<compile_context>
chip_gen: v6e
topology: v6e:2x2x1
jax: 0.10.0
libtpu: 0.0.40
codegen_flags: <defaults>
</compile_context>

<pallas_src>
import math
import functools

import jax
import jax.numpy as jnp
from jax.experimental import pallas as pl
from jax.experimental.pallas import tpu as pltpu

# ---------------------------------------------------------------- config ----
D_MODEL = 32
D_FF = 64
HEADS = 4
BLOCKS = 2
VOCAB = 50
BATCH = 2
SEQ = 8
EPS = 1e-6           # LayerNorm epsilon (nn.LayerNorm-style: biased variance)
NEG_INF = -1e9


# --------------------------------------------------------------- kernel -----
def _layer_norm(x, g, b):
    """LayerNorm over the last axis. x:(R,D), g/b:(1,D)."""
    mu = jnp.mean(x, axis=-1, keepdims=True)
    var = jnp.mean((x - mu) ** 2, axis=-1, keepdims=True)
    return (x - mu) * jax.lax.rsqrt(var + EPS) * g + b


def encoder_kernel(tok_ref, mask_ref, emb_ref, pe_ref,
                   ln1g_ref, ln1b_ref,
                   wq_ref, bq_ref, wk_ref, bk_ref, wv_ref, bv_ref,
                   wo_ref, bo_ref,
                   ln2g_ref, ln2b_ref,
                   w1_ref, b1_ref, w2_ref, b2_ref,
                   lng_ref, lnb_ref,
                   o_ref, *,
                   n_blocks, heads, d_k, batch, seq, vocab_pad, scale):
    bs = batch * seq

    # ---- token embedding as one-hot @ table on the MXU, + scaled PE --------
    tok = tok_ref[...]                                          # (BS, 1) int32
    vocab_iota = jax.lax.broadcasted_iota(jnp.int32, (bs, vocab_pad), 1)
    onehot = (vocab_iota == tok).astype(jnp.float32)            # (BS, Vpad)
    x = jnp.dot(onehot, emb_ref[...], preferred_element_type=jnp.float32)
    x = x * scale + pe_ref[...]                                 # (BS, D)

    # ---- additive attention bias, computed once for the whole forward ------
    bias = jnp.where(mask_ref[...] > 0, 0.0, NEG_INF)           # (B, S, S)

    inv_sqrt_dk = 1.0 / math.sqrt(d_k)

    for nb in range(n_blocks):                                  # static unroll
        ln1g = ln1g_ref[nb]
        ln1b = ln1b_ref[nb]
        ln2g = ln2g_ref[nb]
        ln2b = ln2b_ref[nb]
        bo = bo_ref[nb]
        w1 = w1_ref[nb]
        b1 = b1_ref[nb]
        w2 = w2_ref[nb]
        b2 = b2_ref[nb]
        lo, hi = nb * heads, (nb + 1) * heads
        wq = wq_ref[lo:hi]          # (H, D, dk)
        bq = bq_ref[lo:hi]          # (H, 1, dk)
        wk = wk_ref[lo:hi]
        bk = bk_ref[lo:hi]
        wv = wv_ref[lo:hi]
        bv = bv_ref[lo:hi]
        wo = wo_ref[lo:hi]          # (H, dk, D)

        # ---- self-attention sublayer: x + MHA(LN(x)) ----
        y = _layer_norm(x, ln1g, ln1b)                          # (BS, D)
        d_model = y.shape[-1]
        attn_rows = []
        for b in range(batch):                                  # static unroll
            yb = y[b * seq:(b + 1) * seq]                       # (S, D)
            yb = jnp.broadcast_to(yb[None], (heads, seq, d_model))
            q = jnp.einsum('hsd,hdk->hsk', yb, wq,
                           preferred_element_type=jnp.float32) + bq
            k = jnp.einsum('hsd,hdk->hsk', yb, wk,
                           preferred_element_type=jnp.float32) + bk
            v = jnp.einsum('hsd,hdk->hsk', yb, wv,
                           preferred_element_type=jnp.float32) + bv
            s = jnp.einsum('hqd,hkd->hqk', q, k,
                           preferred_element_type=jnp.float32) * inv_sqrt_dk
            s = s + bias[b]                                     # (H, S, S)
            s = s - jnp.max(s, axis=-1, keepdims=True)
            p = jnp.exp(s)
            p = p / jnp.sum(p, axis=-1, keepdims=True)
            o = jnp.einsum('hqk,hkd->hqd', p, v,
                           preferred_element_type=jnp.float32)  # (H, S, dk)
            # merge heads + output projection, summed over heads (no concat)
            attn_rows.append(jnp.sum(
                jnp.einsum('hsk,hkd->hsd', o, wo,
                           preferred_element_type=jnp.float32), axis=0))
        attn = jnp.concatenate(attn_rows, axis=0)               # (BS, D)
        x = x + attn + bo

        # ---- feed-forward sublayer: x + FFN(LN(x)) ----
        y2 = _layer_norm(x, ln2g, ln2b)
        hidden = jnp.maximum(
            jnp.dot(y2, w1, preferred_element_type=jnp.float32) + b1, 0.0)
        x = x + jnp.dot(hidden, w2, preferred_element_type=jnp.float32) + b2

    # ---- final LayerNorm + single HBM writeback ----
    o_ref[...] = _layer_norm(x, lng_ref[...], lnb_ref[...])
    # TODO(synk): output last-dim is D=32 (<128 lanes) -> masked stores; a
    # lane-dense (B, S*D) slab would need an in-kernel relayout, skipped here.


# -------------------------------------------------------------- wrappers ----
def pack_params(params, heads):
    """One-time layout plumbing: stack per-block params, split heads."""
    d_model = params["emb"].shape[1]
    dk = d_model // heads
    blocks = params["blocks"]

    def head_w(w):   # (D, D) -> (H, D, dk): per-head output columns
        return w.reshape(d_model, heads, dk).transpose(1, 0, 2)

    def head_b(bvec):  # (1, D) -> (H, 1, dk)
        return bvec.reshape(heads, dk)[:, None, :]

    vocab = params["emb"].shape[0]
    v_pad = -(-vocab // 8) * 8
    emb_padded = jnp.zeros((v_pad, d_model), jnp.float32).at[:vocab].set(params["emb"])

    packed = dict(
        emb=emb_padded,
        v_pad=v_pad,
        ln_g=params["ln_g"], ln_b=params["ln_b"],
        ln1g=jnp.stack([blk["ln1_g"] for blk in blocks]),
        ln1b=jnp.stack([blk["ln1_b"] for blk in blocks]),
        wq=jnp.concatenate([head_w(blk["wq"]) for blk in blocks], axis=0),
        bq=jnp.concatenate([head_b(blk["bq"]) for blk in blocks], axis=0),
        wk=jnp.concatenate([head_w(blk["wk"]) for blk in blocks], axis=0),
        bk=jnp.concatenate([head_b(blk["bk"]) for blk in blocks], axis=0),
        wv=jnp.concatenate([head_w(blk["wv"]) for blk in blocks], axis=0),
        bv=jnp.concatenate([head_b(blk["bv"]) for blk in blocks], axis=0),
        wo=jnp.concatenate([blk["wo"].reshape(heads, dk, d_model)
                            for blk in blocks], axis=0),
        bo=jnp.stack([blk["bo"] for blk in blocks]),
        ln2g=jnp.stack([blk["ln2_g"] for blk in blocks]),
        ln2b=jnp.stack([blk["ln2_b"] for blk in blocks]),
        w1=jnp.stack([blk["w1"] for blk in blocks]),
        b1=jnp.stack([blk["b1"] for blk in blocks]),
        w2=jnp.stack([blk["w2"] for blk in blocks]),
        b2=jnp.stack([blk["b2"] for blk in blocks]),
        pe=params["pe"],
        n_blocks=len(blocks),
        d_model=d_model,
        heads=heads,
        d_k=dk,
    )
    return packed


def encoder_forward(tokens, mask, packed):
    B, S = tokens.shape
    d_model = packed["d_model"]

    tok_flat = tokens.reshape(B * S, 1).astype(jnp.int32)
    pe_tiled = jnp.tile(packed["pe"], (B, 1)).astype(jnp.float32)   # (B*S, D)

    kernel = functools.partial(
        encoder_kernel,
        n_blocks=packed["n_blocks"], heads=packed["heads"], d_k=packed["d_k"],
        batch=B, seq=S, vocab_pad=packed["v_pad"], scale=math.sqrt(d_model))

    args = (tok_flat, mask.astype(jnp.float32), packed["emb"], pe_tiled,
            packed["ln1g"], packed["ln1b"],
            packed["wq"], packed["bq"], packed["wk"], packed["bk"],
            packed["wv"], packed["bv"],
            packed["wo"], packed["bo"],
            packed["ln2g"], packed["ln2b"],
            packed["w1"], packed["b1"], packed["w2"], packed["b2"],
            packed["ln_g"], packed["ln_b"])

    vmem_spec = pl.BlockSpec(memory_space=pltpu.MemorySpace.VMEM)
    out = pl.pallas_call(
        kernel,
        out_shape=jax.ShapeDtypeStruct((B * S, d_model), jnp.float32),
        in_specs=[vmem_spec] * len(args),
        out_specs=vmem_spec,
    )(*args)
    return out.reshape(B, S, d_model)


# ----------------------------------------------------- params / reference ---
def make_positional_encoding(seq, d_model):
    pos = jnp.arange(seq, dtype=jnp.float32)[:, None]
    dims = jnp.arange(0, d_model, 2, dtype=jnp.float32)[None, :]
    div = jnp.exp(-dims * (math.log(10000.0) / d_model))
    angles = pos * div
    pe = jnp.zeros((seq, d_model), jnp.float32)
    pe = pe.at[:, 0::2].set(jnp.sin(angles))
    pe = pe.at[:, 1::2].set(jnp.cos(angles))
    return pe


def init_params(key, vocab, d_model, d_ff, blocks):
    ks = jax.random.split(key, 2 + blocks)

    def dense(k, fan_in, fan_out):
        lim = 1.0 / math.sqrt(fan_in)
        return jax.random.uniform(k, (fan_in, fan_out), jnp.float32, -lim, lim)

    params = {
        "emb": jax.random.normal(ks[0], (vocab, d_model), jnp.float32) * 0.02,
        "ln_g": jnp.ones((1, d_model), jnp.float32),
        "ln_b": jnp.zeros((1, d_model), jnp.float32),
        "blocks": [],
    }
    for i in range(blocks):
        bkeys = jax.random.split(ks[2 + i], 6)
        params["blocks"].append(dict(
            ln1_g=jnp.ones((1, d_model), jnp.float32),
            ln1_b=jnp.zeros((1, d_model), jnp.float32),
            wq=dense(bkeys[0], d_model, d_model), bq=jnp.zeros((1, d_model), jnp.float32),
            wk=dense(bkeys[1], d_model, d_model), bk=jnp.zeros((1, d_model), jnp.float32),
            wv=dense(bkeys[2], d_model, d_model), bv=jnp.zeros((1, d_model), jnp.float32),
            wo=dense(bkeys[3], d_model, d_model), bo=jnp.zeros((1, d_model), jnp.float32),
            ln2_g=jnp.ones((1, d_model), jnp.float32),
            ln2_b=jnp.zeros((1, d_model), jnp.float32),
            w1=dense(bkeys[4], d_model, d_ff), b1=jnp.zeros((1, d_ff), jnp.float32),
            w2=dense(bkeys[5], d_ff, d_model), b2=jnp.zeros((1, d_model), jnp.float32),
        ))
    return params


def ref_forward(tokens, mask, params, heads):
    """Pure-JAX reference mirroring the PyTorch forward pass."""
    d_model = params["emb"].shape[1]
    dk = d_model // heads

    def ln(x, g, b):
        mu = jnp.mean(x, -1, keepdims=True)
        var = jnp.mean((x - mu) ** 2, -1, keepdims=True)
        return (x - mu) * jax.lax.rsqrt(var + EPS) * g + b

    x = jnp.take(params["emb"], tokens, axis=0) * math.sqrt(d_model) + params["pe"][None]
    B, S, _ = x.shape
    for blk in params["blocks"]:
        y = ln(x, blk["ln1_g"], blk["ln1_b"])
        q = y @ blk["wq"] + blk["bq"]
        k = y @ blk["wk"] + blk["bk"]
        v = y @ blk["wv"] + blk["bv"]
        split = lambda t: t.reshape(B, S, heads, dk).transpose(0, 2, 1, 3)
        qh, kh, vh = split(q), split(k), split(v)
        s = jnp.einsum("bhqd,bhkd->bhqk", qh, kh) / math.sqrt(dk)
        s = jnp.where(mask[:, None] > 0, s, NEG_INF)
        p = jax.nn.softmax(s, axis=-1)
        o = jnp.einsum("bhqk,bhkd->bhqd", p, vh).transpose(0, 2, 1, 3).reshape(B, S, d_model)
        x = x + o @ blk["wo"] + blk["bo"]
        y = ln(x, blk["ln2_g"], blk["ln2_b"])
        x = x + jnp.maximum(y @ blk["w1"] + blk["b1"], 0.0) @ blk["w2"] + blk["b2"]
    return ln(x, params["ln_g"], params["ln_b"])


# ------------------------------------------------------------------ main ----
if __name__ == "__main__":
    key = jax.random.PRNGKey(0)
    kp, kt = jax.random.split(key)

    params = init_params(kp, VOCAB, D_MODEL, D_FF, BLOCKS)
    params["pe"] = make_positional_encoding(SEQ, D_MODEL)

    tokens = jax.random.randint(kt, (BATCH, SEQ), 0, VOCAB)          # (B, S) int32
    # padding-style attention mask: sequence 0 full length, sequence 1 has 2 pads
    lengths = jnp.array([SEQ, SEQ - 2])
    valid = (jnp.arange(SEQ)[None, :] < lengths[:, None]).astype(jnp.float32)   # (B, S)
    mask = valid[:, None, :] * jnp.ones((1, SEQ, 1), jnp.float32)               # (B, S, S)

    packed = pack_params(params, HEADS)                              # one-time plumbing
    out = encoder_forward(tokens, mask, packed)
    out = jax.block_until_ready(out)

    ref = ref_forward(tokens, mask, params, HEADS)
    assert out.shape == (BATCH, SEQ, D_MODEL)
    assert jnp.allclose(out, ref, atol=1e-4, rtol=1e-4), float(jnp.max(jnp.abs(out - ref)))

    print("KERNEL_OK")
</pallas_src>

<mosaic_0001>
module attributes {stable_mosaic.version = 11 : i64} {
  func.func @encoder_kernel(%arg0: memref<16x1xi32, #tpu.memory_space<vmem>>, %arg1: memref<2x8x8xf32, #tpu.memory_space<vmem>>, %arg2: memref<56x32xf32, #tpu.memory_space<vmem>>, %arg3: memref<16x32xf32, #tpu.memory_space<vmem>>, %arg4: memref<2x1x32xf32, #tpu.memory_space<vmem>>, %arg5: memref<2x1x32xf32, #tpu.memory_space<vmem>>, %arg6: memref<8x32x8xf32, #tpu.memory_space<vmem>>, %arg7: memref<8x1x8xf32, #tpu.memory_space<vmem>>, %arg8: memref<8x32x8xf32, #tpu.memory_space<vmem>>, %arg9: memref<8x1x8xf32, #tpu.memory_space<vmem>>, %arg10: memref<8x32x8xf32, #tpu.memory_space<vmem>>, %arg11: memref<8x1x8xf32, #tpu.memory_space<vmem>>, %arg12: memref<8x8x32xf32, #tpu.memory_space<vmem>>, %arg13: memref<2x1x32xf32, #tpu.memory_space<vmem>>, %arg14: memref<2x1x32xf32, #tpu.memory_space<vmem>>, %arg15: memref<2x1x32xf32, #tpu.memory_space<vmem>>, %arg16: memref<2x32x64xf32, #tpu.memory_space<vmem>>, %arg17: memref<2x1x64xf32, #tpu.memory_space<vmem>>, %arg18: memref<2x64x32xf32, #tpu.memory_space<vmem>>, %arg19: memref<2x1x32xf32, #tpu.memory_space<vmem>>, %arg20: memref<1x32xf32, #tpu.memory_space<vmem>>, %arg21: memref<1x32xf32, #tpu.memory_space<vmem>>, %arg22: memref<16x32xf32, #tpu.memory_space<vmem>>) attributes {dimension_semantics = [], scalar_prefetch = 0 : i64, scratch_operands = 0 : i64, tpu.core_type = #tpu.core_type<tc>} {
    %c0 = arith.constant 0 : index
    %c0_0 = arith.constant 0 : index
    %0 = vector.load %arg0[%c0, %c0_0] : memref<16x1xi32, #tpu.memory_space<vmem>>, vector<16x1xi32>
    %1 = tpu.iota {dimensions = array<i32: 1>} : vector<16x56xi32>
    %2 = vector.broadcast %0 : vector<16x1xi32> to vector<16x56xi32>
    %3 = arith.cmpi eq, %1, %2 : vector<16x56xi32>
    %4 = arith.extui %3 : vector<16x56xi1> to vector<16x56xi32>
    %5 = arith.sitofp %4 : vector<16x56xi32> to vector<16x56xf32>
    %c0_1 = arith.constant 0 : index
    %c0_2 = arith.constant 0 : index
    %6 = vector.load %arg2[%c0_1, %c0_2] : memref<56x32xf32, #tpu.memory_space<vmem>>, vector<56x32xf32>
    %cst = arith.constant dense<0.000000e+00> : vector<16x32xf32>
    %7 = tpu.matmul %5, %6, %cst {dimension_numbers = #tpu.dot_dimension_numbers<[1], [0], [0], [1], [0, 0, 1, 1], [], []>} : vector<16x56xf32>, vector<56x32xf32>, vector<16x32xf32> -> vector<16x32xf32>
    %cst_3 = arith.constant 5.65685415 : f32
    %8 = vector.broadcast %cst_3 : f32 to vector<16x32xf32>
    %9 = arith.mulf %7, %8 : vector<16x32xf32>
    %c0_4 = arith.constant 0 : index
    %c0_5 = arith.constant 0 : index
    %10 = vector.load %arg3[%c0_4, %c0_5] : memref<16x32xf32, #tpu.memory_space<vmem>>, vector<16x32xf32>
    %11 = arith.addf %9, %10 : vector<16x32xf32>
    %c0_6 = arith.constant 0 : index
    %c0_7 = arith.constant 0 : index
    %c0_8 = arith.constant 0 : index
    %12 = vector.load %arg1[%c0_6, %c0_7, %c0_8] : memref<2x8x8xf32, #tpu.memory_space<vmem>>, vector<2x8x8xf32>
    %cst_9 = arith.constant 0.000000e+00 : f32
    %13 = vector.broadcast %cst_9 : f32 to vector<2x8x8xf32>
    %14 = arith.cmpf ogt, %12, %13 : vector<2x8x8xf32>
    %cst_10 = arith.constant 0.000000e+00 : f32
    %cst_11 = arith.constant -1.000000e+09 : f32
    %15 = vector.broadcast %cst_10 : f32 to vector<2x8x8xf32>
    %16 = vector.broadcast %cst_11 : f32 to vector<2x8x8xf32>
    %17 = arith.select %14, %15, %16 : vector<2x8x8xi1>, vector<2x8x8xf32>
    %c0_12 = arith.constant 0 : index
    %c0_13 = arith.constant 0 : index
    %c0_14 = arith.constant 0 : index
    %18 = vector.load %arg4[%c0_12, %c0_13, %c0_14] : memref<2x1x32xf32, #tpu.memory_space<vmem>>, vector<1x1x32xf32>
    %19 = vector.shape_cast %18 : vector<1x1x32xf32> to vector<1x32xf32>
    %c0_15 = arith.constant 0 : index
    %c0_16 = arith.constant 0 : index
    %c0_17 = arith.constant 0 : index
    %20 = vector.load %arg5[%c0_15, %c0_16, %c0_17] : memref<2x1x32xf32, #tpu.memory_space<vmem>>, vector<1x1x32xf32>
    %21 = vector.shape_cast %20 : vector<1x1x32xf32> to vector<1x32xf32>
    %c0_18 = arith.constant 0 : index
    %c0_19 = arith.constant 0 : index
    %c0_20 = arith.constant 0 : index
    %22 = vector.load %arg14[%c0_18, %c0_19, %c0_20] : memref<2x1x32xf32, #tpu.memory_space<vmem>>, vector<1x1x32xf32>
    %23 = vector.shape_cast %22 : vector<1x1x32xf32> to vector<1x32xf32>
    %c0_21 = arith.constant 0 : index
    %c0_22 = arith.constant 0 : index
    %c0_23 = arith.constant 0 : index
    %24 = vector.load %arg15[%c0_21, %c0_22, %c0_23] : memref<2x1x32xf32, #tpu.memory_space<vmem>>, vector<1x1x32xf32>
    %25 = vector.shape_cast %24 : vector<1x1x32xf32> to vector<1x32xf32>
    %c0_24 = arith.constant 0 : index
    %c0_25 = arith.constant 0 : index
    %c0_26 = arith.constant 0 : index
    %26 = vector.load %arg13[%c0_24, %c0_25, %c0_26] : memref<2x1x32xf32, #tpu.memory_space<vmem>>, vector<1x1x32xf32>
    %27 = vector.shape_cast %26 : vector<1x1x32xf32> to vector<1x32xf32>
    %c0_27 = arith.constant 0 : index
    %c0_28 = arith.constant 0 : index
    %c0_29 = arith.constant 0 : index
    %28 = vector.load %arg16[%c0_27, %c0_28, %c0_29] : memref<2x32x64xf32, #tpu.memory_space<vmem>>, vector<1x32x64xf32>
    %29 = vector.shape_cast %28 : vector<1x32x64xf32> to vector<32x64xf32>
    %c0_30 = arith.constant 0 : index
    %c0_31 = arith.constant 0 : index
    %c0_32 = arith.constant 0 : index
    %30 = vector.load %arg17[%c0_30, %c0_31, %c0_32] : memref<2x1x64xf32, #tpu.memory_space<vmem>>, vector<1x1x64xf32>
    %31 = vector.shape_cast %30 : vector<1x1x64xf32> to vector<1x64xf32>
    %c0_33 = arith.constant 0 : index
    %c0_34 = arith.constant 0 : index
    %c0_35 = arith.constant 0 : index
    %32 = vector.load %arg18[%c0_33, %c0_34, %c0_35] : memref<2x64x32xf32, #tpu.memory_space<vmem>>, vector<1x64x32xf32>
    %33 = vector.shape_cast %32 : vector<1x64x32xf32> to vector<64x32xf32>
    %c0_36 = arith.constant 0 : index
    %c0_37 = arith.constant 0 : index
    %c0_38 = arith.constant 0 : index
    %34 = vector.load %arg19[%c0_36, %c0_37, %c0_38] : memref<2x1x32xf32, #tpu.memory_space<vmem>>, vector<1x1x32xf32>
    %35 = vector.shape_cast %34 : vector<1x1x32xf32> to vector<1x32xf32>
    %c0_39 = arith.constant 0 : index
    %c0_40 = arith.constant 0 : index
    %c0_41 = arith.constant 0 : index
    %36 = vector.load %arg6[%c0_39, %c0_40, %c0_41] : memref<8x32x8xf32, #tpu.memory_space<vmem>>, vector<4x32x8xf32>
    %c0_42 = arith.constant 0 : index
    %c0_43 = arith.constant 0 : index
    %c0_44 = arith.constant 0 : index
    %37 = vector.load %arg7[%c0_42, %c0_43, %c0_44] : memref<8x1x8xf32, #tpu.memory_space<vmem>>, vector<4x1x8xf32>
    %c0_45 = arith.constant 0 : index
    %c0_46 = arith.constant 0 : index
    %c0_47 = arith.constant 0 : index
    %38 = vector.load %arg8[%c0_45, %c0_46, %c0_47] : memref<8x32x8xf32, #tpu.memory_space<vmem>>, vector<4x32x8xf32>
    %c0_48 = arith.constant 0 : index
    %c0_49 = arith.constant 0 : index
    %c0_50 = arith.constant 0 : index
    %39 = vector.load %arg9[%c0_48, %c0_49, %c0_50] : memref<8x1x8xf32, #tpu.memory_space<vmem>>, vector<4x1x8xf32>
    %c0_51 = arith.constant 0 : index
    %c0_52 = arith.constant 0 : index
    %c0_53 = arith.constant 0 : index
    %40 = vector.load %arg10[%c0_51, %c0_52, %c0_53] : memref<8x32x8xf32, #tpu.memory_space<vmem>>, vector<4x32x8xf32>
    %c0_54 = arith.constant 0 : index
    %c0_55 = arith.constant 0 : index
    %c0_56 = arith.constant 0 : index
    %41 = vector.load %arg11[%c0_54, %c0_55, %c0_56] : memref<8x1x8xf32, #tpu.memory_space<vmem>>, vector<4x1x8xf32>
    %c0_57 = arith.constant 0 : index
    %c0_58 = arith.constant 0 : index
    %c0_59 = arith.constant 0 : index
    %42 = vector.load %arg12[%c0_57, %c0_58, %c0_59] : memref<8x8x32xf32, #tpu.memory_space<vmem>>, vector<4x8x32xf32>
    %cst_60 = arith.constant dense<0.000000e+00> : vector<16xf32>
    %43 = vector.multi_reduction <add>, %11, %cst_60 [1] : vector<16x32xf32> to vector<16xf32>
    %44 = vector.shape_cast %43 : vector<16xf32> to vector<16x1xf32>
    %cst_61 = arith.constant 3.200000e+01 : f32
    %45 = vector.broadcast %cst_61 : f32 to vector<16x1xf32>
    %46 = arith.divf %44, %45 : vector<16x1xf32>
    %47 = vector.broadcast %46 : vector<16x1xf32> to vector<16x32xf32>
    %48 = arith.subf %11, %47 : vector<16x32xf32>
    %49 = arith.mulf %48, %48 : vector<16x32xf32>
    %cst_62 = arith.constant dense<0.000000e+00> : vector<16xf32>
    %50 = vector.multi_reduction <add>, %49, %cst_62 [1] : vector<16x32xf32> to vector<16xf32>
    %51 = vector.shape_cast %50 : vector<16xf32> to vector<16x1xf32>
    %cst_63 = arith.constant 3.200000e+01 : f32
    %52 = vector.broadcast %cst_63 : f32 to vector<16x1xf32>
    %53 = arith.divf %51, %52 : vector<16x1xf32>
    %54 = vector.broadcast %46 : vector<16x1xf32> to vector<16x32xf32>
    %55 = arith.subf %11, %54 : vector<16x32xf32>
    %cst_64 = arith.constant 9.99999997E-7 : f32
    %56 = vector.broadcast %cst_64 : f32 to vector<16x1xf32>
    %57 = arith.addf %53, %56 : vector<16x1xf32>
    %58 = math.rsqrt %57 : vector<16x1xf32>
    %59 = vector.broadcast %58 : vector<16x1xf32> to vector<16x32xf32>
    %60 = arith.mulf %55, %59 : vector<16x32xf32>
    %61 = vector.broadcast %19 : vector<1x32xf32> to vector<16x32xf32>
    %62 = arith.mulf %60, %61 : vector<16x32xf32>
    %63 = vector.broadcast %21 : vector<1x32xf32> to vector<16x32xf32>
    %64 = arith.addf %62, %63 : vector<16x32xf32>
    %65 = vector.extract_strided_slice %64 {offsets = [0, 0], sizes = [8, 32], strides = [1, 1]} : vector<16x32xf32> to vector<8x32xf32>
    %66 = vector.shape_cast %65 : vector<8x32xf32> to vector<1x8x32xf32>
    %67 = vector.shape_cast %66 : vector<1x8x32xf32> to vector<1x8x32xf32>
    %68 = vector.broadcast %67 : vector<1x8x32xf32> to vector<4x8x32xf32>
    "tpu.trace_start"() <{level = 10 : i32, message = "hsd,hdk->hsk"}> : () -> ()
    %cst_65 = arith.constant dense<0.000000e+00> : vector<4x8x8xf32>
    %69 = tpu.matmul %68, %36, %cst_65 {dimension_numbers = #tpu.dot_dimension_numbers<[2], [1], [1], [2], [0, 0, 0, 1, 1, 2], [0], [0]>} : vector<4x8x32xf32>, vector<4x32x8xf32>, vector<4x8x8xf32> -> vector<4x8x8xf32>
    "tpu.trace_stop"() : () -> ()
    %70 = vector.broadcast %37 : vector<4x1x8xf32> to vector<4x8x8xf32>
    %71 = arith.addf %69, %70 : vector<4x8x8xf32>
    "tpu.trace_start"() <{level = 10 : i32, message = "hsd,hdk->hsk"}> : () -> ()
    %cst_66 = arith.constant dense<0.000000e+00> : vector<4x8x8xf32>
    %72 = tpu.matmul %68, %38, %cst_66 {dimension_numbers = #tpu.dot_dimension_numbers<[2], [1], [1], [2], [0, 0, 0, 1, 1, 2], [0], [0]>} : vector<4x8x32xf32>, vector<4x32x8xf32>, vector<4x8x8xf32> -> vector<4x8x8xf32>
    "tpu.trace_stop"() : () -> ()
    %73 = vector.broadcast %39 : vector<4x1x8xf32> to vector<4x8x8xf32>
    %74 = arith.addf %72, %73 : vector<4x8x8xf32>
    "tpu.trace_start"() <{level = 10 : i32, message = "hsd,hdk->hsk"}> : () -> ()
    %cst_67 = arith.constant dense<0.000000e+00> : vector<4x8x8xf32>
    %75 = tpu.matmul %68, %40, %cst_67 {dimension_numbers = #tpu.dot_dimension_numbers<[2], [1], [1], [2], [0, 0, 0, 1, 1, 2], [0], [0]>} : vector<4x8x32xf32>, vector<4x32x8xf32>, vector<4x8x8xf32> -> vector<4x8x8xf32>
    "tpu.trace_stop"() : () -> ()
    %76 = vector.broadcast %41 : vector<4x1x8xf32> to vector<4x8x8xf32>
    %77 = arith.addf %75, %76 : vector<4x8x8xf32>
    "tpu.trace_start"() <{level = 10 : i32, message = "hqd,hkd->hqk"}> : () -> ()
    %cst_68 = arith.constant dense<0.000000e+00> : vector<4x8x8xf32>
    %78 = tpu.matmul %71, %74, %cst_68 {dimension_numbers = #tpu.dot_dimension_numbers<[2], [2], [1], [1], [0, 0, 0, 1, 1, 1], [0], [0]>} : vector<4x8x8xf32>, vector<4x8x8xf32>, vector<4x8x8xf32> -> vector<4x8x8xf32>
    "tpu.trace_stop"() : () -> ()
    %cst_69 = arith.constant 0.353553385 : f32
    %79 = vector.broadcast %cst_69 : f32 to vector<4x8x8xf32>
    %80 = arith.mulf %78, %79 : vector<4x8x8xf32>
    %81 = vector.extract_strided_slice %17 {offsets = [0, 0, 0], sizes = [1, 8, 8], strides = [1, 1, 1]} : vector<2x8x8xf32> to vector<1x8x8xf32>
    %82 = vector.shape_cast %81 : vector<1x8x8xf32> to vector<8x8xf32>
    %83 = vector.shape_cast %82 : vector<8x8xf32> to vector<1x8x8xf32>
    %84 = vector.broadcast %83 : vector<1x8x8xf32> to vector<4x8x8xf32>
    %85 = arith.addf %80, %84 : vector<4x8x8xf32>
    %cst_70 = arith.constant dense<0xFF800000> : vector<4x8xf32>
    %86 = vector.multi_reduction <maximumf>, %85, %cst_70 [2] : vector<4x8x8xf32> to vector<4x8xf32>
    %87 = vector.shape_cast %86 : vector<4x8xf32> to vector<4x8x1xf32>
    %88 = vector.broadcast %87 : vector<4x8x1xf32> to vector<4x8x8xf32>
    %89 = arith.subf %85, %88 : vector<4x8x8xf32>
    %90 = math.exp %89 : vector<4x8x8xf32>
    %cst_71 = arith.constant dense<0.000000e+00> : vector<4x8xf32>
    %91 = vector.multi_reduction <add>, %90, %cst_71 [2] : vector<4x8x8xf32> to vector<4x8xf32>
    %92 = vector.shape_cast %91 : vector<4x8xf32> to vector<4x8x1xf32>
    %93 = vector.broadcast %92 : vector<4x8x1xf32> to vector<4x8x8xf32>
    %94 = arith.divf %90, %93 : vector<4x8x8xf32>
    "tpu.trace_start"() <{level = 10 : i32, message = "hqk,hkd->hqd"}> : () -> ()
    %cst_72 = arith.constant dense<0.000000e+00> : vector<4x8x8xf32>
    %95 = tpu.matmul %94, %77, %cst_72 {dimension_numbers = #tpu.dot_dimension_numbers<[2], [1], [1], [2], [0, 0, 0, 1, 1, 2], [0], [0]>} : vector<4x8x8xf32>, vector<4x8x8xf32>, vector<4x8x8xf32> -> vector<4x8x8xf32>
    "tpu.trace_stop"() : () -> ()
    "tpu.trace_start"() <{level = 10 : i32, message = "hsk,hkd->hsd"}> : () -> ()
    %cst_73 = arith.constant dense<0.000000e+00> : vector<4x8x32xf32>
    %96 = tpu.matmul %95, %42, %cst_73 {dimension_numbers = #tpu.dot_dimension_numbers<[2], [1], [1], [2], [0, 0, 0, 1, 1, 2], [0], [0]>} : vector<4x8x8xf32>, vector<4x8x32xf32>, vector<4x8x32xf32> -> vector<4x8x32xf32>
    "tpu.trace_stop"() : () -> ()
    %cst_74 = arith.constant dense<0.000000e+00> : vector<8x32xf32>
    %97 = vector.multi_reduction <add>, %96, %cst_74 [0] : vector<4x8x32xf32> to vector<8x32xf32>
    %98 = vector.extract_strided_slice %64 {offsets = [8, 0], sizes = [8, 32], strides = [1, 1]} : vector<16x32xf32> to vector<8x32xf32>
    %99 = vector.shape_cast %98 : vector<8x32xf32> to vector<1x8x32xf32>
    %100 = vector.shape_cast %99 : vector<1x8x32xf32> to vector<1x8x32xf32>
    %101 = vector.broadcast %100 : vector<1x8x32xf32> to vector<4x8x32xf32>
    "tpu.trace_start"() <{level = 10 : i32, message = "hsd,hdk->hsk"}> : () -> ()
    %cst_75 = arith.constant dense<0.000000e+00> : vector<4x8x8xf32>
    %102 = tpu.matmul %101, %36, %cst_75 {dimension_numbers = #tpu.dot_dimension_numbers<[2], [1], [1], [2], [0, 0, 0, 1, 1, 2], [0], [0]>} : vector<4x8x32xf32>, vector<4x32x8xf32>, vector<4x8x8xf32> -> vector<4x8x8xf32>
    "tpu.trace_stop"() : () -> ()
    %103 = vector.broadcast %37 : vector<4x1x8xf32> to vector<4x8x8xf32>
    %104 = arith.addf %102, %103 : vector<4x8x8xf32>
    "tpu.trace_start"() <{level = 10 : i32, message = "hsd,hdk->hsk"}> : () -> ()
    %cst_76 = arith.constant dense<0.000000e+00> : vector<4x8x8xf32>
    %105 = tpu.matmul %101, %38, %cst_76 {dimension_numbers = #tpu.dot_dimension_numbers<[2], [1], [1], [2], [0, 0, 0, 1, 1, 2], [0], [0]>} : vector<4x8x32xf32>, vector<4x32x8xf32>, vector<4x8x8xf32> -> vector<4x8x8xf32>
    "tpu.trace_stop"() : () -> ()
    %106 = vector.broadcast %39 : vector<4x1x8xf32> to vector<4x8x8xf32>
    %107 = arith.addf %105, %106 : vector<4x8x8xf32>
    "tpu.trace_start"() <{level = 10 : i32, message = "hsd,hdk->hsk"}> : () -> ()
    %cst_77 = arith.constant dense<0.000000e+00> : vector<4x8x8xf32>
    %108 = tpu.matmul %101, %40, %cst_77 {dimension_numbers = #tpu.dot_dimension_numbers<[2], [1], [1], [2], [0, 0, 0, 1, 1, 2], [0], [0]>} : vector<4x8x32xf32>, vector<4x32x8xf32>, vector<4x8x8xf32> -> vector<4x8x8xf32>
    "tpu.trace_stop"() : () -> ()
    %109 = vector.broadcast %41 : vector<4x1x8xf32> to vector<4x8x8xf32>
    %110 = arith.addf %108, %109 : vector<4x8x8xf32>
    "tpu.trace_start"() <{level = 10 : i32, message = "hqd,hkd->hqk"}> : () -> ()
    %cst_78 = arith.constant dense<0.000000e+00> : vector<4x8x8xf32>
    %111 = tpu.matmul %104, %107, %cst_78 {dimension_numbers = #tpu.dot_dimension_numbers<[2], [2], [1], [1], [0, 0, 0, 1, 1, 1], [0], [0]>} : vector<4x8x8xf32>, vector<4x8x8xf32>, vector<4x8x8xf32> -> vector<4x8x8xf32>
    "tpu.trace_stop"() : () -> ()
    %cst_79 = arith.constant 0.353553385 : f32
    %112 = vector.broadcast %cst_79 : f32 to vector<4x8x8xf32>
    %113 = arith.mulf %111, %112 : vector<4x8x8xf32>
    %114 = vector.extract_strided_slice %17 {offsets = [1, 0, 0], sizes = [1, 8, 8], strides = [1, 1, 1]} : vector<2x8x8xf32> to vector<1x8x8xf32>
    %115 = vector.shape_cast %114 : vector<1x8x8xf32> to vector<8x8xf32>
    %116 = vector.shape_cast %115 : vector<8x8xf32> to vector<1x8x8xf32>
    %117 = vector.broadcast %116 : vector<1x8x8xf32> to vector<4x8x8xf32>
    %118 = arith.addf %113, %117 : vector<4x8x8xf32>
    %cst_80 = arith.constant dense<0xFF800000> : vector<4x8xf32>
    %119 = vector.multi_reduction <maximumf>, %118, %cst_80 [2] : vector<4x8x8xf32> to vector<4x8xf32>
    %120 = vector.shape_cast %119 : vector<4x8xf32> to vector<4x8x1xf32>
    %121 = vector.broadcast %120 : vector<4x8x1xf32> to vector<4x8x8xf32>
    %122 = arith.subf %118, %121 : vector<4x8x8xf32>
    %123 = math.exp %122 : vector<4x8x8xf32>
    %cst_81 = arith.constant dense<0.000000e+00> : vector<4x8xf32>
    %124 = vector.multi_reduction <add>, %123, %cst_81 [2] : vector<4x8x8xf32> to vector<4x8xf32>
    %125 = vector.shape_cast %124 : vector<4x8xf32> to vector<4x8x1xf32>
    %126 = vector.broadcast %125 : vector<4x8x1xf32> to vector<4x8x8xf32>
    %127 = arith.divf %123, %126 : vector<4x8x8xf32>
    "tpu.trace_start"() <{level = 10 : i32, message = "hqk,hkd->hqd"}> : () -> ()
    %cst_82 = arith.constant dense<0.000000e+00> : vector<4x8x8xf32>
    %128 = tpu.matmul %127, %110, %cst_82 {dimension_numbers = #tpu.dot_dimension_numbers<[2], [1], [1], [2], [0, 0, 0, 1, 1, 2], [0], [0]>} : vector<4x8x8xf32>, vector<4x8x8xf32>, vector<4x8x8xf32> -> vector<4x8x8xf32>
    "tpu.trace_stop"() : () -> ()
    "tpu.trace_start"() <{level = 10 : i32, message = "hsk,hkd->hsd"}> : () -> ()
    %cst_83 = arith.constant dense<0.000000e+00> : vector<4x8x32xf32>
    %129 = tpu.matmul %128, %42, %cst_83 {dimension_numbers = #tpu.dot_dimension_numbers<[2], [1], [1], [2], [0, 0, 0, 1, 1, 2], [0], [0]>} : vector<4x8x8xf32>, vector<4x8x32xf32>, vector<4x8x32xf32> -> vector<4x8x32xf32>
    "tpu.trace_stop"() : () -> ()
    %cst_84 = arith.constant dense<0.000000e+00> : vector<8x32xf32>
    %130 = vector.multi_reduction <add>, %129, %cst_84 [0] : vector<4x8x32xf32> to vector<8x32xf32>
    %131 = tpu.concatenate %97, %130 in 0 : vector<8x32xf32>, vector<8x32xf32> -> vector<16x32xf32>
    %132 = arith.addf %11, %131 : vector<16x32xf32>
    %133 = vector.broadcast %27 : vector<1x32xf32> to vector<16x32xf32>
    %134 = arith.addf %132, %133 : vector<16x32xf32>
    %cst_85 = arith.constant dense<0.000000e+00> : vector<16xf32>
    %135 = vector.multi_reduction <add>, %134, %cst_85 [1] : vector<16x32xf32> to vector<16xf32>
    %136 = vector.shape_cast %135 : vector<16xf32> to vector<16x1xf32>
    %cst_86 = arith.constant 3.200000e+01 : f32
    %137 = vector.broadcast %cst_86 : f32 to vector<16x1xf32>
    %138 = arith.divf %136, %137 : vector<16x1xf32>
    %139 = vector.broadcast %138 : vector<16x1xf32> to vector<16x32xf32>
    %140 = arith.subf %134, %139 : vector<16x32xf32>
    %141 = arith.mulf %140, %140 : vector<16x32xf32>
    %cst_87 = arith.constant dense<0.000000e+00> : vector<16xf32>
    %142 = vector.multi_reduction <add>, %141, %cst_87 [1] : vector<16x32xf32> to vector<16xf32>
    %143 = vector.shape_cast %142 : vector<16xf32> to vector<16x1xf32>
    %cst_88 = arith.constant 3.200000e+01 : f32
    %144 = vector.broadcast %cst_88 : f32 to vector<16x1xf32>
    %145 = arith.divf %143, %144 : vector<16x1xf32>
    %146 = vector.broadcast %138 : vector<16x1xf32> to vector<16x32xf32>
    %147 = arith.subf %134, %146 : vector<16x32xf32>
    %cst_89 = arith.constant 9.99999997E-7 : f32
    %148 = vector.broadcast %cst_89 : f32 to vector<16x1xf32>
    %149 = arith.addf %145, %148 : vector<16x1xf32>
    %150 = math.rsqrt %149 : vector<16x1xf32>
    %151 = vector.broadcast %150 : vector<16x1xf32> to vector<16x32xf32>
    %152 = arith.mulf %147, %151 : vector<16x32xf32>
    %153 = vector.broadcast %23 : vector<1x32xf32> to vector<16x32xf32>
    %154 = arith.mulf %152, %153 : vector<16x32xf32>
    %155 = vector.broadcast %25 : vector<1x32xf32> to vector<16x32xf32>
    %156 = arith.addf %154, %155 : vector<16x32xf32>
    %cst_90 = arith.constant dense<0.000000e+00> : vector<16x64xf32>
    %157 = tpu.matmul %156, %29, %cst_90 {dimension_numbers = #tpu.dot_dimension_numbers<[1], [0], [0], [1], [0, 0, 1, 1], [], []>} : vector<16x32xf32>, vector<32x64xf32>, vector<16x64xf32> -> vector<16x64xf32>
    %158 = vector.broadcast %31 : vector<1x64xf32> to vector<16x64xf32>
    %159 = arith.addf %157, %158 : vector<16x64xf32>
    %cst_91 = arith.constant 0.000000e+00 : f32
    %160 = vector.broadcast %cst_91 : f32 to vector<16x64xf32>
    %161 = arith.maximumf %159, %160 : vector<16x64xf32>
    %cst_92 = arith.constant dense<0.000000e+00> : vector<16x32xf32>
    %162 = tpu.matmul %161, %33, %cst_92 {dimension_numbers = #tpu.dot_dimension_numbers<[1], [0], [0], [1], [0, 0, 1, 1], [], []>} : vector<16x64xf32>, vector<64x32xf32>, vector<16x32xf32> -> vector<16x32xf32>
    %163 = arith.addf %134, %162 : vector<16x32xf32>
    %164 = vector.broadcast %35 : vector<1x32xf32> to vector<16x32xf32>
    %165 = arith.addf %163, %164 : vector<16x32xf32>
    %c1 = arith.constant 1 : index
    %c0_93 = arith.constant 0 : index
    %c0_94 = arith.constant 0 : index
    %166 = vector.load %arg4[%c1, %c0_93, %c0_94] : memref<2x1x32xf32, #tpu.memory_space<vmem>>, vector<1x1x32xf32>
    %167 = vector.shape_cast %166 : vector<1x1x32xf32> to vector<1x32xf32>
    %c1_95 = arith.constant 1 : index
    %c0_96 = arith.constant 0 : index
    %c0_97 = arith.constant 0 : index
    %168 = vector.load %arg5[%c1_95, %c0_96, %c0_97] : memref<2x1x32xf32, #tpu.memory_space<vmem>>, vector<1x1x32xf32>
    %169 = vector.shape_cast %168 : vector<1x1x32xf32> to vector<1x32xf32>
    %c1_98 = arith.constant 1 : index
    %c0_99 = arith.constant 0 : index
    %c0_100 = arith.constant 0 : index
    %170 = vector.load %arg14[%c1_98, %c0_99, %c0_100] : memref<2x1x32xf32, #tpu.memory_space<vmem>>, vector<1x1x32xf32>
    %171 = vector.shape_cast %170 : vector<1x1x32xf32> to vector<1x32xf32>
    %c1_101 = arith.constant 1 : index
    %c0_102 = arith.constant 0 : index
    %c0_103 = arith.constant 0 : index
    %172 = vector.load %arg15[%c1_101, %c0_102, %c0_103] : memref<2x1x32xf32, #tpu.memory_space<vmem>>, vector<1x1x32xf32>
    %173 = vector.shape_cast %172 : vector<1x1x32xf32> to vector<1x32xf32>
    %c1_104 = arith.constant 1 : index
    %c0_105 = arith.constant 0 : index
    %c0_106 = arith.constant 0 : index
    %174 = vector.load %arg13[%c1_104, %c0_105, %c0_106] : memref<2x1x32xf32, #tpu.memory_space<vmem>>, vector<1x1x32xf32>
    %175 = vector.shape_cast %174 : vector<1x1x32xf32> to vector<1x32xf32>
    %c1_107 = arith.constant 1 : index
    %c0_108 = arith.constant 0 : index
    %c0_109 = arith.constant 0 : index
    %176 = vector.load %arg16[%c1_107, %c0_108, %c0_109] : memref<2x32x64xf32, #tpu.memory_space<vmem>>, vector<1x32x64xf32>
    %177 = vector.shape_cast %176 : vector<1x32x64xf32> to vector<32x64xf32>
    %c1_110 = arith.constant 1 : index
    %c0_111 = arith.constant 0 : index
    %c0_112 = arith.constant 0 : index
    %178 = vector.load %arg17[%c1_110, %c0_111, %c0_112] : memref<2x1x64xf32, #tpu.memory_space<vmem>>, vector<1x1x64xf32>
    %179 = vector.shape_cast %178 : vector<1x1x64xf32> to vector<1x64xf32>
    %c1_113 = arith.constant 1 : index
    %c0_114 = arith.constant 0 : index
    %c0_115 = arith.constant 0 : index
    %180 = vector.load %arg18[%c1_113, %c0_114, %c0_115] : memref<2x64x32xf32, #tpu.memory_space<vmem>>, vector<1x64x32xf32>
    %181 = vector.shape_cast %180 : vector<1x64x32xf32> to vector<64x32xf32>
    %c1_116 = arith.constant 1 : index
    %c0_117 = arith.constant 0 : index
    %c0_118 = arith.constant 0 : index
    %182 = vector.load %arg19[%c1_116, %c0_117, %c0_118] : memref<2x1x32xf32, #tpu.memory_space<vmem>>, vector<1x1x32xf32>
    %183 = vector.shape_cast %182 : vector<1x1x32xf32> to vector<1x32xf32>
    %c4 = arith.constant 4 : index
    %c0_119 = arith.constant 0 : index
    %c0_120 = arith.constant 0 : index
    %184 = vector.load %arg6[%c4, %c0_119, %c0_120] : memref<8x32x8xf32, #tpu.memory_space<vmem>>, vector<4x32x8xf32>
    %c4_121 = arith.constant 4 : index
    %c0_122 = arith.constant 0 : index
    %c0_123 = arith.constant 0 : index
    %185 = vector.load %arg7[%c4_121, %c0_122, %c0_123] : memref<8x1x8xf32, #tpu.memory_space<vmem>>, vector<4x1x8xf32>
    %c4_124 = arith.constant 4 : index
    %c0_125 = arith.constant 0 : index
    %c0_126 = arith.constant 0 : index
    %186 = vector.load %arg8[%c4_124, %c0_125, %c0_126] : memref<8x32x8xf32, #tpu.memory_space<vmem>>, vector<4x32x8xf32>
    %c4_127 = arith.constant 4 : index
    %c0_128 = arith.constant 0 : index
    %c0_129 = arith.constant 0 : index
    %187 = vector.load %arg9[%c4_127, %c0_128, %c0_129] : memref<8x1x8xf32, #tpu.memory_space<vmem>>, vector<4x1x8xf32>
    %c4_130 = arith.constant 4 : index
    %c0_131 = arith.constant 0 : index
    %c0_132 = arith.constant 0 : index
    %188 = vector.load %arg10[%c4_130, %c0_131, %c0_132] : memref<8x32x8xf32, #tpu.memory_space<vmem>>, vector<4x32x8xf32>
    %c4_133 = arith.constant 4 : index
    %c0_134 = arith.constant 0 : index
    %c0_135 = arith.constant 0 : index
    %189 = vector.load %arg11[%c4_133, %c0_134, %c0_135] : memref<8x1x8xf32, #tpu.memory_space<vmem>>, vector<4x1x8xf32>
    %c4_136 = arith.constant 4 : index
    %c0_137 = arith.constant 0 : index
    %c0_138 = arith.constant 0 : index
    %190 = vector.load %arg12[%c4_136, %c0_137, %c0_138] : memref<8x8x32xf32, #tpu.memory_space<vmem>>, vector<4x8x32xf32>
    %cst_139 = arith.constant dense<0.000000e+00> : vector<16xf32>
    %191 = vector.multi_reduction <add>, %165, %cst_139 [1] : vector<16x32xf32> to vector<16xf32>
    %192 = vector.shape_cast %191 : vector<16xf32> to vector<16x1xf32>
    %cst_140 = arith.constant 3.200000e+01 : f32
    %193 = vector.broadcast %cst_140 : f32 to vector<16x1xf32>
    %194 = arith.divf %192, %193 : vector<16x1xf32>
    %195 = vector.broadcast %194 : vector<16x1xf32> to vector<16x32xf32>
    %196 = arith.subf %165, %195 : vector<16x32xf32>
    %197 = arith.mulf %196, %196 : vector<16x32xf32>
    %cst_141 = arith.constant dense<0.000000e+00> : vector<16xf32>
    %198 = vector.multi_reduction <add>, %197, %cst_141 [1] : vector<16x32xf32> to vector<16xf32>
    %199 = vector.shape_cast %198 : vector<16xf32> to vector<16x1xf32>
    %cst_142 = arith.constant 3.200000e+01 : f32
    %200 = vector.broadcast %cst_142 : f32 to vector<16x1xf32>
    %201 = arith.divf %199, %200 : vector<16x1xf32>
    %202 = vector.broadcast %194 : vector<16x1xf32> to vector<16x32xf32>
    %203 = arith.subf %165, %202 : vector<16x32xf32>
    %cst_143 = arith.constant 9.99999997E-7 : f32
    %204 = vector.broadcast %cst_143 : f32 to vector<16x1xf32>
    %205 = arith.addf %201, %204 : vector<16x1xf32>
    %206 = math.rsqrt %205 : vector<16x1xf32>
    %207 = vector.broadcast %206 : vector<16x1xf32> to vector<16x32xf32>
    %208 = arith.mulf %203, %207 : vector<16x32xf32>
    %209 = vector.broadcast %167 : vector<1x32xf32> to vector<16x32xf32>
    %210 = arith.mulf %208, %209 : vector<16x32xf32>
    %211 = vector.broadcast %169 : vector<1x32xf32> to vector<16x32xf32>
    %212 = arith.addf %210, %211 : vector<16x32xf32>
    %213 = vector.extract_strided_slice %212 {offsets = [0, 0], sizes = [8, 32], strides = [1, 1]} : vector<16x32xf32> to vector<8x32xf32>
    %214 = vector.shape_cast %213 : vector<8x32xf32> to vector<1x8x32xf32>
    %215 = vector.shape_cast %214 : vector<1x8x32xf32> to vector<1x8x32xf32>
    %216 = vector.broadcast %215 : vector<1x8x32xf32> to vector<4x8x32xf32>
    "tpu.trace_start"() <{level = 10 : i32, message = "hsd,hdk->hsk"}> : () -> ()
    %cst_144 = arith.constant dense<0.000000e+00> : vector<4x8x8xf32>
    %217 = tpu.matmul %216, %184, %cst_144 {dimension_numbers = #tpu.dot_dimension_numbers<[2], [1], [1], [2], [0, 0, 0, 1, 1, 2], [0], [0]>} : vector<4x8x32xf32>, vector<4x32x8xf32>, vector<4x8x8xf32> -> vector<4x8x8xf32>
    "tpu.trace_stop"() : () -> ()
    %218 = vector.broadcast %185 : vector<4x1x8xf32> to vector<4x8x8xf32>
    %219 = arith.addf %217, %218 : vector<4x8x8xf32>
    "tpu.trace_start"() <{level = 10 : i32, message = "hsd,hdk->hsk"}> : () -> ()
    %cst_145 = arith.constant dense<0.000000e+00> : vector<4x8x8xf32>
    %220 = tpu.matmul %216, %186, %cst_145 {dimension_numbers = #tpu.dot_dimension_numbers<[2], [1], [1], [2], [0, 0, 0, 1, 1, 2], [0], [0]>} : vector<4x8x32xf32>, vector<4x32x8xf32>, vector<4x8x8xf32> -> vector<4x8x8xf32>
    "tpu.trace_stop"() : () -> ()
    %221 = vector.broadcast %187 : vector<4x1x8xf32> to vector<4x8x8xf32>
    %222 = arith.addf %220, %221 : vector<4x8x8xf32>
    "tpu.trace_start"() <{level = 10 : i32, message = "hsd,hdk->hsk"}> : () -> ()
    %cst_146 = arith.constant dense<0.000000e+00> : vector<4x8x8xf32>
    %223 = tpu.matmul %216, %188, %cst_146 {dimension_numbers = #tpu.dot_dimension_numbers<[2], [1], [1], [2], [0, 0, 0, 1, 1, 2], [0], [0]>} : vector<4x8x32xf32>, vector<4x32x8xf32>, vector<4x8x8xf32> -> vector<4x8x8xf32>
    "tpu.trace_stop"() : () -> ()
    %224 = vector.broadcast %189 : vector<4x1x8xf32> to vector<4x8x8xf32>
    %225 = arith.addf %223, %224 : vector<4x8x8xf32>
    "tpu.trace_start"() <{level = 10 : i32, message = "hqd,hkd->hqk"}> : () -> ()
    %cst_147 = arith.constant dense<0.000000e+00> : vector<4x8x8xf32>
    %226 = tpu.matmul %219, %222, %cst_147 {dimension_numbers = #tpu.dot_dimension_numbers<[2], [2], [1], [1], [0, 0, 0, 1, 1, 1], [0], [0]>} : vector<4x8x8xf32>, vector<4x8x8xf32>, vector<4x8x8xf32> -> vector<4x8x8xf32>
    "tpu.trace_stop"() : () -> ()
    %cst_148 = arith.constant 0.353553385 : f32
    %227 = vector.broadcast %cst_148 : f32 to vector<4x8x8xf32>
    %228 = arith.mulf %226, %227 : vector<4x8x8xf32>
    %229 = vector.extract_strided_slice %17 {offsets = [0, 0, 0], sizes = [1, 8, 8], strides = [1, 1, 1]} : vector<2x8x8xf32> to vector<1x8x8xf32>
    %230 = vector.shape_cast %229 : vector<1x8x8xf32> to vector<8x8xf32>
    %231 = vector.shape_cast %230 : vector<8x8xf32> to vector<1x8x8xf32>
    %232 = vector.broadcast %231 : vector<1x8x8xf32> to vector<4x8x8xf32>
    %233 = arith.addf %228, %232 : vector<4x8x8xf32>
    %cst_149 = arith.constant dense<0xFF800000> : vector<4x8xf32>
    %234 = vector.multi_reduction <maximumf>, %233, %cst_149 [2] : vector<4x8x8xf32> to vector<4x8xf32>
    %235 = vector.shape_cast %234 : vector<4x8xf32> to vector<4x8x1xf32>
    %236 = vector.broadcast %235 : vector<4x8x1xf32> to vector<4x8x8xf32>
    %237 = arith.subf %233, %236 : vector<4x8x8xf32>
    %238 = math.exp %237 : vector<4x8x8xf32>
    %cst_150 = arith.constant dense<0.000000e+00> : vector<4x8xf32>
    %239 = vector.multi_reduction <add>, %238, %cst_150 [2] : vector<4x8x8xf32> to vector<4x8xf32>
    %240 = vector.shape_cast %239 : vector<4x8xf32> to vector<4x8x1xf32>
    %241 = vector.broadcast %240 : vector<4x8x1xf32> to vector<4x8x8xf32>
    %242 = arith.divf %238, %241 : vector<4x8x8xf32>
    "tpu.trace_start"() <{level = 10 : i32, message = "hqk,hkd->hqd"}> : () -> ()
    %cst_151 = arith.constant dense<0.000000e+00> : vector<4x8x8xf32>
    %243 = tpu.matmul %242, %225, %cst_151 {dimension_numbers = #tpu.dot_dimension_numbers<[2], [1], [1], [2], [0, 0, 0, 1, 1, 2], [0], [0]>} : vector<4x8x8xf32>, vector<4x8x8xf32>, vector<4x8x8xf32> -> vector<4x8x8xf32>
    "tpu.trace_stop"() : () -> ()
    "tpu.trace_start"() <{level = 10 : i32, message = "hsk,hkd->hsd"}> : () -> ()
    %cst_152 = arith.constant dense<0.000000e+00> : vector<4x8x32xf32>
    %244 = tpu.matmul %243, %190, %cst_152 {dimension_numbers = #tpu.dot_dimension_numbers<[2], [1], [1], [2], [0, 0, 0, 1, 1, 2], [0], [0]>} : vector<4x8x8xf32>, vector<4x8x32xf32>, vector<4x8x32xf32> -> vector<4x8x32xf32>
    "tpu.trace_stop"() : () -> ()
    %cst_153 = arith.constant dense<0.000000e+00> : vector<8x32xf32>
    %245 = vector.multi_reduction <add>, %244, %cst_153 [0] : vector<4x8x32xf32> to vector<8x32xf32>
    %246 = vector.extract_strided_slice %212 {offsets = [8, 0], sizes = [8, 32], strides = [1, 1]} : vector<16x32xf32> to vector<8x32xf32>
    %247 = vector.shape_cast %246 : vector<8x32xf32> to vector<1x8x32xf32>
    %248 = vector.shape_cast %247 : vector<1x8x32xf32> to vector<1x8x32xf32>
    %249 = vector.broadcast %248 : vector<1x8x32xf32> to vector<4x8x32xf32>
    "tpu.trace_start"() <{level = 10 : i32, message = "hsd,hdk->hsk"}> : () -> ()
    %cst_154 = arith.constant dense<0.000000e+00> : vector<4x8x8xf32>
    %250 = tpu.matmul %249, %184, %cst_154 {dimension_numbers = #tpu.dot_dimension_numbers<[2], [1], [1], [2], [0, 0, 0, 1, 1, 2], [0], [0]>} : vector<4x8x32xf32>, vector<4x32x8xf32>, vector<4x8x8xf32> -> vector<4x8x8xf32>
    "tpu.trace_stop"() : () -> ()
    %251 = vector.broadcast %185 : vector<4x1x8xf32> to vector<4x8x8xf32>
    %252 = arith.addf %250, %251 : vector<4x8x8xf32>
    "tpu.trace_start"() <{level = 10 : i32, message = "hsd,hdk->hsk"}> : () -> ()
    %cst_155 = arith.constant dense<0.000000e+00> : vector<4x8x8xf32>
    %253 = tpu.matmul %249, %186, %cst_155 {dimension_numbers = #tpu.dot_dimension_numbers<[2], [1], [1], [2], [0, 0, 0, 1, 1, 2], [0], [0]>} : vector<4x8x32xf32>, vector<4x32x8xf32>, vector<4x8x8xf32> -> vector<4x8x8xf32>
    "tpu.trace_stop"() : () -> ()
    %254 = vector.broadcast %187 : vector<4x1x8xf32> to vector<4x8x8xf32>
    %255 = arith.addf %253, %254 : vector<4x8x8xf32>
    "tpu.trace_start"() <{level = 10 : i32, message = "hsd,hdk->hsk"}> : () -> ()
    %cst_156 = arith.constant dense<0.000000e+00> : vector<4x8x8xf32>
    %256 = tpu.matmul %249, %188, %cst_156 {dimension_numbers = #tpu.dot_dimension_numbers<[2], [1], [1], [2], [0, 0, 0, 1, 1, 2], [0], [0]>} : vector<4x8x32xf32>, vector<4x32x8xf32>, vector<4x8x8xf32> -> vector<4x8x8xf32>
    "tpu.trace_stop"() : () -> ()
    %257 = vector.broadcast %189 : vector<4x1x8xf32> to vector<4x8x8xf32>
    %258 = arith.addf %256, %257 : vector<4x8x8xf32>
    "tpu.trace_start"() <{level = 10 : i32, message = "hqd,hkd->hqk"}> : () -> ()
    %cst_157 = arith.constant dense<0.000000e+00> : vector<4x8x8xf32>
    %259 = tpu.matmul %252, %255, %cst_157 {dimension_numbers = #tpu.dot_dimension_numbers<[2], [2], [1], [1], [0, 0, 0, 1, 1, 1], [0], [0]>} : vector<4x8x8xf32>, vector<4x8x8xf32>, vector<4x8x8xf32> -> vector<4x8x8xf32>
    "tpu.trace_stop"() : () -> ()
    %cst_158 = arith.constant 0.353553385 : f32
    %260 = vector.broadcast %cst_158 : f32 to vector<4x8x8xf32>
    %261 = arith.mulf %259, %260 : vector<4x8x8xf32>
    %262 = vector.extract_strided_slice %17 {offsets = [1, 0, 0], sizes = [1, 8, 8], strides = [1, 1, 1]} : vector<2x8x8xf32> to vector<1x8x8xf32>
    %263 = vector.shape_cast %262 : vector<1x8x8xf32> to vector<8x8xf32>
    %264 = vector.shape_cast %263 : vector<8x8xf32> to vector<1x8x8xf32>
    %265 = vector.broadcast %264 : vector<1x8x8xf32> to vector<4x8x8xf32>
    %266 = arith.addf %261, %265 : vector<4x8x8xf32>
    %cst_159 = arith.constant dense<0xFF800000> : vector<4x8xf32>
    %267 = vector.multi_reduction <maximumf>, %266, %cst_159 [2] : vector<4x8x8xf32> to vector<4x8xf32>
    %268 = vector.shape_cast %267 : vector<4x8xf32> to vector<4x8x1xf32>
    %269 = vector.broadcast %268 : vector<4x8x1xf32> to vector<4x8x8xf32>
    %270 = arith.subf %266, %269 : vector<4x8x8xf32>
    %271 = math.exp %270 : vector<4x8x8xf32>
    %cst_160 = arith.constant dense<0.000000e+00> : vector<4x8xf32>
    %272 = vector.multi_reduction <add>, %271, %cst_160 [2] : vector<4x8x8xf32> to vector<4x8xf32>
    %273 = vector.shape_cast %272 : vector<4x8xf32> to vector<4x8x1xf32>
    %274 = vector.broadcast %273 : vector<4x8x1xf32> to vector<4x8x8xf32>
    %275 = arith.divf %271, %274 : vector<4x8x8xf32>
    "tpu.trace_start"() <{level = 10 : i32, message = "hqk,hkd->hqd"}> : () -> ()
    %cst_161 = arith.constant dense<0.000000e+00> : vector<4x8x8xf32>
    %276 = tpu.matmul %275, %258, %cst_161 {dimension_numbers = #tpu.dot_dimension_numbers<[2], [1], [1], [2], [0, 0, 0, 1, 1, 2], [0], [0]>} : vector<4x8x8xf32>, vector<4x8x8xf32>, vector<4x8x8xf32> -> vector<4x8x8xf32>
    "tpu.trace_stop"() : () -> ()
    "tpu.trace_start"() <{level = 10 : i32, message = "hsk,hkd->hsd"}> : () -> ()
    %cst_162 = arith.constant dense<0.000000e+00> : vector<4x8x32xf32>
    %277 = tpu.matmul %276, %190, %cst_162 {dimension_numbers = #tpu.dot_dimension_numbers<[2], [1], [1], [2], [0, 0, 0, 1, 1, 2], [0], [0]>} : vector<4x8x8xf32>, vector<4x8x32xf32>, vector<4x8x32xf32> -> vector<4x8x32xf32>
    "tpu.trace_stop"() : () -> ()
    %cst_163 = arith.constant dense<0.000000e+00> : vector<8x32xf32>
    %278 = vector.multi_reduction <add>, %277, %cst_163 [0] : vector<4x8x32xf32> to vector<8x32xf32>
    %279 = tpu.concatenate %245, %278 in 0 : vector<8x32xf32>, vector<8x32xf32> -> vector<16x32xf32>
    %280 = arith.addf %165, %279 : vector<16x32xf32>
    %281 = vector.broadcast %175 : vector<1x32xf32> to vector<16x32xf32>
    %282 = arith.addf %280, %281 : vector<16x32xf32>
    %cst_164 = arith.constant dense<0.000000e+00> : vector<16xf32>
    %283 = vector.multi_reduction <add>, %282, %cst_164 [1] : vector<16x32xf32> to vector<16xf32>
    %284 = vector.shape_cast %283 : vector<16xf32> to vector<16x1xf32>
    %cst_165 = arith.constant 3.200000e+01 : f32
    %285 = vector.broadcast %cst_165 : f32 to vector<16x1xf32>
    %286 = arith.divf %284, %285 : vector<16x1xf32>
    %287 = vector.broadcast %286 : vector<16x1xf32> to vector<16x32xf32>
    %288 = arith.subf %282, %287 : vector<16x32xf32>
    %289 = arith.mulf %288, %288 : vector<16x32xf32>
    %cst_166 = arith.constant dense<0.000000e+00> : vector<16xf32>
    %290 = vector.multi_reduction <add>, %289, %cst_166 [1] : vector<16x32xf32> to vector<16xf32>
    %291 = vector.shape_cast %290 : vector<16xf32> to vector<16x1xf32>
    %cst_167 = arith.constant 3.200000e+01 : f32
    %292 = vector.broadcast %cst_167 : f32 to vector<16x1xf32>
    %293 = arith.divf %291, %292 : vector<16x1xf32>
    %294 = vector.broadcast %286 : vector<16x1xf32> to vector<16x32xf32>
    %295 = arith.subf %282, %294 : vector<16x32xf32>
    %cst_168 = arith.constant 9.99999997E-7 : f32
    %296 = vector.broadcast %cst_168 : f32 to vector<16x1xf32>
    %297 = arith.addf %293, %296 : vector<16x1xf32>
    %298 = math.rsqrt %297 : vector<16x1xf32>
    %299 = vector.broadcast %298 : vector<16x1xf32> to vector<16x32xf32>
    %300 = arith.mulf %295, %299 : vector<16x32xf32>
    %301 = vector.broadcast %171 : vector<1x32xf32> to vector<16x32xf32>
    %302 = arith.mulf %300, %301 : vector<16x32xf32>
    %303 = vector.broadcast %173 : vector<1x32xf32> to vector<16x32xf32>
    %304 = arith.addf %302, %303 : vector<16x32xf32>
    %cst_169 = arith.constant dense<0.000000e+00> : vector<16x64xf32>
    %305 = tpu.matmul %304, %177, %cst_169 {dimension_numbers = #tpu.dot_dimension_numbers<[1], [0], [0], [1], [0, 0, 1, 1], [], []>} : vector<16x32xf32>, vector<32x64xf32>, vector<16x64xf32> -> vector<16x64xf32>
    %306 = vector.broadcast %179 : vector<1x64xf32> to vector<16x64xf32>
    %307 = arith.addf %305, %306 : vector<16x64xf32>
    %cst_170 = arith.constant 0.000000e+00 : f32
    %308 = vector.broadcast %cst_170 : f32 to vector<16x64xf32>
    %309 = arith.maximumf %307, %308 : vector<16x64xf32>
    %cst_171 = arith.constant dense<0.000000e+00> : vector<16x32xf32>
    %310 = tpu.matmul %309, %181, %cst_171 {dimension_numbers = #tpu.dot_dimension_numbers<[1], [0], [0], [1], [0, 0, 1, 1], [], []>} : vector<16x64xf32>, vector<64x32xf32>, vector<16x32xf32> -> vector<16x32xf32>
    %311 = arith.addf %282, %310 : vector<16x32xf32>
    %312 = vector.broadcast %183 : vector<1x32xf32> to vector<16x32xf32>
    %313 = arith.addf %311, %312 : vector<16x32xf32>
    %c0_172 = arith.constant 0 : index
    %c0_173 = arith.constant 0 : index
    %314 = vector.load %arg20[%c0_172, %c0_173] : memref<1x32xf32, #tpu.memory_space<vmem>>, vector<1x32xf32>
    %c0_174 = arith.constant 0 : index
    %c0_175 = arith.constant 0 : index
    %315 = vector.load %arg21[%c0_174, %c0_175] : memref<1x32xf32, #tpu.memory_space<vmem>>, vector<1x32xf32>
    %cst_176 = arith.constant dense<0.000000e+00> : vector<16xf32>
    %316 = vector.multi_reduction <add>, %313, %cst_176 [1] : vector<16x32xf32> to vector<16xf32>
    %317 = vector.shape_cast %316 : vector<16xf32> to vector<16x1xf32>
    %cst_177 = arith.constant 3.200000e+01 : f32
    %318 = vector.broadcast %cst_177 : f32 to vector<16x1xf32>
    %319 = arith.divf %317, %318 : vector<16x1xf32>
    %320 = vector.broadcast %319 : vector<16x1xf32> to vector<16x32xf32>
    %321 = arith.subf %313, %320 : vector<16x32xf32>
    %322 = arith.mulf %321, %321 : vector<16x32xf32>
    %cst_178 = arith.constant dense<0.000000e+00> : vector<16xf32>
    %323 = vector.multi_reduction <add>, %322, %cst_178 [1] : vector<16x32xf32> to vector<16xf32>
    %324 = vector.shape_cast %323 : vector<16xf32> to vector<16x1xf32>
    %cst_179 = arith.constant 3.200000e+01 : f32
    %325 = vector.broadcast %cst_179 : f32 to vector<16x1xf32>
    %326 = arith.divf %324, %325 : vector<16x1xf32>
    %327 = vector.broadcast %319 : vector<16x1xf32> to vector<16x32xf32>
    %328 = arith.subf %313, %327 : vector<16x32xf32>
    %cst_180 = arith.constant 9.99999997E-7 : f32
    %329 = vector.broadcast %cst_180 : f32 to vector<16x1xf32>
    %330 = arith.addf %326, %329 : vector<16x1xf32>
    %331 = math.rsqrt %330 : vector<16x1xf32>
    %332 = vector.broadcast %331 : vector<16x1xf32> to vector<16x32xf32>
    %333 = arith.mulf %328, %332 : vector<16x32xf32>
    %334 = vector.broadcast %314 : vector<1x32xf32> to vector<16x32xf32>
    %335 = arith.mulf %333, %334 : vector<16x32xf32>
    %336 = vector.broadcast %315 : vector<1x32xf32> to vector<16x32xf32>
    %337 = arith.addf %335, %336 : vector<16x32xf32>
    %c0_181 = arith.constant 0 : index
    %c0_182 = arith.constant 0 : index
    %338 = vector.load %arg22[%c0_181, %c0_182] : memref<16x32xf32, #tpu.memory_space<vmem>>, vector<16x32xf32>
    tpu.vector_store %arg22[%c0_181, %c0_182], %337 {strides = array<i32>} : memref<16x32xf32, #tpu.memory_space<vmem>>, vector<16x32xf32>,
    return
  }
}

</mosaic_0001>

<llo_original>
// kernel: tpu_custom_call.1
$region0: #{tpu_custom_call.1}
  #allocation0 [shape = 'u32[]', space=smem, size = 0x4, offset = 0x4, fixed_abs, tag = 'smem constant byte address 0x4 - core index']
  #allocation1 [shape = 'u32[144,128]{1,0:T(1,128)}', space=vmem, size = 0x12000, scoped, tag = 'internal scratch']
  %s0 = inlined_call_operand.vmem [shape: s32[16,1], index: 0, kind: input, shape index: {}]
  %s1 = inlined_call_operand.vmem [shape: f32[2,8,8], index: 1, kind: input, shape index: {}]
  %s2 = inlined_call_operand.vmem [shape: f32[56,32], index: 2, kind: input, shape index: {}]
  %s3 = inlined_call_operand.vmem [shape: f32[16,32], index: 3, kind: input, shape index: {}]
  %s4 = inlined_call_operand.vmem [shape: f32[2,1,32], index: 4, kind: input, shape index: {}]
  %s5 = inlined_call_operand.vmem [shape: f32[2,1,32], index: 5, kind: input, shape index: {}]
  %s6 = inlined_call_operand.vmem [shape: f32[8,32,8], index: 6, kind: input, shape index: {}]
  %s7 = inlined_call_operand.vmem [shape: f32[8,1,8], index: 7, kind: input, shape index: {}]
  %s8 = inlined_call_operand.vmem [shape: f32[8,32,8], index: 8, kind: input, shape index: {}]
  %s9 = inlined_call_operand.vmem [shape: f32[8,1,8], index: 9, kind: input, shape index: {}]
  %s10 = inlined_call_operand.vmem [shape: f32[8,32,8], index: 10, kind: input, shape index: {}]
  %s11 = inlined_call_operand.vmem [shape: f32[8,1,8], index: 11, kind: input, shape index: {}]
  %s12 = inlined_call_operand.vmem [shape: f32[8,8,32], index: 12, kind: input, shape index: {}]
  %s13 = inlined_call_operand.vmem [shape: f32[2,1,32], index: 13, kind: input, shape index: {}]
  %s14 = inlined_call_operand.vmem [shape: f32[2,1,32], index: 14, kind: input, shape index: {}]
  %s15 = inlined_call_operand.vmem [shape: f32[2,1,32], index: 15, kind: input, shape index: {}]
  %s16 = inlined_call_operand.vmem [shape: f32[2,32,64], index: 16, kind: input, shape index: {}]
  %s17 = inlined_call_operand.vmem [shape: f32[2,1,64], index: 17, kind: input, shape index: {}]
  %s18 = inlined_call_operand.vmem [shape: f32[2,64,32], index: 18, kind: input, shape index: {}]
  %s19 = inlined_call_operand.vmem [shape: f32[2,1,32], index: 19, kind: input, shape index: {}]
  %s20 = inlined_call_operand.vmem [shape: f32[1,32], index: 20, kind: input, shape index: {}]
  %s21 = inlined_call_operand.vmem [shape: f32[1,32], index: 21, kind: input, shape index: {}]
  %s22 = inlined_call_operand.hbm [shape: f32[16,32], index: 22, kind: output, shape index: {}]
  %s23 = sld [smem:[#allocation0]]
  $region98: #{tpu_custom_call.1} parent=0
    _
  %s25 = ssub.s32 1, %s23
  %s26 = scalar_select 0, %s25, %s23
  $region1: #{tpu_custom_call.1} parent=0
    #allocation2 [shape = 'u8[8192]{0}', space=vmem, size = 0x2000, scoped, tag = 'output window, operand 0, single buffered']
    #allocation3 [shape = 's32[1]{0}', space=sflag, size = 0x4, scoped, tag = 'scoped memory for tpu_custom_call.1']
    %27 = vsyncpa [#allocation3], 0
    // Predicated region
    $region2: #{tpu_custom_call.1} parent=1 // pred_check
      _
    $region3: #{tpu_custom_call.1} parent=1 // pred_check_branch
      %29 = sbr.rel (0) target = $region5
    $region4: #{tpu_custom_call.1} parent=1 // pred_region
      _
    $region5: #{tpu_custom_call.1} parent=1 // pred_fallthru
      _
    // Predicated region
    $region6: #{tpu_custom_call.1} parent=1 // pred_check
      _
    $region7: #{tpu_custom_call.1} parent=1 // pred_check_branch
      %31 = sbr.rel (0) target = $region9
    $region8: #{tpu_custom_call.1} parent=1 // pred_region
      _
    $region9: #{tpu_custom_call.1} parent=1 // pred_fallthru
      _
    // Predicated region
    $region10: #{tpu_custom_call.1} parent=1 // pred_check
      _
    $region11: #{tpu_custom_call.1} parent=1 // pred_check_branch
      %33 = sbr.rel (0) target = $region13
    $region12: #{tpu_custom_call.1} parent=1 // pred_region
      _
    $region13: #{tpu_custom_call.1} parent=1 // pred_fallthru
      _
    // Predicated region
    $region14: #{tpu_custom_call.1} parent=1 // pred_check
      _
    $region15: #{tpu_custom_call.1} parent=1 // pred_check_branch
      %35 = sbr.rel (0) target = $region17
    $region16: #{tpu_custom_call.1} parent=1 // pred_region
      _
    $region17: #{tpu_custom_call.1} parent=1 // pred_fallthru
      _
    // Predicated region
    $region18: #{tpu_custom_call.1} parent=1 // pred_check
      _
    $region19: #{tpu_custom_call.1} parent=1 // pred_check_branch
      %37 = sbr.rel (0) target = $region21
    $region20: #{tpu_custom_call.1} parent=1 // pred_region
      _
    $region21: #{tpu_custom_call.1} parent=1 // pred_fallthru
      _
    // Predicated region
    $region22: #{tpu_custom_call.1} parent=1 // pred_check
      _
    $region23: #{tpu_custom_call.1} parent=1 // pred_check_branch
      %39 = sbr.rel (0) target = $region25
    $region24: #{tpu_custom_call.1} parent=1 // pred_region
      _
    $region25: #{tpu_custom_call.1} parent=1 // pred_fallthru
      _
    // Predicated region
    $region26: #{tpu_custom_call.1} parent=1 // pred_check
      _
    $region27: #{tpu_custom_call.1} parent=1 // pred_check_branch
      %41 = sbr.rel (0) target = $region29
    $region28: #{tpu_custom_call.1} parent=1 // pred_region
      _
    $region29: #{tpu_custom_call.1} parent=1 // pred_fallthru
      _
    // Predicated region
    $region30: #{tpu_custom_call.1} parent=1 // pred_check
      _
    $region31: #{tpu_custom_call.1} parent=1 // pred_check_branch
      %43 = sbr.rel (0) target = $region33
    $region32: #{tpu_custom_call.1} parent=1 // pred_region
      _
    $region33: #{tpu_custom_call.1} parent=1 // pred_fallthru
      _
    // Predicated region
    $region34: #{tpu_custom_call.1} parent=1 // pred_check
      _
    $region35: #{tpu_custom_call.1} parent=1 // pred_check_branch
      %45 = sbr.rel (0) target = $region37
    $region36: #{tpu_custom_call.1} parent=1 // pred_region
      _
    $region37: #{tpu_custom_call.1} parent=1 // pred_fallthru
      _
    // Predicated region
    $region38: #{tpu_custom_call.1} parent=1 // pred_check
      _
    $region39: #{tpu_custom_call.1} parent=1 // pred_check_branch
      %47 = sbr.rel (0) target = $region41
    $region40: #{tpu_custom_call.1} parent=1 // pred_region
      _
    $region41: #{tpu_custom_call.1} parent=1 // pred_fallthru
      _
    // Predicated region
    $region42: #{tpu_custom_call.1} parent=1 // pred_check
      _
    $region43: #{tpu_custom_call.1} parent=1 // pred_check_branch
      %49 = sbr.rel (0) target = $region45
    $region44: #{tpu_custom_call.1} parent=1 // pred_region
      _
    $region45: #{tpu_custom_call.1} parent=1 // pred_fallthru
      _
    // Predicated region
    $region46: #{tpu_custom_call.1} parent=1 // pred_check
      _
    $region47: #{tpu_custom_call.1} parent=1 // pred_check_branch
      %51 = sbr.rel (0) target = $region49
    $region48: #{tpu_custom_call.1} parent=1 // pred_region
      _
    $region49: #{tpu_custom_call.1} parent=1 // pred_fallthru
      _
    // Predicated region
    $region50: #{tpu_custom_call.1} parent=1 // pred_check
      _
    $region51: #{tpu_custom_call.1} parent=1 // pred_check_branch
      %53 = sbr.rel (0) target = $region53
    $region52: #{tpu_custom_call.1} parent=1 // pred_region
      _
    $region53: #{tpu_custom_call.1} parent=1 // pred_fallthru
      _
    // Predicated region
    $region54: #{tpu_custom_call.1} parent=1 // pred_check
      _
    $region55: #{tpu_custom_call.1} parent=1 // pred_check_branch
      %55 = sbr.rel (0) target = $region57
    $region56: #{tpu_custom_call.1} parent=1 // pred_region
      _
    $region57: #{tpu_custom_call.1} parent=1 // pred_fallthru
      _
    // Predicated region
    $region58: #{tpu_custom_call.1} parent=1 // pred_check
      _
    $region59: #{tpu_custom_call.1} parent=1 // pred_check_branch
      %57 = sbr.rel (0) target = $region61
    $region60: #{tpu_custom_call.1} parent=1 // pred_region
      _
    $region61: #{tpu_custom_call.1} parent=1 // pred_fallthru
      _
    // Predicated region
    $region62: #{tpu_custom_call.1} parent=1 // pred_check
      _
    $region63: #{tpu_custom_call.1} parent=1 // pred_check_branch
      %59 = sbr.rel (0) target = $region65
    $region64: #{tpu_custom_call.1} parent=1 // pred_region
      _
    $region65: #{tpu_custom_call.1} parent=1 // pred_fallthru
      _
    // Predicated region
    $region66: #{tpu_custom_call.1} parent=1 // pred_check
      _
    $region67: #{tpu_custom_call.1} parent=1 // pred_check_branch
      %61 = sbr.rel (0) target = $region69
    $region68: #{tpu_custom_call.1} parent=1 // pred_region
      _
    $region69: #{tpu_custom_call.1} parent=1 // pred_fallthru
      _
    // Predicated region
    $region70: #{tpu_custom_call.1} parent=1 // pred_check
      _
    $region71: #{tpu_custom_call.1} parent=1 // pred_check_branch
      %63 = sbr.rel (0) target = $region73
    $region72: #{tpu_custom_call.1} parent=1 // pred_region
      _
    $region73: #{tpu_custom_call.1} parent=1 // pred_fallthru
      _
    // Predicated region
    $region74: #{tpu_custom_call.1} parent=1 // pred_check
      _
    $region75: #{tpu_custom_call.1} parent=1 // pred_check_branch
      %65 = sbr.rel (0) target = $region77
    $region76: #{tpu_custom_call.1} parent=1 // pred_region
      _
    $region77: #{tpu_custom_call.1} parent=1 // pred_fallthru
      _
    // Predicated region
    $region78: #{tpu_custom_call.1} parent=1 // pred_check
      _
    $region79: #{tpu_custom_call.1} parent=1 // pred_check_branch
      %67 = sbr.rel (0) target = $region81
    $region80: #{tpu_custom_call.1} parent=1 // pred_region
      _
    $region81: #{tpu_custom_call.1} parent=1 // pred_fallthru
      _
    // Predicated region
    $region82: #{tpu_custom_call.1} parent=1 // pred_check
      _
    $region83: #{tpu_custom_call.1} parent=1 // pred_check_branch
      %69 = sbr.rel (0) target = $region85
    $region84: #{tpu_custom_call.1} parent=1 // pred_region
      _
    $region85: #{tpu_custom_call.1} parent=1 // pred_fallthru
      _
    // Predicated region
    $region86: #{tpu_custom_call.1} parent=1 // pred_check
      _
    $region87: #{tpu_custom_call.1} parent=1 // pred_check_branch
      %71 = sbr.rel (0) target = $region89
    $region88: #{tpu_custom_call.1} parent=1 // pred_region
      _
    $region89: #{tpu_custom_call.1} parent=1 // pred_fallthru
      _
    %v72 = vld [vmem:[%s0] sm:$0xff]
    %v73 = vld [vmem:[%s0 + $0x8] sm:$0xff]
    %v74 = vlaneseq
    %v75 = vand.u32 %v74, 127
    %76 = vset.pattern.permute.xlu0 0
    %77 = vperm.xlu0 %76, %v72
    %v78 = vpop.permute.xlu0 %77
    %79 = vset.pattern.permute.xlu0 0
    %80 = vperm.xlu0 %79, %v73
    %v81 = vpop.permute.xlu0 %80
    %vm82 = vcmp.eq.s32.totalorder %v75, %v78
    %vm83 = vcmp.eq.s32.totalorder %v75, %v81
    %v84 = vsel %vm82, 1, 0
    %v85 = vsel %vm83, 1, 0
    %v86 = vcvt.s32.f32 %v84
    %v87 = vcvt.s32.f32 %v85
    %v88 = vld [vmem:[%s2] sm:$0xff]
    %v89 = vld [vmem:[%s2 + $0x8] sm:$0xff]
    %v90 = vld [vmem:[%s2 + $0x10] sm:$0xff]
    %v91 = vld [vmem:[%s2 + $0x18] sm:$0xff]
    %v92 = vld [vmem:[%s2 + $0x20] sm:$0xff]
    %v93 = vld [vmem:[%s2 + $0x28] sm:$0xff]
    %v94 = vld [vmem:[%s2 + $0x30] sm:$0xff]
    %vm95 = vcmask 457728
    %v97 = vsel %vm95, %v86, 0
    %v100 = vsel %vm95, %v87, 0
    %102 = vmatprep.subr.mxu0 0.0
    %103 = vmatpush1.msra.mxu0 0.0
    %104 = vmatprep.subr.mxu0 0.0
    %105 = vmatpush1.msra.mxu0 0.0
    %106 = vmatprep.subr.mxu0 0.0
    %107 = vmatpush1.msra.mxu0 0.0
    %108 = vmatprep.subr.mxu0 0.0
    %109 = vmatpush1.msra.mxu0 0.0
    %110 = vmatprep.subr.mxu0 0.0
    %111 = vmatpush1.msra.mxu0 0.0
    %112 = vmatprep.subr.mxu0 0.0
    %113 = vmatpush1.msra.mxu0 0.0
    %114 = vmatprep.subr.mxu0 0.0
    %115 = vmatpush1.msra.mxu0 0.0
    %116 = vmatprep.subr.mxu0 0.0
    %117 = vmatpush1.msra.mxu0 0.0
    %118 = vmatprep.subr.mxu0 0.0
    %119 = vmatpush1.msra.mxu0 0.0
    %120 = vmatprep.subr.mxu0 0.0
    %121 = vmatpush1.msra.mxu0 %v94
    %122 = vmatprep.subr.mxu0 0.0
    %123 = vmatpush1.msra.mxu0 %v93
    %124 = vmatprep.subr.mxu0 0.0
    %125 = vmatpush1.msra.mxu0 %v92
    %126 = vmatprep.subr.mxu0 0.0
    %127 = vmatpush1.msra.mxu0 %v91
    %128 = vmatprep.subr.mxu0 0.0
    %129 = vmatpush1.msra.mxu0 %v90
    %130 = vmatprep.subr.mxu0 0.0
    %131 = vmatpush1.msra.mxu0 %v89
    %132 = vmatprep.subr.mxu0 0.0
    %133 = vmatpush1.msra.mxu0 %v88
    %134 = vmatprep.subr.mxu0 0.0
    %135 = vmatpush2.msra.mxu0 0.0
    %136 = vmatprep.subr.mxu0 0.0
    %137 = vmatpush2.msra.mxu0 0.0
    %138 = vmatprep.subr.mxu0 0.0
    %139 = vmatpush2.msra.mxu0 0.0
    %140 = vmatprep.subr.mxu0 0.0
    %141 = vmatpush2.msra.mxu0 0.0
    %142 = vmatprep.subr.mxu0 0.0
    %143 = vmatpush2.msra.mxu0 0.0
    %144 = vmatprep.subr.mxu0 0.0
    %145 = vmatpush2.msra.mxu0 0.0
    %146 = vmatprep.subr.mxu0 0.0
    %147 = vmatpush2.msra.mxu0 0.0
    %148 = vmatprep.subr.mxu0 0.0
    %149 = vmatpush2.msra.mxu0 0.0
    %150 = vmatprep.subr.mxu0 0.0
    %151 = vmatpush2.msra.mxu0 0.0
    %152 = vmatprep.subr.mxu0 0.0
    %153 = vmatpush2.msra.mxu0 0.0
    %154 = vmatprep.subr.mxu0 0.0
    %155 = vmatpush2.msra.mxu0 0.0
    %156 = vmatprep.subr.mxu0 0.0
    %157 = vmatpush2.msra.mxu0 0.0
    %158 = vmatprep.subr.mxu0 0.0
    %159 = vmatpush2.msra.mxu0 0.0
    %160 = vmatprep.subr.mxu0 0.0
    %161 = vmatpush2.msra.mxu0 0.0
    %162 = vmatprep.subr.mxu0 0.0
    %163 = vmatpush2.msra.mxu0 0.0
    %164 = vmatprep.subr.mxu0 0.0
    %165 = vmatpush2.msra.mxu0 0.0
    %166 = vmatprep.mubr.f32.mxu0 0.0
    %167 = vmatmul.mubr.f32.gmra.mxu0 %v97
    %v168 = vpop.f32.mrf.mxu0
    %v169 = vadd.f32 0.0, %v168
    %v170 = vpop.f32.mrf.mxu0
    %171 = vmatprep.mubr.f32.mxu0 0.0
    %172 = vmatmul.mubr.f32.gmra.mxu0 %v100
    %v173 = vpop.f32.mrf.mxu0
    %v174 = vadd.f32 0.0, %v173
    %v175 = vpop.f32.mrf.mxu0
    %176 = vdwg.mxu0
    %v177 = vmul.f32 %v169, 5.656854
    %v178 = vmul.f32 %v174, 5.656854
    %v179 = vld [vmem:[%s3] sm:$0xff]
    %v180 = vld [vmem:[%s3 + $0x8] sm:$0xff]
    %v181 = vadd.f32 %v177, %v179
    %v182 = vadd.f32 %v178, %v180
    %v183 = vld [vmem:[%s1] sm:$0xff]
    %v184 = vld [vmem:[%s1 + $0x8] sm:$0xff]
    %vm185 = vcmp.gt.f32.partialorder %v183, 0.0
    %vm186 = vcmp.gt.f32.partialorder %v184, 0.0
    %v187 = vsel %vm185, 0.0, -1e+09
    %v188 = vsel %vm186, 0.0, -1e+09
    %v189 = vld [vmem:[%s4] sm:$0x1]
    %v190 = vld [vmem:[%s5] sm:$0x1]
    %v191 = vld [vmem:[%s14] sm:$0x1]
    %v192 = vld [vmem:[%s15] sm:$0x1]
    %v193 = vld [vmem:[%s13] sm:$0x1]
    %v194 = vld [vmem:[%s16] sm:$0xff]
    %v195 = vld [vmem:[%s16 + $0x8] sm:$0xff]
    %v196 = vld [vmem:[%s16 + $0x10] sm:$0xff]
    %v197 = vld [vmem:[%s16 + $0x18] sm:$0xff]
    %v198 = vld [vmem:[%s17] sm:$0x1]
    %v199 = vld [vmem:[%s18] sm:$0xff]
    %v200 = vld [vmem:[%s18 + $0x8] sm:$0xff]
    %v201 = vld [vmem:[%s18 + $0x10] sm:$0xff]
    %v202 = vld [vmem:[%s18 + $0x18] sm:$0xff]
    %v203 = vld [vmem:[%s18 + $0x20] sm:$0xff]
    %v204 = vld [vmem:[%s18 + $0x28] sm:$0xff]
    %v205 = vld [vmem:[%s18 + $0x30] sm:$0xff]
    %v206 = vld [vmem:[%s18 + $0x38] sm:$0xff]
    %v207 = vld [vmem:[%s19] sm:$0x1]
    %v208 = vld [vmem:[%s6] sm:$0xff]
    %v209 = vld [vmem:[%s6 + $0x8] sm:$0xff]
    %v210 = vld [vmem:[%s6 + $0x10] sm:$0xff]
    %v211 = vld [vmem:[%s6 + $0x18] sm:$0xff]
    %v212 = vld [vmem:[%s6 + $0x20] sm:$0xff]
    %v213 = vld [vmem:[%s6 + $0x28] sm:$0xff]
    %v214 = vld [vmem:[%s6 + $0x30] sm:$0xff]
    %v215 = vld [vmem:[%s6 + $0x38] sm:$0xff]
    %v216 = vld [vmem:[%s6 + $0x40] sm:$0xff]
    %v217 = vld [vmem:[%s6 + $0x48] sm:$0xff]
    %v218 = vld [vmem:[%s6 + $0x50] sm:$0xff]
    %v219 = vld [vmem:[%s6 + $0x58] sm:$0xff]
    %v220 = vld [vmem:[%s6 + $0x60] sm:$0xff]
    %v221 = vld [vmem:[%s6 + $0x68] sm:$0xff]
    %v222 = vld [vmem:[%s6 + $0x70] sm:$0xff]
    %v223 = vld [vmem:[%s6 + $0x78] sm:$0xff]
    %v224 = vld [vmem:[%s7] sm:$0x1]
    %v225 = vld [vmem:[%s7 + $0x1] sm:$0x1]
    %v226 = vld [vmem:[%s7 + $0x2] sm:$0x1]
    %v227 = vld [vmem:[%s7 + $0x3] sm:$0x1]
    %v228 = vld [vmem:[%s8] sm:$0xff]
    %v229 = vld [vmem:[%s8 + $0x8] sm:$0xff]
    %v230 = vld [vmem:[%s8 + $0x10] sm:$0xff]
    %v231 = vld [vmem:[%s8 + $0x18] sm:$0xff]
    %v232 = vld [vmem:[%s8 + $0x20] sm:$0xff]
    %v233 = vld [vmem:[%s8 + $0x28] sm:$0xff]
    %v234 = vld [vmem:[%s8 + $0x30] sm:$0xff]
    %v235 = vld [vmem:[%s8 + $0x38] sm:$0xff]
    %v236 = vld [vmem:[%s8 + $0x40] sm:$0xff]
    %v237 = vld [vmem:[%s8 + $0x48] sm:$0xff]
    %v238 = vld [vmem:[%s8 + $0x50] sm:$0xff]
    %v239 = vld [vmem:[%s8 + $0x58] sm:$0xff]
    %v240 = vld [vmem:[%s8 + $0x60] sm:$0xff]
    %v241 = vld [vmem:[%s8 + $0x68] sm:$0xff]
    %v242 = vld [vmem:[%s8 + $0x70] sm:$0xff]
    %v243 = vld [vmem:[%s8 + $0x78] sm:$0xff]
    %v244 = vld [vmem:[%s9] sm:$0x1]
    %v245 = vld [vmem:[%s9 + $0x1] sm:$0x1]
    %v246 = vld [vmem:[%s9 + $0x2] sm:$0x1]
    %v247 = vld [vmem:[%s9 + $0x3] sm:$0x1]
    %v248 = vld [vmem:[%s10] sm:$0xff]
    %v249 = vld [vmem:[%s10 + $0x8] sm:$0xff]
    %v250 = vld [vmem:[%s10 + $0x10] sm:$0xff]
    %v251 = vld [vmem:[%s10 + $0x18] sm:$0xff]
    %v252 = vld [vmem:[%s10 + $0x20] sm:$0xff]
    %v253 = vld [vmem:[%s10 + $0x28] sm:$0xff]
    %v254 = vld [vmem:[%s10 + $0x30] sm:$0xff]
    %v255 = vld [vmem:[%s10 + $0x38] sm:$0xff]
    %v256 = vld [vmem:[%s10 + $0x40] sm:$0xff]
    %v257 = vld [vmem:[%s10 + $0x48] sm:$0xff]
    %v258 = vld [vmem:[%s10 + $0x50] sm:$0xff]
    %v259 = vld [vmem:[%s10 + $0x58] sm:$0xff]
    %v260 = vld [vmem:[%s10 + $0x60] sm:$0xff]
    %v261 = vld [vmem:[%s10 + $0x68] sm:$0xff]
    %v262 = vld [vmem:[%s10 + $0x70] sm:$0xff]
    %v263 = vld [vmem:[%s10 + $0x78] sm:$0xff]
    %v264 = vld [vmem:[%s11] sm:$0x1]
    %v265 = vld [vmem:[%s11 + $0x1] sm:$0x1]
    %v266 = vld [vmem:[%s11 + $0x2] sm:$0x1]
    %v267 = vld [vmem:[%s11 + $0x3] sm:$0x1]
    %v268 = vld [vmem:[%s12] sm:$0xff]
    %v269 = vld [vmem:[%s12 + $0x8] sm:$0xff]
    %v270 = vld [vmem:[%s12 + $0x10] sm:$0xff]
    %v271 = vld [vmem:[%s12 + $0x18] sm:$0xff]
    %vm272 = vcmask 261120
    %v273 = vsel %vm272, %v181, 0.0
    %274 = vadd.xlane.f32.xlu0 %v273
    %v275 = vpop.xlane.xlu0 %274
    %v276 = vsel %vm272, %v182, 0.0
    %277 = vadd.xlane.f32.xlu0 %v276
    %v278 = vpop.xlane.xlu0 %277
    %v279 = vrcp.pop 32.0
    %v280 = vmul.f32 %v275, %v279
    %v281 = vmul.f32 %v278, %v279
    %v282 = vsub.f32 %v181, %v280
    %v283 = vsub.f32 %v182, %v281
    %v284 = vmul.f32 %v282, %v282
    %v285 = vmul.f32 %v283, %v283
    %v286 = vsel %vm272, %v284, 0.0
    %287 = vadd.xlane.f32.xlu0 %v286
    %v288 = vpop.xlane.xlu0 %287
    %v289 = vsel %vm272, %v285, 0.0
    %290 = vadd.xlane.f32.xlu0 %v289
    %v291 = vpop.xlane.xlu0 %290
    %v292 = vmul.f32 %v288, %v279
    %v293 = vmul.f32 %v291, %v279
    %v294 = vadd.f32 %v292, 1e-06
    %v295 = vadd.f32 %v293, 1e-06
    %v296 = vrsqrt.pop %v294
    %v297 = vrsqrt.pop %v295
    %v298 = vmul.f32 %v282, %v296
    %v299 = vmul.f32 %v283, %v297
    %v301 = vlaneseq
    %v302 = vshrl.u32 %v301, 7
    %v303 = vsub.s32 0, %v302
    %v304 = vrot.slane %v189, %v303
    %v306 = vmul.f32 %v298, %v304
    %v307 = vmul.f32 %v299, %v304
    %v309 = vlaneseq
    %v310 = vshrl.u32 %v309, 7
    %v311 = vsub.s32 0, %v310
    %v312 = vrot.slane %v190, %v311
    %v314 = vadd.f32 %v306, %v312
    %v315 = vadd.f32 %v307, %v312
    %v320 = vlaneseq
    %v321 = vshrl.u32 %v320, 7
    %v322 = vsub.s32 0, %v321
    %v323 = vrot.slane %v224, %v322
    %v324 = vlaneseq
    %v325 = vshrl.u32 %v324, 7
    %v326 = vsub.s32 0, %v325
    %v327 = vrot.slane %v225, %v326
    %v328 = vlaneseq
    %v329 = vshrl.u32 %v328, 7
    %v330 = vsub.s32 0, %v329
    %v331 = vrot.slane %v226, %v330
    %v332 = vlaneseq
    %v333 = vshrl.u32 %v332, 7
    %v334 = vsub.s32 0, %v333
    %v335 = vrot.slane %v227, %v334
    %v341 = vsel %vm272, %v314, 0
    %343 = vmatprep.subr.mxu0 0.0
    %344 = vmatpush1.msra.mxu0 0.0
    %345 = vmatprep.subr.mxu0 0.0
    %346 = vmatpush1.msra.mxu0 0.0
    %347 = vmatprep.subr.mxu0 0.0
    %348 = vmatpush1.msra.mxu0 0.0
    %349 = vmatprep.subr.mxu0 0.0
    %350 = vmatpush1.msra.mxu0 0.0
    %351 = vmatprep.subr.mxu0 0.0
    %352 = vmatpush1.msra.mxu0 0.0
    %353 = vmatprep.subr.mxu0 0.0
    %354 = vmatpush1.msra.mxu0 0.0
    %355 = vmatprep.subr.mxu0 0.0
    %356 = vmatpush1.msra.mxu0 0.0
    %357 = vmatprep.subr.mxu0 0.0
    %358 = vmatpush1.msra.mxu0 0.0
    %359 = vmatprep.subr.mxu0 0.0
    %360 = vmatpush1.msra.mxu0 0.0
    %361 = vmatprep.subr.mxu0 0.0
    %362 = vmatpush1.msra.mxu0 0.0
    %363 = vmatprep.subr.mxu0 0.0
    %364 = vmatpush1.msra.mxu0 0.0
    %365 = vmatprep.subr.mxu0 0.0
    %366 = vmatpush1.msra.mxu0 0.0
    %367 = vmatprep.subr.mxu0 0.0
    %368 = vmatpush1.msra.mxu0 %v211
    %369 = vmatprep.subr.mxu0 0.0
    %370 = vmatpush1.msra.mxu0 %v210
    %371 = vmatprep.subr.mxu0 0.0
    %372 = vmatpush1.msra.mxu0 %v209
    %373 = vmatprep.subr.mxu0 0.0
    %374 = vmatpush1.msra.mxu0 %v208
    %375 = vmatprep.subr.mxu0 0.0
    %376 = vmatpush2.msra.mxu0 0.0
    %377 = vmatprep.subr.mxu0 0.0
    %378 = vmatpush2.msra.mxu0 0.0
    %379 = vmatprep.subr.mxu0 0.0
    %380 = vmatpush2.msra.mxu0 0.0
    %381 = vmatprep.subr.mxu0 0.0
    %382 = vmatpush2.msra.mxu0 0.0
    %383 = vmatprep.subr.mxu0 0.0
    %384 = vmatpush2.msra.mxu0 0.0
    %385 = vmatprep.subr.mxu0 0.0
    %386 = vmatpush2.msra.mxu0 0.0
    %387 = vmatprep.subr.mxu0 0.0
    %388 = vmatpush2.msra.mxu0 0.0
    %389 = vmatprep.subr.mxu0 0.0
    %390 = vmatpush2.msra.mxu0 0.0
    %391 = vmatprep.subr.mxu0 0.0
    %392 = vmatpush2.msra.mxu0 0.0
    %393 = vmatprep.subr.mxu0 0.0
    %394 = vmatpush2.msra.mxu0 0.0
    %395 = vmatprep.subr.mxu0 0.0
    %396 = vmatpush2.msra.mxu0 0.0
    %397 = vmatprep.subr.mxu0 0.0
    %398 = vmatpush2.msra.mxu0 0.0
    %399 = vmatprep.subr.mxu0 0.0
    %400 = vmatpush2.msra.mxu0 0.0
    %401 = vmatprep.subr.mxu0 0.0
    %402 = vmatpush2.msra.mxu0 0.0
    %403 = vmatprep.subr.mxu0 0.0
    %404 = vmatpush2.msra.mxu0 0.0
    %405 = vmatprep.subr.mxu0 0.0
    %406 = vmatpush2.msra.mxu0 0.0
    %407 = vmatprep.mubr.f32.mxu0 0.0
    %408 = vmatmul.mubr.f32.gmra.mxu0 %v341
    %v409 = vpop.f32.mrf.mxu0
    %v410 = vadd.f32 %v323, %v409
    %v411 = vpop.f32.mrf.mxu0
    %412 = vdwg.mxu0
    %413 = vmatprep.subr.mxu0 0.0
    %414 = vmatpush1.msra.mxu0 0.0
    %415 = vmatprep.subr.mxu0 0.0
    %416 = vmatpush1.msra.mxu0 0.0
    %417 = vmatprep.subr.mxu0 0.0
    %418 = vmatpush1.msra.mxu0 0.0
    %419 = vmatprep.subr.mxu0 0.0
    %420 = vmatpush1.msra.mxu0 0.0
    %421 = vmatprep.subr.mxu0 0.0
    %422 = vmatpush1.msra.mxu0 0.0
    %423 = vmatprep.subr.mxu0 0.0
    %424 = vmatpush1.msra.mxu0 0.0
    %425 = vmatprep.subr.mxu0 0.0
    %426 = vmatpush1.msra.mxu0 0.0
    %427 = vmatprep.subr.mxu0 0.0
    %428 = vmatpush1.msra.mxu0 0.0
    %429 = vmatprep.subr.mxu0 0.0
    %430 = vmatpush1.msra.mxu0 0.0
    %431 = vmatprep.subr.mxu0 0.0
    %432 = vmatpush1.msra.mxu0 0.0
    %433 = vmatprep.subr.mxu0 0.0
    %434 = vmatpush1.msra.mxu0 0.0
    %435 = vmatprep.subr.mxu0 0.0
    %436 = vmatpush1.msra.mxu0 0.0
    %437 = vmatprep.subr.mxu0 0.0
    %438 = vmatpush1.msra.mxu0 %v215
    %439 = vmatprep.subr.mxu0 0.0
    %440 = vmatpush1.msra.mxu0 %v214
    %441 = vmatprep.subr.mxu0 0.0
    %442 = vmatpush1.msra.mxu0 %v213
    %443 = vmatprep.subr.mxu0 0.0
    %444 = vmatpush1.msra.mxu0 %v212
    %445 = vmatprep.subr.mxu0 0.0
    %446 = vmatpush2.msra.mxu0 0.0
    %447 = vmatprep.subr.mxu0 0.0
    %448 = vmatpush2.msra.mxu0 0.0
    %449 = vmatprep.subr.mxu0 0.0
    %450 = vmatpush2.msra.mxu0 0.0
    %451 = vmatprep.subr.mxu0 0.0
    %452 = vmatpush2.msra.mxu0 0.0
    %453 = vmatprep.subr.mxu0 0.0
    %454 = vmatpush2.msra.mxu0 0.0
    %455 = vmatprep.subr.mxu0 0.0
    %456 = vmatpush2.msra.mxu0 0.0
    %457 = vmatprep.subr.mxu0 0.0
    %458 = vmatpush2.msra.mxu0 0.0
    %459 = vmatprep.subr.mxu0 0.0
    %460 = vmatpush2.msra.mxu0 0.0
    %461 = vmatprep.subr.mxu0 0.0
    %462 = vmatpush2.msra.mxu0 0.0
    %463 = vmatprep.subr.mxu0 0.0
    %464 = vmatpush2.msra.mxu0 0.0
    %465 = vmatprep.subr.mxu0 0.0
    %466 = vmatpush2.msra.mxu0 0.0
    %467 = vmatprep.subr.mxu0 0.0
    %468 = vmatpush2.msra.mxu0 0.0
    %469 = vmatprep.subr.mxu0 0.0
    %470 = vmatpush2.msra.mxu0 0.0
    %471 = vmatprep.subr.mxu0 0.0
    %472 = vmatpush2.msra.mxu0 0.0
    %473 = vmatprep.subr.mxu0 0.0
    %474 = vmatpush2.msra.mxu0 0.0
    %475 = vmatprep.subr.mxu0 0.0
    %476 = vmatpush2.msra.mxu0 0.0
    %477 = vmatprep.mubr.f32.mxu0 0.0
    %478 = vmatmul.mubr.f32.gmra.mxu0 %v341
    %v479 = vpop.f32.mrf.mxu0
    %v480 = vadd.f32 %v327, %v479
    %v481 = vpop.f32.mrf.mxu0
    %482 = vdwg.mxu0
    %483 = vmatprep.subr.mxu0 0.0
    %484 = vmatpush1.msra.mxu0 0.0
    %485 = vmatprep.subr.mxu0 0.0
    %486 = vmatpush1.msra.mxu0 0.0
    %487 = vmatprep.subr.mxu0 0.0
    %488 = vmatpush1.msra.mxu0 0.0
    %489 = vmatprep.subr.mxu0 0.0
    %490 = vmatpush1.msra.mxu0 0.0
    %491 = vmatprep.subr.mxu0 0.0
    %492 = vmatpush1.msra.mxu0 0.0
    %493 = vmatprep.subr.mxu0 0.0
    %494 = vmatpush1.msra.mxu0 0.0
    %495 = vmatprep.subr.mxu0 0.0
    %496 = vmatpush1.msra.mxu0 0.0
    %497 = vmatprep.subr.mxu0 0.0
    %498 = vmatpush1.msra.mxu0 0.0
    %499 = vmatprep.subr.mxu0 0.0
    %500 = vmatpush1.msra.mxu0 0.0
    %501 = vmatprep.subr.mxu0 0.0
    %502 = vmatpush1.msra.mxu0 0.0
    %503 = vmatprep.subr.mxu0 0.0
    %504 = vmatpush1.msra.mxu0 0.0
    %505 = vmatprep.subr.mxu0 0.0
    %506 = vmatpush1.msra.mxu0 0.0
    %507 = vmatprep.subr.mxu0 0.0
    %508 = vmatpush1.msra.mxu0 %v219
    %509 = vmatprep.subr.mxu0 0.0
    %510 = vmatpush1.msra.mxu0 %v218
    %511 = vmatprep.subr.mxu0 0.0
    %512 = vmatpush1.msra.mxu0 %v217
    %513 = vmatprep.subr.mxu0 0.0
    %514 = vmatpush1.msra.mxu0 %v216
    %515 = vmatprep.subr.mxu0 0.0
    %516 = vmatpush2.msra.mxu0 0.0
    %517 = vmatprep.subr.mxu0 0.0
    %518 = vmatpush2.msra.mxu0 0.0
    %519 = vmatprep.subr.mxu0 0.0
    %520 = vmatpush2.msra.mxu0 0.0
    %521 = vmatprep.subr.mxu0 0.0
    %522 = vmatpush2.msra.mxu0 0.0
    %523 = vmatprep.subr.mxu0 0.0
    %524 = vmatpush2.msra.mxu0 0.0
    %525 = vmatprep.subr.mxu0 0.0
    %526 = vmatpush2.msra.mxu0 0.0
    %527 = vmatprep.subr.mxu0 0.0
    %528 = vmatpush2.msra.mxu0 0.0
    %529 = vmatprep.subr.mxu0 0.0
    %530 = vmatpush2.msra.mxu0 0.0
    %531 = vmatprep.subr.mxu0 0.0
    %532 = vmatpush2.msra.mxu0 0.0
    %533 = vmatprep.subr.mxu0 0.0
    %534 = vmatpush2.msra.mxu0 0.0
    %535 = vmatprep.subr.mxu0 0.0
    %536 = vmatpush2.msra.mxu0 0.0
    %537 = vmatprep.subr.mxu0 0.0
    %538 = vmatpush2.msra.mxu0 0.0
    %539 = vmatprep.subr.mxu0 0.0
    %540 = vmatpush2.msra.mxu0 0.0
    %541 = vmatprep.subr.mxu0 0.0
    %542 = vmatpush2.msra.mxu0 0.0
    %543 = vmatprep.subr.mxu0 0.0
    %544 = vmatpush2.msra.mxu0 0.0
    %545 = vmatprep.subr.mxu0 0.0
    %546 = vmatpush2.msra.mxu0 0.0
    %547 = vmatprep.mubr.f32.mxu0 0.0
    %548 = vmatmul.mubr.f32.gmra.mxu0 %v341
    %v549 = vpop.f32.mrf.mxu0
    %v550 = vadd.f32 %v331, %v549
    %v551 = vpop.f32.mrf.mxu0
    %552 = vdwg.mxu0
    %553 = vmatprep.subr.mxu0 0.0
    %554 = vmatpush1.msra.mxu0 0.0
    %555 = vmatprep.subr.mxu0 0.0
    %556 = vmatpush1.msra.mxu0 0.0
    %557 = vmatprep.subr.mxu0 0.0
    %558 = vmatpush1.msra.mxu0 0.0
    %559 = vmatprep.subr.mxu0 0.0
    %560 = vmatpush1.msra.mxu0 0.0
    %561 = vmatprep.subr.mxu0 0.0
    %562 = vmatpush1.msra.mxu0 0.0
    %563 = vmatprep.subr.mxu0 0.0
    %564 = vmatpush1.msra.mxu0 0.0
    %565 = vmatprep.subr.mxu0 0.0
    %566 = vmatpush1.msra.mxu0 0.0
    %567 = vmatprep.subr.mxu0 0.0
    %568 = vmatpush1.msra.mxu0 0.0
    %569 = vmatprep.subr.mxu0 0.0
    %570 = vmatpush1.msra.mxu0 0.0
    %571 = vmatprep.subr.mxu0 0.0
    %572 = vmatpush1.msra.mxu0 0.0
    %573 = vmatprep.subr.mxu0 0.0
    %574 = vmatpush1.msra.mxu0 0.0
    %575 = vmatprep.subr.mxu0 0.0
    %576 = vmatpush1.msra.mxu0 0.0
    %577 = vmatprep.subr.mxu0 0.0
    %578 = vmatpush1.msra.mxu0 %v223
    %579 = vmatprep.subr.mxu0 0.0
    %580 = vmatpush1.msra.mxu0 %v222
    %581 = vmatprep.subr.mxu0 0.0
    %582 = vmatpush1.msra.mxu0 %v221
    %583 = vmatprep.subr.mxu0 0.0
    %584 = vmatpush1.msra.mxu0 %v220
    %585 = vmatprep.subr.mxu0 0.0
    %586 = vmatpush2.msra.mxu0 0.0
    %587 = vmatprep.subr.mxu0 0.0
    %588 = vmatpush2.msra.mxu0 0.0
    %589 = vmatprep.subr.mxu0 0.0
    %590 = vmatpush2.msra.mxu0 0.0
    %591 = vmatprep.subr.mxu0 0.0
    %592 = vmatpush2.msra.mxu0 0.0
    %593 = vmatprep.subr.mxu0 0.0
    %594 = vmatpush2.msra.mxu0 0.0
    %595 = vmatprep.subr.mxu0 0.0
    %596 = vmatpush2.msra.mxu0 0.0
    %597 = vmatprep.subr.mxu0 0.0
    %598 = vmatpush2.msra.mxu0 0.0
    %599 = vmatprep.subr.mxu0 0.0
    %600 = vmatpush2.msra.mxu0 0.0
    %601 = vmatprep.subr.mxu0 0.0
    %602 = vmatpush2.msra.mxu0 0.0
    %603 = vmatprep.subr.mxu0 0.0
    %604 = vmatpush2.msra.mxu0 0.0
    %605 = vmatprep.subr.mxu0 0.0
    %606 = vmatpush2.msra.mxu0 0.0
    %607 = vmatprep.subr.mxu0 0.0
    %608 = vmatpush2.msra.mxu0 0.0
    %609 = vmatprep.subr.mxu0 0.0
    %610 = vmatpush2.msra.mxu0 0.0
    %611 = vmatprep.subr.mxu0 0.0
    %612 = vmatpush2.msra.mxu0 0.0
    %613 = vmatprep.subr.mxu0 0.0
    %614 = vmatpush2.msra.mxu0 0.0
    %615 = vmatprep.subr.mxu0 0.0
    %616 = vmatpush2.msra.mxu0 0.0
    %617 = vmatprep.mubr.f32.mxu0 0.0
    %618 = vmatmul.mubr.f32.gmra.mxu0 %v341
    %v619 = vpop.f32.mrf.mxu0
    %v620 = vadd.f32 %v335, %v619
    %v621 = vpop.f32.mrf.mxu0
    %622 = vdwg.mxu0
    %v627 = vlaneseq
    %v628 = vshrl.u32 %v627, 7
    %v629 = vsub.s32 0, %v628
    %v630 = vrot.slane %v244, %v629
    %v631 = vlaneseq
    %v632 = vshrl.u32 %v631, 7
    %v633 = vsub.s32 0, %v632
    %v634 = vrot.slane %v245, %v633
    %v635 = vlaneseq
    %v636 = vshrl.u32 %v635, 7
    %v637 = vsub.s32 0, %v636
    %v638 = vrot.slane %v246, %v637
    %v639 = vlaneseq
    %v640 = vshrl.u32 %v639, 7
    %v641 = vsub.s32 0, %v640
    %v642 = vrot.slane %v247, %v641
    %647 = vmatprep.subr.mxu0 0.0
    %648 = vmatpush1.msra.mxu0 0.0
    %649 = vmatprep.subr.mxu0 0.0
    %650 = vmatpush1.msra.mxu0 0.0
    %651 = vmatprep.subr.mxu0 0.0
    %652 = vmatpush1.msra.mxu0 0.0
    %653 = vmatprep.subr.mxu0 0.0
    %654 = vmatpush1.msra.mxu0 0.0
    %655 = vmatprep.subr.mxu0 0.0
    %656 = vmatpush1.msra.mxu0 0.0
    %657 = vmatprep.subr.mxu0 0.0
    %658 = vmatpush1.msra.mxu0 0.0
    %659 = vmatprep.subr.mxu0 0.0
    %660 = vmatpush1.msra.mxu0 0.0
    %661 = vmatprep.subr.mxu0 0.0
    %662 = vmatpush1.msra.mxu0 0.0
    %663 = vmatprep.subr.mxu0 0.0
    %664 = vmatpush1.msra.mxu0 0.0
    %665 = vmatprep.subr.mxu0 0.0
    %666 = vmatpush1.msra.mxu0 0.0
    %667 = vmatprep.subr.mxu0 0.0
    %668 = vmatpush1.msra.mxu0 0.0
    %669 = vmatprep.subr.mxu0 0.0
    %670 = vmatpush1.msra.mxu0 0.0
    %671 = vmatprep.subr.mxu0 0.0
    %672 = vmatpush1.msra.mxu0 %v231
    %673 = vmatprep.subr.mxu0 0.0
    %674 = vmatpush1.msra.mxu0 %v230
    %675 = vmatprep.subr.mxu0 0.0
    %676 = vmatpush1.msra.mxu0 %v229
    %677 = vmatprep.subr.mxu0 0.0
    %678 = vmatpush1.msra.mxu0 %v228
    %679 = vmatprep.subr.mxu0 0.0
    %680 = vmatpush2.msra.mxu0 0.0
    %681 = vmatprep.subr.mxu0 0.0
    %682 = vmatpush2.msra.mxu0 0.0
    %683 = vmatprep.subr.mxu0 0.0
    %684 = vmatpush2.msra.mxu0 0.0
    %685 = vmatprep.subr.mxu0 0.0
    %686 = vmatpush2.msra.mxu0 0.0
    %687 = vmatprep.subr.mxu0 0.0
    %688 = vmatpush2.msra.mxu0 0.0
    %689 = vmatprep.subr.mxu0 0.0
    %690 = vmatpush2.msra.mxu0 0.0
    %691 = vmatprep.subr.mxu0 0.0
    %692 = vmatpush2.msra.mxu0 0.0
    %693 = vmatprep.subr.mxu0 0.0
    %694 = vmatpush2.msra.mxu0 0.0
    %695 = vmatprep.subr.mxu0 0.0
    %696 = vmatpush2.msra.mxu0 0.0
    %697 = vmatprep.subr.mxu0 0.0
    %698 = vmatpush2.msra.mxu0 0.0
    %699 = vmatprep.subr.mxu0 0.0
    %700 = vmatpush2.msra.mxu0 0.0
    %701 = vmatprep.subr.mxu0 0.0
    %702 = vmatpush2.msra.mxu0 0.0
    %703 = vmatprep.subr.mxu0 0.0
    %704 = vmatpush2.msra.mxu0 0.0
    %705 = vmatprep.subr.mxu0 0.0
    %706 = vmatpush2.msra.mxu0 0.0
    %707 = vmatprep.subr.mxu0 0.0
    %708 = vmatpush2.msra.mxu0 0.0
    %709 = vmatprep.subr.mxu0 0.0
    %710 = vmatpush2.msra.mxu0 0.0
    %711 = vmatprep.mubr.f32.mxu0 0.0
    %712 = vmatmul.mubr.f32.gmra.mxu0 %v341
    %v713 = vpop.f32.mrf.mxu0
    %v714 = vadd.f32 %v630, %v713
    %v715 = vpop.f32.mrf.mxu0
    %716 = vdwg.mxu0
    %717 = vmatprep.subr.mxu0 0.0
    %718 = vmatpush1.msra.mxu0 0.0
    %719 = vmatprep.subr.mxu0 0.0
    %720 = vmatpush1.msra.mxu0 0.0
    %721 = vmatprep.subr.mxu0 0.0
    %722 = vmatpush1.msra.mxu0 0.0
    %723 = vmatprep.subr.mxu0 0.0
    %724 = vmatpush1.msra.mxu0 0.0
    %725 = vmatprep.subr.mxu0 0.0
    %726 = vmatpush1.msra.mxu0 0.0
    %727 = vmatprep.subr.mxu0 0.0
    %728 = vmatpush1.msra.mxu0 0.0
    %729 = vmatprep.subr.mxu0 0.0
    %730 = vmatpush1.msra.mxu0 0.0
    %731 = vmatprep.subr.mxu0 0.0
    %732 = vmatpush1.msra.mxu0 0.0
    %733 = vmatprep.subr.mxu0 0.0
    %734 = vmatpush1.msra.mxu0 0.0
    %735 = vmatprep.subr.mxu0 0.0
    %736 = vmatpush1.msra.mxu0 0.0
    %737 = vmatprep.subr.mxu0 0.0
    %738 = vmatpush1.msra.mxu0 0.0
    %739 = vmatprep.subr.mxu0 0.0
    %740 = vmatpush1.msra.mxu0 0.0
    %741 = vmatprep.subr.mxu0 0.0
    %742 = vmatpush1.msra.mxu0 %v235
    %743 = vmatprep.subr.mxu0 0.0
    %744 = vmatpush1.msra.mxu0 %v234
    %745 = vmatprep.subr.mxu0 0.0
    %746 = vmatpush1.msra.mxu0 %v233
    %747 = vmatprep.subr.mxu0 0.0
    %748 = vmatpush1.msra.mxu0 %v232
    %749 = vmatprep.subr.mxu0 0.0
    %750 = vmatpush2.msra.mxu0 0.0
    %751 = vmatprep.subr.mxu0 0.0
    %752 = vmatpush2.msra.mxu0 0.0
    %753 = vmatprep.subr.mxu0 0.0
    %754 = vmatpush2.msra.mxu0 0.0
    %755 = vmatprep.subr.mxu0 0.0
    %756 = vmatpush2.msra.mxu0 0.0
    %757 = vmatprep.subr.mxu0 0.0
    %758 = vmatpush2.msra.mxu0 0.0
    %759 = vmatprep.subr.mxu0 0.0
    %760 = vmatpush2.msra.mxu0 0.0
    %761 = vmatprep.subr.mxu0 0.0
    %762 = vmatpush2.msra.mxu0 0.0
    %763 = vmatprep.subr.mxu0 0.0
    %764 = vmatpush2.msra.mxu0 0.0
    %765 = vmatprep.subr.mxu0 0.0
    %766 = vmatpush2.msra.mxu0 0.0
    %767 = vmatprep.subr.mxu0 0.0
    %768 = vmatpush2.msra.mxu0 0.0
    %769 = vmatprep.subr.mxu0 0.0
    %770 = vmatpush2.msra.mxu0 0.0
    %771 = vmatprep.subr.mxu0 0.0
    %772 = vmatpush2.msra.mxu0 0.0
    %773 = vmatprep.subr.mxu0 0.0
    %774 = vmatpush2.msra.mxu0 0.0
    %775 = vmatprep.subr.mxu0 0.0
    %776 = vmatpush2.msra.mxu0 0.0
    %777 = vmatprep.subr.mxu0 0.0
    %778 = vmatpush2.msra.mxu0 0.0
    %779 = vmatprep.subr.mxu0 0.0
    %780 = vmatpush2.msra.mxu0 0.0
    %781 = vmatprep.mubr.f32.mxu0 0.0
    %782 = vmatmul.mubr.f32.gmra.mxu0 %v341
    %v783 = vpop.f32.mrf.mxu0
    %v784 = vadd.f32 %v634, %v783
    %v785 = vpop.f32.mrf.mxu0
    %786 = vdwg.mxu0
    %787 = vmatprep.subr.mxu0 0.0
    %788 = vmatpush1.msra.mxu0 0.0
    %789 = vmatprep.subr.mxu0 0.0
    %790 = vmatpush1.msra.mxu0 0.0
    %791 = vmatprep.subr.mxu0 0.0
    %792 = vmatpush1.msra.mxu0 0.0
    %793 = vmatprep.subr.mxu0 0.0
    %794 = vmatpush1.msra.mxu0 0.0
    %795 = vmatprep.subr.mxu0 0.0
    %796 = vmatpush1.msra.mxu0 0.0
    %797 = vmatprep.subr.mxu0 0.0
    %798 = vmatpush1.msra.mxu0 0.0
    %799 = vmatprep.subr.mxu0 0.0
    %800 = vmatpush1.msra.mxu0 0.0
    %801 = vmatprep.subr.mxu0 0.0
    %802 = vmatpush1.msra.mxu0 0.0
    %803 = vmatprep.subr.mxu0 0.0
    %804 = vmatpush1.msra.mxu0 0.0
    %805 = vmatprep.subr.mxu0 0.0
    %806 = vmatpush1.msra.mxu0 0.0
    %807 = vmatprep.subr.mxu0 0.0
    %808 = vmatpush1.msra.mxu0 0.0
    %809 = vmatprep.subr.mxu0 0.0
    %810 = vmatpush1.msra.mxu0 0.0
    %811 = vmatprep.subr.mxu0 0.0
    %812 = vmatpush1.msra.mxu0 %v239
    %813 = vmatprep.subr.mxu0 0.0
    %814 = vmatpush1.msra.mxu0 %v238
    %815 = vmatprep.subr.mxu0 0.0
    %816 = vmatpush1.msra.mxu0 %v237
    %817 = vmatprep.subr.mxu0 0.0
    %818 = vmatpush1.msra.mxu0 %v236
    %819 = vmatprep.subr.mxu0 0.0
    %820 = vmatpush2.msra.mxu0 0.0
    %821 = vmatprep.subr.mxu0 0.0
    %822 = vmatpush2.msra.mxu0 0.0
    %823 = vmatprep.subr.mxu0 0.0
    %824 = vmatpush2.msra.mxu0 0.0
    %825 = vmatprep.subr.mxu0 0.0
    %826 = vmatpush2.msra.mxu0 0.0
    %827 = vmatprep.subr.mxu0 0.0
    %828 = vmatpush2.msra.mxu0 0.0
    %829 = vmatprep.subr.mxu0 0.0
    %830 = vmatpush2.msra.mxu0 0.0
    %831 = vmatprep.subr.mxu0 0.0
    %832 = vmatpush2.msra.mxu0 0.0
    %833 = vmatprep.subr.mxu0 0.0
    %834 = vmatpush2.msra.mxu0 0.0
    %835 = vmatprep.subr.mxu0 0.0
    %836 = vmatpush2.msra.mxu0 0.0
    %837 = vmatprep.subr.mxu0 0.0
    %838 = vmatpush2.msra.mxu0 0.0
    %839 = vmatprep.subr.mxu0 0.0
    %840 = vmatpush2.msra.mxu0 0.0
    %841 = vmatprep.subr.mxu0 0.0
    %842 = vmatpush2.msra.mxu0 0.0
    %843 = vmatprep.subr.mxu0 0.0
    %844 = vmatpush2.msra.mxu0 0.0
    %845 = vmatprep.subr.mxu0 0.0
    %846 = vmatpush2.msra.mxu0 0.0
    %847 = vmatprep.subr.mxu0 0.0
    %848 = vmatpush2.msra.mxu0 0.0
    %849 = vmatprep.subr.mxu0 0.0
    %850 = vmatpush2.msra.mxu0 0.0
    %851 = vmatprep.mubr.f32.mxu0 0.0
    %852 = vmatmul.mubr.f32.gmra.mxu0 %v341
    %v853 = vpop.f32.mrf.mxu0
    %v854 = vadd.f32 %v638, %v853
    %v855 = vpop.f32.mrf.mxu0
    %856 = vdwg.mxu0
    %857 = vmatprep.subr.mxu0 0.0
    %858 = vmatpush1.msra.mxu0 0.0
    %859 = vmatprep.subr.mxu0 0.0
    %860 = vmatpush1.msra.mxu0 0.0
    %861 = vmatprep.subr.mxu0 0.0
    %862 = vmatpush1.msra.mxu0 0.0
    %863 = vmatprep.subr.mxu0 0.0
    %864 = vmatpush1.msra.mxu0 0.0
    %865 = vmatprep.subr.mxu0 0.0
    %866 = vmatpush1.msra.mxu0 0.0
    %867 = vmatprep.subr.mxu0 0.0
    %868 = vmatpush1.msra.mxu0 0.0
    %869 = vmatprep.subr.mxu0 0.0
    %870 = vmatpush1.msra.mxu0 0.0
    %871 = vmatprep.subr.mxu0 0.0
    %872 = vmatpush1.msra.mxu0 0.0
    %873 = vmatprep.subr.mxu0 0.0
    %874 = vmatpush1.msra.mxu0 0.0
    %875 = vmatprep.subr.mxu0 0.0
    %876 = vmatpush1.msra.mxu0 0.0
    %877 = vmatprep.subr.mxu0 0.0
    %878 = vmatpush1.msra.mxu0 0.0
    %879 = vmatprep.subr.mxu0 0.0
    %880 = vmatpush1.msra.mxu0 0.0
    %881 = vmatprep.subr.mxu0 0.0
    %882 = vmatpush1.msra.mxu0 %v243
    %883 = vmatprep.subr.mxu0 0.0
    %884 = vmatpush1.msra.mxu0 %v242
    %885 = vmatprep.subr.mxu0 0.0
    %886 = vmatpush1.msra.mxu0 %v241
    %887 = vmatprep.subr.mxu0 0.0
    %888 = vmatpush1.msra.mxu0 %v240
    %889 = vmatprep.subr.mxu0 0.0
    %890 = vmatpush2.msra.mxu0 0.0
    %891 = vmatprep.subr.mxu0 0.0
    %892 = vmatpush2.msra.mxu0 0.0
    %893 = vmatprep.subr.mxu0 0.0
    %894 = vmatpush2.msra.mxu0 0.0
    %895 = vmatprep.subr.mxu0 0.0
    %896 = vmatpush2.msra.mxu0 0.0
    %897 = vmatprep.subr.mxu0 0.0
    %898 = vmatpush2.msra.mxu0 0.0
    %899 = vmatprep.subr.mxu0 0.0
    %900 = vmatpush2.msra.mxu0 0.0
    %901 = vmatprep.subr.mxu0 0.0
    %902 = vmatpush2.msra.mxu0 0.0
    %903 = vmatprep.subr.mxu0 0.0
    %904 = vmatpush2.msra.mxu0 0.0
    %905 = vmatprep.subr.mxu0 0.0
    %906 = vmatpush2.msra.mxu0 0.0
    %907 = vmatprep.subr.mxu0 0.0
    %908 = vmatpush2.msra.mxu0 0.0
    %909 = vmatprep.subr.mxu0 0.0
    %910 = vmatpush2.msra.mxu0 0.0
    %911 = vmatprep.subr.mxu0 0.0
    %912 = vmatpush2.msra.mxu0 0.0
    %913 = vmatprep.subr.mxu0 0.0
    %914 = vmatpush2.msra.mxu0 0.0
    %915 = vmatprep.subr.mxu0 0.0
    %916 = vmatpush2.msra.mxu0 0.0
    %917 = vmatprep.subr.mxu0 0.0
    %918 = vmatpush2.msra.mxu0 0.0
    %919 = vmatprep.subr.mxu0 0.0
    %920 = vmatpush2.msra.mxu0 0.0
    %921 = vmatprep.mubr.f32.mxu0 0.0
    %922 = vmatmul.mubr.f32.gmra.mxu0 %v341
    %v923 = vpop.f32.mrf.mxu0
    %v924 = vadd.f32 %v642, %v923
    %v925 = vpop.f32.mrf.mxu0
    %926 = vdwg.mxu0
    %v931 = vlaneseq
    %v932 = vshrl.u32 %v931, 7
    %v933 = vsub.s32 0, %v932
    %v934 = vrot.slane %v264, %v933
    %v935 = vlaneseq
    %v936 = vshrl.u32 %v935, 7
    %v937 = vsub.s32 0, %v936
    %v938 = vrot.slane %v265, %v937
    %v939 = vlaneseq
    %v940 = vshrl.u32 %v939, 7
    %v941 = vsub.s32 0, %v940
    %v942 = vrot.slane %v266, %v941
    %v943 = vlaneseq
    %v944 = vshrl.u32 %v943, 7
    %v945 = vsub.s32 0, %v944
    %v946 = vrot.slane %v267, %v945
    %951 = vmatprep.subr.mxu0 0.0
    %952 = vmatpush1.msra.mxu0 0.0
    %953 = vmatprep.subr.mxu0 0.0
    %954 = vmatpush1.msra.mxu0 0.0
    %955 = vmatprep.subr.mxu0 0.0
    %956 = vmatpush1.msra.mxu0 0.0
    %957 = vmatprep.subr.mxu0 0.0
    %958 = vmatpush1.msra.mxu0 0.0
    %959 = vmatprep.subr.mxu0 0.0
    %960 = vmatpush1.msra.mxu0 0.0
    %961 = vmatprep.subr.mxu0 0.0
    %962 = vmatpush1.msra.mxu0 0.0
    %963 = vmatprep.subr.mxu0 0.0
    %964 = vmatpush1.msra.mxu0 0.0
    %965 = vmatprep.subr.mxu0 0.0
    %966 = vmatpush1.msra.mxu0 0.0
    %967 = vmatprep.subr.mxu0 0.0
    %968 = vmatpush1.msra.mxu0 0.0
    %969 = vmatprep.subr.mxu0 0.0
    %970 = vmatpush1.msra.mxu0 0.0
    %971 = vmatprep.subr.mxu0 0.0
    %972 = vmatpush1.msra.mxu0 0.0
    %973 = vmatprep.subr.mxu0 0.0
    %974 = vmatpush1.msra.mxu0 0.0
    %975 = vmatprep.subr.mxu0 0.0
    %976 = vmatpush1.msra.mxu0 %v251
    %977 = vmatprep.subr.mxu0 0.0
    %978 = vmatpush1.msra.mxu0 %v250
    %979 = vmatprep.subr.mxu0 0.0
    %980 = vmatpush1.msra.mxu0 %v249
    %981 = vmatprep.subr.mxu0 0.0
    %982 = vmatpush1.msra.mxu0 %v248
    %983 = vmatprep.subr.mxu0 0.0
    %984 = vmatpush2.msra.mxu0 0.0
    %985 = vmatprep.subr.mxu0 0.0
    %986 = vmatpush2.msra.mxu0 0.0
    %987 = vmatprep.subr.mxu0 0.0
    %988 = vmatpush2.msra.mxu0 0.0
    %989 = vmatprep.subr.mxu0 0.0
    %990 = vmatpush2.msra.mxu0 0.0
    %991 = vmatprep.subr.mxu0 0.0
    %992 = vmatpush2.msra.mxu0 0.0
    %993 = vmatprep.subr.mxu0 0.0
    %994 = vmatpush2.msra.mxu0 0.0
    %995 = vmatprep.subr.mxu0 0.0
    %996 = vmatpush2.msra.mxu0 0.0
    %997 = vmatprep.subr.mxu0 0.0
    %998 = vmatpush2.msra.mxu0 0.0
    %999 = vmatprep.subr.mxu0 0.0
    %1000 = vmatpush2.msra.mxu0 0.0
    %1001 = vmatprep.subr.mxu0 0.0
    %1002 = vmatpush2.msra.mxu0 0.0
    %1003 = vmatprep.subr.mxu0 0.0
    %1004 = vmatpush2.msra.mxu0 0.0
    %1005 = vmatprep.subr.mxu0 0.0
    %1006 = vmatpush2.msra.mxu0 0.0
    %1007 = vmatprep.subr.mxu0 0.0
    %1008 = vmatpush2.msra.mxu0 0.0
    %1009 = vmatprep.subr.mxu0 0.0
    %1010 = vmatpush2.msra.mxu0 0.0
    %1011 = vmatprep.subr.mxu0 0.0
    %1012 = vmatpush2.msra.mxu0 0.0
    %1013 = vmatprep.subr.mxu0 0.0
    %1014 = vmatpush2.msra.mxu0 0.0
    %1015 = vmatprep.mubr.f32.mxu0 0.0
    %1016 = vmatmul.mubr.f32.gmra.mxu0 %v341
    %v1017 = vpop.f32.mrf.mxu0
    %v1018 = vadd.f32 %v934, %v1017
    %v1019 = vpop.f32.mrf.mxu0
    %1020 = vdwg.mxu0
    %1021 = vmatprep.subr.mxu0 0.0
    %1022 = vmatpush1.msra.mxu0 0.0
    %1023 = vmatprep.subr.mxu0 0.0
    %1024 = vmatpush1.msra.mxu0 0.0
    %1025 = vmatprep.subr.mxu0 0.0
    %1026 = vmatpush1.msra.mxu0 0.0
    %1027 = vmatprep.subr.mxu0 0.0
    %1028 = vmatpush1.msra.mxu0 0.0
    %1029 = vmatprep.subr.mxu0 0.0
    %1030 = vmatpush1.msra.mxu0 0.0
    %1031 = vmatprep.subr.mxu0 0.0
    %1032 = vmatpush1.msra.mxu0 0.0
    %1033 = vmatprep.subr.mxu0 0.0
    %1034 = vmatpush1.msra.mxu0 0.0
    %1035 = vmatprep.subr.mxu0 0.0
    %1036 = vmatpush1.msra.mxu0 0.0
    %1037 = vmatprep.subr.mxu0 0.0
    %1038 = vmatpush1.msra.mxu0 0.0
    %1039 = vmatprep.subr.mxu0 0.0
    %1040 = vmatpush1.msra.mxu0 0.0
    %1041 = vmatprep.subr.mxu0 0.0
    %1042 = vmatpush1.msra.mxu0 0.0
    %1043 = vmatprep.subr.mxu0 0.0
    %1044 = vmatpush1.msra.mxu0 0.0
    %1045 = vmatprep.subr.mxu0 0.0
    %1046 = vmatpush1.msra.mxu0 %v255
    %1047 = vmatprep.subr.mxu0 0.0
    %1048 = vmatpush1.msra.mxu0 %v254
    %1049 = vmatprep.subr.mxu0 0.0
    %1050 = vmatpush1.msra.mxu0 %v253
    %1051 = vmatprep.subr.mxu0 0.0
    %1052 = vmatpush1.msra.mxu0 %v252
    %1053 = vmatprep.subr.mxu0 0.0
    %1054 = vmatpush2.msra.mxu0 0.0
    %1055 = vmatprep.subr.mxu0 0.0
    %1056 = vmatpush2.msra.mxu0 0.0
    %1057 = vmatprep.subr.mxu0 0.0
    %1058 = vmatpush2.msra.mxu0 0.0
    %1059 = vmatprep.subr.mxu0 0.0
    %1060 = vmatpush2.msra.mxu0 0.0
    %1061 = vmatprep.subr.mxu0 0.0
    %1062 = vmatpush2.msra.mxu0 0.0
    %1063 = vmatprep.subr.mxu0 0.0
    %1064 = vmatpush2.msra.mxu0 0.0
    %1065 = vmatprep.subr.mxu0 0.0
    %1066 = vmatpush2.msra.mxu0 0.0
    %1067 = vmatprep.subr.mxu0 0.0
    %1068 = vmatpush2.msra.mxu0 0.0
    %1069 = vmatprep.subr.mxu0 0.0
    %1070 = vmatpush2.msra.mxu0 0.0
    %1071 = vmatprep.subr.mxu0 0.0
    %1072 = vmatpush2.msra.mxu0 0.0
    %1073 = vmatprep.subr.mxu0 0.0
    %1074 = vmatpush2.msra.mxu0 0.0
    %1075 = vmatprep.subr.mxu0 0.0
    %1076 = vmatpush2.msra.mxu0 0.0
    %1077 = vmatprep.subr.mxu0 0.0
    %1078 = vmatpush2.msra.mxu0 0.0
    %1079 = vmatprep.subr.mxu0 0.0
    %1080 = vmatpush2.msra.mxu0 0.0
    %1081 = vmatprep.subr.mxu0 0.0
    %1082 = vmatpush2.msra.mxu0 0.0
    %1083 = vmatprep.subr.mxu0 0.0
    %1084 = vmatpush2.msra.mxu0 0.0
    %1085 = vmatprep.mubr.f32.mxu0 0.0
    %1086 = vmatmul.mubr.f32.gmra.mxu0 %v341
    %v1087 = vpop.f32.mrf.mxu0
    %v1088 = vadd.f32 %v938, %v1087
    %v1089 = vpop.f32.mrf.mxu0
    %1090 = vdwg.mxu0
    %1091 = vmatprep.subr.mxu0 0.0
    %1092 = vmatpush1.msra.mxu0 0.0
    %1093 = vmatprep.subr.mxu0 0.0
    %1094 = vmatpush1.msra.mxu0 0.0
    %1095 = vmatprep.subr.mxu0 0.0
    %1096 = vmatpush1.msra.mxu0 0.0
    %1097 = vmatprep.subr.mxu0 0.0
    %1098 = vmatpush1.msra.mxu0 0.0
    %1099 = vmatprep.subr.mxu0 0.0
    %1100 = vmatpush1.msra.mxu0 0.0
    %1101 = vmatprep.subr.mxu0 0.0
    %1102 = vmatpush1.msra.mxu0 0.0
    %1103 = vmatprep.subr.mxu0 0.0
    %1104 = vmatpush1.msra.mxu0 0.0
    %1105 = vmatprep.subr.mxu0 0.0
    %1106 = vmatpush1.msra.mxu0 0.0
    %1107 = vmatprep.subr.mxu0 0.0
    %1108 = vmatpush1.msra.mxu0 0.0
    %1109 = vmatprep.subr.mxu0 0.0
    %1110 = vmatpush1.msra.mxu0 0.0
    %1111 = vmatprep.subr.mxu0 0.0
    %1112 = vmatpush1.msra.mxu0 0.0
    %1113 = vmatprep.subr.mxu0 0.0
    %1114 = vmatpush1.msra.mxu0 0.0
    %1115 = vmatprep.subr.mxu0 0.0
    %1116 = vmatpush1.msra.mxu0 %v259
    %1117 = vmatprep.subr.mxu0 0.0
    %1118 = vmatpush1.msra.mxu0 %v258
    %1119 = vmatprep.subr.mxu0 0.0
    %1120 = vmatpush1.msra.mxu0 %v257
    %1121 = vmatprep.subr.mxu0 0.0
    %1122 = vmatpush1.msra.mxu0 %v256
    %1123 = vmatprep.subr.mxu0 0.0
    %1124 = vmatpush2.msra.mxu0 0.0
    %1125 = vmatprep.subr.mxu0 0.0
    %1126 = vmatpush2.msra.mxu0 0.0
    %1127 = vmatprep.subr.mxu0 0.0
    %1128 = vmatpush2.msra.mxu0 0.0
    %1129 = vmatprep.subr.mxu0 0.0
    %1130 = vmatpush2.msra.mxu0 0.0
    %1131 = vmatprep.subr.mxu0 0.0
    %1132 = vmatpush2.msra.mxu0 0.0
    %1133 = vmatprep.subr.mxu0 0.0
    %1134 = vmatpush2.msra.mxu0 0.0
    %1135 = vmatprep.subr.mxu0 0.0
    %1136 = vmatpush2.msra.mxu0 0.0
    %1137 = vmatprep.subr.mxu0 0.0
    %1138 = vmatpush2.msra.mxu0 0.0
    %1139 = vmatprep.subr.mxu0 0.0
    %1140 = vmatpush2.msra.mxu0 0.0
    %1141 = vmatprep.subr.mxu0 0.0
    %1142 = vmatpush2.msra.mxu0 0.0
    %1143 = vmatprep.subr.mxu0 0.0
    %1144 = vmatpush2.msra.mxu0 0.0
    %1145 = vmatprep.subr.mxu0 0.0
    %1146 = vmatpush2.msra.mxu0 0.0
    %1147 = vmatprep.subr.mxu0 0.0
    %1148 = vmatpush2.msra.mxu0 0.0
    %1149 = vmatprep.subr.mxu0 0.0
    %1150 = vmatpush2.msra.mxu0 0.0
    %1151 = vmatprep.subr.mxu0 0.0
    %1152 = vmatpush2.msra.mxu0 0.0
    %1153 = vmatprep.subr.mxu0 0.0
    %1154 = vmatpush2.msra.mxu0 0.0
    %1155 = vmatprep.mubr.f32.mxu0 0.0
    %1156 = vmatmul.mubr.f32.gmra.mxu0 %v341
    %v1157 = vpop.f32.mrf.mxu0
    %v1158 = vadd.f32 %v942, %v1157
    %v1159 = vpop.f32.mrf.mxu0
    %1160 = vdwg.mxu0
    %1161 = vmatprep.subr.mxu0 0.0
    %1162 = vmatpush1.msra.mxu0 0.0
    %1163 = vmatprep.subr.mxu0 0.0
    %1164 = vmatpush1.msra.mxu0 0.0
    %1165 = vmatprep.subr.mxu0 0.0
    %1166 = vmatpush1.msra.mxu0 0.0
    %1167 = vmatprep.subr.mxu0 0.0
    %1168 = vmatpush1.msra.mxu0 0.0
    %1169 = vmatprep.subr.mxu0 0.0
    %1170 = vmatpush1.msra.mxu0 0.0
    %1171 = vmatprep.subr.mxu0 0.0
    %1172 = vmatpush1.msra.mxu0 0.0
    %1173 = vmatprep.subr.mxu0 0.0
    %1174 = vmatpush1.msra.mxu0 0.0
    %1175 = vmatprep.subr.mxu0 0.0
    %1176 = vmatpush1.msra.mxu0 0.0
    %1177 = vmatprep.subr.mxu0 0.0
    %1178 = vmatpush1.msra.mxu0 0.0
    %1179 = vmatprep.subr.mxu0 0.0
    %1180 = vmatpush1.msra.mxu0 0.0
    %1181 = vmatprep.subr.mxu0 0.0
    %1182 = vmatpush1.msra.mxu0 0.0
    %1183 = vmatprep.subr.mxu0 0.0
    %1184 = vmatpush1.msra.mxu0 0.0
    %1185 = vmatprep.subr.mxu0 0.0
    %1186 = vmatpush1.msra.mxu0 %v263
    %1187 = vmatprep.subr.mxu0 0.0
    %1188 = vmatpush1.msra.mxu0 %v262
    %1189 = vmatprep.subr.mxu0 0.0
    %1190 = vmatpush1.msra.mxu0 %v261
    %1191 = vmatprep.subr.mxu0 0.0
    %1192 = vmatpush1.msra.mxu0 %v260
    %1193 = vmatprep.subr.mxu0 0.0
    %1194 = vmatpush2.msra.mxu0 0.0
    %1195 = vmatprep.subr.mxu0 0.0
    %1196 = vmatpush2.msra.mxu0 0.0
    %1197 = vmatprep.subr.mxu0 0.0
    %1198 = vmatpush2.msra.mxu0 0.0
    %1199 = vmatprep.subr.mxu0 0.0
    %1200 = vmatpush2.msra.mxu0 0.0
    %1201 = vmatprep.subr.mxu0 0.0
    %1202 = vmatpush2.msra.mxu0 0.0
    %1203 = vmatprep.subr.mxu0 0.0
    %1204 = vmatpush2.msra.mxu0 0.0
    %1205 = vmatprep.subr.mxu0 0.0
    %1206 = vmatpush2.msra.mxu0 0.0
    %1207 = vmatprep.subr.mxu0 0.0
    %1208 = vmatpush2.msra.mxu0 0.0
    %1209 = vmatprep.subr.mxu0 0.0
    %1210 = vmatpush2.msra.mxu0 0.0
    %1211 = vmatprep.subr.mxu0 0.0
    %1212 = vmatpush2.msra.mxu0 0.0
    %1213 = vmatprep.subr.mxu0 0.0
    %1214 = vmatpush2.msra.mxu0 0.0
    %1215 = vmatprep.subr.mxu0 0.0
    %1216 = vmatpush2.msra.mxu0 0.0
    %1217 = vmatprep.subr.mxu0 0.0
    %1218 = vmatpush2.msra.mxu0 0.0
    %1219 = vmatprep.subr.mxu0 0.0
    %1220 = vmatpush2.msra.mxu0 0.0
    %1221 = vmatprep.subr.mxu0 0.0
    %1222 = vmatpush2.msra.mxu0 0.0
    %1223 = vmatprep.subr.mxu0 0.0
    %1224 = vmatpush2.msra.mxu0 0.0
    %1225 = vmatprep.mubr.f32.mxu0 0.0
    %1226 = vmatmul.mubr.f32.gmra.mxu0 %v341
    %v1227 = vpop.f32.mrf.mxu0
    %v1228 = vadd.f32 %v946, %v1227
    %v1229 = vpop.f32.mrf.mxu0
    %1230 = vdwg.mxu0
    %vm1231 = vcmask 64512
    %v1233 = vsel %vm1231, %v410, 0
    %v1236 = vsel %vm1231, %v714, 0
    %1238 = vmatprep.subr.mxu0 0.0
    %1239 = vmatpush1.xpose.msra.mxu0 0.0
    %1240 = vmatprep.subr.mxu0 0.0
    %1241 = vmatpush1.xpose.msra.mxu0 0.0
    %1242 = vmatprep.subr.mxu0 0.0
    %1243 = vmatpush1.xpose.msra.mxu0 0.0
    %1244 = vmatprep.subr.mxu0 0.0
    %1245 = vmatpush1.xpose.msra.mxu0 0.0
    %1246 = vmatprep.subr.mxu0 0.0
    %1247 = vmatpush1.xpose.msra.mxu0 0.0
    %1248 = vmatprep.subr.mxu0 0.0
    %1249 = vmatpush1.xpose.msra.mxu0 0.0
    %1250 = vmatprep.subr.mxu0 0.0
    %1251 = vmatpush1.xpose.msra.mxu0 0.0
    %1252 = vmatprep.subr.mxu0 0.0
    %1253 = vmatpush1.xpose.msra.mxu0 0.0
    %1254 = vmatprep.subr.mxu0 0.0
    %1255 = vmatpush1.xpose.msra.mxu0 0.0
    %1256 = vmatprep.subr.mxu0 0.0
    %1257 = vmatpush1.xpose.msra.mxu0 0.0
    %1258 = vmatprep.subr.mxu0 0.0
    %1259 = vmatpush1.xpose.msra.mxu0 0.0
    %1260 = vmatprep.subr.mxu0 0.0
    %1261 = vmatpush1.xpose.msra.mxu0 0.0
    %1262 = vmatprep.subr.mxu0 0.0
    %1263 = vmatpush1.xpose.msra.mxu0 0.0
    %1264 = vmatprep.subr.mxu0 0.0
    %1265 = vmatpush1.xpose.msra.mxu0 0.0
    %1266 = vmatprep.subr.mxu0 0.0
    %1267 = vmatpush1.xpose.msra.mxu0 0.0
    %1268 = vmatprep.subr.mxu0 0.0
    %1269 = vmatpush1.xpose.msra.mxu0 %v1236
    %1270 = vmatprep.subr.mxu0 0.0
    %1271 = vmatpush2.xpose.msra.mxu0 0.0
    %1272 = vmatprep.subr.mxu0 0.0
    %1273 = vmatpush2.xpose.msra.mxu0 0.0
    %1274 = vmatprep.subr.mxu0 0.0
    %1275 = vmatpush2.xpose.msra.mxu0 0.0
    %1276 = vmatprep.subr.mxu0 0.0
    %1277 = vmatpush2.xpose.msra.mxu0 0.0
    %1278 = vmatprep.subr.mxu0 0.0
    %1279 = vmatpush2.xpose.msra.mxu0 0.0
    %1280 = vmatprep.subr.mxu0 0.0
    %1281 = vmatpush2.xpose.msra.mxu0 0.0
    %1282 = vmatprep.subr.mxu0 0.0
    %1283 = vmatpush2.xpose.msra.mxu0 0.0
    %1284 = vmatprep.subr.mxu0 0.0
    %1285 = vmatpush2.xpose.msra.mxu0 0.0
    %1286 = vmatprep.subr.mxu0 0.0
    %1287 = vmatpush2.xpose.msra.mxu0 0.0
    %1288 = vmatprep.subr.mxu0 0.0
    %1289 = vmatpush2.xpose.msra.mxu0 0.0
    %1290 = vmatprep.subr.mxu0 0.0
    %1291 = vmatpush2.xpose.msra.mxu0 0.0
    %1292 = vmatprep.subr.mxu0 0.0
    %1293 = vmatpush2.xpose.msra.mxu0 0.0
    %1294 = vmatprep.subr.mxu0 0.0
    %1295 = vmatpush2.xpose.msra.mxu0 0.0
    %1296 = vmatprep.subr.mxu0 0.0
    %1297 = vmatpush2.xpose.msra.mxu0 0.0
    %1298 = vmatprep.subr.mxu0 0.0
    %1299 = vmatpush2.xpose.msra.mxu0 0.0
    %1300 = vmatprep.subr.mxu0 0.0
    %1301 = vmatpush2.xpose.msra.mxu0 0.0
    %1302 = vmatprep.mubr.f32.mxu0 0.0
    %1303 = vmatmul.mubr.f32.gmra.mxu0 %v1233
    %v1304 = vpop.f32.mrf.mxu0
    %v1305 = vadd.f32 0.0, %v1304
    %v1306 = vpop.f32.mrf.mxu0
    %1307 = vdwg.mxu0
    %v1309 = vsel %vm1231, %v480, 0
    %v1312 = vsel %vm1231, %v784, 0
    %1314 = vmatprep.subr.mxu0 0.0
    %1315 = vmatpush1.xpose.msra.mxu0 0.0
    %1316 = vmatprep.subr.mxu0 0.0
    %1317 = vmatpush1.xpose.msra.mxu0 0.0
    %1318 = vmatprep.subr.mxu0 0.0
    %1319 = vmatpush1.xpose.msra.mxu0 0.0
    %1320 = vmatprep.subr.mxu0 0.0
    %1321 = vmatpush1.xpose.msra.mxu0 0.0
    %1322 = vmatprep.subr.mxu0 0.0
    %1323 = vmatpush1.xpose.msra.mxu0 0.0
    %1324 = vmatprep.subr.mxu0 0.0
    %1325 = vmatpush1.xpose.msra.mxu0 0.0
    %1326 = vmatprep.subr.mxu0 0.0
    %1327 = vmatpush1.xpose.msra.mxu0 0.0
    %1328 = vmatprep.subr.mxu0 0.0
    %1329 = vmatpush1.xpose.msra.mxu0 0.0
    %1330 = vmatprep.subr.mxu0 0.0
    %1331 = vmatpush1.xpose.msra.mxu0 0.0
    %1332 = vmatprep.subr.mxu0 0.0
    %1333 = vmatpush1.xpose.msra.mxu0 0.0
    %1334 = vmatprep.subr.mxu0 0.0
    %1335 = vmatpush1.xpose.msra.mxu0 0.0
    %1336 = vmatprep.subr.mxu0 0.0
    %1337 = vmatpush1.xpose.msra.mxu0 0.0
    %1338 = vmatprep.subr.mxu0 0.0
    %1339 = vmatpush1.xpose.msra.mxu0 0.0
    %1340 = vmatprep.subr.mxu0 0.0
    %1341 = vmatpush1.xpose.msra.mxu0 0.0
    %1342 = vmatprep.subr.mxu0 0.0
    %1343 = vmatpush1.xpose.msra.mxu0 0.0
    %1344 = vmatprep.subr.mxu0 0.0
    %1345 = vmatpush1.xpose.msra.mxu0 %v1312
    %1346 = vmatprep.subr.mxu0 0.0
    %1347 = vmatpush2.xpose.msra.mxu0 0.0
    %1348 = vmatprep.subr.mxu0 0.0
    %1349 = vmatpush2.xpose.msra.mxu0 0.0
    %1350 = vmatprep.subr.mxu0 0.0
    %1351 = vmatpush2.xpose.msra.mxu0 0.0
    %1352 = vmatprep.subr.mxu0 0.0
    %1353 = vmatpush2.xpose.msra.mxu0 0.0
    %1354 = vmatprep.subr.mxu0 0.0
    %1355 = vmatpush2.xpose.msra.mxu0 0.0
    %1356 = vmatprep.subr.mxu0 0.0
    %1357 = vmatpush2.xpose.msra.mxu0 0.0
    %1358 = vmatprep.subr.mxu0 0.0
    %1359 = vmatpush2.xpose.msra.mxu0 0.0
    %1360 = vmatprep.subr.mxu0 0.0
    %1361 = vmatpush2.xpose.msra.mxu0 0.0
    %1362 = vmatprep.subr.mxu0 0.0
    %1363 = vmatpush2.xpose.msra.mxu0 0.0
    %1364 = vmatprep.subr.mxu0 0.0
    %1365 = vmatpush2.xpose.msra.mxu0 0.0
    %1366 = vmatprep.subr.mxu0 0.0
    %1367 = vmatpush2.xpose.msra.mxu0 0.0
    %1368 = vmatprep.subr.mxu0 0.0
    %1369 = vmatpush2.xpose.msra.mxu0 0.0
    %1370 = vmatprep.subr.mxu0 0.0
    %1371 = vmatpush2.xpose.msra.mxu0 0.0
    %1372 = vmatprep.subr.mxu0 0.0
    %1373 = vmatpush2.xpose.msra.mxu0 0.0
    %1374 = vmatprep.subr.mxu0 0.0
    %1375 = vmatpush2.xpose.msra.mxu0 0.0
    %1376 = vmatprep.subr.mxu0 0.0
    %1377 = vmatpush2.xpose.msra.mxu0 0.0
    %1378 = vmatprep.mubr.f32.mxu0 0.0
    %1379 = vmatmul.mubr.f32.gmra.mxu0 %v1309
    %v1380 = vpop.f32.mrf.mxu0
    %v1381 = vadd.f32 0.0, %v1380
    %v1382 = vpop.f32.mrf.mxu0
    %1383 = vdwg.mxu0
    %v1385 = vsel %vm1231, %v550, 0
    %v1388 = vsel %vm1231, %v854, 0
    %1390 = vmatprep.subr.mxu0 0.0
    %1391 = vmatpush1.xpose.msra.mxu0 0.0
    %1392 = vmatprep.subr.mxu0 0.0
    %1393 = vmatpush1.xpose.msra.mxu0 0.0
    %1394 = vmatprep.subr.mxu0 0.0
    %1395 = vmatpush1.xpose.msra.mxu0 0.0
    %1396 = vmatprep.subr.mxu0 0.0
    %1397 = vmatpush1.xpose.msra.mxu0 0.0
    %1398 = vmatprep.subr.mxu0 0.0
    %1399 = vmatpush1.xpose.msra.mxu0 0.0
    %1400 = vmatprep.subr.mxu0 0.0
    %1401 = vmatpush1.xpose.msra.mxu0 0.0
    %1402 = vmatprep.subr.mxu0 0.0
    %1403 = vmatpush1.xpose.msra.mxu0 0.0
    %1404 = vmatprep.subr.mxu0 0.0
    %1405 = vmatpush1.xpose.msra.mxu0 0.0
    %1406 = vmatprep.subr.mxu0 0.0
    %1407 = vmatpush1.xpose.msra.mxu0 0.0
    %1408 = vmatprep.subr.mxu0 0.0
    %1409 = vmatpush1.xpose.msra.mxu0 0.0
    %1410 = vmatprep.subr.mxu0 0.0
    %1411 = vmatpush1.xpose.msra.mxu0 0.0
    %1412 = vmatprep.subr.mxu0 0.0
    %1413 = vmatpush1.xpose.msra.mxu0 0.0
    %1414 = vmatprep.subr.mxu0 0.0
    %1415 = vmatpush1.xpose.msra.mxu0 0.0
    %1416 = vmatprep.subr.mxu0 0.0
    %1417 = vmatpush1.xpose.msra.mxu0 0.0
    %1418 = vmatprep.subr.mxu0 0.0
    %1419 = vmatpush1.xpose.msra.mxu0 0.0
    %1420 = vmatprep.subr.mxu0 0.0
    %1421 = vmatpush1.xpose.msra.mxu0 %v1388
    %1422 = vmatprep.subr.mxu0 0.0
    %1423 = vmatpush2.xpose.msra.mxu0 0.0
    %1424 = vmatprep.subr.mxu0 0.0
    %1425 = vmatpush2.xpose.msra.mxu0 0.0
    %1426 = vmatprep.subr.mxu0 0.0
    %1427 = vmatpush2.xpose.msra.mxu0 0.0
    %1428 = vmatprep.subr.mxu0 0.0
    %1429 = vmatpush2.xpose.msra.mxu0 0.0
    %1430 = vmatprep.subr.mxu0 0.0
    %1431 = vmatpush2.xpose.msra.mxu0 0.0
    %1432 = vmatprep.subr.mxu0 0.0
    %1433 = vmatpush2.xpose.msra.mxu0 0.0
    %1434 = vmatprep.subr.mxu0 0.0
    %1435 = vmatpush2.xpose.msra.mxu0 0.0
    %1436 = vmatprep.subr.mxu0 0.0
    %1437 = vmatpush2.xpose.msra.mxu0 0.0
    %1438 = vmatprep.subr.mxu0 0.0
    %1439 = vmatpush2.xpose.msra.mxu0 0.0
    %1440 = vmatprep.subr.mxu0 0.0
    %1441 = vmatpush2.xpose.msra.mxu0 0.0
    %1442 = vmatprep.subr.mxu0 0.0
    %1443 = vmatpush2.xpose.msra.mxu0 0.0
    %1444 = vmatprep.subr.mxu0 0.0
    %1445 = vmatpush2.xpose.msra.mxu0 0.0
    %1446 = vmatprep.subr.mxu0 0.0
    %1447 = vmatpush2.xpose.msra.mxu0 0.0
    %1448 = vmatprep.subr.mxu0 0.0
    %1449 = vmatpush2.xpose.msra.mxu0 0.0
    %1450 = vmatprep.subr.mxu0 0.0
    %1451 = vmatpush2.xpose.msra.mxu0 0.0
    %1452 = vmatprep.subr.mxu0 0.0
    %1453 = vmatpush2.xpose.msra.mxu0 0.0
    %1454 = vmatprep.mubr.f32.mxu0 0.0
    %1455 = vmatmul.mubr.f32.gmra.mxu0 %v1385
    %v1456 = vpop.f32.mrf.mxu0
    %v1457 = vadd.f32 0.0, %v1456
    %v1458 = vpop.f32.mrf.mxu0
    %1459 = vdwg.mxu0
    %v1461 = vsel %vm1231, %v620, 0
    %v1464 = vsel %vm1231, %v924, 0
    %1466 = vmatprep.subr.mxu0 0.0
    %1467 = vmatpush1.xpose.msra.mxu0 0.0
    %1468 = vmatprep.subr.mxu0 0.0
    %1469 = vmatpush1.xpose.msra.mxu0 0.0
    %1470 = vmatprep.subr.mxu0 0.0
    %1471 = vmatpush1.xpose.msra.mxu0 0.0
    %1472 = vmatprep.subr.mxu0 0.0
    %1473 = vmatpush1.xpose.msra.mxu0 0.0
    %1474 = vmatprep.subr.mxu0 0.0
    %1475 = vmatpush1.xpose.msra.mxu0 0.0
    %1476 = vmatprep.subr.mxu0 0.0
    %1477 = vmatpush1.xpose.msra.mxu0 0.0
    %1478 = vmatprep.subr.mxu0 0.0
    %1479 = vmatpush1.xpose.msra.mxu0 0.0
    %1480 = vmatprep.subr.mxu0 0.0
    %1481 = vmatpush1.xpose.msra.mxu0 0.0
    %1482 = vmatprep.subr.mxu0 0.0
    %1483 = vmatpush1.xpose.msra.mxu0 0.0
    %1484 = vmatprep.subr.mxu0 0.0
    %1485 = vmatpush1.xpose.msra.mxu0 0.0
    %1486 = vmatprep.subr.mxu0 0.0
    %1487 = vmatpush1.xpose.msra.mxu0 0.0
    %1488 = vmatprep.subr.mxu0 0.0
    %1489 = vmatpush1.xpose.msra.mxu0 0.0
    %1490 = vmatprep.subr.mxu0 0.0
    %1491 = vmatpush1.xpose.msra.mxu0 0.0
    %1492 = vmatprep.subr.mxu0 0.0
    %1493 = vmatpush1.xpose.msra.mxu0 0.0
    %1494 = vmatprep.subr.mxu0 0.0
    %1495 = vmatpush1.xpose.msra.mxu0 0.0
    %1496 = vmatprep.subr.mxu0 0.0
    %1497 = vmatpush1.xpose.msra.mxu0 %v1464
    %1498 = vmatprep.subr.mxu0 0.0
    %1499 = vmatpush2.xpose.msra.mxu0 0.0
    %1500 = vmatprep.subr.mxu0 0.0
    %1501 = vmatpush2.xpose.msra.mxu0 0.0
    %1502 = vmatprep.subr.mxu0 0.0
    %1503 = vmatpush2.xpose.msra.mxu0 0.0
    %1504 = vmatprep.subr.mxu0 0.0
    %1505 = vmatpush2.xpose.msra.mxu0 0.0
    %1506 = vmatprep.subr.mxu0 0.0
    %1507 = vmatpush2.xpose.msra.mxu0 0.0
    %1508 = vmatprep.subr.mxu0 0.0
    %1509 = vmatpush2.xpose.msra.mxu0 0.0
    %1510 = vmatprep.subr.mxu0 0.0
    %1511 = vmatpush2.xpose.msra.mxu0 0.0
    %1512 = vmatprep.subr.mxu0 0.0
    %1513 = vmatpush2.xpose.msra.mxu0 0.0
    %1514 = vmatprep.subr.mxu0 0.0
    %1515 = vmatpush2.xpose.msra.mxu0 0.0
    %1516 = vmatprep.subr.mxu0 0.0
    %1517 = vmatpush2.xpose.msra.mxu0 0.0
    %1518 = vmatprep.subr.mxu0 0.0
    %1519 = vmatpush2.xpose.msra.mxu0 0.0
    %1520 = vmatprep.subr.mxu0 0.0
    %1521 = vmatpush2.xpose.msra.mxu0 0.0
    %1522 = vmatprep.subr.mxu0 0.0
    %1523 = vmatpush2.xpose.msra.mxu0 0.0
    %1524 = vmatprep.subr.mxu0 0.0
    %1525 = vmatpush2.xpose.msra.mxu0 0.0
    %1526 = vmatprep.subr.mxu0 0.0
    %1527 = vmatpush2.xpose.msra.mxu0 0.0
    %1528 = vmatprep.subr.mxu0 0.0
    %1529 = vmatpush2.xpose.msra.mxu0 0.0
    %1530 = vmatprep.mubr.f32.mxu0 0.0
    %1531 = vmatmul.mubr.f32.gmra.mxu0 %v1461
    %v1532 = vpop.f32.mrf.mxu0
    %v1533 = vadd.f32 0.0, %v1532
    %v1534 = vpop.f32.mrf.mxu0
    %1535 = vdwg.mxu0
    %v1536 = vmul.f32 %v1305, 0.35355338
    %v1537 = vmul.f32 %v1381, 0.35355338
    %v1538 = vmul.f32 %v1457, 0.35355338
    %v1539 = vmul.f32 %v1533, 0.35355338
    %v1540 = vadd.f32 %v1536, %v187
    %v1541 = vadd.f32 %v1537, %v187
    %v1542 = vadd.f32 %v1538, %v187
    %v1543 = vadd.f32 %v1539, %v187
    %v1544 = vsel %vm1231, %v1540, -inf
    %1545 = vmax.xlane.f32.xlu0 %v1544
    %v1546 = vpop.xlane.xlu0 %1545
    %v1547 = vsel %vm1231, %v1541, -inf
    %1548 = vmax.xlane.f32.xlu0 %v1547
    %v1549 = vpop.xlane.xlu0 %1548
    %v1550 = vsel %vm1231, %v1542, -inf
    %1551 = vmax.xlane.f32.xlu0 %v1550
    %v1552 = vpop.xlane.xlu0 %1551
    %v1553 = vsel %vm1231, %v1543, -inf
    %1554 = vmax.xlane.f32.xlu0 %v1553
    %v1555 = vpop.xlane.xlu0 %1554
    %v1556 = vsub.f32 %v1540, %v1546
    %v1557 = vsub.f32 %v1541, %v1549
    %v1558 = vsub.f32 %v1542, %v1552
    %v1559 = vsub.f32 %v1543, %v1555
    %v1560 = vmul.f32 %v1556, 1.442695
    %v1561 = vpow.pop %v1560
    %v1562 = vmul.f32 %v1557, 1.442695
    %v1563 = vpow.pop %v1562
    %v1564 = vmul.f32 %v1558, 1.442695
    %v1565 = vpow.pop %v1564
    %v1566 = vmul.f32 %v1559, 1.442695
    %v1567 = vpow.pop %v1566
    %v1568 = vsel %vm1231, %v1561, 0.0
    %1569 = vadd.xlane.f32.xlu0 %v1568
    %v1570 = vpop.xlane.xlu0 %1569
    %v1571 = vsel %vm1231, %v1563, 0.0
    %1572 = vadd.xlane.f32.xlu0 %v1571
    %v1573 = vpop.xlane.xlu0 %1572
    %v1574 = vsel %vm1231, %v1565, 0.0
    %1575 = vadd.xlane.f32.xlu0 %v1574
    %v1576 = vpop.xlane.xlu0 %1575
    %v1577 = vsel %vm1231, %v1567, 0.0
    %1578 = vadd.xlane.f32.xlu0 %v1577
    %v1579 = vpop.xlane.xlu0 %1578
    %v1580 = vrcp.pop %v1570
    %v1581 = vmul.f32 %v1561, %v1580
    %v1582 = vrcp.pop %v1573
    %v1583 = vmul.f32 %v1563, %v1582
    %v1584 = vrcp.pop %v1576
    %v1585 = vmul.f32 %v1565, %v1584
    %v1586 = vrcp.pop %v1579
    %v1587 = vmul.f32 %v1567, %v1586
    %v1589 = vsel %vm1231, %v1581, 0
    %1591 = vmatprep.subr.mxu0 0.0
    %1592 = vmatpush1.msra.mxu0 0.0
    %1593 = vmatprep.subr.mxu0 0.0
    %1594 = vmatpush1.msra.mxu0 0.0
    %1595 = vmatprep.subr.mxu0 0.0
    %1596 = vmatpush1.msra.mxu0 0.0
    %1597 = vmatprep.subr.mxu0 0.0
    %1598 = vmatpush1.msra.mxu0 0.0
    %1599 = vmatprep.subr.mxu0 0.0
    %1600 = vmatpush1.msra.mxu0 0.0
    %1601 = vmatprep.subr.mxu0 0.0
    %1602 = vmatpush1.msra.mxu0 0.0
    %1603 = vmatprep.subr.mxu0 0.0
    %1604 = vmatpush1.msra.mxu0 0.0
    %1605 = vmatprep.subr.mxu0 0.0
    %1606 = vmatpush1.msra.mxu0 0.0
    %1607 = vmatprep.subr.mxu0 0.0
    %1608 = vmatpush1.msra.mxu0 0.0
    %1609 = vmatprep.subr.mxu0 0.0
    %1610 = vmatpush1.msra.mxu0 0.0
    %1611 = vmatprep.subr.mxu0 0.0
    %1612 = vmatpush1.msra.mxu0 0.0
    %1613 = vmatprep.subr.mxu0 0.0
    %1614 = vmatpush1.msra.mxu0 0.0
    %1615 = vmatprep.subr.mxu0 0.0
    %1616 = vmatpush1.msra.mxu0 0.0
    %1617 = vmatprep.subr.mxu0 0.0
    %1618 = vmatpush1.msra.mxu0 0.0
    %1619 = vmatprep.subr.mxu0 0.0
    %1620 = vmatpush1.msra.mxu0 0.0
    %1621 = vmatprep.subr.mxu0 0.0
    %1622 = vmatpush1.msra.mxu0 %v1018
    %1623 = vmatprep.subr.mxu0 0.0
    %1624 = vmatpush2.msra.mxu0 0.0
    %1625 = vmatprep.subr.mxu0 0.0
    %1626 = vmatpush2.msra.mxu0 0.0
    %1627 = vmatprep.subr.mxu0 0.0
    %1628 = vmatpush2.msra.mxu0 0.0
    %1629 = vmatprep.subr.mxu0 0.0
    %1630 = vmatpush2.msra.mxu0 0.0
    %1631 = vmatprep.subr.mxu0 0.0
    %1632 = vmatpush2.msra.mxu0 0.0
    %1633 = vmatprep.subr.mxu0 0.0
    %1634 = vmatpush2.msra.mxu0 0.0
    %1635 = vmatprep.subr.mxu0 0.0
    %1636 = vmatpush2.msra.mxu0 0.0
    %1637 = vmatprep.subr.mxu0 0.0
    %1638 = vmatpush2.msra.mxu0 0.0
    %1639 = vmatprep.subr.mxu0 0.0
    %1640 = vmatpush2.msra.mxu0 0.0
    %1641 = vmatprep.subr.mxu0 0.0
    %1642 = vmatpush2.msra.mxu0 0.0
    %1643 = vmatprep.subr.mxu0 0.0
    %1644 = vmatpush2.msra.mxu0 0.0
    %1645 = vmatprep.subr.mxu0 0.0
    %1646 = vmatpush2.msra.mxu0 0.0
    %1647 = vmatprep.subr.mxu0 0.0
    %1648 = vmatpush2.msra.mxu0 0.0
    %1649 = vmatprep.subr.mxu0 0.0
    %1650 = vmatpush2.msra.mxu0 0.0
    %1651 = vmatprep.subr.mxu0 0.0
    %1652 = vmatpush2.msra.mxu0 0.0
    %1653 = vmatprep.subr.mxu0 0.0
    %1654 = vmatpush2.msra.mxu0 0.0
    %1655 = vmatprep.mubr.f32.mxu0 0.0
    %1656 = vmatmul.mubr.f32.gmra.mxu0 %v1589
    %v1657 = vpop.f32.mrf.mxu0
    %v1658 = vadd.f32 0.0, %v1657
    %v1659 = vpop.f32.mrf.mxu0
    %1660 = vdwg.mxu0
    %v1662 = vsel %vm1231, %v1583, 0
    %1664 = vmatprep.subr.mxu0 0.0
    %1665 = vmatpush1.msra.mxu0 0.0
    %1666 = vmatprep.subr.mxu0 0.0
    %1667 = vmatpush1.msra.mxu0 0.0
    %1668 = vmatprep.subr.mxu0 0.0
    %1669 = vmatpush1.msra.mxu0 0.0
    %1670 = vmatprep.subr.mxu0 0.0
    %1671 = vmatpush1.msra.mxu0 0.0
    %1672 = vmatprep.subr.mxu0 0.0
    %1673 = vmatpush1.msra.mxu0 0.0
    %1674 = vmatprep.subr.mxu0 0.0
    %1675 = vmatpush1.msra.mxu0 0.0
    %1676 = vmatprep.subr.mxu0 0.0
    %1677 = vmatpush1.msra.mxu0 0.0
    %1678 = vmatprep.subr.mxu0 0.0
    %1679 = vmatpush1.msra.mxu0 0.0
    %1680 = vmatprep.subr.mxu0 0.0
    %1681 = vmatpush1.msra.mxu0 0.0
    %1682 = vmatprep.subr.mxu0 0.0
    %1683 = vmatpush1.msra.mxu0 0.0
    %1684 = vmatprep.subr.mxu0 0.0
    %1685 = vmatpush1.msra.mxu0 0.0
    %1686 = vmatprep.subr.mxu0 0.0
    %1687 = vmatpush1.msra.mxu0 0.0
    %1688 = vmatprep.subr.mxu0 0.0
    %1689 = vmatpush1.msra.mxu0 0.0
    %1690 = vmatprep.subr.mxu0 0.0
    %1691 = vmatpush1.msra.mxu0 0.0
    %1692 = vmatprep.subr.mxu0 0.0
    %1693 = vmatpush1.msra.mxu0 0.0
    %1694 = vmatprep.subr.mxu0 0.0
    %1695 = vmatpush1.msra.mxu0 %v1088
    %1696 = vmatprep.subr.mxu0 0.0
    %1697 = vmatpush2.msra.mxu0 0.0
    %1698 = vmatprep.subr.mxu0 0.0
    %1699 = vmatpush2.msra.mxu0 0.0
    %1700 = vmatprep.subr.mxu0 0.0
    %1701 = vmatpush2.msra.mxu0 0.0
    %1702 = vmatprep.subr.mxu0 0.0
    %1703 = vmatpush2.msra.mxu0 0.0
    %1704 = vmatprep.subr.mxu0 0.0
    %1705 = vmatpush2.msra.mxu0 0.0
    %1706 = vmatprep.subr.mxu0 0.0
    %1707 = vmatpush2.msra.mxu0 0.0
    %1708 = vmatprep.subr.mxu0 0.0
    %1709 = vmatpush2.msra.mxu0 0.0
    %1710 = vmatprep.subr.mxu0 0.0
    %1711 = vmatpush2.msra.mxu0 0.0
    %1712 = vmatprep.subr.mxu0 0.0
    %1713 = vmatpush2.msra.mxu0 0.0
    %1714 = vmatprep.subr.mxu0 0.0
    %1715 = vmatpush2.msra.mxu0 0.0
    %1716 = vmatprep.subr.mxu0 0.0
    %1717 = vmatpush2.msra.mxu0 0.0
    %1718 = vmatprep.subr.mxu0 0.0
    %1719 = vmatpush2.msra.mxu0 0.0
    %1720 = vmatprep.subr.mxu0 0.0
    %1721 = vmatpush2.msra.mxu0 0.0
    %1722 = vmatprep.subr.mxu0 0.0
    %1723 = vmatpush2.msra.mxu0 0.0
    %1724 = vmatprep.subr.mxu0 0.0
    %1725 = vmatpush2.msra.mxu0 0.0
    %1726 = vmatprep.subr.mxu0 0.0
    %1727 = vmatpush2.msra.mxu0 0.0
    %1728 = vmatprep.mubr.f32.mxu0 0.0
    %1729 = vmatmul.mubr.f32.gmra.mxu0 %v1662
    %v1730 = vpop.f32.mrf.mxu0
    %v1731 = vadd.f32 0.0, %v1730
    %v1732 = vpop.f32.mrf.mxu0
    %1733 = vdwg.mxu0
    %v1735 = vsel %vm1231, %v1585, 0
    %1737 = vmatprep.subr.mxu0 0.0
    %1738 = vmatpush1.msra.mxu0 0.0
    %1739 = vmatprep.subr.mxu0 0.0
    %1740 = vmatpush1.msra.mxu0 0.0
    %1741 = vmatprep.subr.mxu0 0.0
    %1742 = vmatpush1.msra.mxu0 0.0
    %1743 = vmatprep.subr.mxu0 0.0
    %1744 = vmatpush1.msra.mxu0 0.0
    %1745 = vmatprep.subr.mxu0 0.0
    %1746 = vmatpush1.msra.mxu0 0.0
    %1747 = vmatprep.subr.mxu0 0.0
    %1748 = vmatpush1.msra.mxu0 0.0
    %1749 = vmatprep.subr.mxu0 0.0
    %1750 = vmatpush1.msra.mxu0 0.0
    %1751 = vmatprep.subr.mxu0 0.0
    %1752 = vmatpush1.msra.mxu0 0.0
    %1753 = vmatprep.subr.mxu0 0.0
    %1754 = vmatpush1.msra.mxu0 0.0
    %1755 = vmatprep.subr.mxu0 0.0
    %1756 = vmatpush1.msra.mxu0 0.0
    %1757 = vmatprep.subr.mxu0 0.0
    %1758 = vmatpush1.msra.mxu0 0.0
    %1759 = vmatprep.subr.mxu0 0.0
    %1760 = vmatpush1.msra.mxu0 0.0
    %1761 = vmatprep.subr.mxu0 0.0
    %1762 = vmatpush1.msra.mxu0 0.0
    %1763 = vmatprep.subr.mxu0 0.0
    %1764 = vmatpush1.msra.mxu0 0.0
    %1765 = vmatprep.subr.mxu0 0.0
    %1766 = vmatpush1.msra.mxu0 0.0
    %1767 = vmatprep.subr.mxu0 0.0
    %1768 = vmatpush1.msra.mxu0 %v1158
    %1769 = vmatprep.subr.mxu0 0.0
    %1770 = vmatpush2.msra.mxu0 0.0
    %1771 = vmatprep.subr.mxu0 0.0
    %1772 = vmatpush2.msra.mxu0 0.0
    %1773 = vmatprep.subr.mxu0 0.0
    %1774 = vmatpush2.msra.mxu0 0.0
    %1775 = vmatprep.subr.mxu0 0.0
    %1776 = vmatpush2.msra.mxu0 0.0
    %1777 = vmatprep.subr.mxu0 0.0
    %1778 = vmatpush2.msra.mxu0 0.0
    %1779 = vmatprep.subr.mxu0 0.0
    %1780 = vmatpush2.msra.mxu0 0.0
    %1781 = vmatprep.subr.mxu0 0.0
    %1782 = vmatpush2.msra.mxu0 0.0
    %1783 = vmatprep.subr.mxu0 0.0
    %1784 = vmatpush2.msra.mxu0 0.0
    %1785 = vmatprep.subr.mxu0 0.0
    %1786 = vmatpush2.msra.mxu0 0.0
    %1787 = vmatprep.subr.mxu0 0.0
    %1788 = vmatpush2.msra.mxu0 0.0
    %1789 = vmatprep.subr.mxu0 0.0
    %1790 = vmatpush2.msra.mxu0 0.0
    %1791 = vmatprep.subr.mxu0 0.0
    %1792 = vmatpush2.msra.mxu0 0.0
    %1793 = vmatprep.subr.mxu0 0.0
    %1794 = vmatpush2.msra.mxu0 0.0
    %1795 = vmatprep.subr.mxu0 0.0
    %1796 = vmatpush2.msra.mxu0 0.0
    %1797 = vmatprep.subr.mxu0 0.0
    %1798 = vmatpush2.msra.mxu0 0.0
    %1799 = vmatprep.subr.mxu0 0.0
    %1800 = vmatpush2.msra.mxu0 0.0
    %1801 = vmatprep.mubr.f32.mxu0 0.0
    %1802 = vmatmul.mubr.f32.gmra.mxu0 %v1735
    %v1803 = vpop.f32.mrf.mxu0
    %v1804 = vadd.f32 0.0, %v1803
    %v1805 = vpop.f32.mrf.mxu0
    %1806 = vdwg.mxu0
    %v1808 = vsel %vm1231, %v1587, 0
    %1810 = vmatprep.subr.mxu0 0.0
    %1811 = vmatpush1.msra.mxu0 0.0
    %1812 = vmatprep.subr.mxu0 0.0
    %1813 = vmatpush1.msra.mxu0 0.0
    %1814 = vmatprep.subr.mxu0 0.0
    %1815 = vmatpush1.msra.mxu0 0.0
    %1816 = vmatprep.subr.mxu0 0.0
    %1817 = vmatpush1.msra.mxu0 0.0
    %1818 = vmatprep.subr.mxu0 0.0
    %1819 = vmatpush1.msra.mxu0 0.0
    %1820 = vmatprep.subr.mxu0 0.0
    %1821 = vmatpush1.msra.mxu0 0.0
    %1822 = vmatprep.subr.mxu0 0.0
    %1823 = vmatpush1.msra.mxu0 0.0
    %1824 = vmatprep.subr.mxu0 0.0
    %1825 = vmatpush1.msra.mxu0 0.0
    %1826 = vmatprep.subr.mxu0 0.0
    %1827 = vmatpush1.msra.mxu0 0.0
    %1828 = vmatprep.subr.mxu0 0.0
    %1829 = vmatpush1.msra.mxu0 0.0
    %1830 = vmatprep.subr.mxu0 0.0
    %1831 = vmatpush1.msra.mxu0 0.0
    %1832 = vmatprep.subr.mxu0 0.0
    %1833 = vmatpush1.msra.mxu0 0.0
    %1834 = vmatprep.subr.mxu0 0.0
    %1835 = vmatpush1.msra.mxu0 0.0
    %1836 = vmatprep.subr.mxu0 0.0
    %1837 = vmatpush1.msra.mxu0 0.0
    %1838 = vmatprep.subr.mxu0 0.0
    %1839 = vmatpush1.msra.mxu0 0.0
    %1840 = vmatprep.subr.mxu0 0.0
    %1841 = vmatpush1.msra.mxu0 %v1228
    %1842 = vmatprep.subr.mxu0 0.0
    %1843 = vmatpush2.msra.mxu0 0.0
    %1844 = vmatprep.subr.mxu0 0.0
    %1845 = vmatpush2.msra.mxu0 0.0
    %1846 = vmatprep.subr.mxu0 0.0
    %1847 = vmatpush2.msra.mxu0 0.0
    %1848 = vmatprep.subr.mxu0 0.0
    %1849 = vmatpush2.msra.mxu0 0.0
    %1850 = vmatprep.subr.mxu0 0.0
    %1851 = vmatpush2.msra.mxu0 0.0
    %1852 = vmatprep.subr.mxu0 0.0
    %1853 = vmatpush2.msra.mxu0 0.0
    %1854 = vmatprep.subr.mxu0 0.0
    %1855 = vmatpush2.msra.mxu0 0.0
    %1856 = vmatprep.subr.mxu0 0.0
    %1857 = vmatpush2.msra.mxu0 0.0
    %1858 = vmatprep.subr.mxu0 0.0
    %1859 = vmatpush2.msra.mxu0 0.0
    %1860 = vmatprep.subr.mxu0 0.0
    %1861 = vmatpush2.msra.mxu0 0.0
    %1862 = vmatprep.subr.mxu0 0.0
    %1863 = vmatpush2.msra.mxu0 0.0
    %1864 = vmatprep.subr.mxu0 0.0
    %1865 = vmatpush2.msra.mxu0 0.0
    %1866 = vmatprep.subr.mxu0 0.0
    %1867 = vmatpush2.msra.mxu0 0.0
    %1868 = vmatprep.subr.mxu0 0.0
    %1869 = vmatpush2.msra.mxu0 0.0
    %1870 = vmatprep.subr.mxu0 0.0
    %1871 = vmatpush2.msra.mxu0 0.0
    %1872 = vmatprep.subr.mxu0 0.0
    %1873 = vmatpush2.msra.mxu0 0.0
    %1874 = vmatprep.mubr.f32.mxu0 0.0
    %1875 = vmatmul.mubr.f32.gmra.mxu0 %v1808
    %v1876 = vpop.f32.mrf.mxu0
    %v1877 = vadd.f32 0.0, %v1876
    %v1878 = vpop.f32.mrf.mxu0
    %1879 = vdwg.mxu0
    %v1881 = vsel %vm1231, %v1658, 0
    %1883 = vmatprep.subr.mxu0 0.0
    %1884 = vmatpush1.msra.mxu0 0.0
    %1885 = vmatprep.subr.mxu0 0.0
    %1886 = vmatpush1.msra.mxu0 0.0
    %1887 = vmatprep.subr.mxu0 0.0
    %1888 = vmatpush1.msra.mxu0 0.0
    %1889 = vmatprep.subr.mxu0 0.0
    %1890 = vmatpush1.msra.mxu0 0.0
    %1891 = vmatprep.subr.mxu0 0.0
    %1892 = vmatpush1.msra.mxu0 0.0
    %1893 = vmatprep.subr.mxu0 0.0
    %1894 = vmatpush1.msra.mxu0 0.0
    %1895 = vmatprep.subr.mxu0 0.0
    %1896 = vmatpush1.msra.mxu0 0.0
    %1897 = vmatprep.subr.mxu0 0.0
    %1898 = vmatpush1.msra.mxu0 0.0
    %1899 = vmatprep.subr.mxu0 0.0
    %1900 = vmatpush1.msra.mxu0 0.0
    %1901 = vmatprep.subr.mxu0 0.0
    %1902 = vmatpush1.msra.mxu0 0.0
    %1903 = vmatprep.subr.mxu0 0.0
    %1904 = vmatpush1.msra.mxu0 0.0
    %1905 = vmatprep.subr.mxu0 0.0
    %1906 = vmatpush1.msra.mxu0 0.0
    %1907 = vmatprep.subr.mxu0 0.0
    %1908 = vmatpush1.msra.mxu0 0.0
    %1909 = vmatprep.subr.mxu0 0.0
    %1910 = vmatpush1.msra.mxu0 0.0
    %1911 = vmatprep.subr.mxu0 0.0
    %1912 = vmatpush1.msra.mxu0 0.0
    %1913 = vmatprep.subr.mxu0 0.0
    %1914 = vmatpush1.msra.mxu0 %v268
    %1915 = vmatprep.subr.mxu0 0.0
    %1916 = vmatpush2.msra.mxu0 0.0
    %1917 = vmatprep.subr.mxu0 0.0
    %1918 = vmatpush2.msra.mxu0 0.0
    %1919 = vmatprep.subr.mxu0 0.0
    %1920 = vmatpush2.msra.mxu0 0.0
    %1921 = vmatprep.subr.mxu0 0.0
    %1922 = vmatpush2.msra.mxu0 0.0
    %1923 = vmatprep.subr.mxu0 0.0
    %1924 = vmatpush2.msra.mxu0 0.0
    %1925 = vmatprep.subr.mxu0 0.0
    %1926 = vmatpush2.msra.mxu0 0.0
    %1927 = vmatprep.subr.mxu0 0.0
    %1928 = vmatpush2.msra.mxu0 0.0
    %1929 = vmatprep.subr.mxu0 0.0
    %1930 = vmatpush2.msra.mxu0 0.0
    %1931 = vmatprep.subr.mxu0 0.0
    %1932 = vmatpush2.msra.mxu0 0.0
    %1933 = vmatprep.subr.mxu0 0.0
    %1934 = vmatpush2.msra.mxu0 0.0
    %1935 = vmatprep.subr.mxu0 0.0
    %1936 = vmatpush2.msra.mxu0 0.0
    %1937 = vmatprep.subr.mxu0 0.0
    %1938 = vmatpush2.msra.mxu0 0.0
    %1939 = vmatprep.subr.mxu0 0.0
    %1940 = vmatpush2.msra.mxu0 0.0
    %1941 = vmatprep.subr.mxu0 0.0
    %1942 = vmatpush2.msra.mxu0 0.0
    %1943 = vmatprep.subr.mxu0 0.0
    %1944 = vmatpush2.msra.mxu0 0.0
    %1945 = vmatprep.subr.mxu0 0.0
    %1946 = vmatpush2.msra.mxu0 0.0
    %1947 = vmatprep.mubr.f32.mxu0 0.0
    %1948 = vmatmul.mubr.f32.gmra.mxu0 %v1881
    %v1949 = vpop.f32.mrf.mxu0
    %v1950 = vadd.f32 0.0, %v1949
    %v1951 = vpop.f32.mrf.mxu0
    %1952 = vdwg.mxu0
    %v1954 = vsel %vm1231, %v1731, 0
    %1956 = vmatprep.subr.mxu0 0.0
    %1957 = vmatpush1.msra.mxu0 0.0
    %1958 = vmatprep.subr.mxu0 0.0
    %1959 = vmatpush1.msra.mxu0 0.0
    %1960 = vmatprep.subr.mxu0 0.0
    %1961 = vmatpush1.msra.mxu0 0.0
    %1962 = vmatprep.subr.mxu0 0.0
    %1963 = vmatpush1.msra.mxu0 0.0
    %1964 = vmatprep.subr.mxu0 0.0
    %1965 = vmatpush1.msra.mxu0 0.0
    %1966 = vmatprep.subr.mxu0 0.0
    %1967 = vmatpush1.msra.mxu0 0.0
    %1968 = vmatprep.subr.mxu0 0.0
    %1969 = vmatpush1.msra.mxu0 0.0
    %1970 = vmatprep.subr.mxu0 0.0
    %1971 = vmatpush1.msra.mxu0 0.0
    %1972 = vmatprep.subr.mxu0 0.0
    %1973 = vmatpush1.msra.mxu0 0.0
    %1974 = vmatprep.subr.mxu0 0.0
    %1975 = vmatpush1.msra.mxu0 0.0
    %1976 = vmatprep.subr.mxu0 0.0
    %1977 = vmatpush1.msra.mxu0 0.0
    %1978 = vmatprep.subr.mxu0 0.0
    %1979 = vmatpush1.msra.mxu0 0.0
    %1980 = vmatprep.subr.mxu0 0.0
    %1981 = vmatpush1.msra.mxu0 0.0
    %1982 = vmatprep.subr.mxu0 0.0
    %1983 = vmatpush1.msra.mxu0 0.0
    %1984 = vmatprep.subr.mxu0 0.0
    %1985 = vmatpush1.msra.mxu0 0.0
    %1986 = vmatprep.subr.mxu0 0.0
    %1987 = vmatpush1.msra.mxu0 %v269
    %1988 = vmatprep.subr.mxu0 0.0
    %1989 = vmatpush2.msra.mxu0 0.0
    %1990 = vmatprep.subr.mxu0 0.0
    %1991 = vmatpush2.msra.mxu0 0.0
    %1992 = vmatprep.subr.mxu0 0.0
    %1993 = vmatpush2.msra.mxu0 0.0
    %1994 = vmatprep.subr.mxu0 0.0
    %1995 = vmatpush2.msra.mxu0 0.0
    %1996 = vmatprep.subr.mxu0 0.0
    %1997 = vmatpush2.msra.mxu0 0.0
    %1998 = vmatprep.subr.mxu0 0.0
    %1999 = vmatpush2.msra.mxu0 0.0
    %2000 = vmatprep.subr.mxu0 0.0
    %2001 = vmatpush2.msra.mxu0 0.0
    %2002 = vmatprep.subr.mxu0 0.0
    %2003 = vmatpush2.msra.mxu0 0.0
    %2004 = vmatprep.subr.mxu0 0.0
    %2005 = vmatpush2.msra.mxu0 0.0
    %2006 = vmatprep.subr.mxu0 0.0
    %2007 = vmatpush2.msra.mxu0 0.0
    %2008 = vmatprep.subr.mxu0 0.0
    %2009 = vmatpush2.msra.mxu0 0.0
    %2010 = vmatprep.subr.mxu0 0.0
    %2011 = vmatpush2.msra.mxu0 0.0
    %2012 = vmatprep.subr.mxu0 0.0
    %2013 = vmatpush2.msra.mxu0 0.0
    %2014 = vmatprep.subr.mxu0 0.0
    %2015 = vmatpush2.msra.mxu0 0.0
    %2016 = vmatprep.subr.mxu0 0.0
    %2017 = vmatpush2.msra.mxu0 0.0
    %2018 = vmatprep.subr.mxu0 0.0
    %2019 = vmatpush2.msra.mxu0 0.0
    %2020 = vmatprep.mubr.f32.mxu0 0.0
    %2021 = vmatmul.mubr.f32.gmra.mxu0 %v1954
    %v2022 = vpop.f32.mrf.mxu0
    %v2023 = vadd.f32 0.0, %v2022
    %v2024 = vpop.f32.mrf.mxu0
    %2025 = vdwg.mxu0
    %v2027 = vsel %vm1231, %v1804, 0
    %2029 = vmatprep.subr.mxu0 0.0
    %2030 = vmatpush1.msra.mxu0 0.0
    %2031 = vmatprep.subr.mxu0 0.0
    %2032 = vmatpush1.msra.mxu0 0.0
    %2033 = vmatprep.subr.mxu0 0.0
    %2034 = vmatpush1.msra.mxu0 0.0
    %2035 = vmatprep.subr.mxu0 0.0
    %2036 = vmatpush1.msra.mxu0 0.0
    %2037 = vmatprep.subr.mxu0 0.0
    %2038 = vmatpush1.msra.mxu0 0.0
    %2039 = vmatprep.subr.mxu0 0.0
    %2040 = vmatpush1.msra.mxu0 0.0
    %2041 = vmatprep.subr.mxu0 0.0
    %2042 = vmatpush1.msra.mxu0 0.0
    %2043 = vmatprep.subr.mxu0 0.0
    %2044 = vmatpush1.msra.mxu0 0.0
    %2045 = vmatprep.subr.mxu0 0.0
    %2046 = vmatpush1.msra.mxu0 0.0
    %2047 = vmatprep.subr.mxu0 0.0
    %2048 = vmatpush1.msra.mxu0 0.0
    %2049 = vmatprep.subr.mxu0 0.0
    %2050 = vmatpush1.msra.mxu0 0.0
    %2051 = vmatprep.subr.mxu0 0.0
    %2052 = vmatpush1.msra.mxu0 0.0
    %2053 = vmatprep.subr.mxu0 0.0
    %2054 = vmatpush1.msra.mxu0 0.0
    %2055 = vmatprep.subr.mxu0 0.0
    %2056 = vmatpush1.msra.mxu0 0.0
    %2057 = vmatprep.subr.mxu0 0.0
    %2058 = vmatpush1.msra.mxu0 0.0
    %2059 = vmatprep.subr.mxu0 0.0
    %2060 = vmatpush1.msra.mxu0 %v270
    %2061 = vmatprep.subr.mxu0 0.0
    %2062 = vmatpush2.msra.mxu0 0.0
    %2063 = vmatprep.subr.mxu0 0.0
    %2064 = vmatpush2.msra.mxu0 0.0
    %2065 = vmatprep.subr.mxu0 0.0
    %2066 = vmatpush2.msra.mxu0 0.0
    %2067 = vmatprep.subr.mxu0 0.0
    %2068 = vmatpush2.msra.mxu0 0.0
    %2069 = vmatprep.subr.mxu0 0.0
    %2070 = vmatpush2.msra.mxu0 0.0
    %2071 = vmatprep.subr.mxu0 0.0
    %2072 = vmatpush2.msra.mxu0 0.0
    %2073 = vmatprep.subr.mxu0 0.0
    %2074 = vmatpush2.msra.mxu0 0.0
    %2075 = vmatprep.subr.mxu0 0.0
    %2076 = vmatpush2.msra.mxu0 0.0
    %2077 = vmatprep.subr.mxu0 0.0
    %2078 = vmatpush2.msra.mxu0 0.0
    %2079 = vmatprep.subr.mxu0 0.0
    %2080 = vmatpush2.msra.mxu0 0.0
    %2081 = vmatprep.subr.mxu0 0.0
    %2082 = vmatpush2.msra.mxu0 0.0
    %2083 = vmatprep.subr.mxu0 0.0
    %2084 = vmatpush2.msra.mxu0 0.0
    %2085 = vmatprep.subr.mxu0 0.0
    %2086 = vmatpush2.msra.mxu0 0.0
    %2087 = vmatprep.subr.mxu0 0.0
    %2088 = vmatpush2.msra.mxu0 0.0
    %2089 = vmatprep.subr.mxu0 0.0
    %2090 = vmatpush2.msra.mxu0 0.0
    %2091 = vmatprep.subr.mxu0 0.0
    %2092 = vmatpush2.msra.mxu0 0.0
    %2093 = vmatprep.mubr.f32.mxu0 0.0
    %2094 = vmatmul.mubr.f32.gmra.mxu0 %v2027
    %v2095 = vpop.f32.mrf.mxu0
    %v2096 = vadd.f32 0.0, %v2095
    %v2097 = vpop.f32.mrf.mxu0
    %2098 = vdwg.mxu0
    %v2100 = vsel %vm1231, %v1877, 0
    %2102 = vmatprep.subr.mxu0 0.0
    %2103 = vmatpush1.msra.mxu0 0.0
    %2104 = vmatprep.subr.mxu0 0.0
    %2105 = vmatpush1.msra.mxu0 0.0
    %2106 = vmatprep.subr.mxu0 0.0
    %2107 = vmatpush1.msra.mxu0 0.0
    %2108 = vmatprep.subr.mxu0 0.0
    %2109 = vmatpush1.msra.mxu0 0.0
    %2110 = vmatprep.subr.mxu0 0.0
    %2111 = vmatpush1.msra.mxu0 0.0
    %2112 = vmatprep.subr.mxu0 0.0
    %2113 = vmatpush1.msra.mxu0 0.0
    %2114 = vmatprep.subr.mxu0 0.0
    %2115 = vmatpush1.msra.mxu0 0.0
    %2116 = vmatprep.subr.mxu0 0.0
    %2117 = vmatpush1.msra.mxu0 0.0
    %2118 = vmatprep.subr.mxu0 0.0
    %2119 = vmatpush1.msra.mxu0 0.0
    %2120 = vmatprep.subr.mxu0 0.0
    %2121 = vmatpush1.msra.mxu0 0.0
    %2122 = vmatprep.subr.mxu0 0.0
    %2123 = vmatpush1.msra.mxu0 0.0
    %2124 = vmatprep.subr.mxu0 0.0
    %2125 = vmatpush1.msra.mxu0 0.0
    %2126 = vmatprep.subr.mxu0 0.0
    %2127 = vmatpush1.msra.mxu0 0.0
    %2128 = vmatprep.subr.mxu0 0.0
    %2129 = vmatpush1.msra.mxu0 0.0
    %2130 = vmatprep.subr.mxu0 0.0
    %2131 = vmatpush1.msra.mxu0 0.0
    %2132 = vmatprep.subr.mxu0 0.0
    %2133 = vmatpush1.msra.mxu0 %v271
    %2134 = vmatprep.subr.mxu0 0.0
    %2135 = vmatpush2.msra.mxu0 0.0
    %2136 = vmatprep.subr.mxu0 0.0
    %2137 = vmatpush2.msra.mxu0 0.0
    %2138 = vmatprep.subr.mxu0 0.0
    %2139 = vmatpush2.msra.mxu0 0.0
    %2140 = vmatprep.subr.mxu0 0.0
    %2141 = vmatpush2.msra.mxu0 0.0
    %2142 = vmatprep.subr.mxu0 0.0
    %2143 = vmatpush2.msra.mxu0 0.0
    %2144 = vmatprep.subr.mxu0 0.0
    %2145 = vmatpush2.msra.mxu0 0.0
    %2146 = vmatprep.subr.mxu0 0.0
    %2147 = vmatpush2.msra.mxu0 0.0
    %2148 = vmatprep.subr.mxu0 0.0
    %2149 = vmatpush2.msra.mxu0 0.0
    %2150 = vmatprep.subr.mxu0 0.0
    %2151 = vmatpush2.msra.mxu0 0.0
    %2152 = vmatprep.subr.mxu0 0.0
    %2153 = vmatpush2.msra.mxu0 0.0
    %2154 = vmatprep.subr.mxu0 0.0
    %2155 = vmatpush2.msra.mxu0 0.0
    %2156 = vmatprep.subr.mxu0 0.0
    %2157 = vmatpush2.msra.mxu0 0.0
    %2158 = vmatprep.subr.mxu0 0.0
    %2159 = vmatpush2.msra.mxu0 0.0
    %2160 = vmatprep.subr.mxu0 0.0
    %2161 = vmatpush2.msra.mxu0 0.0
    %2162 = vmatprep.subr.mxu0 0.0
    %2163 = vmatpush2.msra.mxu0 0.0
    %2164 = vmatprep.subr.mxu0 0.0
    %2165 = vmatpush2.msra.mxu0 0.0
    %2166 = vmatprep.mubr.f32.mxu0 0.0
    %2167 = vmatmul.mubr.f32.gmra.mxu0 %v2100
    %v2168 = vpop.f32.mrf.mxu0
    %v2169 = vadd.f32 0.0, %v2168
    %v2170 = vpop.f32.mrf.mxu0
    %2171 = vdwg.mxu0
    %v2172 = vsel %vm272, %v1950, 0.0
    %v2173 = vsel %vm272, %v2023, 0.0
    %v2174 = vadd.f32 %v2172, %v2173
    %v2175 = vsel %vm272, %v2096, 0.0
    %v2176 = vadd.f32 %v2174, %v2175
    %v2177 = vsel %vm272, %v2169, 0.0
    %v2178 = vadd.f32 %v2176, %v2177
    %v2180 = vsel %vm272, %v315, 0
    %2182 = vmatprep.subr.mxu0 0.0
    %2183 = vmatpush1.msra.mxu0 0.0
    %2184 = vmatprep.subr.mxu0 0.0
    %2185 = vmatpush1.msra.mxu0 0.0
    %2186 = vmatprep.subr.mxu0 0.0
    %2187 = vmatpush1.msra.mxu0 0.0
    %2188 = vmatprep.subr.mxu0 0.0
    %2189 = vmatpush1.msra.mxu0 0.0
    %2190 = vmatprep.subr.mxu0 0.0
    %2191 = vmatpush1.msra.mxu0 0.0
    %2192 = vmatprep.subr.mxu0 0.0
    %2193 = vmatpush1.msra.mxu0 0.0
    %2194 = vmatprep.subr.mxu0 0.0
    %2195 = vmatpush1.msra.mxu0 0.0
    %2196 = vmatprep.subr.mxu0 0.0
    %2197 = vmatpush1.msra.mxu0 0.0
    %2198 = vmatprep.subr.mxu0 0.0
    %2199 = vmatpush1.msra.mxu0 0.0
    %2200 = vmatprep.subr.mxu0 0.0
    %2201 = vmatpush1.msra.mxu0 0.0
    %2202 = vmatprep.subr.mxu0 0.0
    %2203 = vmatpush1.msra.mxu0 0.0
    %2204 = vmatprep.subr.mxu0 0.0
    %2205 = vmatpush1.msra.mxu0 0.0
    %2206 = vmatprep.subr.mxu0 0.0
    %2207 = vmatpush1.msra.mxu0 %v211
    %2208 = vmatprep.subr.mxu0 0.0
    %2209 = vmatpush1.msra.mxu0 %v210
    %2210 = vmatprep.subr.mxu0 0.0
    %2211 = vmatpush1.msra.mxu0 %v209
    %2212 = vmatprep.subr.mxu0 0.0
    %2213 = vmatpush1.msra.mxu0 %v208
    %2214 = vmatprep.subr.mxu0 0.0
    %2215 = vmatpush2.msra.mxu0 0.0
    %2216 = vmatprep.subr.mxu0 0.0
    %2217 = vmatpush2.msra.mxu0 0.0
    %2218 = vmatprep.subr.mxu0 0.0
    %2219 = vmatpush2.msra.mxu0 0.0
    %2220 = vmatprep.subr.mxu0 0.0
    %2221 = vmatpush2.msra.mxu0 0.0
    %2222 = vmatprep.subr.mxu0 0.0
    %2223 = vmatpush2.msra.mxu0 0.0
    %2224 = vmatprep.subr.mxu0 0.0
    %2225 = vmatpush2.msra.mxu0 0.0
    %2226 = vmatprep.subr.mxu0 0.0
    %2227 = vmatpush2.msra.mxu0 0.0
    %2228 = vmatprep.subr.mxu0 0.0
    %2229 = vmatpush2.msra.mxu0 0.0
    %2230 = vmatprep.subr.mxu0 0.0
    %2231 = vmatpush2.msra.mxu0 0.0
    %2232 = vmatprep.subr.mxu0 0.0
    %2233 = vmatpush2.msra.mxu0 0.0
    %2234 = vmatprep.subr.mxu0 0.0
    %2235 = vmatpush2.msra.mxu0 0.0
    %2236 = vmatprep.subr.mxu0 0.0
    %2237 = vmatpush2.msra.mxu0 0.0
    %2238 = vmatprep.subr.mxu0 0.0
    %2239 = vmatpush2.msra.mxu0 0.0
    %2240 = vmatprep.subr.mxu0 0.0
    %2241 = vmatpush2.msra.mxu0 0.0
    %2242 = vmatprep.subr.mxu0 0.0
    %2243 = vmatpush2.msra.mxu0 0.0
    %2244 = vmatprep.subr.mxu0 0.0
    %2245 = vmatpush2.msra.mxu0 0.0
    %2246 = vmatprep.mubr.f32.mxu0 0.0
    %2247 = vmatmul.mubr.f32.gmra.mxu0 %v2180
    %v2248 = vpop.f32.mrf.mxu0
    %v2249 = vadd.f32 %v323, %v2248
    %v2250 = vpop.f32.mrf.mxu0
    %2251 = vdwg.mxu0
    %2252 = vmatprep.subr.mxu0 0.0
    %2253 = vmatpush1.msra.mxu0 0.0
    %2254 = vmatprep.subr.mxu0 0.0
    %2255 = vmatpush1.msra.mxu0 0.0
    %2256 = vmatprep.subr.mxu0 0.0
    %2257 = vmatpush1.msra.mxu0 0.0
    %2258 = vmatprep.subr.mxu0 0.0
    %2259 = vmatpush1.msra.mxu0 0.0
    %2260 = vmatprep.subr.mxu0 0.0
    %2261 = vmatpush1.msra.mxu0 0.0
    %2262 = vmatprep.subr.mxu0 0.0
    %2263 = vmatpush1.msra.mxu0 0.0
    %2264 = vmatprep.subr.mxu0 0.0
    %2265 = vmatpush1.msra.mxu0 0.0
    %2266 = vmatprep.subr.mxu0 0.0
    %2267 = vmatpush1.msra.mxu0 0.0
    %2268 = vmatprep.subr.mxu0 0.0
    %2269 = vmatpush1.msra.mxu0 0.0
    %2270 = vmatprep.subr.mxu0 0.0
    %2271 = vmatpush1.msra.mxu0 0.0
    %2272 = vmatprep.subr.mxu0 0.0
    %2273 = vmatpush1.msra.mxu0 0.0
    %2274 = vmatprep.subr.mxu0 0.0
    %2275 = vmatpush1.msra.mxu0 0.0
    %2276 = vmatprep.subr.mxu0 0.0
    %2277 = vmatpush1.msra.mxu0 %v215
    %2278 = vmatprep.subr.mxu0 0.0
    %2279 = vmatpush1.msra.mxu0 %v214
    %2280 = vmatprep.subr.mxu0 0.0
    %2281 = vmatpush1.msra.mxu0 %v213
    %2282 = vmatprep.subr.mxu0 0.0
    %2283 = vmatpush1.msra.mxu0 %v212
    %2284 = vmatprep.subr.mxu0 0.0
    %2285 = vmatpush2.msra.mxu0 0.0
    %2286 = vmatprep.subr.mxu0 0.0
    %2287 = vmatpush2.msra.mxu0 0.0
    %2288 = vmatprep.subr.mxu0 0.0
    %2289 = vmatpush2.msra.mxu0 0.0
    %2290 = vmatprep.subr.mxu0 0.0
    %2291 = vmatpush2.msra.mxu0 0.0
    %2292 = vmatprep.subr.mxu0 0.0
    %2293 = vmatpush2.msra.mxu0 0.0
    %2294 = vmatprep.subr.mxu0 0.0
    %2295 = vmatpush2.msra.mxu0 0.0
    %2296 = vmatprep.subr.mxu0 0.0
    %2297 = vmatpush2.msra.mxu0 0.0
    %2298 = vmatprep.subr.mxu0 0.0
    %2299 = vmatpush2.msra.mxu0 0.0
    %2300 = vmatprep.subr.mxu0 0.0
    %2301 = vmatpush2.msra.mxu0 0.0
    %2302 = vmatprep.subr.mxu0 0.0
    %2303 = vmatpush2.msra.mxu0 0.0
    %2304 = vmatprep.subr.mxu0 0.0
    %2305 = vmatpush2.msra.mxu0 0.0
    %2306 = vmatprep.subr.mxu0 0.0
    %2307 = vmatpush2.msra.mxu0 0.0
    %2308 = vmatprep.subr.mxu0 0.0
    %2309 = vmatpush2.msra.mxu0 0.0
    %2310 = vmatprep.subr.mxu0 0.0
    %2311 = vmatpush2.msra.mxu0 0.0
    %2312 = vmatprep.subr.mxu0 0.0
    %2313 = vmatpush2.msra.mxu0 0.0
    %2314 = vmatprep.subr.mxu0 0.0
    %2315 = vmatpush2.msra.mxu0 0.0
    %2316 = vmatprep.mubr.f32.mxu0 0.0
    %2317 = vmatmul.mubr.f32.gmra.mxu0 %v2180
    %v2318 = vpop.f32.mrf.mxu0
    %v2319 = vadd.f32 %v327, %v2318
    %v2320 = vpop.f32.mrf.mxu0
    %2321 = vdwg.mxu0
    %2322 = vmatprep.subr.mxu0 0.0
    %2323 = vmatpush1.msra.mxu0 0.0
    %2324 = vmatprep.subr.mxu0 0.0
    %2325 = vmatpush1.msra.mxu0 0.0
    %2326 = vmatprep.subr.mxu0 0.0
    %2327 = vmatpush1.msra.mxu0 0.0
    %2328 = vmatprep.subr.mxu0 0.0
    %2329 = vmatpush1.msra.mxu0 0.0
    %2330 = vmatprep.subr.mxu0 0.0
    %2331 = vmatpush1.msra.mxu0 0.0
    %2332 = vmatprep.subr.mxu0 0.0
    %2333 = vmatpush1.msra.mxu0 0.0
    %2334 = vmatprep.subr.mxu0 0.0
    %2335 = vmatpush1.msra.mxu0 0.0
    %2336 = vmatprep.subr.mxu0 0.0
    %2337 = vmatpush1.msra.mxu0 0.0
    %2338 = vmatprep.subr.mxu0 0.0
    %2339 = vmatpush1.msra.mxu0 0.0
    %2340 = vmatprep.subr.mxu0 0.0
    %2341 = vmatpush1.msra.mxu0 0.0
    %2342 = vmatprep.subr.mxu0 0.0
    %2343 = vmatpush1.msra.mxu0 0.0
    %2344 = vmatprep.subr.mxu0 0.0
    %2345 = vmatpush1.msra.mxu0 0.0
    %2346 = vmatprep.subr.mxu0 0.0
    %2347 = vmatpush1.msra.mxu0 %v219
    %2348 = vmatprep.subr.mxu0 0.0
    %2349 = vmatpush1.msra.mxu0 %v218
    %2350 = vmatprep.subr.mxu0 0.0
    %2351 = vmatpush1.msra.mxu0 %v217
    %2352 = vmatprep.subr.mxu0 0.0
    %2353 = vmatpush1.msra.mxu0 %v216
    %2354 = vmatprep.subr.mxu0 0.0
    %2355 = vmatpush2.msra.mxu0 0.0
    %2356 = vmatprep.subr.mxu0 0.0
    %2357 = vmatpush2.msra.mxu0 0.0
    %2358 = vmatprep.subr.mxu0 0.0
    %2359 = vmatpush2.msra.mxu0 0.0
    %2360 = vmatprep.subr.mxu0 0.0
    %2361 = vmatpush2.msra.mxu0 0.0
    %2362 = vmatprep.subr.mxu0 0.0
    %2363 = vmatpush2.msra.mxu0 0.0
    %2364 = vmatprep.subr.mxu0 0.0
    %2365 = vmatpush2.msra.mxu0 0.0
    %2366 = vmatprep.subr.mxu0 0.0
    %2367 = vmatpush2.msra.mxu0 0.0
    %2368 = vmatprep.subr.mxu0 0.0
    %2369 = vmatpush2.msra.mxu0 0.0
    %2370 = vmatprep.subr.mxu0 0.0
    %2371 = vmatpush2.msra.mxu0 0.0
    %2372 = vmatprep.subr.mxu0 0.0
    %2373 = vmatpush2.msra.mxu0 0.0
    %2374 = vmatprep.subr.mxu0 0.0
    %2375 = vmatpush2.msra.mxu0 0.0
    %2376 = vmatprep.subr.mxu0 0.0
    %2377 = vmatpush2.msra.mxu0 0.0
    %2378 = vmatprep.subr.mxu0 0.0
    %2379 = vmatpush2.msra.mxu0 0.0
    %2380 = vmatprep.subr.mxu0 0.0
    %2381 = vmatpush2.msra.mxu0 0.0
    %2382 = vmatprep.subr.mxu0 0.0
    %2383 = vmatpush2.msra.mxu0 0.0
    %2384 = vmatprep.subr.mxu0 0.0
    %2385 = vmatpush2.msra.mxu0 0.0
    %2386 = vmatprep.mubr.f32.mxu0 0.0
    %2387 = vmatmul.mubr.f32.gmra.mxu0 %v2180
    %v2388 = vpop.f32.mrf.mxu0
    %v2389 = vadd.f32 %v331, %v2388
    %v2390 = vpop.f32.mrf.mxu0
    %2391 = vdwg.mxu0
    %2392 = vmatprep.subr.mxu0 0.0
    %2393 = vmatpush1.msra.mxu0 0.0
    %2394 = vmatprep.subr.mxu0 0.0
    %2395 = vmatpush1.msra.mxu0 0.0
    %2396 = vmatprep.subr.mxu0 0.0
    %2397 = vmatpush1.msra.mxu0 0.0
    %2398 = vmatprep.subr.mxu0 0.0
    %2399 = vmatpush1.msra.mxu0 0.0
    %2400 = vmatprep.subr.mxu0 0.0
    %2401 = vmatpush1.msra.mxu0 0.0
    %2402 = vmatprep.subr.mxu0 0.0
    %2403 = vmatpush1.msra.mxu0 0.0
    %2404 = vmatprep.subr.mxu0 0.0
    %2405 = vmatpush1.msra.mxu0 0.0
    %2406 = vmatprep.subr.mxu0 0.0
    %2407 = vmatpush1.msra.mxu0 0.0
    %2408 = vmatprep.subr.mxu0 0.0
    %2409 = vmatpush1.msra.mxu0 0.0
    %2410 = vmatprep.subr.mxu0 0.0
    %2411 = vmatpush1.msra.mxu0 0.0
    %2412 = vmatprep.subr.mxu0 0.0
    %2413 = vmatpush1.msra.mxu0 0.0
    %2414 = vmatprep.subr.mxu0 0.0
    %2415 = vmatpush1.msra.mxu0 0.0
    %2416 = vmatprep.subr.mxu0 0.0
    %2417 = vmatpush1.msra.mxu0 %v223
    %2418 = vmatprep.subr.mxu0 0.0
    %2419 = vmatpush1.msra.mxu0 %v222
    %2420 = vmatprep.subr.mxu0 0.0
    %2421 = vmatpush1.msra.mxu0 %v221
    %2422 = vmatprep.subr.mxu0 0.0
    %2423 = vmatpush1.msra.mxu0 %v220
    %2424 = vmatprep.subr.mxu0 0.0
    %2425 = vmatpush2.msra.mxu0 0.0
    %2426 = vmatprep.subr.mxu0 0.0
    %2427 = vmatpush2.msra.mxu0 0.0
    %2428 = vmatprep.subr.mxu0 0.0
    %2429 = vmatpush2.msra.mxu0 0.0
    %2430 = vmatprep.subr.mxu0 0.0
    %2431 = vmatpush2.msra.mxu0 0.0
    %2432 = vmatprep.subr.mxu0 0.0
    %2433 = vmatpush2.msra.mxu0 0.0
    %2434 = vmatprep.subr.mxu0 0.0
    %2435 = vmatpush2.msra.mxu0 0.0
    %2436 = vmatprep.subr.mxu0 0.0
    %2437 = vmatpush2.msra.mxu0 0.0
    %2438 = vmatprep.subr.mxu0 0.0
    %2439 = vmatpush2.msra.mxu0 0.0
    %2440 = vmatprep.subr.mxu0 0.0
    %2441 = vmatpush2.msra.mxu0 0.0
    %2442 = vmatprep.subr.mxu0 0.0
    %2443 = vmatpush2.msra.mxu0 0.0
    %2444 = vmatprep.subr.mxu0 0.0
    %2445 = vmatpush2.msra.mxu0 0.0
    %2446 = vmatprep.subr.mxu0 0.0
    %2447 = vmatpush2.msra.mxu0 0.0
    %2448 = vmatprep.subr.mxu0 0.0
    %2449 = vmatpush2.msra.mxu0 0.0
    %2450 = vmatprep.subr.mxu0 0.0
    %2451 = vmatpush2.msra.mxu0 0.0
    %2452 = vmatprep.subr.mxu0 0.0
    %2453 = vmatpush2.msra.mxu0 0.0
    %2454 = vmatprep.subr.mxu0 0.0
    %2455 = vmatpush2.msra.mxu0 0.0
    %2456 = vmatprep.mubr.f32.mxu0 0.0
    %2457 = vmatmul.mubr.f32.gmra.mxu0 %v2180
    %v2458 = vpop.f32.mrf.mxu0
    %v2459 = vadd.f32 %v335, %v2458
    %v2460 = vpop.f32.mrf.mxu0
    %2461 = vdwg.mxu0
    %2462 = vmatprep.subr.mxu0 0.0
    %2463 = vmatpush1.msra.mxu0 0.0
    %2464 = vmatprep.subr.mxu0 0.0
    %2465 = vmatpush1.msra.mxu0 0.0
    %2466 = vmatprep.subr.mxu0 0.0
    %2467 = vmatpush1.msra.mxu0 0.0
    %2468 = vmatprep.subr.mxu0 0.0
    %2469 = vmatpush1.msra.mxu0 0.0
    %2470 = vmatprep.subr.mxu0 0.0
    %2471 = vmatpush1.msra.mxu0 0.0
    %2472 = vmatprep.subr.mxu0 0.0
    %2473 = vmatpush1.msra.mxu0 0.0
    %2474 = vmatprep.subr.mxu0 0.0
    %2475 = vmatpush1.msra.mxu0 0.0
    %2476 = vmatprep.subr.mxu0 0.0
    %2477 = vmatpush1.msra.mxu0 0.0
    %2478 = vmatprep.subr.mxu0 0.0
    %2479 = vmatpush1.msra.mxu0 0.0
    %2480 = vmatprep.subr.mxu0 0.0
    %2481 = vmatpush1.msra.mxu0 0.0
    %2482 = vmatprep.subr.mxu0 0.0
    %2483 = vmatpush1.msra.mxu0 0.0
    %2484 = vmatprep.subr.mxu0 0.0
    %2485 = vmatpush1.msra.mxu0 0.0
    %2486 = vmatprep.subr.mxu0 0.0
    %2487 = vmatpush1.msra.mxu0 %v231
    %2488 = vmatprep.subr.mxu0 0.0
    %2489 = vmatpush1.msra.mxu0 %v230
    %2490 = vmatprep.subr.mxu0 0.0
    %2491 = vmatpush1.msra.mxu0 %v229
    %2492 = vmatprep.subr.mxu0 0.0
    %2493 = vmatpush1.msra.mxu0 %v228
    %2494 = vmatprep.subr.mxu0 0.0
    %2495 = vmatpush2.msra.mxu0 0.0
    %2496 = vmatprep.subr.mxu0 0.0
    %2497 = vmatpush2.msra.mxu0 0.0
    %2498 = vmatprep.subr.mxu0 0.0
    %2499 = vmatpush2.msra.mxu0 0.0
    %2500 = vmatprep.subr.mxu0 0.0
    %2501 = vmatpush2.msra.mxu0 0.0
    %2502 = vmatprep.subr.mxu0 0.0
    %2503 = vmatpush2.msra.mxu0 0.0
    %2504 = vmatprep.subr.mxu0 0.0
    %2505 = vmatpush2.msra.mxu0 0.0
    %2506 = vmatprep.subr.mxu0 0.0
    %2507 = vmatpush2.msra.mxu0 0.0
    %2508 = vmatprep.subr.mxu0 0.0
    %2509 = vmatpush2.msra.mxu0 0.0
    %2510 = vmatprep.subr.mxu0 0.0
    %2511 = vmatpush2.msra.mxu0 0.0
    %2512 = vmatprep.subr.mxu0 0.0
    %2513 = vmatpush2.msra.mxu0 0.0
    %2514 = vmatprep.subr.mxu0 0.0
    %2515 = vmatpush2.msra.mxu0 0.0
    %2516 = vmatprep.subr.mxu0 0.0
    %2517 = vmatpush2.msra.mxu0 0.0
    %2518 = vmatprep.subr.mxu0 0.0
    %2519 = vmatpush2.msra.mxu0 0.0
    %2520 = vmatprep.subr.mxu0 0.0
    %2521 = vmatpush2.msra.mxu0 0.0
    %2522 = vmatprep.subr.mxu0 0.0
    %2523 = vmatpush2.msra.mxu0 0.0
    %2524 = vmatprep.subr.mxu0 0.0
    %2525 = vmatpush2.msra.mxu0 0.0
    %2526 = vmatprep.mubr.f32.mxu0 0.0
    %2527 = vmatmul.mubr.f32.gmra.mxu0 %v2180
    %v2528 = vpop.f32.mrf.mxu0
    %v2529 = vadd.f32 %v630, %v2528
    %v2530 = vpop.f32.mrf.mxu0
    %2531 = vdwg.mxu0
    %2532 = vmatprep.subr.mxu0 0.0
    %2533 = vmatpush1.msra.mxu0 0.0
    %2534 = vmatprep.subr.mxu0 0.0
    %2535 = vmatpush1.msra.mxu0 0.0
    %2536 = vmatprep.subr.mxu0 0.0
    %2537 = vmatpush1.msra.mxu0 0.0
    %2538 = vmatprep.subr.mxu0 0.0
    %2539 = vmatpush1.msra.mxu0 0.0
    %2540 = vmatprep.subr.mxu0 0.0
    %2541 = vmatpush1.msra.mxu0 0.0
    %2542 = vmatprep.subr.mxu0 0.0
    %2543 = vmatpush1.msra.mxu0 0.0
    %2544 = vmatprep.subr.mxu0 0.0
    %2545 = vmatpush1.msra.mxu0 0.0
    %2546 = vmatprep.subr.mxu0 0.0
    %2547 = vmatpush1.msra.mxu0 0.0
    %2548 = vmatprep.subr.mxu0 0.0
    %2549 = vmatpush1.msra.mxu0 0.0
    %2550 = vmatprep.subr.mxu0 0.0
    %2551 = vmatpush1.msra.mxu0 0.0
    %2552 = vmatprep.subr.mxu0 0.0
    %2553 = vmatpush1.msra.mxu0 0.0
    %2554 = vmatprep.subr.mxu0 0.0
    %2555 = vmatpush1.msra.mxu0 0.0
    %2556 = vmatprep.subr.mxu0 0.0
    %2557 = vmatpush1.msra.mxu0 %v235
    %2558 = vmatprep.subr.mxu0 0.0
    %2559 = vmatpush1.msra.mxu0 %v234
    %2560 = vmatprep.subr.mxu0 0.0
    %2561 = vmatpush1.msra.mxu0 %v233
    %2562 = vmatprep.subr.mxu0 0.0
    %2563 = vmatpush1.msra.mxu0 %v232
    %2564 = vmatprep.subr.mxu0 0.0
    %2565 = vmatpush2.msra.mxu0 0.0
    %2566 = vmatprep.subr.mxu0 0.0
    %2567 = vmatpush2.msra.mxu0 0.0
    %2568 = vmatprep.subr.mxu0 0.0
    %2569 = vmatpush2.msra.mxu0 0.0
    %2570 = vmatprep.subr.mxu0 0.0
    %2571 = vmatpush2.msra.mxu0 0.0
    %2572 = vmatprep.subr.mxu0 0.0
    %2573 = vmatpush2.msra.mxu0 0.0
    %2574 = vmatprep.subr.mxu0 0.0
    %2575 = vmatpush2.msra.mxu0 0.0
    %2576 = vmatprep.subr.mxu0 0.0
    %2577 = vmatpush2.msra.mxu0 0.0
    %2578 = vmatprep.subr.mxu0 0.0
    %2579 = vmatpush2.msra.mxu0 0.0
    %2580 = vmatprep.subr.mxu0 0.0
    %2581 = vmatpush2.msra.mxu0 0.0
    %2582 = vmatprep.subr.mxu0 0.0
    %2583 = vmatpush2.msra.mxu0 0.0
    %2584 = vmatprep.subr.mxu0 0.0
    %2585 = vmatpush2.msra.mxu0 0.0
    %2586 = vmatprep.subr.mxu0 0.0
    %2587 = vmatpush2.msra.mxu0 0.0
    %2588 = vmatprep.subr.mxu0 0.0
    %2589 = vmatpush2.msra.mxu0 0.0
    %2590 = vmatprep.subr.mxu0 0.0
    %2591 = vmatpush2.msra.mxu0 0.0
    %2592 = vmatprep.subr.mxu0 0.0
    %2593 = vmatpush2.msra.mxu0 0.0
    %2594 = vmatprep.subr.mxu0 0.0
    %2595 = vmatpush2.msra.mxu0 0.0
    %2596 = vmatprep.mubr.f32.mxu0 0.0
    %2597 = vmatmul.mubr.f32.gmra.mxu0 %v2180
    %v2598 = vpop.f32.mrf.mxu0
    %v2599 = vadd.f32 %v634, %v2598
    %v2600 = vpop.f32.mrf.mxu0
    %2601 = vdwg.mxu0
    %2602 = vmatprep.subr.mxu0 0.0
    %2603 = vmatpush1.msra.mxu0 0.0
    %2604 = vmatprep.subr.mxu0 0.0
    %2605 = vmatpush1.msra.mxu0 0.0
    %2606 = vmatprep.subr.mxu0 0.0
    %2607 = vmatpush1.msra.mxu0 0.0
    %2608 = vmatprep.subr.mxu0 0.0
    %2609 = vmatpush1.msra.mxu0 0.0
    %2610 = vmatprep.subr.mxu0 0.0
    %2611 = vmatpush1.msra.mxu0 0.0
    %2612 = vmatprep.subr.mxu0 0.0
    %2613 = vmatpush1.msra.mxu0 0.0
    %2614 = vmatprep.subr.mxu0 0.0
    %2615 = vmatpush1.msra.mxu0 0.0
    %2616 = vmatprep.subr.mxu0 0.0
    %2617 = vmatpush1.msra.mxu0 0.0
    %2618 = vmatprep.subr.mxu0 0.0
    %2619 = vmatpush1.msra.mxu0 0.0
    %2620 = vmatprep.subr.mxu0 0.0
    %2621 = vmatpush1.msra.mxu0 0.0
    %2622 = vmatprep.subr.mxu0 0.0
    %2623 = vmatpush1.msra.mxu0 0.0
    %2624 = vmatprep.subr.mxu0 0.0
    %2625 = vmatpush1.msra.mxu0 0.0
    %2626 = vmatprep.subr.mxu0 0.0
    %2627 = vmatpush1.msra.mxu0 %v239
    %2628 = vmatprep.subr.mxu0 0.0
    %2629 = vmatpush1.msra.mxu0 %v238
    %2630 = vmatprep.subr.mxu0 0.0
    %2631 = vmatpush1.msra.mxu0 %v237
    %2632 = vmatprep.subr.mxu0 0.0
    %2633 = vmatpush1.msra.mxu0 %v236
    %2634 = vmatprep.subr.mxu0 0.0
    %2635 = vmatpush2.msra.mxu0 0.0
    %2636 = vmatprep.subr.mxu0 0.0
    %2637 = vmatpush2.msra.mxu0 0.0
    %2638 = vmatprep.subr.mxu0 0.0
    %2639 = vmatpush2.msra.mxu0 0.0
    %2640 = vmatprep.subr.mxu0 0.0
    %2641 = vmatpush2.msra.mxu0 0.0
    %2642 = vmatprep.subr.mxu0 0.0
    %2643 = vmatpush2.msra.mxu0 0.0
    %2644 = vmatprep.subr.mxu0 0.0
    %2645 = vmatpush2.msra.mxu0 0.0
    %2646 = vmatprep.subr.mxu0 0.0
    %2647 = vmatpush2.msra.mxu0 0.0
    %2648 = vmatprep.subr.mxu0 0.0
    %2649 = vmatpush2.msra.mxu0 0.0
    %2650 = vmatprep.subr.mxu0 0.0
    %2651 = vmatpush2.msra.mxu0 0.0
    %2652 = vmatprep.subr.mxu0 0.0
    %2653 = vmatpush2.msra.mxu0 0.0
    %2654 = vmatprep.subr.mxu0 0.0
    %2655 = vmatpush2.msra.mxu0 0.0
    %2656 = vmatprep.subr.mxu0 0.0
    %2657 = vmatpush2.msra.mxu0 0.0
    %2658 = vmatprep.subr.mxu0 0.0
    %2659 = vmatpush2.msra.mxu0 0.0
    %2660 = vmatprep.subr.mxu0 0.0
    %2661 = vmatpush2.msra.mxu0 0.0
    %2662 = vmatprep.subr.mxu0 0.0
    %2663 = vmatpush2.msra.mxu0 0.0
    %2664 = vmatprep.subr.mxu0 0.0
    %2665 = vmatpush2.msra.mxu0 0.0
    %2666 = vmatprep.mubr.f32.mxu0 0.0
    %2667 = vmatmul.mubr.f32.gmra.mxu0 %v2180
    %v2668 = vpop.f32.mrf.mxu0
    %v2669 = vadd.f32 %v638, %v2668
    %v2670 = vpop.f32.mrf.mxu0
    %2671 = vdwg.mxu0
    %2672 = vmatprep.subr.mxu0 0.0
    %2673 = vmatpush1.msra.mxu0 0.0
    %2674 = vmatprep.subr.mxu0 0.0
    %2675 = vmatpush1.msra.mxu0 0.0
    %2676 = vmatprep.subr.mxu0 0.0
    %2677 = vmatpush1.msra.mxu0 0.0
    %2678 = vmatprep.subr.mxu0 0.0
    %2679 = vmatpush1.msra.mxu0 0.0
    %2680 = vmatprep.subr.mxu0 0.0
    %2681 = vmatpush1.msra.mxu0 0.0
    %2682 = vmatprep.subr.mxu0 0.0
    %2683 = vmatpush1.msra.mxu0 0.0
    %2684 = vmatprep.subr.mxu0 0.0
    %2685 = vmatpush1.msra.mxu0 0.0
    %2686 = vmatprep.subr.mxu0 0.0
    %2687 = vmatpush1.msra.mxu0 0.0
    %2688 = vmatprep.subr.mxu0 0.0
    %2689 = vmatpush1.msra.mxu0 0.0
    %2690 = vmatprep.subr.mxu0 0.0
    %2691 = vmatpush1.msra.mxu0 0.0
    %2692 = vmatprep.subr.mxu0 0.0
    %2693 = vmatpush1.msra.mxu0 0.0
    %2694 = vmatprep.subr.mxu0 0.0
    %2695 = vmatpush1.msra.mxu0 0.0
    %2696 = vmatprep.subr.mxu0 0.0
    %2697 = vmatpush1.msra.mxu0 %v243
    %2698 = vmatprep.subr.mxu0 0.0
    %2699 = vmatpush1.msra.mxu0 %v242
    %2700 = vmatprep.subr.mxu0 0.0
    %2701 = vmatpush1.msra.mxu0 %v241
    %2702 = vmatprep.subr.mxu0 0.0
    %2703 = vmatpush1.msra.mxu0 %v240
    %2704 = vmatprep.subr.mxu0 0.0
    %2705 = vmatpush2.msra.mxu0 0.0
    %2706 = vmatprep.subr.mxu0 0.0
    %2707 = vmatpush2.msra.mxu0 0.0
    %2708 = vmatprep.subr.mxu0 0.0
    %2709 = vmatpush2.msra.mxu0 0.0
    %2710 = vmatprep.subr.mxu0 0.0
    %2711 = vmatpush2.msra.mxu0 0.0
    %2712 = vmatprep.subr.mxu0 0.0
    %2713 = vmatpush2.msra.mxu0 0.0
    %2714 = vmatprep.subr.mxu0 0.0
    %2715 = vmatpush2.msra.mxu0 0.0
    %2716 = vmatprep.subr.mxu0 0.0
    %2717 = vmatpush2.msra.mxu0 0.0
    %2718 = vmatprep.subr.mxu0 0.0
    %2719 = vmatpush2.msra.mxu0 0.0
    %2720 = vmatprep.subr.mxu0 0.0
    %2721 = vmatpush2.msra.mxu0 0.0
    %2722 = vmatprep.subr.mxu0 0.0
    %2723 = vmatpush2.msra.mxu0 0.0
    %2724 = vmatprep.subr.mxu0 0.0
    %2725 = vmatpush2.msra.mxu0 0.0
    %2726 = vmatprep.subr.mxu0 0.0
    %2727 = vmatpush2.msra.mxu0 0.0
    %2728 = vmatprep.subr.mxu0 0.0
    %2729 = vmatpush2.msra.mxu0 0.0
    %2730 = vmatprep.subr.mxu0 0.0
    %2731 = vmatpush2.msra.mxu0 0.0
    %2732 = vmatprep.subr.mxu0 0.0
    %2733 = vmatpush2.msra.mxu0 0.0
    %2734 = vmatprep.subr.mxu0 0.0
    %2735 = vmatpush2.msra.mxu0 0.0
    %2736 = vmatprep.mubr.f32.mxu0 0.0
    %2737 = vmatmul.mubr.f32.gmra.mxu0 %v2180
    %v2738 = vpop.f32.mrf.mxu0
    %v2739 = vadd.f32 %v642, %v2738
    %v2740 = vpop.f32.mrf.mxu0
    %2741 = vdwg.mxu0
    %2742 = vmatprep.subr.mxu0 0.0
    %2743 = vmatpush1.msra.mxu0 0.0
    %2744 = vmatprep.subr.mxu0 0.0
    %2745 = vmatpush1.msra.mxu0 0.0
    %2746 = vmatprep.subr.mxu0 0.0
    %2747 = vmatpush1.msra.mxu0 0.0
    %2748 = vmatprep.subr.mxu0 0.0
    %2749 = vmatpush1.msra.mxu0 0.0
    %2750 = vmatprep.subr.mxu0 0.0
    %2751 = vmatpush1.msra.mxu0 0.0
    %2752 = vmatprep.subr.mxu0 0.0
    %2753 = vmatpush1.msra.mxu0 0.0
    %2754 = vmatprep.subr.mxu0 0.0
    %2755 = vmatpush1.msra.mxu0 0.0
    %2756 = vmatprep.subr.mxu0 0.0
    %2757 = vmatpush1.msra.mxu0 0.0
    %2758 = vmatprep.subr.mxu0 0.0
    %2759 = vmatpush1.msra.mxu0 0.0
    %2760 = vmatprep.subr.mxu0 0.0
    %2761 = vmatpush1.msra.mxu0 0.0
    %2762 = vmatprep.subr.mxu0 0.0
    %2763 = vmatpush1.msra.mxu0 0.0
    %2764 = vmatprep.subr.mxu0 0.0
    %2765 = vmatpush1.msra.mxu0 0.0
    %2766 = vmatprep.subr.mxu0 0.0
    %2767 = vmatpush1.msra.mxu0 %v251
    %2768 = vmatprep.subr.mxu0 0.0
    %2769 = vmatpush1.msra.mxu0 %v250
    %2770 = vmatprep.subr.mxu0 0.0
    %2771 = vmatpush1.msra.mxu0 %v249
    %2772 = vmatprep.subr.mxu0 0.0
    %2773 = vmatpush1.msra.mxu0 %v248
    %2774 = vmatprep.subr.mxu0 0.0
    %2775 = vmatpush2.msra.mxu0 0.0
    %2776 = vmatprep.subr.mxu0 0.0
    %2777 = vmatpush2.msra.mxu0 0.0
    %2778 = vmatprep.subr.mxu0 0.0
    %2779 = vmatpush2.msra.mxu0 0.0
    %2780 = vmatprep.subr.mxu0 0.0
    %2781 = vmatpush2.msra.mxu0 0.0
    %2782 = vmatprep.subr.mxu0 0.0
    %2783 = vmatpush2.msra.mxu0 0.0
    %2784 = vmatprep.subr.mxu0 0.0
    %2785 = vmatpush2.msra.mxu0 0.0
    %2786 = vmatprep.subr.mxu0 0.0
    %2787 = vmatpush2.msra.mxu0 0.0
    %2788 = vmatprep.subr.mxu0 0.0
    %2789 = vmatpush2.msra.mxu0 0.0
    %2790 = vmatprep.subr.mxu0 0.0
    %2791 = vmatpush2.msra.mxu0 0.0
    %2792 = vmatprep.subr.mxu0 0.0
    %2793 = vmatpush2.msra.mxu0 0.0
    %2794 = vmatprep.subr.mxu0 0.0
    %2795 = vmatpush2.msra.mxu0 0.0
    %2796 = vmatprep.subr.mxu0 0.0
    %2797 = vmatpush2.msra.mxu0 0.0
    %2798 = vmatprep.subr.mxu0 0.0
    %2799 = vmatpush2.msra.mxu0 0.0
    %2800 = vmatprep.subr.mxu0 0.0
    %2801 = vmatpush2.msra.mxu0 0.0
    %2802 = vmatprep.subr.mxu0 0.0
    %2803 = vmatpush2.msra.mxu0 0.0
    %2804 = vmatprep.subr.mxu0 0.0
    %2805 = vmatpush2.msra.mxu0 0.0
    %2806 = vmatprep.mubr.f32.mxu0 0.0
    %2807 = vmatmul.mubr.f32.gmra.mxu0 %v2180
    %v2808 = vpop.f32.mrf.mxu0
    %v2809 = vadd.f32 %v934, %v2808
    %v2810 = vpop.f32.mrf.mxu0
    %2811 = vdwg.mxu0
    %2812 = vmatprep.subr.mxu0 0.0
    %2813 = vmatpush1.msra.mxu0 0.0
    %2814 = vmatprep.subr.mxu0 0.0
    %2815 = vmatpush1.msra.mxu0 0.0
    %2816 = vmatprep.subr.mxu0 0.0
    %2817 = vmatpush1.msra.mxu0 0.0
    %2818 = vmatprep.subr.mxu0 0.0
    %2819 = vmatpush1.msra.mxu0 0.0
    %2820 = vmatprep.subr.mxu0 0.0
    %2821 = vmatpush1.msra.mxu0 0.0
    %2822 = vmatprep.subr.mxu0 0.0
    %2823 = vmatpush1.msra.mxu0 0.0
    %2824 = vmatprep.subr.mxu0 0.0
    %2825 = vmatpush1.msra.mxu0 0.0
    %2826 = vmatprep.subr.mxu0 0.0
    %2827 = vmatpush1.msra.mxu0 0.0
    %2828 = vmatprep.subr.mxu0 0.0
    %2829 = vmatpush1.msra.mxu0 0.0
    %2830 = vmatprep.subr.mxu0 0.0
    %2831 = vmatpush1.msra.mxu0 0.0
    %2832 = vmatprep.subr.mxu0 0.0
    %2833 = vmatpush1.msra.mxu0 0.0
    %2834 = vmatprep.subr.mxu0 0.0
    %2835 = vmatpush1.msra.mxu0 0.0
    %2836 = vmatprep.subr.mxu0 0.0
    %2837 = vmatpush1.msra.mxu0 %v255
    %2838 = vmatprep.subr.mxu0 0.0
    %2839 = vmatpush1.msra.mxu0 %v254
    %2840 = vmatprep.subr.mxu0 0.0
    %2841 = vmatpush1.msra.mxu0 %v253
    %2842 = vmatprep.subr.mxu0 0.0
    %2843 = vmatpush1.msra.mxu0 %v252
    %2844 = vmatprep.subr.mxu0 0.0
    %2845 = vmatpush2.msra.mxu0 0.0
    %2846 = vmatprep.subr.mxu0 0.0
    %2847 = vmatpush2.msra.mxu0 0.0
    %2848 = vmatprep.subr.mxu0 0.0
    %2849 = vmatpush2.msra.mxu0 0.0
    %2850 = vmatprep.subr.mxu0 0.0
    %2851 = vmatpush2.msra.mxu0 0.0
    %2852 = vmatprep.subr.mxu0 0.0
    %2853 = vmatpush2.msra.mxu0 0.0
    %2854 = vmatprep.subr.mxu0 0.0
    %2855 = vmatpush2.msra.mxu0 0.0
    %2856 = vmatprep.subr.mxu0 0.0
    %2857 = vmatpush2.msra.mxu0 0.0
    %2858 = vmatprep.subr.mxu0 0.0
    %2859 = vmatpush2.msra.mxu0 0.0
    %2860 = vmatprep.subr.mxu0 0.0
    %2861 = vmatpush2.msra.mxu0 0.0
    %2862 = vmatprep.subr.mxu0 0.0
    %2863 = vmatpush2.msra.mxu0 0.0
    %2864 = vmatprep.subr.mxu0 0.0
    %2865 = vmatpush2.msra.mxu0 0.0
    %2866 = vmatprep.subr.mxu0 0.0
    %2867 = vmatpush2.msra.mxu0 0.0
    %2868 = vmatprep.subr.mxu0 0.0
    %2869 = vmatpush2.msra.mxu0 0.0
    %2870 = vmatprep.subr.mxu0 0.0
    %2871 = vmatpush2.msra.mxu0 0.0
    %2872 = vmatprep.subr.mxu0 0.0
    %2873 = vmatpush2.msra.mxu0 0.0
    %2874 = vmatprep.subr.mxu0 0.0
    %2875 = vmatpush2.msra.mxu0 0.0
    %2876 = vmatprep.mubr.f32.mxu0 0.0
    %2877 = vmatmul.mubr.f32.gmra.mxu0 %v2180
    %v2878 = vpop.f32.mrf.mxu0
    %v2879 = vadd.f32 %v938, %v2878
    %v2880 = vpop.f32.mrf.mxu0
    %2881 = vdwg.mxu0
    %2882 = vmatprep.subr.mxu0 0.0
    %2883 = vmatpush1.msra.mxu0 0.0
    %2884 = vmatprep.subr.mxu0 0.0
    %2885 = vmatpush1.msra.mxu0 0.0
    %2886 = vmatprep.subr.mxu0 0.0
    %2887 = vmatpush1.msra.mxu0 0.0
    %2888 = vmatprep.subr.mxu0 0.0
    %2889 = vmatpush1.msra.mxu0 0.0
    %2890 = vmatprep.subr.mxu0 0.0
    %2891 = vmatpush1.msra.mxu0 0.0
    %2892 = vmatprep.subr.mxu0 0.0
    %2893 = vmatpush1.msra.mxu0 0.0
    %2894 = vmatprep.subr.mxu0 0.0
    %2895 = vmatpush1.msra.mxu0 0.0
    %2896 = vmatprep.subr.mxu0 0.0
    %2897 = vmatpush1.msra.mxu0 0.0
    %2898 = vmatprep.subr.mxu0 0.0
    %2899 = vmatpush1.msra.mxu0 0.0
    %2900 = vmatprep.subr.mxu0 0.0
    %2901 = vmatpush1.msra.mxu0 0.0
    %2902 = vmatprep.subr.mxu0 0.0
    %2903 = vmatpush1.msra.mxu0 0.0
    %2904 = vmatprep.subr.mxu0 0.0
    %2905 = vmatpush1.msra.mxu0 0.0
    %2906 = vmatprep.subr.mxu0 0.0
    %2907 = vmatpush1.msra.mxu0 %v259
    %2908 = vmatprep.subr.mxu0 0.0
    %2909 = vmatpush1.msra.mxu0 %v258
    %2910 = vmatprep.subr.mxu0 0.0
    %2911 = vmatpush1.msra.mxu0 %v257
    %2912 = vmatprep.subr.mxu0 0.0
    %2913 = vmatpush1.msra.mxu0 %v256
    %2914 = vmatprep.subr.mxu0 0.0
    %2915 = vmatpush2.msra.mxu0 0.0
    %2916 = vmatprep.subr.mxu0 0.0
    %2917 = vmatpush2.msra.mxu0 0.0
    %2918 = vmatprep.subr.mxu0 0.0
    %2919 = vmatpush2.msra.mxu0 0.0
    %2920 = vmatprep.subr.mxu0 0.0
    %2921 = vmatpush2.msra.mxu0 0.0
    %2922 = vmatprep.subr.mxu0 0.0
    %2923 = vmatpush2.msra.mxu0 0.0
    %2924 = vmatprep.subr.mxu0 0.0
    %2925 = vmatpush2.msra.mxu0 0.0
    %2926 = vmatprep.subr.mxu0 0.0
    %2927 = vmatpush2.msra.mxu0 0.0
    %2928 = vmatprep.subr.mxu0 0.0
    %2929 = vmatpush2.msra.mxu0 0.0
    %2930 = vmatprep.subr.mxu0 0.0
    %2931 = vmatpush2.msra.mxu0 0.0
    %2932 = vmatprep.subr.mxu0 0.0
    %2933 = vmatpush2.msra.mxu0 0.0
    %2934 = vmatprep.subr.mxu0 0.0
    %2935 = vmatpush2.msra.mxu0 0.0
    %2936 = vmatprep.subr.mxu0 0.0
    %2937 = vmatpush2.msra.mxu0 0.0
    %2938 = vmatprep.subr.mxu0 0.0
    %2939 = vmatpush2.msra.mxu0 0.0
    %2940 = vmatprep.subr.mxu0 0.0
    %2941 = vmatpush2.msra.mxu0 0.0
    %2942 = vmatprep.subr.mxu0 0.0
    %2943 = vmatpush2.msra.mxu0 0.0
    %2944 = vmatprep.subr.mxu0 0.0
    %2945 = vmatpush2.msra.mxu0 0.0
    %2946 = vmatprep.mubr.f32.mxu0 0.0
    %2947 = vmatmul.mubr.f32.gmra.mxu0 %v2180
    %v2948 = vpop.f32.mrf.mxu0
    %v2949 = vadd.f32 %v942, %v2948
    %v2950 = vpop.f32.mrf.mxu0
    %2951 = vdwg.mxu0
    %2952 = vmatprep.subr.mxu0 0.0
    %2953 = vmatpush1.msra.mxu0 0.0
    %2954 = vmatprep.subr.mxu0 0.0
    %2955 = vmatpush1.msra.mxu0 0.0
    %2956 = vmatprep.subr.mxu0 0.0
    %2957 = vmatpush1.msra.mxu0 0.0
    %2958 = vmatprep.subr.mxu0 0.0
    %2959 = vmatpush1.msra.mxu0 0.0
    %2960 = vmatprep.subr.mxu0 0.0
    %2961 = vmatpush1.msra.mxu0 0.0
    %2962 = vmatprep.subr.mxu0 0.0
    %2963 = vmatpush1.msra.mxu0 0.0
    %2964 = vmatprep.subr.mxu0 0.0
    %2965 = vmatpush1.msra.mxu0 0.0
    %2966 = vmatprep.subr.mxu0 0.0
    %2967 = vmatpush1.msra.mxu0 0.0
    %2968 = vmatprep.subr.mxu0 0.0
    %2969 = vmatpush1.msra.mxu0 0.0
    %2970 = vmatprep.subr.mxu0 0.0
    %2971 = vmatpush1.msra.mxu0 0.0
    %2972 = vmatprep.subr.mxu0 0.0
    %2973 = vmatpush1.msra.mxu0 0.0
    %2974 = vmatprep.subr.mxu0 0.0
    %2975 = vmatpush1.msra.mxu0 0.0
    %2976 = vmatprep.subr.mxu0 0.0
    %2977 = vmatpush1.msra.mxu0 %v263
    %2978 = vmatprep.subr.mxu0 0.0
    %2979 = vmatpush1.msra.mxu0 %v262
    %2980 = vmatprep.subr.mxu0 0.0
    %2981 = vmatpush1.msra.mxu0 %v261
    %2982 = vmatprep.subr.mxu0 0.0
    %2983 = vmatpush1.msra.mxu0 %v260
    %2984 = vmatprep.subr.mxu0 0.0
    %2985 = vmatpush2.msra.mxu0 0.0
    %2986 = vmatprep.subr.mxu0 0.0
    %2987 = vmatpush2.msra.mxu0 0.0
    %2988 = vmatprep.subr.mxu0 0.0
    %2989 = vmatpush2.msra.mxu0 0.0
    %2990 = vmatprep.subr.mxu0 0.0
    %2991 = vmatpush2.msra.mxu0 0.0
    %2992 = vmatprep.subr.mxu0 0.0
    %2993 = vmatpush2.msra.mxu0 0.0
    %2994 = vmatprep.subr.mxu0 0.0
    %2995 = vmatpush2.msra.mxu0 0.0
    %2996 = vmatprep.subr.mxu0 0.0
    %2997 = vmatpush2.msra.mxu0 0.0
    %2998 = vmatprep.subr.mxu0 0.0
    %2999 = vmatpush2.msra.mxu0 0.0
    %3000 = vmatprep.subr.mxu0 0.0
    %3001 = vmatpush2.msra.mxu0 0.0
    %3002 = vmatprep.subr.mxu0 0.0
    %3003 = vmatpush2.msra.mxu0 0.0
    %3004 = vmatprep.subr.mxu0 0.0
    %3005 = vmatpush2.msra.mxu0 0.0
    %3006 = vmatprep.subr.mxu0 0.0
    %3007 = vmatpush2.msra.mxu0 0.0
    %3008 = vmatprep.subr.mxu0 0.0
    %3009 = vmatpush2.msra.mxu0 0.0
    %3010 = vmatprep.subr.mxu0 0.0
    %3011 = vmatpush2.msra.mxu0 0.0
    %3012 = vmatprep.subr.mxu0 0.0
    %3013 = vmatpush2.msra.mxu0 0.0
    %3014 = vmatprep.subr.mxu0 0.0
    %3015 = vmatpush2.msra.mxu0 0.0
    %3016 = vmatprep.mubr.f32.mxu0 0.0
    %3017 = vmatmul.mubr.f32.gmra.mxu0 %v2180
    %v3018 = vpop.f32.mrf.mxu0
    %v3019 = vadd.f32 %v946, %v3018
    %v3020 = vpop.f32.mrf.mxu0
    %3021 = vdwg.mxu0
    %v3023 = vsel %vm1231, %v2249, 0
    %v3026 = vsel %vm1231, %v2529, 0
    %3028 = vmatprep.subr.mxu0 0.0
    %3029 = vmatpush1.xpose.msra.mxu0 0.0
    %3030 = vmatprep.subr.mxu0 0.0
    %3031 = vmatpush1.xpose.msra.mxu0 0.0
    %3032 = vmatprep.subr.mxu0 0.0
    %3033 = vmatpush1.xpose.msra.mxu0 0.0
    %3034 = vmatprep.subr.mxu0 0.0
    %3035 = vmatpush1.xpose.msra.mxu0 0.0
    %3036 = vmatprep.subr.mxu0 0.0
    %3037 = vmatpush1.xpose.msra.mxu0 0.0
    %3038 = vmatprep.subr.mxu0 0.0
    %3039 = vmatpush1.xpose.msra.mxu0 0.0
    %3040 = vmatprep.subr.mxu0 0.0
    %3041 = vmatpush1.xpose.msra.mxu0 0.0
    %3042 = vmatprep.subr.mxu0 0.0
    %3043 = vmatpush1.xpose.msra.mxu0 0.0
    %3044 = vmatprep.subr.mxu0 0.0
    %3045 = vmatpush1.xpose.msra.mxu0 0.0
    %3046 = vmatprep.subr.mxu0 0.0
    %3047 = vmatpush1.xpose.msra.mxu0 0.0
    %3048 = vmatprep.subr.mxu0 0.0
    %3049 = vmatpush1.xpose.msra.mxu0 0.0
    %3050 = vmatprep.subr.mxu0 0.0
    %3051 = vmatpush1.xpose.msra.mxu0 0.0
    %3052 = vmatprep.subr.mxu0 0.0
    %3053 = vmatpush1.xpose.msra.mxu0 0.0
    %3054 = vmatprep.subr.mxu0 0.0
    %3055 = vmatpush1.xpose.msra.mxu0 0.0
    %3056 = vmatprep.subr.mxu0 0.0
    %3057 = vmatpush1.xpose.msra.mxu0 0.0
    %3058 = vmatprep.subr.mxu0 0.0
    %3059 = vmatpush1.xpose.msra.mxu0 %v3026
    %3060 = vmatprep.subr.mxu0 0.0
    %3061 = vmatpush2.xpose.msra.mxu0 0.0
    %3062 = vmatprep.subr.mxu0 0.0
    %3063 = vmatpush2.xpose.msra.mxu0 0.0
    %3064 = vmatprep.subr.mxu0 0.0
    %3065 = vmatpush2.xpose.msra.mxu0 0.0
    %3066 = vmatprep.subr.mxu0 0.0
    %3067 = vmatpush2.xpose.msra.mxu0 0.0
    %3068 = vmatprep.subr.mxu0 0.0
    %3069 = vmatpush2.xpose.msra.mxu0 0.0
    %3070 = vmatprep.subr.mxu0 0.0
    %3071 = vmatpush2.xpose.msra.mxu0 0.0
    %3072 = vmatprep.subr.mxu0 0.0
    %3073 = vmatpush2.xpose.msra.mxu0 0.0
    %3074 = vmatprep.subr.mxu0 0.0
    %3075 = vmatpush2.xpose.msra.mxu0 0.0
    %3076 = vmatprep.subr.mxu0 0.0
    %3077 = vmatpush2.xpose.msra.mxu0 0.0
    %3078 = vmatprep.subr.mxu0 0.0
    %3079 = vmatpush2.xpose.msra.mxu0 0.0
    %3080 = vmatprep.subr.mxu0 0.0
    %3081 = vmatpush2.xpose.msra.mxu0 0.0
    %3082 = vmatprep.subr.mxu0 0.0
    %3083 = vmatpush2.xpose.msra.mxu0 0.0
    %3084 = vmatprep.subr.mxu0 0.0
    %3085 = vmatpush2.xpose.msra.mxu0 0.0
    %3086 = vmatprep.subr.mxu0 0.0
    %3087 = vmatpush2.xpose.msra.mxu0 0.0
    %3088 = vmatprep.subr.mxu0 0.0
    %3089 = vmatpush2.xpose.msra.mxu0 0.0
    %3090 = vmatprep.subr.mxu0 0.0
    %3091 = vmatpush2.xpose.msra.mxu0 0.0
    %3092 = vmatprep.mubr.f32.mxu0 0.0
    %3093 = vmatmul.mubr.f32.gmra.mxu0 %v3023
    %v3094 = vpop.f32.mrf.mxu0
    %v3095 = vadd.f32 0.0, %v3094
    %v3096 = vpop.f32.mrf.mxu0
    %3097 = vdwg.mxu0
    %v3099 = vsel %vm1231, %v2319, 0
    %v3102 = vsel %vm1231, %v2599, 0
    %3104 = vmatprep.subr.mxu0 0.0
    %3105 = vmatpush1.xpose.msra.mxu0 0.0
    %3106 = vmatprep.subr.mxu0 0.0
    %3107 = vmatpush1.xpose.msra.mxu0 0.0
    %3108 = vmatprep.subr.mxu0 0.0
    %3109 = vmatpush1.xpose.msra.mxu0 0.0
    %3110 = vmatprep.subr.mxu0 0.0
    %3111 = vmatpush1.xpose.msra.mxu0 0.0
    %3112 = vmatprep.subr.mxu0 0.0
    %3113 = vmatpush1.xpose.msra.mxu0 0.0
    %3114 = vmatprep.subr.mxu0 0.0
    %3115 = vmatpush1.xpose.msra.mxu0 0.0
    %3116 = vmatprep.subr.mxu0 0.0
    %3117 = vmatpush1.xpose.msra.mxu0 0.0
    %3118 = vmatprep.subr.mxu0 0.0
    %3119 = vmatpush1.xpose.msra.mxu0 0.0
    %3120 = vmatprep.subr.mxu0 0.0
    %3121 = vmatpush1.xpose.msra.mxu0 0.0
    %3122 = vmatprep.subr.mxu0 0.0
    %3123 = vmatpush1.xpose.msra.mxu0 0.0
    %3124 = vmatprep.subr.mxu0 0.0
    %3125 = vmatpush1.xpose.msra.mxu0 0.0
    %3126 = vmatprep.subr.mxu0 0.0
    %3127 = vmatpush1.xpose.msra.mxu0 0.0
    %3128 = vmatprep.subr.mxu0 0.0
    %3129 = vmatpush1.xpose.msra.mxu0 0.0
    %3130 = vmatprep.subr.mxu0 0.0
    %3131 = vmatpush1.xpose.msra.mxu0 0.0
    %3132 = vmatprep.subr.mxu0 0.0
    %3133 = vmatpush1.xpose.msra.mxu0 0.0
    %3134 = vmatprep.subr.mxu0 0.0
    %3135 = vmatpush1.xpose.msra.mxu0 %v3102
    %3136 = vmatprep.subr.mxu0 0.0
    %3137 = vmatpush2.xpose.msra.mxu0 0.0
    %3138 = vmatprep.subr.mxu0 0.0
    %3139 = vmatpush2.xpose.msra.mxu0 0.0
    %3140 = vmatprep.subr.mxu0 0.0
    %3141 = vmatpush2.xpose.msra.mxu0 0.0
    %3142 = vmatprep.subr.mxu0 0.0
    %3143 = vmatpush2.xpose.msra.mxu0 0.0
    %3144 = vmatprep.subr.mxu0 0.0
    %3145 = vmatpush2.xpose.msra.mxu0 0.0
    %3146 = vmatprep.subr.mxu0 0.0
    %3147 = vmatpush2.xpose.msra.mxu0 0.0
    %3148 = vmatprep.subr.mxu0 0.0
    %3149 = vmatpush2.xpose.msra.mxu0 0.0
    %3150 = vmatprep.subr.mxu0 0.0
    %3151 = vmatpush2.xpose.msra.mxu0 0.0
    %3152 = vmatprep.subr.mxu0 0.0
    %3153 = vmatpush2.xpose.msra.mxu0 0.0
    %3154 = vmatprep.subr.mxu0 0.0
    %3155 = vmatpush2.xpose.msra.mxu0 0.0
    %3156 = vmatprep.subr.mxu0 0.0
    %3157 = vmatpush2.xpose.msra.mxu0 0.0
    %3158 = vmatprep.subr.mxu0 0.0
    %3159 = vmatpush2.xpose.msra.mxu0 0.0
    %3160 = vmatprep.subr.mxu0 0.0
    %3161 = vmatpush2.xpose.msra.mxu0 0.0
    %3162 = vmatprep.subr.mxu0 0.0
    %3163 = vmatpush2.xpose.msra.mxu0 0.0
    %3164 = vmatprep.subr.mxu0 0.0
    %3165 = vmatpush2.xpose.msra.mxu0 0.0
    %3166 = vmatprep.subr.mxu0 0.0
    %3167 = vmatpush2.xpose.msra.mxu0 0.0
    %3168 = vmatprep.mubr.f32.mxu0 0.0
    %3169 = vmatmul.mubr.f32.gmra.mxu0 %v3099
    %v3170 = vpop.f32.mrf.mxu0
    %v3171 = vadd.f32 0.0, %v3170
    %v3172 = vpop.f32.mrf.mxu0
    %3173 = vdwg.mxu0
    %v3175 = vsel %vm1231, %v2389, 0
    %v3178 = vsel %vm1231, %v2669, 0
    %3180 = vmatprep.subr.mxu0 0.0
    %3181 = vmatpush1.xpose.msra.mxu0 0.0
    %3182 = vmatprep.subr.mxu0 0.0
    %3183 = vmatpush1.xpose.msra.mxu0 0.0
    %3184 = vmatprep.subr.mxu0 0.0
    %3185 = vmatpush1.xpose.msra.mxu0 0.0
    %3186 = vmatprep.subr.mxu0 0.0
    %3187 = vmatpush1.xpose.msra.mxu0 0.0
    %3188 = vmatprep.subr.mxu0 0.0
    %3189 = vmatpush1.xpose.msra.mxu0 0.0
    %3190 = vmatprep.subr.mxu0 0.0
    %3191 = vmatpush1.xpose.msra.mxu0 0.0
    %3192 = vmatprep.subr.mxu0 0.0
    %3193 = vmatpush1.xpose.msra.mxu0 0.0
    %3194 = vmatprep.subr.mxu0 0.0
    %3195 = vmatpush1.xpose.msra.mxu0 0.0
    %3196 = vmatprep.subr.mxu0 0.0
    %3197 = vmatpush1.xpose.msra.mxu0 0.0
    %3198 = vmatprep.subr.mxu0 0.0
    %3199 = vmatpush1.xpose.msra.mxu0 0.0
    %3200 = vmatprep.subr.mxu0 0.0
    %3201 = vmatpush1.xpose.msra.mxu0 0.0
    %3202 = vmatprep.subr.mxu0 0.0
    %3203 = vmatpush1.xpose.msra.mxu0 0.0
    %3204 = vmatprep.subr.mxu0 0.0
    %3205 = vmatpush1.xpose.msra.mxu0 0.0
    %3206 = vmatprep.subr.mxu0 0.0
    %3207 = vmatpush1.xpose.msra.mxu0 0.0
    %3208 = vmatprep.subr.mxu0 0.0
    %3209 = vmatpush1.xpose.msra.mxu0 0.0
    %3210 = vmatprep.subr.mxu0 0.0
    %3211 = vmatpush1.xpose.msra.mxu0 %v3178
    %3212 = vmatprep.subr.mxu0 0.0
    %3213 = vmatpush2.xpose.msra.mxu0 0.0
    %3214 = vmatprep.subr.mxu0 0.0
    %3215 = vmatpush2.xpose.msra.mxu0 0.0
    %3216 = vmatprep.subr.mxu0 0.0
    %3217 = vmatpush2.xpose.msra.mxu0 0.0
    %3218 = vmatprep.subr.mxu0 0.0
    %3219 = vmatpush2.xpose.msra.mxu0 0.0
    %3220 = vmatprep.subr.mxu0 0.0
    %3221 = vmatpush2.xpose.msra.mxu0 0.0
    %3222 = vmatprep.subr.mxu0 0.0
    %3223 = vmatpush2.xpose.msra.mxu0 0.0
    %3224 = vmatprep.subr.mxu0 0.0
    %3225 = vmatpush2.xpose.msra.mxu0 0.0
    %3226 = vmatprep.subr.mxu0 0.0
    %3227 = vmatpush2.xpose.msra.mxu0 0.0
    %3228 = vmatprep.subr.mxu0 0.0
    %3229 = vmatpush2.xpose.msra.mxu0 0.0
    %3230 = vmatprep.subr.mxu0 0.0
    %3231 = vmatpush2.xpose.msra.mxu0 0.0
    %3232 = vmatprep.subr.mxu0 0.0
    %3233 = vmatpush2.xpose.msra.mxu0 0.0
    %3234 = vmatprep.subr.mxu0 0.0
    %3235 = vmatpush2.xpose.msra.mxu0 0.0
    %3236 = vmatprep.subr.mxu0 0.0
    %3237 = vmatpush2.xpose.msra.mxu0 0.0
    %3238 = vmatprep.subr.mxu0 0.0
    %3239 = vmatpush2.xpose.msra.mxu0 0.0
    %3240 = vmatprep.subr.mxu0 0.0
    %3241 = vmatpush2.xpose.msra.mxu0 0.0
    %3242 = vmatprep.subr.mxu0 0.0
    %3243 = vmatpush2.xpose.msra.mxu0 0.0
    %3244 = vmatprep.mubr.f32.mxu0 0.0
    %3245 = vmatmul.mubr.f32.gmra.mxu0 %v3175
    %v3246 = vpop.f32.mrf.mxu0
    %v3247 = vadd.f32 0.0, %v3246
    %v3248 = vpop.f32.mrf.mxu0
    %3249 = vdwg.mxu0
    %v3251 = vsel %vm1231, %v2459, 0
    %v3254 = vsel %vm1231, %v2739, 0
    %3256 = vmatprep.subr.mxu0 0.0
    %3257 = vmatpush1.xpose.msra.mxu0 0.0
    %3258 = vmatprep.subr.mxu0 0.0
    %3259 = vmatpush1.xpose.msra.mxu0 0.0
    %3260 = vmatprep.subr.mxu0 0.0
    %3261 = vmatpush1.xpose.msra.mxu0 0.0
    %3262 = vmatprep.subr.mxu0 0.0
    %3263 = vmatpush1.xpose.msra.mxu0 0.0
    %3264 = vmatprep.subr.mxu0 0.0
    %3265 = vmatpush1.xpose.msra.mxu0 0.0
    %3266 = vmatprep.subr.mxu0 0.0
    %3267 = vmatpush1.xpose.msra.mxu0 0.0
    %3268 = vmatprep.subr.mxu0 0.0
    %3269 = vmatpush1.xpose.msra.mxu0 0.0
    %3270 = vmatprep.subr.mxu0 0.0
    %3271 = vmatpush1.xpose.msra.mxu0 0.0
    %3272 = vmatprep.subr.mxu0 0.0
    %3273 = vmatpush1.xpose.msra.mxu0 0.0
    %3274 = vmatprep.subr.mxu0 0.0
    %3275 = vmatpush1.xpose.msra.mxu0 0.0
    %3276 = vmatprep.subr.mxu0 0.0
    %3277 = vmatpush1.xpose.msra.mxu0 0.0
    %3278 = vmatprep.subr.mxu0 0.0
    %3279 = vmatpush1.xpose.msra.mxu0 0.0
    %3280 = vmatprep.subr.mxu0 0.0
    %3281 = vmatpush1.xpose.msra.mxu0 0.0
    %3282 = vmatprep.subr.mxu0 0.0
    %3283 = vmatpush1.xpose.msra.mxu0 0.0
    %3284 = vmatprep.subr.mxu0 0.0
    %3285 = vmatpush1.xpose.msra.mxu0 0.0
    %3286 = vmatprep.subr.mxu0 0.0
    %3287 = vmatpush1.xpose.msra.mxu0 %v3254
    %3288 = vmatprep.subr.mxu0 0.0
    %3289 = vmatpush2.xpose.msra.mxu0 0.0
    %3290 = vmatprep.subr.mxu0 0.0
    %3291 = vmatpush2.xpose.msra.mxu0 0.0
    %3292 = vmatprep.subr.mxu0 0.0
    %3293 = vmatpush2.xpose.msra.mxu0 0.0
    %3294 = vmatprep.subr.mxu0 0.0
    %3295 = vmatpush2.xpose.msra.mxu0 0.0
    %3296 = vmatprep.subr.mxu0 0.0
    %3297 = vmatpush2.xpose.msra.mxu0 0.0
    %3298 = vmatprep.subr.mxu0 0.0
    %3299 = vmatpush2.xpose.msra.mxu0 0.0
    %3300 = vmatprep.subr.mxu0 0.0
    %3301 = vmatpush2.xpose.msra.mxu0 0.0
    %3302 = vmatprep.subr.mxu0 0.0
    %3303 = vmatpush2.xpose.msra.mxu0 0.0
    %3304 = vmatprep.subr.mxu0 0.0
    %3305 = vmatpush2.xpose.msra.mxu0 0.0
    %3306 = vmatprep.subr.mxu0 0.0
    %3307 = vmatpush2.xpose.msra.mxu0 0.0
    %3308 = vmatprep.subr.mxu0 0.0
    %3309 = vmatpush2.xpose.msra.mxu0 0.0
    %3310 = vmatprep.subr.mxu0 0.0
    %3311 = vmatpush2.xpose.msra.mxu0 0.0
    %3312 = vmatprep.subr.mxu0 0.0
    %3313 = vmatpush2.xpose.msra.mxu0 0.0
    %3314 = vmatprep.subr.mxu0 0.0
    %3315 = vmatpush2.xpose.msra.mxu0 0.0
    %3316 = vmatprep.subr.mxu0 0.0
    %3317 = vmatpush2.xpose.msra.mxu0 0.0
    %3318 = vmatprep.subr.mxu0 0.0
    %3319 = vmatpush2.xpose.msra.mxu0 0.0
    %3320 = vmatprep.mubr.f32.mxu0 0.0
    %3321 = vmatmul.mubr.f32.gmra.mxu0 %v3251
    %v3322 = vpop.f32.mrf.mxu0
    %v3323 = vadd.f32 0.0, %v3322
    %v3324 = vpop.f32.mrf.mxu0
    %3325 = vdwg.mxu0
    %v3326 = vmul.f32 %v3095, 0.35355338
    %v3327 = vmul.f32 %v3171, 0.35355338
    %v3328 = vmul.f32 %v3247, 0.35355338
    %v3329 = vmul.f32 %v3323, 0.35355338
    %v3330 = vadd.f32 %v3326, %v188
    %v3331 = vadd.f32 %v3327, %v188
    %v3332 = vadd.f32 %v3328, %v188
    %v3333 = vadd.f32 %v3329, %v188
    %v3334 = vsel %vm1231, %v3330, -inf
    %3335 = vmax.xlane.f32.xlu0 %v3334
    %v3336 = vpop.xlane.xlu0 %3335
    %v3337 = vsel %vm1231, %v3331, -inf
    %3338 = vmax.xlane.f32.xlu0 %v3337
    %v3339 = vpop.xlane.xlu0 %3338
    %v3340 = vsel %vm1231, %v3332, -inf
    %3341 = vmax.xlane.f32.xlu0 %v3340
    %v3342 = vpop.xlane.xlu0 %3341
    %v3343 = vsel %vm1231, %v3333, -inf
    %3344 = vmax.xlane.f32.xlu0 %v3343
    %v3345 = vpop.xlane.xlu0 %3344
    %v3346 = vsub.f32 %v3330, %v3336
    %v3347 = vsub.f32 %v3331, %v3339
    %v3348 = vsub.f32 %v3332, %v3342
    %v3349 = vsub.f32 %v3333, %v3345
    %v3350 = vmul.f32 %v3346, 1.442695
    %v3351 = vpow.pop %v3350
    %v3352 = vmul.f32 %v3347, 1.442695
    %v3353 = vpow.pop %v3352
    %v3354 = vmul.f32 %v3348, 1.442695
    %v3355 = vpow.pop %v3354
    %v3356 = vmul.f32 %v3349, 1.442695
    %v3357 = vpow.pop %v3356
    %v3358 = vsel %vm1231, %v3351, 0.0
    %3359 = vadd.xlane.f32.xlu0 %v3358
    %v3360 = vpop.xlane.xlu0 %3359
    %v3361 = vsel %vm1231, %v3353, 0.0
    %3362 = vadd.xlane.f32.xlu0 %v3361
    %v3363 = vpop.xlane.xlu0 %3362
    %v3364 = vsel %vm1231, %v3355, 0.0
    %3365 = vadd.xlane.f32.xlu0 %v3364
    %v3366 = vpop.xlane.xlu0 %3365
    %v3367 = vsel %vm1231, %v3357, 0.0
    %3368 = vadd.xlane.f32.xlu0 %v3367
    %v3369 = vpop.xlane.xlu0 %3368
    %v3370 = vrcp.pop %v3360
    %v3371 = vmul.f32 %v3351, %v3370
    %v3372 = vrcp.pop %v3363
    %v3373 = vmul.f32 %v3353, %v3372
    %v3374 = vrcp.pop %v3366
    %v3375 = vmul.f32 %v3355, %v3374
    %v3376 = vrcp.pop %v3369
    %v3377 = vmul.f32 %v3357, %v3376
    %v3379 = vsel %vm1231, %v3371, 0
    %3381 = vmatprep.subr.mxu0 0.0
    %3382 = vmatpush1.msra.mxu0 0.0
    %3383 = vmatprep.subr.mxu0 0.0
    %3384 = vmatpush1.msra.mxu0 0.0
    %3385 = vmatprep.subr.mxu0 0.0
    %3386 = vmatpush1.msra.mxu0 0.0
    %3387 = vmatprep.subr.mxu0 0.0
    %3388 = vmatpush1.msra.mxu0 0.0
    %3389 = vmatprep.subr.mxu0 0.0
    %3390 = vmatpush1.msra.mxu0 0.0
    %3391 = vmatprep.subr.mxu0 0.0
    %3392 = vmatpush1.msra.mxu0 0.0
    %3393 = vmatprep.subr.mxu0 0.0
    %3394 = vmatpush1.msra.mxu0 0.0
    %3395 = vmatprep.subr.mxu0 0.0
    %3396 = vmatpush1.msra.mxu0 0.0
    %3397 = vmatprep.subr.mxu0 0.0
    %3398 = vmatpush1.msra.mxu0 0.0
    %3399 = vmatprep.subr.mxu0 0.0
    %3400 = vmatpush1.msra.mxu0 0.0
    %3401 = vmatprep.subr.mxu0 0.0
    %3402 = vmatpush1.msra.mxu0 0.0
    %3403 = vmatprep.subr.mxu0 0.0
    %3404 = vmatpush1.msra.mxu0 0.0
    %3405 = vmatprep.subr.mxu0 0.0
    %3406 = vmatpush1.msra.mxu0 0.0
    %3407 = vmatprep.subr.mxu0 0.0
    %3408 = vmatpush1.msra.mxu0 0.0
    %3409 = vmatprep.subr.mxu0 0.0
    %3410 = vmatpush1.msra.mxu0 0.0
    %3411 = vmatprep.subr.mxu0 0.0
    %3412 = vmatpush1.msra.mxu0 %v2809
    %3413 = vmatprep.subr.mxu0 0.0
    %3414 = vmatpush2.msra.mxu0 0.0
    %3415 = vmatprep.subr.mxu0 0.0
    %3416 = vmatpush2.msra.mxu0 0.0
    %3417 = vmatprep.subr.mxu0 0.0
    %3418 = vmatpush2.msra.mxu0 0.0
    %3419 = vmatprep.subr.mxu0 0.0
    %3420 = vmatpush2.msra.mxu0 0.0
    %3421 = vmatprep.subr.mxu0 0.0
    %3422 = vmatpush2.msra.mxu0 0.0
    %3423 = vmatprep.subr.mxu0 0.0
    %3424 = vmatpush2.msra.mxu0 0.0
    %3425 = vmatprep.subr.mxu0 0.0
    %3426 = vmatpush2.msra.mxu0 0.0
    %3427 = vmatprep.subr.mxu0 0.0
    %3428 = vmatpush2.msra.mxu0 0.0
    %3429 = vmatprep.subr.mxu0 0.0
    %3430 = vmatpush2.msra.mxu0 0.0
    %3431 = vmatprep.subr.mxu0 0.0
    %3432 = vmatpush2.msra.mxu0 0.0
    %3433 = vmatprep.subr.mxu0 0.0
    %3434 = vmatpush2.msra.mxu0 0.0
    %3435 = vmatprep.subr.mxu0 0.0
    %3436 = vmatpush2.msra.mxu0 0.0
    %3437 = vmatprep.subr.mxu0 0.0
    %3438 = vmatpush2.msra.mxu0 0.0
    %3439 = vmatprep.subr.mxu0 0.0
    %3440 = vmatpush2.msra.mxu0 0.0
    %3441 = vmatprep.subr.mxu0 0.0
    %3442 = vmatpush2.msra.mxu0 0.0
    %3443 = vmatprep.subr.mxu0 0.0
    %3444 = vmatpush2.msra.mxu0 0.0
    %3445 = vmatprep.mubr.f32.mxu0 0.0
    %3446 = vmatmul.mubr.f32.gmra.mxu0 %v3379
    %v3447 = vpop.f32.mrf.mxu0
    %v3448 = vadd.f32 0.0, %v3447
    %v3449 = vpop.f32.mrf.mxu0
    %3450 = vdwg.mxu0
    %v3452 = vsel %vm1231, %v3373, 0
    %3454 = vmatprep.subr.mxu0 0.0
    %3455 = vmatpush1.msra.mxu0 0.0
    %3456 = vmatprep.subr.mxu0 0.0
    %3457 = vmatpush1.msra.mxu0 0.0
    %3458 = vmatprep.subr.mxu0 0.0
    %3459 = vmatpush1.msra.mxu0 0.0
    %3460 = vmatprep.subr.mxu0 0.0
    %3461 = vmatpush1.msra.mxu0 0.0
    %3462 = vmatprep.subr.mxu0 0.0
    %3463 = vmatpush1.msra.mxu0 0.0
    %3464 = vmatprep.subr.mxu0 0.0
    %3465 = vmatpush1.msra.mxu0 0.0
    %3466 = vmatprep.subr.mxu0 0.0
    %3467 = vmatpush1.msra.mxu0 0.0
    %3468 = vmatprep.subr.mxu0 0.0
    %3469 = vmatpush1.msra.mxu0 0.0
    %3470 = vmatprep.subr.mxu0 0.0
    %3471 = vmatpush1.msra.mxu0 0.0
    %3472 = vmatprep.subr.mxu0 0.0
    %3473 = vmatpush1.msra.mxu0 0.0
    %3474 = vmatprep.subr.mxu0 0.0
    %3475 = vmatpush1.msra.mxu0 0.0
    %3476 = vmatprep.subr.mxu0 0.0
    %3477 = vmatpush1.msra.mxu0 0.0
    %3478 = vmatprep.subr.mxu0 0.0
    %3479 = vmatpush1.msra.mxu0 0.0
    %3480 = vmatprep.subr.mxu0 0.0
    %3481 = vmatpush1.msra.mxu0 0.0
    %3482 = vmatprep.subr.mxu0 0.0
    %3483 = vmatpush1.msra.mxu0 0.0
    %3484 = vmatprep.subr.mxu0 0.0
    %3485 = vmatpush1.msra.mxu0 %v2879
    %3486 = vmatprep.subr.mxu0 0.0
    %3487 = vmatpush2.msra.mxu0 0.0
    %3488 = vmatprep.subr.mxu0 0.0
    %3489 = vmatpush2.msra.mxu0 0.0
    %3490 = vmatprep.subr.mxu0 0.0
    %3491 = vmatpush2.msra.mxu0 0.0
    %3492 = vmatprep.subr.mxu0 0.0
    %3493 = vmatpush2.msra.mxu0 0.0
    %3494 = vmatprep.subr.mxu0 0.0
    %3495 = vmatpush2.msra.mxu0 0.0
    %3496 = vmatprep.subr.mxu0 0.0
    %3497 = vmatpush2.msra.mxu0 0.0
    %3498 = vmatprep.subr.mxu0 0.0
    %3499 = vmatpush2.msra.mxu0 0.0
    %3500 = vmatprep.subr.mxu0 0.0
    %3501 = vmatpush2.msra.mxu0 0.0
    %3502 = vmatprep.subr.mxu0 0.0
    %3503 = vmatpush2.msra.mxu0 0.0
    %3504 = vmatprep.subr.mxu0 0.0
    %3505 = vmatpush2.msra.mxu0 0.0
    %3506 = vmatprep.subr.mxu0 0.0
    %3507 = vmatpush2.msra.mxu0 0.0
    %3508 = vmatprep.subr.mxu0 0.0
    %3509 = vmatpush2.msra.mxu0 0.0
    %3510 = vmatprep.subr.mxu0 0.0
    %3511 = vmatpush2.msra.mxu0 0.0
    %3512 = vmatprep.subr.mxu0 0.0
    %3513 = vmatpush2.msra.mxu0 0.0
    %3514 = vmatprep.subr.mxu0 0.0
    %3515 = vmatpush2.msra.mxu0 0.0
    %3516 = vmatprep.subr.mxu0 0.0
    %3517 = vmatpush2.msra.mxu0 0.0
    %3518 = vmatprep.mubr.f32.mxu0 0.0
    %3519 = vmatmul.mubr.f32.gmra.mxu0 %v3452
    %v3520 = vpop.f32.mrf.mxu0
    %v3521 = vadd.f32 0.0, %v3520
    %v3522 = vpop.f32.mrf.mxu0
    %3523 = vdwg.mxu0
    %v3525 = vsel %vm1231, %v3375, 0
    %3527 = vmatprep.subr.mxu0 0.0
    %3528 = vmatpush1.msra.mxu0 0.0
    %3529 = vmatprep.subr.mxu0 0.0
    %3530 = vmatpush1.msra.mxu0 0.0
    %3531 = vmatprep.subr.mxu0 0.0
    %3532 = vmatpush1.msra.mxu0 0.0
    %3533 = vmatprep.subr.mxu0 0.0
    %3534 = vmatpush1.msra.mxu0 0.0
    %3535 = vmatprep.subr.mxu0 0.0
    %3536 = vmatpush1.msra.mxu0 0.0
    %3537 = vmatprep.subr.mxu0 0.0
    %3538 = vmatpush1.msra.mxu0 0.0
    %3539 = vmatprep.subr.mxu0 0.0
    %3540 = vmatpush1.msra.mxu0 0.0
    %3541 = vmatprep.subr.mxu0 0.0
    %3542 = vmatpush1.msra.mxu0 0.0
    %3543 = vmatprep.subr.mxu0 0.0
    %3544 = vmatpush1.msra.mxu0 0.0
    %3545 = vmatprep.subr.mxu0 0.0
    %3546 = vmatpush1.msra.mxu0 0.0
    %3547 = vmatprep.subr.mxu0 0.0
    %3548 = vmatpush1.msra.mxu0 0.0
    %3549 = vmatprep.subr.mxu0 0.0
    %3550 = vmatpush1.msra.mxu0 0.0
    %3551 = vmatprep.subr.mxu0 0.0
    %3552 = vmatpush1.msra.mxu0 0.0
    %3553 = vmatprep.subr.mxu0 0.0
    %3554 = vmatpush1.msra.mxu0 0.0
    %3555 = vmatprep.subr.mxu0 0.0
    %3556 = vmatpush1.msra.mxu0 0.0
    %3557 = vmatprep.subr.mxu0 0.0
    %3558 = vmatpush1.msra.mxu0 %v2949
    %3559 = vmatprep.subr.mxu0 0.0
    %3560 = vmatpush2.msra.mxu0 0.0
    %3561 = vmatprep.subr.mxu0 0.0
    %3562 = vmatpush2.msra.mxu0 0.0
    %3563 = vmatprep.subr.mxu0 0.0
    %3564 = vmatpush2.msra.mxu0 0.0
    %3565 = vmatprep.subr.mxu0 0.0
    %3566 = vmatpush2.msra.mxu0 0.0
    %3567 = vmatprep.subr.mxu0 0.0
    %3568 = vmatpush2.msra.mxu0 0.0
    %3569 = vmatprep.subr.mxu0 0.0
    %3570 = vmatpush2.msra.mxu0 0.0
    %3571 = vmatprep.subr.mxu0 0.0
    %3572 = vmatpush2.msra.mxu0 0.0
    %3573 = vmatprep.subr.mxu0 0.0
    %3574 = vmatpush2.msra.mxu0 0.0
    %3575 = vmatprep.subr.mxu0 0.0
    %3576 = vmatpush2.msra.mxu0 0.0
    %3577 = vmatprep.subr.mxu0 0.0
    %3578 = vmatpush2.msra.mxu0 0.0
    %3579 = vmatprep.subr.mxu0 0.0
    %3580 = vmatpush2.msra.mxu0 0.0
    %3581 = vmatprep.subr.mxu0 0.0
    %3582 = vmatpush2.msra.mxu0 0.0
    %3583 = vmatprep.subr.mxu0 0.0
    %3584 = vmatpush2.msra.mxu0 0.0
    %3585 = vmatprep.subr.mxu0 0.0
    %3586 = vmatpush2.msra.mxu0 0.0
    %3587 = vmatprep.subr.mxu0 0.0
    %3588 = vmatpush2.msra.mxu0 0.0
    %3589 = vmatprep.subr.mxu0 0.0
    %3590 = vmatpush2.msra.mxu0 0.0
    %3591 = vmatprep.mubr.f32.mxu0 0.0
    %3592 = vmatmul.mubr.f32.gmra.mxu0 %v3525
    %v3593 = vpop.f32.mrf.mxu0
    %v3594 = vadd.f32 0.0, %v3593
    %v3595 = vpop.f32.mrf.mxu0
    %3596 = vdwg.mxu0
    %v3598 = vsel %vm1231, %v3377, 0
    %3600 = vmatprep.subr.mxu0 0.0
    %3601 = vmatpush1.msra.mxu0 0.0
    %3602 = vmatprep.subr.mxu0 0.0
    %3603 = vmatpush1.msra.mxu0 0.0
    %3604 = vmatprep.subr.mxu0 0.0
    %3605 = vmatpush1.msra.mxu0 0.0
    %3606 = vmatprep.subr.mxu0 0.0
    %3607 = vmatpush1.msra.mxu0 0.0
    %3608 = vmatprep.subr.mxu0 0.0
    %3609 = vmatpush1.msra.mxu0 0.0
    %3610 = vmatprep.subr.mxu0 0.0
    %3611 = vmatpush1.msra.mxu0 0.0
    %3612 = vmatprep.subr.mxu0 0.0
    %3613 = vmatpush1.msra.mxu0 0.0
    %3614 = vmatprep.subr.mxu0 0.0
    %3615 = vmatpush1.msra.mxu0 0.0
    %3616 = vmatprep.subr.mxu0 0.0
    %3617 = vmatpush1.msra.mxu0 0.0
    %3618 = vmatprep.subr.mxu0 0.0
    %3619 = vmatpush1.msra.mxu0 0.0
    %3620 = vmatprep.subr.mxu0 0.0
    %3621 = vmatpush1.msra.mxu0 0.0
    %3622 = vmatprep.subr.mxu0 0.0
    %3623 = vmatpush1.msra.mxu0 0.0
    %3624 = vmatprep.subr.mxu0 0.0
    %3625 = vmatpush1.msra.mxu0 0.0
    %3626 = vmatprep.subr.mxu0 0.0
    %3627 = vmatpush1.msra.mxu0 0.0
    %3628 = vmatprep.subr.mxu0 0.0
    %3629 = vmatpush1.msra.mxu0 0.0
    %3630 = vmatprep.subr.mxu0 0.0
    %3631 = vmatpush1.msra.mxu0 %v3019
    %3632 = vmatprep.subr.mxu0 0.0
    %3633 = vmatpush2.msra.mxu0 0.0
    %3634 = vmatprep.subr.mxu0 0.0
    %3635 = vmatpush2.msra.mxu0 0.0
    %3636 = vmatprep.subr.mxu0 0.0
    %3637 = vmatpush2.msra.mxu0 0.0
    %3638 = vmatprep.subr.mxu0 0.0
    %3639 = vmatpush2.msra.mxu0 0.0
    %3640 = vmatprep.subr.mxu0 0.0
    %3641 = vmatpush2.msra.mxu0 0.0
    %3642 = vmatprep.subr.mxu0 0.0
    %3643 = vmatpush2.msra.mxu0 0.0
    %3644 = vmatprep.subr.mxu0 0.0
    %3645 = vmatpush2.msra.mxu0 0.0
    %3646 = vmatprep.subr.mxu0 0.0
    %3647 = vmatpush2.msra.mxu0 0.0
    %3648 = vmatprep.subr.mxu0 0.0
    %3649 = vmatpush2.msra.mxu0 0.0
    %3650 = vmatprep.subr.mxu0 0.0
    %3651 = vmatpush2.msra.mxu0 0.0
    %3652 = vmatprep.subr.mxu0 0.0
    %3653 = vmatpush2.msra.mxu0 0.0
    %3654 = vmatprep.subr.mxu0 0.0
    %3655 = vmatpush2.msra.mxu0 0.0
    %3656 = vmatprep.subr.mxu0 0.0
    %3657 = vmatpush2.msra.mxu0 0.0
    %3658 = vmatprep.subr.mxu0 0.0
    %3659 = vmatpush2.msra.mxu0 0.0
    %3660 = vmatprep.subr.mxu0 0.0
    %3661 = vmatpush2.msra.mxu0 0.0
    %3662 = vmatprep.subr.mxu0 0.0
    %3663 = vmatpush2.msra.mxu0 0.0
    %3664 = vmatprep.mubr.f32.mxu0 0.0
    %3665 = vmatmul.mubr.f32.gmra.mxu0 %v3598
    %v3666 = vpop.f32.mrf.mxu0
    %v3667 = vadd.f32 0.0, %v3666
    %v3668 = vpop.f32.mrf.mxu0
    %3669 = vdwg.mxu0
    %v3671 = vsel %vm1231, %v3448, 0
    %3673 = vmatprep.subr.mxu0 0.0
    %3674 = vmatpush1.msra.mxu0 0.0
    %3675 = vmatprep.subr.mxu0 0.0
    %3676 = vmatpush1.msra.mxu0 0.0
    %3677 = vmatprep.subr.mxu0 0.0
    %3678 = vmatpush1.msra.mxu0 0.0
    %3679 = vmatprep.subr.mxu0 0.0
    %3680 = vmatpush1.msra.mxu0 0.0
    %3681 = vmatprep.subr.mxu0 0.0
    %3682 = vmatpush1.msra.mxu0 0.0
    %3683 = vmatprep.subr.mxu0 0.0
    %3684 = vmatpush1.msra.mxu0 0.0
    %3685 = vmatprep.subr.mxu0 0.0
    %3686 = vmatpush1.msra.mxu0 0.0
    %3687 = vmatprep.subr.mxu0 0.0
    %3688 = vmatpush1.msra.mxu0 0.0
    %3689 = vmatprep.subr.mxu0 0.0
    %3690 = vmatpush1.msra.mxu0 0.0
    %3691 = vmatprep.subr.mxu0 0.0
    %3692 = vmatpush1.msra.mxu0 0.0
    %3693 = vmatprep.subr.mxu0 0.0
    %3694 = vmatpush1.msra.mxu0 0.0
    %3695 = vmatprep.subr.mxu0 0.0
    %3696 = vmatpush1.msra.mxu0 0.0
    %3697 = vmatprep.subr.mxu0 0.0
    %3698 = vmatpush1.msra.mxu0 0.0
    %3699 = vmatprep.subr.mxu0 0.0
    %3700 = vmatpush1.msra.mxu0 0.0
    %3701 = vmatprep.subr.mxu0 0.0
    %3702 = vmatpush1.msra.mxu0 0.0
    %3703 = vmatprep.subr.mxu0 0.0
    %3704 = vmatpush1.msra.mxu0 %v268
    %3705 = vmatprep.subr.mxu0 0.0
    %3706 = vmatpush2.msra.mxu0 0.0
    %3707 = vmatprep.subr.mxu0 0.0
    %3708 = vmatpush2.msra.mxu0 0.0
    %3709 = vmatprep.subr.mxu0 0.0
    %3710 = vmatpush2.msra.mxu0 0.0
    %3711 = vmatprep.subr.mxu0 0.0
    %3712 = vmatpush2.msra.mxu0 0.0
    %3713 = vmatprep.subr.mxu0 0.0
    %3714 = vmatpush2.msra.mxu0 0.0
    %3715 = vmatprep.subr.mxu0 0.0
    %3716 = vmatpush2.msra.mxu0 0.0
    %3717 = vmatprep.subr.mxu0 0.0
    %3718 = vmatpush2.msra.mxu0 0.0
    %3719 = vmatprep.subr.mxu0 0.0
    %3720 = vmatpush2.msra.mxu0 0.0
    %3721 = vmatprep.subr.mxu0 0.0
    %3722 = vmatpush2.msra.mxu0 0.0
    %3723 = vmatprep.subr.mxu0 0.0
    %3724 = vmatpush2.msra.mxu0 0.0
    %3725 = vmatprep.subr.mxu0 0.0
    %3726 = vmatpush2.msra.mxu0 0.0
    %3727 = vmatprep.subr.mxu0 0.0
    %3728 = vmatpush2.msra.mxu0 0.0
    %3729 = vmatprep.subr.mxu0 0.0
    %3730 = vmatpush2.msra.mxu0 0.0
    %3731 = vmatprep.subr.mxu0 0.0
    %3732 = vmatpush2.msra.mxu0 0.0
    %3733 = vmatprep.subr.mxu0 0.0
    %3734 = vmatpush2.msra.mxu0 0.0
    %3735 = vmatprep.subr.mxu0 0.0
    %3736 = vmatpush2.msra.mxu0 0.0
    %3737 = vmatprep.mubr.f32.mxu0 0.0
    %3738 = vmatmul.mubr.f32.gmra.mxu0 %v3671
    %v3739 = vpop.f32.mrf.mxu0
    %v3740 = vadd.f32 0.0, %v3739
    %v3741 = vpop.f32.mrf.mxu0
    %3742 = vdwg.mxu0
    %v3744 = vsel %vm1231, %v3521, 0
    %3746 = vmatprep.subr.mxu0 0.0
    %3747 = vmatpush1.msra.mxu0 0.0
    %3748 = vmatprep.subr.mxu0 0.0
    %3749 = vmatpush1.msra.mxu0 0.0
    %3750 = vmatprep.subr.mxu0 0.0
    %3751 = vmatpush1.msra.mxu0 0.0
    %3752 = vmatprep.subr.mxu0 0.0
    %3753 = vmatpush1.msra.mxu0 0.0
    %3754 = vmatprep.subr.mxu0 0.0
    %3755 = vmatpush1.msra.mxu0 0.0
    %3756 = vmatprep.subr.mxu0 0.0
    %3757 = vmatpush1.msra.mxu0 0.0
    %3758 = vmatprep.subr.mxu0 0.0
    %3759 = vmatpush1.msra.mxu0 0.0
    %3760 = vmatprep.subr.mxu0 0.0
    %3761 = vmatpush1.msra.mxu0 0.0
    %3762 = vmatprep.subr.mxu0 0.0
    %3763 = vmatpush1.msra.mxu0 0.0
    %3764 = vmatprep.subr.mxu0 0.0
    %3765 = vmatpush1.msra.mxu0 0.0
    %3766 = vmatprep.subr.mxu0 0.0
    %3767 = vmatpush1.msra.mxu0 0.0
    %3768 = vmatprep.subr.mxu0 0.0
    %3769 = vmatpush1.msra.mxu0 0.0
    %3770 = vmatprep.subr.mxu0 0.0
    %3771 = vmatpush1.msra.mxu0 0.0
    %3772 = vmatprep.subr.mxu0 0.0
    %3773 = vmatpush1.msra.mxu0 0.0
    %3774 = vmatprep.subr.mxu0 0.0
    %3775 = vmatpush1.msra.mxu0 0.0
    %3776 = vmatprep.subr.mxu0 0.0
    %3777 = vmatpush1.msra.mxu0 %v269
    %3778 = vmatprep.subr.mxu0 0.0
    %3779 = vmatpush2.msra.mxu0 0.0
    %3780 = vmatprep.subr.mxu0 0.0
    %3781 = vmatpush2.msra.mxu0 0.0
    %3782 = vmatprep.subr.mxu0 0.0
    %3783 = vmatpush2.msra.mxu0 0.0
    %3784 = vmatprep.subr.mxu0 0.0
    %3785 = vmatpush2.msra.mxu0 0.0
    %3786 = vmatprep.subr.mxu0 0.0
    %3787 = vmatpush2.msra.mxu0 0.0
    %3788 = vmatprep.subr.mxu0 0.0
    %3789 = vmatpush2.msra.mxu0 0.0
    %3790 = vmatprep.subr.mxu0 0.0
    %3791 = vmatpush2.msra.mxu0 0.0
    %3792 = vmatprep.subr.mxu0 0.0
    %3793 = vmatpush2.msra.mxu0 0.0
    %3794 = vmatprep.subr.mxu0 0.0
    %3795 = vmatpush2.msra.mxu0 0.0
    %3796 = vmatprep.subr.mxu0 0.0
    %3797 = vmatpush2.msra.mxu0 0.0
    %3798 = vmatprep.subr.mxu0 0.0
    %3799 = vmatpush2.msra.mxu0 0.0
    %3800 = vmatprep.subr.mxu0 0.0
    %3801 = vmatpush2.msra.mxu0 0.0
    %3802 = vmatprep.subr.mxu0 0.0
    %3803 = vmatpush2.msra.mxu0 0.0
    %3804 = vmatprep.subr.mxu0 0.0
    %3805 = vmatpush2.msra.mxu0 0.0
    %3806 = vmatprep.subr.mxu0 0.0
    %3807 = vmatpush2.msra.mxu0 0.0
    %3808 = vmatprep.subr.mxu0 0.0
    %3809 = vmatpush2.msra.mxu0 0.0
    %3810 = vmatprep.mubr.f32.mxu0 0.0
    %3811 = vmatmul.mubr.f32.gmra.mxu0 %v3744
    %v3812 = vpop.f32.mrf.mxu0
    %v3813 = vadd.f32 0.0, %v3812
    %v3814 = vpop.f32.mrf.mxu0
    %3815 = vdwg.mxu0
    %v3817 = vsel %vm1231, %v3594, 0
    %3819 = vmatprep.subr.mxu0 0.0
    %3820 = vmatpush1.msra.mxu0 0.0
    %3821 = vmatprep.subr.mxu0 0.0
    %3822 = vmatpush1.msra.mxu0 0.0
    %3823 = vmatprep.subr.mxu0 0.0
    %3824 = vmatpush1.msra.mxu0 0.0
    %3825 = vmatprep.subr.mxu0 0.0
    %3826 = vmatpush1.msra.mxu0 0.0
    %3827 = vmatprep.subr.mxu0 0.0
    %3828 = vmatpush1.msra.mxu0 0.0
    %3829 = vmatprep.subr.mxu0 0.0
    %3830 = vmatpush1.msra.mxu0 0.0
    %3831 = vmatprep.subr.mxu0 0.0
    %3832 = vmatpush1.msra.mxu0 0.0
    %3833 = vmatprep.subr.mxu0 0.0
    %3834 = vmatpush1.msra.mxu0 0.0
    %3835 = vmatprep.subr.mxu0 0.0
    %3836 = vmatpush1.msra.mxu0 0.0
    %3837 = vmatprep.subr.mxu0 0.0
    %3838 = vmatpush1.msra.mxu0 0.0
    %3839 = vmatprep.subr.mxu0 0.0
    %3840 = vmatpush1.msra.mxu0 0.0
    %3841 = vmatprep.subr.mxu0 0.0
    %3842 = vmatpush1.msra.mxu0 0.0
    %3843 = vmatprep.subr.mxu0 0.0
    %3844 = vmatpush1.msra.mxu0 0.0
    %3845 = vmatprep.subr.mxu0 0.0
    %3846 = vmatpush1.msra.mxu0 0.0
    %3847 = vmatprep.subr.mxu0 0.0
    %3848 = vmatpush1.msra.mxu0 0.0
    %3849 = vmatprep.subr.mxu0 0.0
    %3850 = vmatpush1.msra.mxu0 %v270
    %3851 = vmatprep.subr.mxu0 0.0
    %3852 = vmatpush2.msra.mxu0 0.0
    %3853 = vmatprep.subr.mxu0 0.0
    %3854 = vmatpush2.msra.mxu0 0.0
    %3855 = vmatprep.subr.mxu0 0.0
    %3856 = vmatpush2.msra.mxu0 0.0
    %3857 = vmatprep.subr.mxu0 0.0
    %3858 = vmatpush2.msra.mxu0 0.0
    %3859 = vmatprep.subr.mxu0 0.0
    %3860 = vmatpush2.msra.mxu0 0.0
    %3861 = vmatprep.subr.mxu0 0.0
    %3862 = vmatpush2.msra.mxu0 0.0
    %3863 = vmatprep.subr.mxu0 0.0
    %3864 = vmatpush2.msra.mxu0 0.0
    %3865 = vmatprep.subr.mxu0 0.0
    %3866 = vmatpush2.msra.mxu0 0.0
    %3867 = vmatprep.subr.mxu0 0.0
    %3868 = vmatpush2.msra.mxu0 0.0
    %3869 = vmatprep.subr.mxu0 0.0
    %3870 = vmatpush2.msra.mxu0 0.0
    %3871 = vmatprep.subr.mxu0 0.0
    %3872 = vmatpush2.msra.mxu0 0.0
    %3873 = vmatprep.subr.mxu0 0.0
    %3874 = vmatpush2.msra.mxu0 0.0
    %3875 = vmatprep.subr.mxu0 0.0
    %3876 = vmatpush2.msra.mxu0 0.0
    %3877 = vmatprep.subr.mxu0 0.0
    %3878 = vmatpush2.msra.mxu0 0.0
    %3879 = vmatprep.subr.mxu0 0.0
    %3880 = vmatpush2.msra.mxu0 0.0
    %3881 = vmatprep.subr.mxu0 0.0
    %3882 = vmatpush2.msra.mxu0 0.0
    %3883 = vmatprep.mubr.f32.mxu0 0.0
    %3884 = vmatmul.mubr.f32.gmra.mxu0 %v3817
    %v3885 = vpop.f32.mrf.mxu0
    %v3886 = vadd.f32 0.0, %v3885
    %v3887 = vpop.f32.mrf.mxu0
    %3888 = vdwg.mxu0
    %v3890 = vsel %vm1231, %v3667, 0
    %3892 = vmatprep.subr.mxu0 0.0
    %3893 = vmatpush1.msra.mxu0 0.0
    %3894 = vmatprep.subr.mxu0 0.0
    %3895 = vmatpush1.msra.mxu0 0.0
    %3896 = vmatprep.subr.mxu0 0.0
    %3897 = vmatpush1.msra.mxu0 0.0
    %3898 = vmatprep.subr.mxu0 0.0
    %3899 = vmatpush1.msra.mxu0 0.0
    %3900 = vmatprep.subr.mxu0 0.0
    %3901 = vmatpush1.msra.mxu0 0.0
    %3902 = vmatprep.subr.mxu0 0.0
    %3903 = vmatpush1.msra.mxu0 0.0
    %3904 = vmatprep.subr.mxu0 0.0
    %3905 = vmatpush1.msra.mxu0 0.0
    %3906 = vmatprep.subr.mxu0 0.0
    %3907 = vmatpush1.msra.mxu0 0.0
    %3908 = vmatprep.subr.mxu0 0.0
    %3909 = vmatpush1.msra.mxu0 0.0
    %3910 = vmatprep.subr.mxu0 0.0
    %3911 = vmatpush1.msra.mxu0 0.0
    %3912 = vmatprep.subr.mxu0 0.0
    %3913 = vmatpush1.msra.mxu0 0.0
    %3914 = vmatprep.subr.mxu0 0.0
    %3915 = vmatpush1.msra.mxu0 0.0
    %3916 = vmatprep.subr.mxu0 0.0
    %3917 = vmatpush1.msra.mxu0 0.0
    %3918 = vmatprep.subr.mxu0 0.0
    %3919 = vmatpush1.msra.mxu0 0.0
    %3920 = vmatprep.subr.mxu0 0.0
    %3921 = vmatpush1.msra.mxu0 0.0
    %3922 = vmatprep.subr.mxu0 0.0
    %3923 = vmatpush1.msra.mxu0 %v271
    %3924 = vmatprep.subr.mxu0 0.0
    %3925 = vmatpush2.msra.mxu0 0.0
    %3926 = vmatprep.subr.mxu0 0.0
    %3927 = vmatpush2.msra.mxu0 0.0
    %3928 = vmatprep.subr.mxu0 0.0
    %3929 = vmatpush2.msra.mxu0 0.0
    %3930 = vmatprep.subr.mxu0 0.0
    %3931 = vmatpush2.msra.mxu0 0.0
    %3932 = vmatprep.subr.mxu0 0.0
    %3933 = vmatpush2.msra.mxu0 0.0
    %3934 = vmatprep.subr.mxu0 0.0
    %3935 = vmatpush2.msra.mxu0 0.0
    %3936 = vmatprep.subr.mxu0 0.0
    %3937 = vmatpush2.msra.mxu0 0.0
    %3938 = vmatprep.subr.mxu0 0.0
    %3939 = vmatpush2.msra.mxu0 0.0
    %3940 = vmatprep.subr.mxu0 0.0
    %3941 = vmatpush2.msra.mxu0 0.0
    %3942 = vmatprep.subr.mxu0 0.0
    %3943 = vmatpush2.msra.mxu0 0.0
    %3944 = vmatprep.subr.mxu0 0.0
    %3945 = vmatpush2.msra.mxu0 0.0
    %3946 = vmatprep.subr.mxu0 0.0
    %3947 = vmatpush2.msra.mxu0 0.0
    %3948 = vmatprep.subr.mxu0 0.0
    %3949 = vmatpush2.msra.mxu0 0.0
    %3950 = vmatprep.subr.mxu0 0.0
    %3951 = vmatpush2.msra.mxu0 0.0
    %3952 = vmatprep.subr.mxu0 0.0
    %3953 = vmatpush2.msra.mxu0 0.0
    %3954 = vmatprep.subr.mxu0 0.0
    %3955 = vmatpush2.msra.mxu0 0.0
    %3956 = vmatprep.mubr.f32.mxu0 0.0
    %3957 = vmatmul.mubr.f32.gmra.mxu0 %v3890
    %v3958 = vpop.f32.mrf.mxu0
    %v3959 = vadd.f32 0.0, %v3958
    %v3960 = vpop.f32.mrf.mxu0
    %3961 = vdwg.mxu0
    %v3962 = vsel %vm272, %v3740, 0.0
    %v3963 = vsel %vm272, %v3813, 0.0
    %v3964 = vadd.f32 %v3962, %v3963
    %v3965 = vsel %vm272, %v3886, 0.0
    %v3966 = vadd.f32 %v3964, %v3965
    %v3967 = vsel %vm272, %v3959, 0.0
    %v3968 = vadd.f32 %v3966, %v3967
    %v3969 = vadd.f32 %v181, %v2178
    %v3970 = vadd.f32 %v182, %v3968
    %v3972 = vlaneseq
    %v3973 = vshrl.u32 %v3972, 7
    %v3974 = vsub.s32 0, %v3973
    %v3975 = vrot.slane %v193, %v3974
    %v3977 = vadd.f32 %v3969, %v3975
    %v3978 = vadd.f32 %v3970, %v3975
    %v3979 = vsel %vm272, %v3977, 0.0
    %3980 = vadd.xlane.f32.xlu0 %v3979
    %v3981 = vpop.xlane.xlu0 %3980
    %v3982 = vsel %vm272, %v3978, 0.0
    %3983 = vadd.xlane.f32.xlu0 %v3982
    %v3984 = vpop.xlane.xlu0 %3983
    %v3985 = vmul.f32 %v3981, %v279
    %v3986 = vmul.f32 %v3984, %v279
    %v3987 = vsub.f32 %v3977, %v3985
    %v3988 = vsub.f32 %v3978, %v3986
    %v3989 = vmul.f32 %v3987, %v3987
    %v3990 = vmul.f32 %v3988, %v3988
    %v3991 = vsel %vm272, %v3989, 0.0
    %3992 = vadd.xlane.f32.xlu0 %v3991
    %v3993 = vpop.xlane.xlu0 %3992
    %v3994 = vsel %vm272, %v3990, 0.0
    %3995 = vadd.xlane.f32.xlu0 %v3994
    %v3996 = vpop.xlane.xlu0 %3995
    %v3997 = vmul.f32 %v3993, %v279
    %v3998 = vmul.f32 %v3996, %v279
    %v3999 = vadd.f32 %v3997, 1e-06
    %v4000 = vadd.f32 %v3998, 1e-06
    %v4001 = vrsqrt.pop %v3999
    %v4002 = vrsqrt.pop %v4000
    %v4003 = vmul.f32 %v3987, %v4001
    %v4004 = vmul.f32 %v3988, %v4002
    %v4006 = vlaneseq
    %v4007 = vshrl.u32 %v4006, 7
    %v4008 = vsub.s32 0, %v4007
    %v4009 = vrot.slane %v191, %v4008
    %v4011 = vmul.f32 %v4003, %v4009
    %v4012 = vmul.f32 %v4004, %v4009
    %v4014 = vlaneseq
    %v4015 = vshrl.u32 %v4014, 7
    %v4016 = vsub.s32 0, %v4015
    %v4017 = vrot.slane %v192, %v4016
    %v4019 = vadd.f32 %v4011, %v4017
    %v4020 = vadd.f32 %v4012, %v4017
    %v4022 = vlaneseq
    %v4023 = vshrl.u32 %v4022, 7
    %v4024 = vsub.s32 0, %v4023
    %v4025 = vrot.slane %v198, %v4024
    %v4028 = vsel %vm272, %v4019, 0
    %v4031 = vsel %vm272, %v4020, 0
    %4033 = vmatprep.subr.mxu0 0.0
    %4034 = vmatpush1.msra.mxu0 0.0
    %4035 = vmatprep.subr.mxu0 0.0
    %4036 = vmatpush1.msra.mxu0 0.0
    %4037 = vmatprep.subr.mxu0 0.0
    %4038 = vmatpush1.msra.mxu0 0.0
    %4039 = vmatprep.subr.mxu0 0.0
    %4040 = vmatpush1.msra.mxu0 0.0
    %4041 = vmatprep.subr.mxu0 0.0
    %4042 = vmatpush1.msra.mxu0 0.0
    %4043 = vmatprep.subr.mxu0 0.0
    %4044 = vmatpush1.msra.mxu0 0.0
    %4045 = vmatprep.subr.mxu0 0.0
    %4046 = vmatpush1.msra.mxu0 0.0
    %4047 = vmatprep.subr.mxu0 0.0
    %4048 = vmatpush1.msra.mxu0 0.0
    %4049 = vmatprep.subr.mxu0 0.0
    %4050 = vmatpush1.msra.mxu0 0.0
    %4051 = vmatprep.subr.mxu0 0.0
    %4052 = vmatpush1.msra.mxu0 0.0
    %4053 = vmatprep.subr.mxu0 0.0
    %4054 = vmatpush1.msra.mxu0 0.0
    %4055 = vmatprep.subr.mxu0 0.0
    %4056 = vmatpush1.msra.mxu0 0.0
    %4057 = vmatprep.subr.mxu0 0.0
    %4058 = vmatpush1.msra.mxu0 %v197
    %4059 = vmatprep.subr.mxu0 0.0
    %4060 = vmatpush1.msra.mxu0 %v196
    %4061 = vmatprep.subr.mxu0 0.0
    %4062 = vmatpush1.msra.mxu0 %v195
    %4063 = vmatprep.subr.mxu0 0.0
    %4064 = vmatpush1.msra.mxu0 %v194
    %4065 = vmatprep.subr.mxu0 0.0
    %4066 = vmatpush2.msra.mxu0 0.0
    %4067 = vmatprep.subr.mxu0 0.0
    %4068 = vmatpush2.msra.mxu0 0.0
    %4069 = vmatprep.subr.mxu0 0.0
    %4070 = vmatpush2.msra.mxu0 0.0
    %4071 = vmatprep.subr.mxu0 0.0
    %4072 = vmatpush2.msra.mxu0 0.0
    %4073 = vmatprep.subr.mxu0 0.0
    %4074 = vmatpush2.msra.mxu0 0.0
    %4075 = vmatprep.subr.mxu0 0.0
    %4076 = vmatpush2.msra.mxu0 0.0
    %4077 = vmatprep.subr.mxu0 0.0
    %4078 = vmatpush2.msra.mxu0 0.0
    %4079 = vmatprep.subr.mxu0 0.0
    %4080 = vmatpush2.msra.mxu0 0.0
    %4081 = vmatprep.subr.mxu0 0.0
    %4082 = vmatpush2.msra.mxu0 0.0
    %4083 = vmatprep.subr.mxu0 0.0
    %4084 = vmatpush2.msra.mxu0 0.0
    %4085 = vmatprep.subr.mxu0 0.0
    %4086 = vmatpush2.msra.mxu0 0.0
    %4087 = vmatprep.subr.mxu0 0.0
    %4088 = vmatpush2.msra.mxu0 0.0
    %4089 = vmatprep.subr.mxu0 0.0
    %4090 = vmatpush2.msra.mxu0 0.0
    %4091 = vmatprep.subr.mxu0 0.0
    %4092 = vmatpush2.msra.mxu0 0.0
    %4093 = vmatprep.subr.mxu0 0.0
    %4094 = vmatpush2.msra.mxu0 0.0
    %4095 = vmatprep.subr.mxu0 0.0
    %4096 = vmatpush2.msra.mxu0 0.0
    %4097 = vmatprep.mubr.f32.mxu0 0.0
    %4098 = vmatmul.mubr.f32.gmra.mxu0 %v4028
    %v4099 = vpop.f32.mrf.mxu0
    %v4100 = vadd.f32 %v4025, %v4099
    %v4101 = vpop.f32.mrf.mxu0
    %4102 = vmatprep.mubr.f32.mxu0 0.0
    %4103 = vmatmul.mubr.f32.gmra.mxu0 %v4031
    %v4104 = vpop.f32.mrf.mxu0
    %v4105 = vadd.f32 %v4025, %v4104
    %v4106 = vpop.f32.mrf.mxu0
    %4107 = vdwg.mxu0
    %v4108 = vmax.f32 %v4100, 0.0
    %v4109 = vmax.f32 %v4105, 0.0
    %vm4110 = vcmask 523264
    %v4112 = vsel %vm4110, %v4108, 0
    %v4115 = vsel %vm4110, %v4109, 0
    %4117 = vmatprep.subr.mxu0 0.0
    %4118 = vmatpush1.msra.mxu0 0.0
    %4119 = vmatprep.subr.mxu0 0.0
    %4120 = vmatpush1.msra.mxu0 0.0
    %4121 = vmatprep.subr.mxu0 0.0
    %4122 = vmatpush1.msra.mxu0 0.0
    %4123 = vmatprep.subr.mxu0 0.0
    %4124 = vmatpush1.msra.mxu0 0.0
    %4125 = vmatprep.subr.mxu0 0.0
    %4126 = vmatpush1.msra.mxu0 0.0
    %4127 = vmatprep.subr.mxu0 0.0
    %4128 = vmatpush1.msra.mxu0 0.0
    %4129 = vmatprep.subr.mxu0 0.0
    %4130 = vmatpush1.msra.mxu0 0.0
    %4131 = vmatprep.subr.mxu0 0.0
    %4132 = vmatpush1.msra.mxu0 0.0
    %4133 = vmatprep.subr.mxu0 0.0
    %4134 = vmatpush1.msra.mxu0 %v206
    %4135 = vmatprep.subr.mxu0 0.0
    %4136 = vmatpush1.msra.mxu0 %v205
    %4137 = vmatprep.subr.mxu0 0.0
    %4138 = vmatpush1.msra.mxu0 %v204
    %4139 = vmatprep.subr.mxu0 0.0
    %4140 = vmatpush1.msra.mxu0 %v203
    %4141 = vmatprep.subr.mxu0 0.0
    %4142 = vmatpush1.msra.mxu0 %v202
    %4143 = vmatprep.subr.mxu0 0.0
    %4144 = vmatpush1.msra.mxu0 %v201
    %4145 = vmatprep.subr.mxu0 0.0
    %4146 = vmatpush1.msra.mxu0 %v200
    %4147 = vmatprep.subr.mxu0 0.0
    %4148 = vmatpush1.msra.mxu0 %v199
    %4149 = vmatprep.subr.mxu0 0.0
    %4150 = vmatpush2.msra.mxu0 0.0
    %4151 = vmatprep.subr.mxu0 0.0
    %4152 = vmatpush2.msra.mxu0 0.0
    %4153 = vmatprep.subr.mxu0 0.0
    %4154 = vmatpush2.msra.mxu0 0.0
    %4155 = vmatprep.subr.mxu0 0.0
    %4156 = vmatpush2.msra.mxu0 0.0
    %4157 = vmatprep.subr.mxu0 0.0
    %4158 = vmatpush2.msra.mxu0 0.0
    %4159 = vmatprep.subr.mxu0 0.0
    %4160 = vmatpush2.msra.mxu0 0.0
    %4161 = vmatprep.subr.mxu0 0.0
    %4162 = vmatpush2.msra.mxu0 0.0
    %4163 = vmatprep.subr.mxu0 0.0
    %4164 = vmatpush2.msra.mxu0 0.0
    %4165 = vmatprep.subr.mxu0 0.0
    %4166 = vmatpush2.msra.mxu0 0.0
    %4167 = vmatprep.subr.mxu0 0.0
    %4168 = vmatpush2.msra.mxu0 0.0
    %4169 = vmatprep.subr.mxu0 0.0
    %4170 = vmatpush2.msra.mxu0 0.0
    %4171 = vmatprep.subr.mxu0 0.0
    %4172 = vmatpush2.msra.mxu0 0.0
    %4173 = vmatprep.subr.mxu0 0.0
    %4174 = vmatpush2.msra.mxu0 0.0
    %4175 = vmatprep.subr.mxu0 0.0
    %4176 = vmatpush2.msra.mxu0 0.0
    %4177 = vmatprep.subr.mxu0 0.0
    %4178 = vmatpush2.msra.mxu0 0.0
    %4179 = vmatprep.subr.mxu0 0.0
    %4180 = vmatpush2.msra.mxu0 0.0
    %4181 = vmatprep.mubr.f32.mxu0 0.0
    %4182 = vmatmul.mubr.f32.gmra.mxu0 %v4112
    %v4183 = vpop.f32.mrf.mxu0
    %v4184 = vadd.f32 0.0, %v4183
    %v4185 = vpop.f32.mrf.mxu0
    %4186 = vmatprep.mubr.f32.mxu0 0.0
    %4187 = vmatmul.mubr.f32.gmra.mxu0 %v4115
    %v4188 = vpop.f32.mrf.mxu0
    %v4189 = vadd.f32 0.0, %v4188
    %v4190 = vpop.f32.mrf.mxu0
    %4191 = vdwg.mxu0
    %v4192 = vadd.f32 %v3977, %v4184
    %v4193 = vadd.f32 %v3978, %v4189
    %v4195 = vlaneseq
    %v4196 = vshrl.u32 %v4195, 7
    %v4197 = vsub.s32 0, %v4196
    %v4198 = vrot.slane %v207, %v4197
    %v4200 = vadd.f32 %v4192, %v4198
    %v4201 = vadd.f32 %v4193, %v4198
    %s4202 = scalar_lea.vmem %s4, 1
    %v4203 = vld [vmem:[%s4202] sm:$0x1]
    %s4204 = scalar_lea.vmem %s5, 1
    %v4205 = vld [vmem:[%s4204] sm:$0x1]
    %s4206 = scalar_lea.vmem %s14, 1
    %v4207 = vld [vmem:[%s4206] sm:$0x1]
    %s4208 = scalar_lea.vmem %s15, 1
    %v4209 = vld [vmem:[%s4208] sm:$0x1]
    %s4210 = scalar_lea.vmem %s13, 1
    %v4211 = vld [vmem:[%s4210] sm:$0x1]
    %s4212 = scalar_lea.vmem %s16, 32
    %v4213 = vld [vmem:[%s4212] sm:$0xff]
    %v4214 = vld [vmem:[%s4212 + $0x8] sm:$0xff]
    %v4215 = vld [vmem:[%s4212 + $0x10] sm:$0xff]
    %v4216 = vld [vmem:[%s4212 + $0x18] sm:$0xff]
    %s4217 = scalar_lea.vmem %s17, 1
    %v4218 = vld [vmem:[%s4217] sm:$0x1]
    %s4219 = scalar_lea.vmem %s18, 64
    %v4220 = vld [vmem:[%s4219] sm:$0xff]
    %v4221 = vld [vmem:[%s4219 + $0x8] sm:$0xff]
    %v4222 = vld [vmem:[%s4219 + $0x10] sm:$0xff]
    %v4223 = vld [vmem:[%s4219 + $0x18] sm:$0xff]
    %v4224 = vld [vmem:[%s4219 + $0x20] sm:$0xff]
    %v4225 = vld [vmem:[%s4219 + $0x28] sm:$0xff]
    %v4226 = vld [vmem:[%s4219 + $0x30] sm:$0xff]
    %v4227 = vld [vmem:[%s4219 + $0x38] sm:$0xff]
    %s4228 = scalar_lea.vmem %s19, 1
    %v4229 = vld [vmem:[%s4228] sm:$0x1]
    %s4230 = scalar_lea.vmem %s6, 128
    %v4231 = vld [vmem:[%s4230] sm:$0xff]
    %v4232 = vld [vmem:[%s4230 + $0x8] sm:$0xff]
    %v4233 = vld [vmem:[%s4230 + $0x10] sm:$0xff]
    %v4234 = vld [vmem:[%s4230 + $0x18] sm:$0xff]
    %v4235 = vld [vmem:[%s4230 + $0x20] sm:$0xff]
    %v4236 = vld [vmem:[%s4230 + $0x28] sm:$0xff]
    %v4237 = vld [vmem:[%s4230 + $0x30] sm:$0xff]
    %v4238 = vld [vmem:[%s4230 + $0x38] sm:$0xff]
    %v4239 = vld [vmem:[%s4230 + $0x40] sm:$0xff]
    %v4240 = vld [vmem:[%s4230 + $0x48] sm:$0xff]
    %v4241 = vld [vmem:[%s4230 + $0x50] sm:$0xff]
    %v4242 = vld [vmem:[%s4230 + $0x58] sm:$0xff]
    %v4243 = vld [vmem:[%s4230 + $0x60] sm:$0xff]
    %v4244 = vld [vmem:[%s4230 + $0x68] sm:$0xff]
    %v4245 = vld [vmem:[%s4230 + $0x70] sm:$0xff]
    %v4246 = vld [vmem:[%s4230 + $0x78] sm:$0xff]
    %s4247 = scalar_lea.vmem %s7, 4
    %v4248 = vld [vmem:[%s4247] sm:$0x1]
    %v4249 = vld [vmem:[%s4247 + $0x1] sm:$0x1]
    %v4250 = vld [vmem:[%s4247 + $0x2] sm:$0x1]
    %v4251 = vld [vmem:[%s4247 + $0x3] sm:$0x1]
    %s4252 = scalar_lea.vmem %s8, 128
    %v4253 = vld [vmem:[%s4252] sm:$0xff]
    %v4254 = vld [vmem:[%s4252 + $0x8] sm:$0xff]
    %v4255 = vld [vmem:[%s4252 + $0x10] sm:$0xff]
    %v4256 = vld [vmem:[%s4252 + $0x18] sm:$0xff]
    %v4257 = vld [vmem:[%s4252 + $0x20] sm:$0xff]
    %v4258 = vld [vmem:[%s4252 + $0x28] sm:$0xff]
    %v4259 = vld [vmem:[%s4252 + $0x30] sm:$0xff]
    %v4260 = vld [vmem:[%s4252 + $0x38] sm:$0xff]
    %v4261 = vld [vmem:[%s4252 + $0x40] sm:$0xff]
    %v4262 = vld [vmem:[%s4252 + $0x48] sm:$0xff]
    %v4263 = vld [vmem:[%s4252 + $0x50] sm:$0xff]
    %v4264 = vld [vmem:[%s4252 + $0x58] sm:$0xff]
    %v4265 = vld [vmem:[%s4252 + $0x60] sm:$0xff]
    %v4266 = vld [vmem:[%s4252 + $0x68] sm:$0xff]
    %v4267 = vld [vmem:[%s4252 + $0x70] sm:$0xff]
    %v4268 = vld [vmem:[%s4252 + $0x78] sm:$0xff]
    %s4269 = scalar_lea.vmem %s9, 4
    %v4270 = vld [vmem:[%s4269] sm:$0x1]
    %v4271 = vld [vmem:[%s4269 + $0x1] sm:$0x1]
    %v4272 = vld [vmem:[%s4269 + $0x2] sm:$0x1]
    %v4273 = vld [vmem:[%s4269 + $0x3] sm:$0x1]
    %s4274 = scalar_lea.vmem %s10, 128
    %v4275 = vld [vmem:[%s4274] sm:$0xff]
    %v4276 = vld [vmem:[%s4274 + $0x8] sm:$0xff]
    %v4277 = vld [vmem:[%s4274 + $0x10] sm:$0xff]
    %v4278 = vld [vmem:[%s4274 + $0x18] sm:$0xff]
    %v4279 = vld [vmem:[%s4274 + $0x20] sm:$0xff]
    %v4280 = vld [vmem:[%s4274 + $0x28] sm:$0xff]
    %v4281 = vld [vmem:[%s4274 + $0x30] sm:$0xff]
    %v4282 = vld [vmem:[%s4274 + $0x38] sm:$0xff]
    %v4283 = vld [vmem:[%s4274 + $0x40] sm:$0xff]
    %v4284 = vld [vmem:[%s4274 + $0x48] sm:$0xff]
    %v4285 = vld [vmem:[%s4274 + $0x50] sm:$0xff]
    %v4286 = vld [vmem:[%s4274 + $0x58] sm:$0xff]
    %v4287 = vld [vmem:[%s4274 + $0x60] sm:$0xff]
    %v4288 = vld [vmem:[%s4274 + $0x68] sm:$0xff]
    %v4289 = vld [vmem:[%s4274 + $0x70] sm:$0xff]
    %v4290 = vld [vmem:[%s4274 + $0x78] sm:$0xff]
    %s4291 = scalar_lea.vmem %s11, 4
    %v4292 = vld [vmem:[%s4291] sm:$0x1]
    %v4293 = vld [vmem:[%s4291 + $0x1] sm:$0x1]
    %v4294 = vld [vmem:[%s4291 + $0x2] sm:$0x1]
    %v4295 = vld [vmem:[%s4291 + $0x3] sm:$0x1]
    %s4296 = scalar_lea.vmem %s12, 32
    %v4297 = vld [vmem:[%s4296] sm:$0xff]
    %v4298 = vld [vmem:[%s4296 + $0x8] sm:$0xff]
    %v4299 = vld [vmem:[%s4296 + $0x10] sm:$0xff]
    %v4300 = vld [vmem:[%s4296 + $0x18] sm:$0xff]
    %v4301 = vsel %vm272, %v4200, 0.0
    %4302 = vadd.xlane.f32.xlu0 %v4301
    %v4303 = vpop.xlane.xlu0 %4302
    %v4304 = vsel %vm272, %v4201, 0.0
    %4305 = vadd.xlane.f32.xlu0 %v4304
    %v4306 = vpop.xlane.xlu0 %4305
    %v4307 = vmul.f32 %v4303, %v279
    %v4308 = vmul.f32 %v4306, %v279
    %v4309 = vsub.f32 %v4200, %v4307
    %v4310 = vsub.f32 %v4201, %v4308
    %v4311 = vmul.f32 %v4309, %v4309
    %v4312 = vmul.f32 %v4310, %v4310
    %v4313 = vsel %vm272, %v4311, 0.0
    %4314 = vadd.xlane.f32.xlu0 %v4313
    %v4315 = vpop.xlane.xlu0 %4314
    %v4316 = vsel %vm272, %v4312, 0.0
    %4317 = vadd.xlane.f32.xlu0 %v4316
    %v4318 = vpop.xlane.xlu0 %4317
    %v4319 = vmul.f32 %v4315, %v279
    %v4320 = vmul.f32 %v4318, %v279
    %v4321 = vadd.f32 %v4319, 1e-06
    %v4322 = vadd.f32 %v4320, 1e-06
    %v4323 = vrsqrt.pop %v4321
    %v4324 = vrsqrt.pop %v4322
    %v4325 = vmul.f32 %v4309, %v4323
    %v4326 = vmul.f32 %v4310, %v4324
    %v4328 = vlaneseq
    %v4329 = vshrl.u32 %v4328, 7
    %v4330 = vsub.s32 0, %v4329
    %v4331 = vrot.slane %v4203, %v4330
    %v4333 = vmul.f32 %v4325, %v4331
    %v4334 = vmul.f32 %v4326, %v4331
    %v4336 = vlaneseq
    %v4337 = vshrl.u32 %v4336, 7
    %v4338 = vsub.s32 0, %v4337
    %v4339 = vrot.slane %v4205, %v4338
    %v4341 = vadd.f32 %v4333, %v4339
    %v4342 = vadd.f32 %v4334, %v4339
    %v4347 = vlaneseq
    %v4348 = vshrl.u32 %v4347, 7
    %v4349 = vsub.s32 0, %v4348
    %v4350 = vrot.slane %v4248, %v4349
    %v4351 = vlaneseq
    %v4352 = vshrl.u32 %v4351, 7
    %v4353 = vsub.s32 0, %v4352
    %v4354 = vrot.slane %v4249, %v4353
    %v4355 = vlaneseq
    %v4356 = vshrl.u32 %v4355, 7
    %v4357 = vsub.s32 0, %v4356
    %v4358 = vrot.slane %v4250, %v4357
    %v4359 = vlaneseq
    %v4360 = vshrl.u32 %v4359, 7
    %v4361 = vsub.s32 0, %v4360
    %v4362 = vrot.slane %v4251, %v4361
    %v4368 = vsel %vm272, %v4341, 0
    %4370 = vmatprep.subr.mxu0 0.0
    %4371 = vmatpush1.msra.mxu0 0.0
    %4372 = vmatprep.subr.mxu0 0.0
    %4373 = vmatpush1.msra.mxu0 0.0
    %4374 = vmatprep.subr.mxu0 0.0
    %4375 = vmatpush1.msra.mxu0 0.0
    %4376 = vmatprep.subr.mxu0 0.0
    %4377 = vmatpush1.msra.mxu0 0.0
    %4378 = vmatprep.subr.mxu0 0.0
    %4379 = vmatpush1.msra.mxu0 0.0
    %4380 = vmatprep.subr.mxu0 0.0
    %4381 = vmatpush1.msra.mxu0 0.0
    %4382 = vmatprep.subr.mxu0 0.0
    %4383 = vmatpush1.msra.mxu0 0.0
    %4384 = vmatprep.subr.mxu0 0.0
    %4385 = vmatpush1.msra.mxu0 0.0
    %4386 = vmatprep.subr.mxu0 0.0
    %4387 = vmatpush1.msra.mxu0 0.0
    %4388 = vmatprep.subr.mxu0 0.0
    %4389 = vmatpush1.msra.mxu0 0.0
    %4390 = vmatprep.subr.mxu0 0.0
    %4391 = vmatpush1.msra.mxu0 0.0
    %4392 = vmatprep.subr.mxu0 0.0
    %4393 = vmatpush1.msra.mxu0 0.0
    %4394 = vmatprep.subr.mxu0 0.0
    %4395 = vmatpush1.msra.mxu0 %v4234
    %4396 = vmatprep.subr.mxu0 0.0
    %4397 = vmatpush1.msra.mxu0 %v4233
    %4398 = vmatprep.subr.mxu0 0.0
    %4399 = vmatpush1.msra.mxu0 %v4232
    %4400 = vmatprep.subr.mxu0 0.0
    %4401 = vmatpush1.msra.mxu0 %v4231
    %4402 = vmatprep.subr.mxu0 0.0
    %4403 = vmatpush2.msra.mxu0 0.0
    %4404 = vmatprep.subr.mxu0 0.0
    %4405 = vmatpush2.msra.mxu0 0.0
    %4406 = vmatprep.subr.mxu0 0.0
    %4407 = vmatpush2.msra.mxu0 0.0
    %4408 = vmatprep.subr.mxu0 0.0
    %4409 = vmatpush2.msra.mxu0 0.0
    %4410 = vmatprep.subr.mxu0 0.0
    %4411 = vmatpush2.msra.mxu0 0.0
    %4412 = vmatprep.subr.mxu0 0.0
    %4413 = vmatpush2.msra.mxu0 0.0
    %4414 = vmatprep.subr.mxu0 0.0
    %4415 = vmatpush2.msra.mxu0 0.0
    %4416 = vmatprep.subr.mxu0 0.0
    %4417 = vmatpush2.msra.mxu0 0.0
    %4418 = vmatprep.subr.mxu0 0.0
    %4419 = vmatpush2.msra.mxu0 0.0
    %4420 = vmatprep.subr.mxu0 0.0
    %4421 = vmatpush2.msra.mxu0 0.0
    %4422 = vmatprep.subr.mxu0 0.0
    %4423 = vmatpush2.msra.mxu0 0.0
    %4424 = vmatprep.subr.mxu0 0.0
    %4425 = vmatpush2.msra.mxu0 0.0
    %4426 = vmatprep.subr.mxu0 0.0
    %4427 = vmatpush2.msra.mxu0 0.0
    %4428 = vmatprep.subr.mxu0 0.0
    %4429 = vmatpush2.msra.mxu0 0.0
    %4430 = vmatprep.subr.mxu0 0.0
    %4431 = vmatpush2.msra.mxu0 0.0
    %4432 = vmatprep.subr.mxu0 0.0
    %4433 = vmatpush2.msra.mxu0 0.0
    %4434 = vmatprep.mubr.f32.mxu0 0.0
    %4435 = vmatmul.mubr.f32.gmra.mxu0 %v4368
    %v4436 = vpop.f32.mrf.mxu0
    %v4437 = vadd.f32 %v4350, %v4436
    %v4438 = vpop.f32.mrf.mxu0
    %4439 = vdwg.mxu0
    %4440 = vmatprep.subr.mxu0 0.0
    %4441 = vmatpush1.msra.mxu0 0.0
    %4442 = vmatprep.subr.mxu0 0.0
    %4443 = vmatpush1.msra.mxu0 0.0
    %4444 = vmatprep.subr.mxu0 0.0
    %4445 = vmatpush1.msra.mxu0 0.0
    %4446 = vmatprep.subr.mxu0 0.0
    %4447 = vmatpush1.msra.mxu0 0.0
    %4448 = vmatprep.subr.mxu0 0.0
    %4449 = vmatpush1.msra.mxu0 0.0
    %4450 = vmatprep.subr.mxu0 0.0
    %4451 = vmatpush1.msra.mxu0 0.0
    %4452 = vmatprep.subr.mxu0 0.0
    %4453 = vmatpush1.msra.mxu0 0.0
    %4454 = vmatprep.subr.mxu0 0.0
    %4455 = vmatpush1.msra.mxu0 0.0
    %4456 = vmatprep.subr.mxu0 0.0
    %4457 = vmatpush1.msra.mxu0 0.0
    %4458 = vmatprep.subr.mxu0 0.0
    %4459 = vmatpush1.msra.mxu0 0.0
    %4460 = vmatprep.subr.mxu0 0.0
    %4461 = vmatpush1.msra.mxu0 0.0
    %4462 = vmatprep.subr.mxu0 0.0
    %4463 = vmatpush1.msra.mxu0 0.0
    %4464 = vmatprep.subr.mxu0 0.0
    %4465 = vmatpush1.msra.mxu0 %v4238
    %4466 = vmatprep.subr.mxu0 0.0
    %4467 = vmatpush1.msra.mxu0 %v4237
    %4468 = vmatprep.subr.mxu0 0.0
    %4469 = vmatpush1.msra.mxu0 %v4236
    %4470 = vmatprep.subr.mxu0 0.0
    %4471 = vmatpush1.msra.mxu0 %v4235
    %4472 = vmatprep.subr.mxu0 0.0
    %4473 = vmatpush2.msra.mxu0 0.0
    %4474 = vmatprep.subr.mxu0 0.0
    %4475 = vmatpush2.msra.mxu0 0.0
    %4476 = vmatprep.subr.mxu0 0.0
    %4477 = vmatpush2.msra.mxu0 0.0
    %4478 = vmatprep.subr.mxu0 0.0
    %4479 = vmatpush2.msra.mxu0 0.0
    %4480 = vmatprep.subr.mxu0 0.0
    %4481 = vmatpush2.msra.mxu0 0.0
    %4482 = vmatprep.subr.mxu0 0.0
    %4483 = vmatpush2.msra.mxu0 0.0
    %4484 = vmatprep.subr.mxu0 0.0
    %4485 = vmatpush2.msra.mxu0 0.0
    %4486 = vmatprep.subr.mxu0 0.0
    %4487 = vmatpush2.msra.mxu0 0.0
    %4488 = vmatprep.subr.mxu0 0.0
    %4489 = vmatpush2.msra.mxu0 0.0
    %4490 = vmatprep.subr.mxu0 0.0
    %4491 = vmatpush2.msra.mxu0 0.0
    %4492 = vmatprep.subr.mxu0 0.0
    %4493 = vmatpush2.msra.mxu0 0.0
    %4494 = vmatprep.subr.mxu0 0.0
    %4495 = vmatpush2.msra.mxu0 0.0
    %4496 = vmatprep.subr.mxu0 0.0
    %4497 = vmatpush2.msra.mxu0 0.0
    %4498 = vmatprep.subr.mxu0 0.0
    %4499 = vmatpush2.msra.mxu0 0.0
    %4500 = vmatprep.subr.mxu0 0.0
    %4501 = vmatpush2.msra.mxu0 0.0
    %4502 = vmatprep.subr.mxu0 0.0
    %4503 = vmatpush2.msra.mxu0 0.0
    %4504 = vmatprep.mubr.f32.mxu0 0.0
    %4505 = vmatmul.mubr.f32.gmra.mxu0 %v4368
    %v4506 = vpop.f32.mrf.mxu0
    %v4507 = vadd.f32 %v4354, %v4506
    %v4508 = vpop.f32.mrf.mxu0
    %4509 = vdwg.mxu0
    %4510 = vmatprep.subr.mxu0 0.0
    %4511 = vmatpush1.msra.mxu0 0.0
    %4512 = vmatprep.subr.mxu0 0.0
    %4513 = vmatpush1.msra.mxu0 0.0
    %4514 = vmatprep.subr.mxu0 0.0
    %4515 = vmatpush1.msra.mxu0 0.0
    %4516 = vmatprep.subr.mxu0 0.0
    %4517 = vmatpush1.msra.mxu0 0.0
    %4518 = vmatprep.subr.mxu0 0.0
    %4519 = vmatpush1.msra.mxu0 0.0
    %4520 = vmatprep.subr.mxu0 0.0
    %4521 = vmatpush1.msra.mxu0 0.0
    %4522 = vmatprep.subr.mxu0 0.0
    %4523 = vmatpush1.msra.mxu0 0.0
    %4524 = vmatprep.subr.mxu0 0.0
    %4525 = vmatpush1.msra.mxu0 0.0
    %4526 = vmatprep.subr.mxu0 0.0
    %4527 = vmatpush1.msra.mxu0 0.0
    %4528 = vmatprep.subr.mxu0 0.0
    %4529 = vmatpush1.msra.mxu0 0.0
    %4530 = vmatprep.subr.mxu0 0.0
    %4531 = vmatpush1.msra.mxu0 0.0
    %4532 = vmatprep.subr.mxu0 0.0
    %4533 = vmatpush1.msra.mxu0 0.0
    %4534 = vmatprep.subr.mxu0 0.0
    %4535 = vmatpush1.msra.mxu0 %v4242
    %4536 = vmatprep.subr.mxu0 0.0
    %4537 = vmatpush1.msra.mxu0 %v4241
    %4538 = vmatprep.subr.mxu0 0.0
    %4539 = vmatpush1.msra.mxu0 %v4240
    %4540 = vmatprep.subr.mxu0 0.0
    %4541 = vmatpush1.msra.mxu0 %v4239
    %4542 = vmatprep.subr.mxu0 0.0
    %4543 = vmatpush2.msra.mxu0 0.0
    %4544 = vmatprep.subr.mxu0 0.0
    %4545 = vmatpush2.msra.mxu0 0.0
    %4546 = vmatprep.subr.mxu0 0.0
    %4547 = vmatpush2.msra.mxu0 0.0
    %4548 = vmatprep.subr.mxu0 0.0
    %4549 = vmatpush2.msra.mxu0 0.0
    %4550 = vmatprep.subr.mxu0 0.0
    %4551 = vmatpush2.msra.mxu0 0.0
    %4552 = vmatprep.subr.mxu0 0.0
    %4553 = vmatpush2.msra.mxu0 0.0
    %4554 = vmatprep.subr.mxu0 0.0
    %4555 = vmatpush2.msra.mxu0 0.0
    %4556 = vmatprep.subr.mxu0 0.0
    %4557 = vmatpush2.msra.mxu0 0.0
    %4558 = vmatprep.subr.mxu0 0.0
    %4559 = vmatpush2.msra.mxu0 0.0
    %4560 = vmatprep.subr.mxu0 0.0
    %4561 = vmatpush2.msra.mxu0 0.0
    %4562 = vmatprep.subr.mxu0 0.0
    %4563 = vmatpush2.msra.mxu0 0.0
    %4564 = vmatprep.subr.mxu0 0.0
    %4565 = vmatpush2.msra.mxu0 0.0
    %4566 = vmatprep.subr.mxu0 0.0
    %4567 = vmatpush2.msra.mxu0 0.0
    %4568 = vmatprep.subr.mxu0 0.0
    %4569 = vmatpush2.msra.mxu0 0.0
    %4570 = vmatprep.subr.mxu0 0.0
    %4571 = vmatpush2.msra.mxu0 0.0
    %4572 = vmatprep.subr.mxu0 0.0
    %4573 = vmatpush2.msra.mxu0 0.0
    %4574 = vmatprep.mubr.f32.mxu0 0.0
    %4575 = vmatmul.mubr.f32.gmra.mxu0 %v4368
    %v4576 = vpop.f32.mrf.mxu0
    %v4577 = vadd.f32 %v4358, %v4576
    %v4578 = vpop.f32.mrf.mxu0
    %4579 = vdwg.mxu0
    %4580 = vmatprep.subr.mxu0 0.0
    %4581 = vmatpush1.msra.mxu0 0.0
    %4582 = vmatprep.subr.mxu0 0.0
    %4583 = vmatpush1.msra.mxu0 0.0
    %4584 = vmatprep.subr.mxu0 0.0
    %4585 = vmatpush1.msra.mxu0 0.0
    %4586 = vmatprep.subr.mxu0 0.0
    %4587 = vmatpush1.msra.mxu0 0.0
    %4588 = vmatprep.subr.mxu0 0.0
    %4589 = vmatpush1.msra.mxu0 0.0
    %4590 = vmatprep.subr.mxu0 0.0
    %4591 = vmatpush1.msra.mxu0 0.0
    %4592 = vmatprep.subr.mxu0 0.0
    %4593 = vmatpush1.msra.mxu0 0.0
    %4594 = vmatprep.subr.mxu0 0.0
    %4595 = vmatpush1.msra.mxu0 0.0
    %4596 = vmatprep.subr.mxu0 0.0
    %4597 = vmatpush1.msra.mxu0 0.0
    %4598 = vmatprep.subr.mxu0 0.0
    %4599 = vmatpush1.msra.mxu0 0.0
    %4600 = vmatprep.subr.mxu0 0.0
    %4601 = vmatpush1.msra.mxu0 0.0
    %4602 = vmatprep.subr.mxu0 0.0
    %4603 = vmatpush1.msra.mxu0 0.0
    %4604 = vmatprep.subr.mxu0 0.0
    %4605 = vmatpush1.msra.mxu0 %v4246
    %4606 = vmatprep.subr.mxu0 0.0
    %4607 = vmatpush1.msra.mxu0 %v4245
    %4608 = vmatprep.subr.mxu0 0.0
    %4609 = vmatpush1.msra.mxu0 %v4244
    %4610 = vmatprep.subr.mxu0 0.0
    %4611 = vmatpush1.msra.mxu0 %v4243
    %4612 = vmatprep.subr.mxu0 0.0
    %4613 = vmatpush2.msra.mxu0 0.0
    %4614 = vmatprep.subr.mxu0 0.0
    %4615 = vmatpush2.msra.mxu0 0.0
    %4616 = vmatprep.subr.mxu0 0.0
    %4617 = vmatpush2.msra.mxu0 0.0
    %4618 = vmatprep.subr.mxu0 0.0
    %4619 = vmatpush2.msra.mxu0 0.0
    %4620 = vmatprep.subr.mxu0 0.0
    %4621 = vmatpush2.msra.mxu0 0.0
    %4622 = vmatprep.subr.mxu0 0.0
    %4623 = vmatpush2.msra.mxu0 0.0
    %4624 = vmatprep.subr.mxu0 0.0
    %4625 = vmatpush2.msra.mxu0 0.0
    %4626 = vmatprep.subr.mxu0 0.0
    %4627 = vmatpush2.msra.mxu0 0.0
    %4628 = vmatprep.subr.mxu0 0.0
    %4629 = vmatpush2.msra.mxu0 0.0
    %4630 = vmatprep.subr.mxu0 0.0
    %4631 = vmatpush2.msra.mxu0 0.0
    %4632 = vmatprep.subr.mxu0 0.0
    %4633 = vmatpush2.msra.mxu0 0.0
    %4634 = vmatprep.subr.mxu0 0.0
    %4635 = vmatpush2.msra.mxu0 0.0
    %4636 = vmatprep.subr.mxu0 0.0
    %4637 = vmatpush2.msra.mxu0 0.0
    %4638 = vmatprep.subr.mxu0 0.0
    %4639 = vmatpush2.msra.mxu0 0.0
    %4640 = vmatprep.subr.mxu0 0.0
    %4641 = vmatpush2.msra.mxu0 0.0
    %4642 = vmatprep.subr.mxu0 0.0
    %4643 = vmatpush2.msra.mxu0 0.0
    %4644 = vmatprep.mubr.f32.mxu0 0.0
    %4645 = vmatmul.mubr.f32.gmra.mxu0 %v4368
    %v4646 = vpop.f32.mrf.mxu0
    %v4647 = vadd.f32 %v4362, %v4646
    %v4648 = vpop.f32.mrf.mxu0
    %4649 = vdwg.mxu0
    %v4654 = vlaneseq
    %v4655 = vshrl.u32 %v4654, 7
    %v4656 = vsub.s32 0, %v4655
    %v4657 = vrot.slane %v4270, %v4656
    %v4658 = vlaneseq
    %v4659 = vshrl.u32 %v4658, 7
    %v4660 = vsub.s32 0, %v4659
    %v4661 = vrot.slane %v4271, %v4660
    %v4662 = vlaneseq
    %v4663 = vshrl.u32 %v4662, 7
    %v4664 = vsub.s32 0, %v4663
    %v4665 = vrot.slane %v4272, %v4664
    %v4666 = vlaneseq
    %v4667 = vshrl.u32 %v4666, 7
    %v4668 = vsub.s32 0, %v4667
    %v4669 = vrot.slane %v4273, %v4668
    %4674 = vmatprep.subr.mxu0 0.0
    %4675 = vmatpush1.msra.mxu0 0.0
    %4676 = vmatprep.subr.mxu0 0.0
    %4677 = vmatpush1.msra.mxu0 0.0
    %4678 = vmatprep.subr.mxu0 0.0
    %4679 = vmatpush1.msra.mxu0 0.0
    %4680 = vmatprep.subr.mxu0 0.0
    %4681 = vmatpush1.msra.mxu0 0.0
    %4682 = vmatprep.subr.mxu0 0.0
    %4683 = vmatpush1.msra.mxu0 0.0
    %4684 = vmatprep.subr.mxu0 0.0
    %4685 = vmatpush1.msra.mxu0 0.0
    %4686 = vmatprep.subr.mxu0 0.0
    %4687 = vmatpush1.msra.mxu0 0.0
    %4688 = vmatprep.subr.mxu0 0.0
    %4689 = vmatpush1.msra.mxu0 0.0
    %4690 = vmatprep.subr.mxu0 0.0
    %4691 = vmatpush1.msra.mxu0 0.0
    %4692 = vmatprep.subr.mxu0 0.0
    %4693 = vmatpush1.msra.mxu0 0.0
    %4694 = vmatprep.subr.mxu0 0.0
    %4695 = vmatpush1.msra.mxu0 0.0
    %4696 = vmatprep.subr.mxu0 0.0
    %4697 = vmatpush1.msra.mxu0 0.0
    %4698 = vmatprep.subr.mxu0 0.0
    %4699 = vmatpush1.msra.mxu0 %v4256
    %4700 = vmatprep.subr.mxu0 0.0
    %4701 = vmatpush1.msra.mxu0 %v4255
    %4702 = vmatprep.subr.mxu0 0.0
    %4703 = vmatpush1.msra.mxu0 %v4254
    %4704 = vmatprep.subr.mxu0 0.0
    %4705 = vmatpush1.msra.mxu0 %v4253
    %4706 = vmatprep.subr.mxu0 0.0
    %4707 = vmatpush2.msra.mxu0 0.0
    %4708 = vmatprep.subr.mxu0 0.0
    %4709 = vmatpush2.msra.mxu0 0.0
    %4710 = vmatprep.subr.mxu0 0.0
    %4711 = vmatpush2.msra.mxu0 0.0
    %4712 = vmatprep.subr.mxu0 0.0
    %4713 = vmatpush2.msra.mxu0 0.0
    %4714 = vmatprep.subr.mxu0 0.0
    %4715 = vmatpush2.msra.mxu0 0.0
    %4716 = vmatprep.subr.mxu0 0.0
    %4717 = vmatpush2.msra.mxu0 0.0
    %4718 = vmatprep.subr.mxu0 0.0
    %4719 = vmatpush2.msra.mxu0 0.0
    %4720 = vmatprep.subr.mxu0 0.0
    %4721 = vmatpush2.msra.mxu0 0.0
    %4722 = vmatprep.subr.mxu0 0.0
    %4723 = vmatpush2.msra.mxu0 0.0
    %4724 = vmatprep.subr.mxu0 0.0
    %4725 = vmatpush2.msra.mxu0 0.0
    %4726 = vmatprep.subr.mxu0 0.0
    %4727 = vmatpush2.msra.mxu0 0.0
    %4728 = vmatprep.subr.mxu0 0.0
    %4729 = vmatpush2.msra.mxu0 0.0
    %4730 = vmatprep.subr.mxu0 0.0
    %4731 = vmatpush2.msra.mxu0 0.0
    %4732 = vmatprep.subr.mxu0 0.0
    %4733 = vmatpush2.msra.mxu0 0.0
    %4734 = vmatprep.subr.mxu0 0.0
    %4735 = vmatpush2.msra.mxu0 0.0
    %4736 = vmatprep.subr.mxu0 0.0
    %4737 = vmatpush2.msra.mxu0 0.0
    %4738 = vmatprep.mubr.f32.mxu0 0.0
    %4739 = vmatmul.mubr.f32.gmra.mxu0 %v4368
    %v4740 = vpop.f32.mrf.mxu0
    %v4741 = vadd.f32 %v4657, %v4740
    %v4742 = vpop.f32.mrf.mxu0
    %4743 = vdwg.mxu0
    %4744 = vmatprep.subr.mxu0 0.0
    %4745 = vmatpush1.msra.mxu0 0.0
    %4746 = vmatprep.subr.mxu0 0.0
    %4747 = vmatpush1.msra.mxu0 0.0
    %4748 = vmatprep.subr.mxu0 0.0
    %4749 = vmatpush1.msra.mxu0 0.0
    %4750 = vmatprep.subr.mxu0 0.0
    %4751 = vmatpush1.msra.mxu0 0.0
    %4752 = vmatprep.subr.mxu0 0.0
    %4753 = vmatpush1.msra.mxu0 0.0
    %4754 = vmatprep.subr.mxu0 0.0
    %4755 = vmatpush1.msra.mxu0 0.0
    %4756 = vmatprep.subr.mxu0 0.0
    %4757 = vmatpush1.msra.mxu0 0.0
    %4758 = vmatprep.subr.mxu0 0.0
    %4759 = vmatpush1.msra.mxu0 0.0
    %4760 = vmatprep.subr.mxu0 0.0
    %4761 = vmatpush1.msra.mxu0 0.0
    %4762 = vmatprep.subr.mxu0 0.0
    %4763 = vmatpush1.msra.mxu0 0.0
    %4764 = vmatprep.subr.mxu0 0.0
    %4765 = vmatpush1.msra.mxu0 0.0
    %4766 = vmatprep.subr.mxu0 0.0
    %4767 = vmatpush1.msra.mxu0 0.0
    %4768 = vmatprep.subr.mxu0 0.0
    %4769 = vmatpush1.msra.mxu0 %v4260
    %4770 = vmatprep.subr.mxu0 0.0
    %4771 = vmatpush1.msra.mxu0 %v4259
    %4772 = vmatprep.subr.mxu0 0.0
    %4773 = vmatpush1.msra.mxu0 %v4258
    %4774 = vmatprep.subr.mxu0 0.0
    %4775 = vmatpush1.msra.mxu0 %v4257
    %4776 = vmatprep.subr.mxu0 0.0
    %4777 = vmatpush2.msra.mxu0 0.0
    %4778 = vmatprep.subr.mxu0 0.0
    %4779 = vmatpush2.msra.mxu0 0.0
    %4780 = vmatprep.subr.mxu0 0.0
    %4781 = vmatpush2.msra.mxu0 0.0
    %4782 = vmatprep.subr.mxu0 0.0
    %4783 = vmatpush2.msra.mxu0 0.0
    %4784 = vmatprep.subr.mxu0 0.0
    %4785 = vmatpush2.msra.mxu0 0.0
    %4786 = vmatprep.subr.mxu0 0.0
    %4787 = vmatpush2.msra.mxu0 0.0
    %4788 = vmatprep.subr.mxu0 0.0
    %4789 = vmatpush2.msra.mxu0 0.0
    %4790 = vmatprep.subr.mxu0 0.0
    %4791 = vmatpush2.msra.mxu0 0.0
    %4792 = vmatprep.subr.mxu0 0.0
    %4793 = vmatpush2.msra.mxu0 0.0
    %4794 = vmatprep.subr.mxu0 0.0
    %4795 = vmatpush2.msra.mxu0 0.0
    %4796 = vmatprep.subr.mxu0 0.0
    %4797 = vmatpush2.msra.mxu0 0.0
    %4798 = vmatprep.subr.mxu0 0.0
    %4799 = vmatpush2.msra.mxu0 0.0
    %4800 = vmatprep.subr.mxu0 0.0
    %4801 = vmatpush2.msra.mxu0 0.0
    %4802 = vmatprep.subr.mxu0 0.0
    %4803 = vmatpush2.msra.mxu0 0.0
    %4804 = vmatprep.subr.mxu0 0.0
    %4805 = vmatpush2.msra.mxu0 0.0
    %4806 = vmatprep.subr.mxu0 0.0
    %4807 = vmatpush2.msra.mxu0 0.0
    %4808 = vmatprep.mubr.f32.mxu0 0.0
    %4809 = vmatmul.mubr.f32.gmra.mxu0 %v4368
    %v4810 = vpop.f32.mrf.mxu0
    %v4811 = vadd.f32 %v4661, %v4810
    %v4812 = vpop.f32.mrf.mxu0
    %4813 = vdwg.mxu0
    %4814 = vmatprep.subr.mxu0 0.0
    %4815 = vmatpush1.msra.mxu0 0.0
    %4816 = vmatprep.subr.mxu0 0.0
    %4817 = vmatpush1.msra.mxu0 0.0
    %4818 = vmatprep.subr.mxu0 0.0
    %4819 = vmatpush1.msra.mxu0 0.0
    %4820 = vmatprep.subr.mxu0 0.0
    %4821 = vmatpush1.msra.mxu0 0.0
    %4822 = vmatprep.subr.mxu0 0.0
    %4823 = vmatpush1.msra.mxu0 0.0
    %4824 = vmatprep.subr.mxu0 0.0
    %4825 = vmatpush1.msra.mxu0 0.0
    %4826 = vmatprep.subr.mxu0 0.0
    %4827 = vmatpush1.msra.mxu0 0.0
    %4828 = vmatprep.subr.mxu0 0.0
    %4829 = vmatpush1.msra.mxu0 0.0
    %4830 = vmatprep.subr.mxu0 0.0
    %4831 = vmatpush1.msra.mxu0 0.0
    %4832 = vmatprep.subr.mxu0 0.0
    %4833 = vmatpush1.msra.mxu0 0.0
    %4834 = vmatprep.subr.mxu0 0.0
    %4835 = vmatpush1.msra.mxu0 0.0
    %4836 = vmatprep.subr.mxu0 0.0
    %4837 = vmatpush1.msra.mxu0 0.0
    %4838 = vmatprep.subr.mxu0 0.0
    %4839 = vmatpush1.msra.mxu0 %v4264
    %4840 = vmatprep.subr.mxu0 0.0
    %4841 = vmatpush1.msra.mxu0 %v4263
    %4842 = vmatprep.subr.mxu0 0.0
    %4843 = vmatpush1.msra.mxu0 %v4262
    %4844 = vmatprep.subr.mxu0 0.0
    %4845 = vmatpush1.msra.mxu0 %v4261
    %4846 = vmatprep.subr.mxu0 0.0
    %4847 = vmatpush2.msra.mxu0 0.0
    %4848 = vmatprep.subr.mxu0 0.0
    %4849 = vmatpush2.msra.mxu0 0.0
    %4850 = vmatprep.subr.mxu0 0.0
    %4851 = vmatpush2.msra.mxu0 0.0
    %4852 = vmatprep.subr.mxu0 0.0
    %4853 = vmatpush2.msra.mxu0 0.0
    %4854 = vmatprep.subr.mxu0 0.0
    %4855 = vmatpush2.msra.mxu0 0.0
    %4856 = vmatprep.subr.mxu0 0.0
    %4857 = vmatpush2.msra.mxu0 0.0
    %4858 = vmatprep.subr.mxu0 0.0
    %4859 = vmatpush2.msra.mxu0 0.0
    %4860 = vmatprep.subr.mxu0 0.0
    %4861 = vmatpush2.msra.mxu0 0.0
    %4862 = vmatprep.subr.mxu0 0.0
    %4863 = vmatpush2.msra.mxu0 0.0
    %4864 = vmatprep.subr.mxu0 0.0
    %4865 = vmatpush2.msra.mxu0 0.0
    %4866 = vmatprep.subr.mxu0 0.0
    %4867 = vmatpush2.msra.mxu0 0.0
    %4868 = vmatprep.subr.mxu0 0.0
    %4869 = vmatpush2.msra.mxu0 0.0
    %4870 = vmatprep.subr.mxu0 0.0
    %4871 = vmatpush2.msra.mxu0 0.0
    %4872 = vmatprep.subr.mxu0 0.0
    %4873 = vmatpush2.msra.mxu0 0.0
    %4874 = vmatprep.subr.mxu0 0.0
    %4875 = vmatpush2.msra.mxu0 0.0
    %4876 = vmatprep.subr.mxu0 0.0
    %4877 = vmatpush2.msra.mxu0 0.0
    %4878 = vmatprep.mubr.f32.mxu0 0.0
    %4879 = vmatmul.mubr.f32.gmra.mxu0 %v4368
    %v4880 = vpop.f32.mrf.mxu0
    %v4881 = vadd.f32 %v4665, %v4880
    %v4882 = vpop.f32.mrf.mxu0
    %4883 = vdwg.mxu0
    %4884 = vmatprep.subr.mxu0 0.0
    %4885 = vmatpush1.msra.mxu0 0.0
    %4886 = vmatprep.subr.mxu0 0.0
    %4887 = vmatpush1.msra.mxu0 0.0
    %4888 = vmatprep.subr.mxu0 0.0
    %4889 = vmatpush1.msra.mxu0 0.0
    %4890 = vmatprep.subr.mxu0 0.0
    %4891 = vmatpush1.msra.mxu0 0.0
    %4892 = vmatprep.subr.mxu0 0.0
    %4893 = vmatpush1.msra.mxu0 0.0
    %4894 = vmatprep.subr.mxu0 0.0
    %4895 = vmatpush1.msra.mxu0 0.0
    %4896 = vmatprep.subr.mxu0 0.0
    %4897 = vmatpush1.msra.mxu0 0.0
    %4898 = vmatprep.subr.mxu0 0.0
    %4899 = vmatpush1.msra.mxu0 0.0
    %4900 = vmatprep.subr.mxu0 0.0
    %4901 = vmatpush1.msra.mxu0 0.0
    %4902 = vmatprep.subr.mxu0 0.0
    %4903 = vmatpush1.msra.mxu0 0.0
    %4904 = vmatprep.subr.mxu0 0.0
    %4905 = vmatpush1.msra.mxu0 0.0
    %4906 = vmatprep.subr.mxu0 0.0
    %4907 = vmatpush1.msra.mxu0 0.0
    %4908 = vmatprep.subr.mxu0 0.0
    %4909 = vmatpush1.msra.mxu0 %v4268
    %4910 = vmatprep.subr.mxu0 0.0
    %4911 = vmatpush1.msra.mxu0 %v4267
    %4912 = vmatprep.subr.mxu0 0.0
    %4913 = vmatpush1.msra.mxu0 %v4266
    %4914 = vmatprep.subr.mxu0 0.0
    %4915 = vmatpush1.msra.mxu0 %v4265
    %4916 = vmatprep.subr.mxu0 0.0
    %4917 = vmatpush2.msra.mxu0 0.0
    %4918 = vmatprep.subr.mxu0 0.0
    %4919 = vmatpush2.msra.mxu0 0.0
    %4920 = vmatprep.subr.mxu0 0.0
    %4921 = vmatpush2.msra.mxu0 0.0
    %4922 = vmatprep.subr.mxu0 0.0
    %4923 = vmatpush2.msra.mxu0 0.0
    %4924 = vmatprep.subr.mxu0 0.0
    %4925 = vmatpush2.msra.mxu0 0.0
    %4926 = vmatprep.subr.mxu0 0.0
    %4927 = vmatpush2.msra.mxu0 0.0
    %4928 = vmatprep.subr.mxu0 0.0
    %4929 = vmatpush2.msra.mxu0 0.0
    %4930 = vmatprep.subr.mxu0 0.0
    %4931 = vmatpush2.msra.mxu0 0.0
    %4932 = vmatprep.subr.mxu0 0.0
    %4933 = vmatpush2.msra.mxu0 0.0
    %4934 = vmatprep.subr.mxu0 0.0
    %4935 = vmatpush2.msra.mxu0 0.0
    %4936 = vmatprep.subr.mxu0 0.0
    %4937 = vmatpush2.msra.mxu0 0.0
    %4938 = vmatprep.subr.mxu0 0.0
    %4939 = vmatpush2.msra.mxu0 0.0
    %4940 = vmatprep.subr.mxu0 0.0
    %4941 = vmatpush2.msra.mxu0 0.0
    %4942 = vmatprep.subr.mxu0 0.0
    %4943 = vmatpush2.msra.mxu0 0.0
    %4944 = vmatprep.subr.mxu0 0.0
    %4945 = vmatpush2.msra.mxu0 0.0
    %4946 = vmatprep.subr.mxu0 0.0
    %4947 = vmatpush2.msra.mxu0 0.0
    %4948 = vmatprep.mubr.f32.mxu0 0.0
    %4949 = vmatmul.mubr.f32.gmra.mxu0 %v4368
    %v4950 = vpop.f32.mrf.mxu0
    %v4951 = vadd.f32 %v4669, %v4950
    %v4952 = vpop.f32.mrf.mxu0
    %4953 = vdwg.mxu0
    %v4958 = vlaneseq
    %v4959 = vshrl.u32 %v4958, 7
    %v4960 = vsub.s32 0, %v4959
    %v4961 = vrot.slane %v4292, %v4960
    %v4962 = vlaneseq
    %v4963 = vshrl.u32 %v4962, 7
    %v4964 = vsub.s32 0, %v4963
    %v4965 = vrot.slane %v4293, %v4964
    %v4966 = vlaneseq
    %v4967 = vshrl.u32 %v4966, 7
    %v4968 = vsub.s32 0, %v4967
    %v4969 = vrot.slane %v4294, %v4968
    %v4970 = vlaneseq
    %v4971 = vshrl.u32 %v4970, 7
    %v4972 = vsub.s32 0, %v4971
    %v4973 = vrot.slane %v4295, %v4972
    %4978 = vmatprep.subr.mxu0 0.0
    %4979 = vmatpush1.msra.mxu0 0.0
    %4980 = vmatprep.subr.mxu0 0.0
    %4981 = vmatpush1.msra.mxu0 0.0
    %4982 = vmatprep.subr.mxu0 0.0
    %4983 = vmatpush1.msra.mxu0 0.0
    %4984 = vmatprep.subr.mxu0 0.0
    %4985 = vmatpush1.msra.mxu0 0.0
    %4986 = vmatprep.subr.mxu0 0.0
    %4987 = vmatpush1.msra.mxu0 0.0
    %4988 = vmatprep.subr.mxu0 0.0
    %4989 = vmatpush1.msra.mxu0 0.0
    %4990 = vmatprep.subr.mxu0 0.0
    %4991 = vmatpush1.msra.mxu0 0.0
    %4992 = vmatprep.subr.mxu0 0.0
    %4993 = vmatpush1.msra.mxu0 0.0
    %4994 = vmatprep.subr.mxu0 0.0
    %4995 = vmatpush1.msra.mxu0 0.0
    %4996 = vmatprep.subr.mxu0 0.0
    %4997 = vmatpush1.msra.mxu0 0.0
    %4998 = vmatprep.subr.mxu0 0.0
    %4999 = vmatpush1.msra.mxu0 0.0
    %5000 = vmatprep.subr.mxu0 0.0
    %5001 = vmatpush1.msra.mxu0 0.0
    %5002 = vmatprep.subr.mxu0 0.0
    %5003 = vmatpush1.msra.mxu0 %v4278
    %5004 = vmatprep.subr.mxu0 0.0
    %5005 = vmatpush1.msra.mxu0 %v4277
    %5006 = vmatprep.subr.mxu0 0.0
    %5007 = vmatpush1.msra.mxu0 %v4276
    %5008 = vmatprep.subr.mxu0 0.0
    %5009 = vmatpush1.msra.mxu0 %v4275
    %5010 = vmatprep.subr.mxu0 0.0
    %5011 = vmatpush2.msra.mxu0 0.0
    %5012 = vmatprep.subr.mxu0 0.0
    %5013 = vmatpush2.msra.mxu0 0.0
    %5014 = vmatprep.subr.mxu0 0.0
    %5015 = vmatpush2.msra.mxu0 0.0
    %5016 = vmatprep.subr.mxu0 0.0
    %5017 = vmatpush2.msra.mxu0 0.0
    %5018 = vmatprep.subr.mxu0 0.0
    %5019 = vmatpush2.msra.mxu0 0.0
    %5020 = vmatprep.subr.mxu0 0.0
    %5021 = vmatpush2.msra.mxu0 0.0
    %5022 = vmatprep.subr.mxu0 0.0
    %5023 = vmatpush2.msra.mxu0 0.0
    %5024 = vmatprep.subr.mxu0 0.0
    %5025 = vmatpush2.msra.mxu0 0.0
    %5026 = vmatprep.subr.mxu0 0.0
    %5027 = vmatpush2.msra.mxu0 0.0
    %5028 = vmatprep.subr.mxu0 0.0
    %5029 = vmatpush2.msra.mxu0 0.0
    %5030 = vmatprep.subr.mxu0 0.0
    %5031 = vmatpush2.msra.mxu0 0.0
    %5032 = vmatprep.subr.mxu0 0.0
    %5033 = vmatpush2.msra.mxu0 0.0
    %5034 = vmatprep.subr.mxu0 0.0
    %5035 = vmatpush2.msra.mxu0 0.0
    %5036 = vmatprep.subr.mxu0 0.0
    %5037 = vmatpush2.msra.mxu0 0.0
    %5038 = vmatprep.subr.mxu0 0.0
    %5039 = vmatpush2.msra.mxu0 0.0
    %5040 = vmatprep.subr.mxu0 0.0
    %5041 = vmatpush2.msra.mxu0 0.0
    %5042 = vmatprep.mubr.f32.mxu0 0.0
    %5043 = vmatmul.mubr.f32.gmra.mxu0 %v4368
    %v5044 = vpop.f32.mrf.mxu0
    %v5045 = vadd.f32 %v4961, %v5044
    %v5046 = vpop.f32.mrf.mxu0
    %5047 = vdwg.mxu0
    %5048 = vmatprep.subr.mxu0 0.0
    %5049 = vmatpush1.msra.mxu0 0.0
    %5050 = vmatprep.subr.mxu0 0.0
    %5051 = vmatpush1.msra.mxu0 0.0
    %5052 = vmatprep.subr.mxu0 0.0
    %5053 = vmatpush1.msra.mxu0 0.0
    %5054 = vmatprep.subr.mxu0 0.0
    %5055 = vmatpush1.msra.mxu0 0.0
    %5056 = vmatprep.subr.mxu0 0.0
    %5057 = vmatpush1.msra.mxu0 0.0
    %5058 = vmatprep.subr.mxu0 0.0
    %5059 = vmatpush1.msra.mxu0 0.0
    %5060 = vmatprep.subr.mxu0 0.0
    %5061 = vmatpush1.msra.mxu0 0.0
    %5062 = vmatprep.subr.mxu0 0.0
    %5063 = vmatpush1.msra.mxu0 0.0
    %5064 = vmatprep.subr.mxu0 0.0
    %5065 = vmatpush1.msra.mxu0 0.0
    %5066 = vmatprep.subr.mxu0 0.0
    %5067 = vmatpush1.msra.mxu0 0.0
    %5068 = vmatprep.subr.mxu0 0.0
    %5069 = vmatpush1.msra.mxu0 0.0
    %5070 = vmatprep.subr.mxu0 0.0
    %5071 = vmatpush1.msra.mxu0 0.0
    %5072 = vmatprep.subr.mxu0 0.0
    %5073 = vmatpush1.msra.mxu0 %v4282
    %5074 = vmatprep.subr.mxu0 0.0
    %5075 = vmatpush1.msra.mxu0 %v4281
    %5076 = vmatprep.subr.mxu0 0.0
    %5077 = vmatpush1.msra.mxu0 %v4280
    %5078 = vmatprep.subr.mxu0 0.0
    %5079 = vmatpush1.msra.mxu0 %v4279
    %5080 = vmatprep.subr.mxu0 0.0
    %5081 = vmatpush2.msra.mxu0 0.0
    %5082 = vmatprep.subr.mxu0 0.0
    %5083 = vmatpush2.msra.mxu0 0.0
    %5084 = vmatprep.subr.mxu0 0.0
    %5085 = vmatpush2.msra.mxu0 0.0
    %5086 = vmatprep.subr.mxu0 0.0
    %5087 = vmatpush2.msra.mxu0 0.0
    %5088 = vmatprep.subr.mxu0 0.0
    %5089 = vmatpush2.msra.mxu0 0.0
    %5090 = vmatprep.subr.mxu0 0.0
    %5091 = vmatpush2.msra.mxu0 0.0
    %5092 = vmatprep.subr.mxu0 0.0
    %5093 = vmatpush2.msra.mxu0 0.0
    %5094 = vmatprep.subr.mxu0 0.0
    %5095 = vmatpush2.msra.mxu0 0.0
    %5096 = vmatprep.subr.mxu0 0.0
    %5097 = vmatpush2.msra.mxu0 0.0
    %5098 = vmatprep.subr.mxu0 0.0
    %5099 = vmatpush2.msra.mxu0 0.0
    %5100 = vmatprep.subr.mxu0 0.0
    %5101 = vmatpush2.msra.mxu0 0.0
    %5102 = vmatprep.subr.mxu0 0.0
    %5103 = vmatpush2.msra.mxu0 0.0
    %5104 = vmatprep.subr.mxu0 0.0
    %5105 = vmatpush2.msra.mxu0 0.0
    %5106 = vmatprep.subr.mxu0 0.0
    %5107 = vmatpush2.msra.mxu0 0.0
    %5108 = vmatprep.subr.mxu0 0.0
    %5109 = vmatpush2.msra.mxu0 0.0
    %5110 = vmatprep.subr.mxu0 0.0
    %5111 = vmatpush2.msra.mxu0 0.0
    %5112 = vmatprep.mubr.f32.mxu0 0.0
    %5113 = vmatmul.mubr.f32.gmra.mxu0 %v4368
    %v5114 = vpop.f32.mrf.mxu0
    %v5115 = vadd.f32 %v4965, %v5114
    %v5116 = vpop.f32.mrf.mxu0
    %5117 = vdwg.mxu0
    %5118 = vmatprep.subr.mxu0 0.0
    %5119 = vmatpush1.msra.mxu0 0.0
    %5120 = vmatprep.subr.mxu0 0.0
    %5121 = vmatpush1.msra.mxu0 0.0
    %5122 = vmatprep.subr.mxu0 0.0
    %5123 = vmatpush1.msra.mxu0 0.0
    %5124 = vmatprep.subr.mxu0 0.0
    %5125 = vmatpush1.msra.mxu0 0.0
    %5126 = vmatprep.subr.mxu0 0.0
    %5127 = vmatpush1.msra.mxu0 0.0
    %5128 = vmatprep.subr.mxu0 0.0
    %5129 = vmatpush1.msra.mxu0 0.0
    %5130 = vmatprep.subr.mxu0 0.0
    %5131 = vmatpush1.msra.mxu0 0.0
    %5132 = vmatprep.subr.mxu0 0.0
    %5133 = vmatpush1.msra.mxu0 0.0
    %5134 = vmatprep.subr.mxu0 0.0
    %5135 = vmatpush1.msra.mxu0 0.0
    %5136 = vmatprep.subr.mxu0 0.0
    %5137 = vmatpush1.msra.mxu0 0.0
    %5138 = vmatprep.subr.mxu0 0.0
    %5139 = vmatpush1.msra.mxu0 0.0
    %5140 = vmatprep.subr.mxu0 0.0
    %5141 = vmatpush1.msra.mxu0 0.0
    %5142 = vmatprep.subr.mxu0 0.0
    %5143 = vmatpush1.msra.mxu0 %v4286
    %5144 = vmatprep.subr.mxu0 0.0
    %5145 = vmatpush1.msra.mxu0 %v4285
    %5146 = vmatprep.subr.mxu0 0.0
    %5147 = vmatpush1.msra.mxu0 %v4284
    %5148 = vmatprep.subr.mxu0 0.0
    %5149 = vmatpush1.msra.mxu0 %v4283
    %5150 = vmatprep.subr.mxu0 0.0
    %5151 = vmatpush2.msra.mxu0 0.0
    %5152 = vmatprep.subr.mxu0 0.0
    %5153 = vmatpush2.msra.mxu0 0.0
    %5154 = vmatprep.subr.mxu0 0.0
    %5155 = vmatpush2.msra.mxu0 0.0
    %5156 = vmatprep.subr.mxu0 0.0
    %5157 = vmatpush2.msra.mxu0 0.0
    %5158 = vmatprep.subr.mxu0 0.0
    %5159 = vmatpush2.msra.mxu0 0.0
    %5160 = vmatprep.subr.mxu0 0.0
    %5161 = vmatpush2.msra.mxu0 0.0
    %5162 = vmatprep.subr.mxu0 0.0
    %5163 = vmatpush2.msra.mxu0 0.0
    %5164 = vmatprep.subr.mxu0 0.0
    %5165 = vmatpush2.msra.mxu0 0.0
    %5166 = vmatprep.subr.mxu0 0.0
    %5167 = vmatpush2.msra.mxu0 0.0
    %5168 = vmatprep.subr.mxu0 0.0
    %5169 = vmatpush2.msra.mxu0 0.0
    %5170 = vmatprep.subr.mxu0 0.0
    %5171 = vmatpush2.msra.mxu0 0.0
    %5172 = vmatprep.subr.mxu0 0.0
    %5173 = vmatpush2.msra.mxu0 0.0
    %5174 = vmatprep.subr.mxu0 0.0
    %5175 = vmatpush2.msra.mxu0 0.0
    %5176 = vmatprep.subr.mxu0 0.0
    %5177 = vmatpush2.msra.mxu0 0.0
    %5178 = vmatprep.subr.mxu0 0.0
    %5179 = vmatpush2.msra.mxu0 0.0
    %5180 = vmatprep.subr.mxu0 0.0
    %5181 = vmatpush2.msra.mxu0 0.0
    %5182 = vmatprep.mubr.f32.mxu0 0.0
    %5183 = vmatmul.mubr.f32.gmra.mxu0 %v4368
    %v5184 = vpop.f32.mrf.mxu0
    %v5185 = vadd.f32 %v4969, %v5184
    %v5186 = vpop.f32.mrf.mxu0
    %5187 = vdwg.mxu0
    %5188 = vmatprep.subr.mxu0 0.0
    %5189 = vmatpush1.msra.mxu0 0.0
    %5190 = vmatprep.subr.mxu0 0.0
    %5191 = vmatpush1.msra.mxu0 0.0
    %5192 = vmatprep.subr.mxu0 0.0
    %5193 = vmatpush1.msra.mxu0 0.0
    %5194 = vmatprep.subr.mxu0 0.0
    %5195 = vmatpush1.msra.mxu0 0.0
    %5196 = vmatprep.subr.mxu0 0.0
    %5197 = vmatpush1.msra.mxu0 0.0
    %5198 = vmatprep.subr.mxu0 0.0
    %5199 = vmatpush1.msra.mxu0 0.0
    %5200 = vmatprep.subr.mxu0 0.0
    %5201 = vmatpush1.msra.mxu0 0.0
    %5202 = vmatprep.subr.mxu0 0.0
    %5203 = vmatpush1.msra.mxu0 0.0
    %5204 = vmatprep.subr.mxu0 0.0
    %5205 = vmatpush1.msra.mxu0 0.0
    %5206 = vmatprep.subr.mxu0 0.0
    %5207 = vmatpush1.msra.mxu0 0.0
    %5208 = vmatprep.subr.mxu0 0.0
    %5209 = vmatpush1.msra.mxu0 0.0
    %5210 = vmatprep.subr.mxu0 0.0
    %5211 = vmatpush1.msra.mxu0 0.0
    %5212 = vmatprep.subr.mxu0 0.0
    %5213 = vmatpush1.msra.mxu0 %v4290
    %5214 = vmatprep.subr.mxu0 0.0
    %5215 = vmatpush1.msra.mxu0 %v4289
    %5216 = vmatprep.subr.mxu0 0.0
    %5217 = vmatpush1.msra.mxu0 %v4288
    %5218 = vmatprep.subr.mxu0 0.0
    %5219 = vmatpush1.msra.mxu0 %v4287
    %5220 = vmatprep.subr.mxu0 0.0
    %5221 = vmatpush2.msra.mxu0 0.0
    %5222 = vmatprep.subr.mxu0 0.0
    %5223 = vmatpush2.msra.mxu0 0.0
    %5224 = vmatprep.subr.mxu0 0.0
    %5225 = vmatpush2.msra.mxu0 0.0
    %5226 = vmatprep.subr.mxu0 0.0
    %5227 = vmatpush2.msra.mxu0 0.0
    %5228 = vmatprep.subr.mxu0 0.0
    %5229 = vmatpush2.msra.mxu0 0.0
    %5230 = vmatprep.subr.mxu0 0.0
    %5231 = vmatpush2.msra.mxu0 0.0
    %5232 = vmatprep.subr.mxu0 0.0
    %5233 = vmatpush2.msra.mxu0 0.0
    %5234 = vmatprep.subr.mxu0 0.0
    %5235 = vmatpush2.msra.mxu0 0.0
    %5236 = vmatprep.subr.mxu0 0.0
    %5237 = vmatpush2.msra.mxu0 0.0
    %5238 = vmatprep.subr.mxu0 0.0
    %5239 = vmatpush2.msra.mxu0 0.0
    %5240 = vmatprep.subr.mxu0 0.0
    %5241 = vmatpush2.msra.mxu0 0.0
    %5242 = vmatprep.subr.mxu0 0.0
    %5243 = vmatpush2.msra.mxu0 0.0
    %5244 = vmatprep.subr.mxu0 0.0
    %5245 = vmatpush2.msra.mxu0 0.0
    %5246 = vmatprep.subr.mxu0 0.0
    %5247 = vmatpush2.msra.mxu0 0.0
    %5248 = vmatprep.subr.mxu0 0.0
    %5249 = vmatpush2.msra.mxu0 0.0
    %5250 = vmatprep.subr.mxu0 0.0
    %5251 = vmatpush2.msra.mxu0 0.0
    %5252 = vmatprep.mubr.f32.mxu0 0.0
    %5253 = vmatmul.mubr.f32.gmra.mxu0 %v4368
    %v5254 = vpop.f32.mrf.mxu0
    %v5255 = vadd.f32 %v4973, %v5254
    %v5256 = vpop.f32.mrf.mxu0
    %5257 = vdwg.mxu0
    %v5259 = vsel %vm1231, %v4437, 0
    %v5262 = vsel %vm1231, %v4741, 0
    %5264 = vmatprep.subr.mxu0 0.0
    %5265 = vmatpush1.xpose.msra.mxu0 0.0
    %5266 = vmatprep.subr.mxu0 0.0
    %5267 = vmatpush1.xpose.msra.mxu0 0.0
    %5268 = vmatprep.subr.mxu0 0.0
    %5269 = vmatpush1.xpose.msra.mxu0 0.0
    %5270 = vmatprep.subr.mxu0 0.0
    %5271 = vmatpush1.xpose.msra.mxu0 0.0
    %5272 = vmatprep.subr.mxu0 0.0
    %5273 = vmatpush1.xpose.msra.mxu0 0.0
    %5274 = vmatprep.subr.mxu0 0.0
    %5275 = vmatpush1.xpose.msra.mxu0 0.0
    %5276 = vmatprep.subr.mxu0 0.0
    %5277 = vmatpush1.xpose.msra.mxu0 0.0
    %5278 = vmatprep.subr.mxu0 0.0
    %5279 = vmatpush1.xpose.msra.mxu0 0.0
    %5280 = vmatprep.subr.mxu0 0.0
    %5281 = vmatpush1.xpose.msra.mxu0 0.0
    %5282 = vmatprep.subr.mxu0 0.0
    %5283 = vmatpush1.xpose.msra.mxu0 0.0
    %5284 = vmatprep.subr.mxu0 0.0
    %5285 = vmatpush1.xpose.msra.mxu0 0.0
    %5286 = vmatprep.subr.mxu0 0.0
    %5287 = vmatpush1.xpose.msra.mxu0 0.0
    %5288 = vmatprep.subr.mxu0 0.0
    %5289 = vmatpush1.xpose.msra.mxu0 0.0
    %5290 = vmatprep.subr.mxu0 0.0
    %5291 = vmatpush1.xpose.msra.mxu0 0.0
    %5292 = vmatprep.subr.mxu0 0.0
    %5293 = vmatpush1.xpose.msra.mxu0 0.0
    %5294 = vmatprep.subr.mxu0 0.0
    %5295 = vmatpush1.xpose.msra.mxu0 %v5262
    %5296 = vmatprep.subr.mxu0 0.0
    %5297 = vmatpush2.xpose.msra.mxu0 0.0
    %5298 = vmatprep.subr.mxu0 0.0
    %5299 = vmatpush2.xpose.msra.mxu0 0.0
    %5300 = vmatprep.subr.mxu0 0.0
    %5301 = vmatpush2.xpose.msra.mxu0 0.0
    %5302 = vmatprep.subr.mxu0 0.0
    %5303 = vmatpush2.xpose.msra.mxu0 0.0
    %5304 = vmatprep.subr.mxu0 0.0
    %5305 = vmatpush2.xpose.msra.mxu0 0.0
    %5306 = vmatprep.subr.mxu0 0.0
    %5307 = vmatpush2.xpose.msra.mxu0 0.0
    %5308 = vmatprep.subr.mxu0 0.0
    %5309 = vmatpush2.xpose.msra.mxu0 0.0
    %5310 = vmatprep.subr.mxu0 0.0
    %5311 = vmatpush2.xpose.msra.mxu0 0.0
    %5312 = vmatprep.subr.mxu0 0.0
    %5313 = vmatpush2.xpose.msra.mxu0 0.0
    %5314 = vmatprep.subr.mxu0 0.0
    %5315 = vmatpush2.xpose.msra.mxu0 0.0
    %5316 = vmatprep.subr.mxu0 0.0
    %5317 = vmatpush2.xpose.msra.mxu0 0.0
    %5318 = vmatprep.subr.mxu0 0.0
    %5319 = vmatpush2.xpose.msra.mxu0 0.0
    %5320 = vmatprep.subr.mxu0 0.0
    %5321 = vmatpush2.xpose.msra.mxu0 0.0
    %5322 = vmatprep.subr.mxu0 0.0
    %5323 = vmatpush2.xpose.msra.mxu0 0.0
    %5324 = vmatprep.subr.mxu0 0.0
    %5325 = vmatpush2.xpose.msra.mxu0 0.0
    %5326 = vmatprep.subr.mxu0 0.0
    %5327 = vmatpush2.xpose.msra.mxu0 0.0
    %5328 = vmatprep.mubr.f32.mxu0 0.0
    %5329 = vmatmul.mubr.f32.gmra.mxu0 %v5259
    %v5330 = vpop.f32.mrf.mxu0
    %v5331 = vadd.f32 0.0, %v5330
    %v5332 = vpop.f32.mrf.mxu0
    %5333 = vdwg.mxu0
    %v5335 = vsel %vm1231, %v4507, 0
    %v5338 = vsel %vm1231, %v4811, 0
    %5340 = vmatprep.subr.mxu0 0.0
    %5341 = vmatpush1.xpose.msra.mxu0 0.0
    %5342 = vmatprep.subr.mxu0 0.0
    %5343 = vmatpush1.xpose.msra.mxu0 0.0
    %5344 = vmatprep.subr.mxu0 0.0
    %5345 = vmatpush1.xpose.msra.mxu0 0.0
    %5346 = vmatprep.subr.mxu0 0.0
    %5347 = vmatpush1.xpose.msra.mxu0 0.0
    %5348 = vmatprep.subr.mxu0 0.0
    %5349 = vmatpush1.xpose.msra.mxu0 0.0
    %5350 = vmatprep.subr.mxu0 0.0
    %5351 = vmatpush1.xpose.msra.mxu0 0.0
    %5352 = vmatprep.subr.mxu0 0.0
    %5353 = vmatpush1.xpose.msra.mxu0 0.0
    %5354 = vmatprep.subr.mxu0 0.0
    %5355 = vmatpush1.xpose.msra.mxu0 0.0
    %5356 = vmatprep.subr.mxu0 0.0
    %5357 = vmatpush1.xpose.msra.mxu0 0.0
    %5358 = vmatprep.subr.mxu0 0.0
    %5359 = vmatpush1.xpose.msra.mxu0 0.0
    %5360 = vmatprep.subr.mxu0 0.0
    %5361 = vmatpush1.xpose.msra.mxu0 0.0
    %5362 = vmatprep.subr.mxu0 0.0
    %5363 = vmatpush1.xpose.msra.mxu0 0.0
    %5364 = vmatprep.subr.mxu0 0.0
    %5365 = vmatpush1.xpose.msra.mxu0 0.0
    %5366 = vmatprep.subr.mxu0 0.0
    %5367 = vmatpush1.xpose.msra.mxu0 0.0
    %5368 = vmatprep.subr.mxu0 0.0
    %5369 = vmatpush1.xpose.msra.mxu0 0.0
    %5370 = vmatprep.subr.mxu0 0.0
    %5371 = vmatpush1.xpose.msra.mxu0 %v5338
    %5372 = vmatprep.subr.mxu0 0.0
    %5373 = vmatpush2.xpose.msra.mxu0 0.0
    %5374 = vmatprep.subr.mxu0 0.0
    %5375 = vmatpush2.xpose.msra.mxu0 0.0
    %5376 = vmatprep.subr.mxu0 0.0
    %5377 = vmatpush2.xpose.msra.mxu0 0.0
    %5378 = vmatprep.subr.mxu0 0.0
    %5379 = vmatpush2.xpose.msra.mxu0 0.0
    %5380 = vmatprep.subr.mxu0 0.0
    %5381 = vmatpush2.xpose.msra.mxu0 0.0
    %5382 = vmatprep.subr.mxu0 0.0
    %5383 = vmatpush2.xpose.msra.mxu0 0.0
    %5384 = vmatprep.subr.mxu0 0.0
    %5385 = vmatpush2.xpose.msra.mxu0 0.0
    %5386 = vmatprep.subr.mxu0 0.0
    %5387 = vmatpush2.xpose.msra.mxu0 0.0
    %5388 = vmatprep.subr.mxu0 0.0
    %5389 = vmatpush2.xpose.msra.mxu0 0.0
    %5390 = vmatprep.subr.mxu0 0.0
    %5391 = vmatpush2.xpose.msra.mxu0 0.0
    %5392 = vmatprep.subr.mxu0 0.0
    %5393 = vmatpush2.xpose.msra.mxu0 0.0
    %5394 = vmatprep.subr.mxu0 0.0
    %5395 = vmatpush2.xpose.msra.mxu0 0.0
    %5396 = vmatprep.subr.mxu0 0.0
    %5397 = vmatpush2.xpose.msra.mxu0 0.0
    %5398 = vmatprep.subr.mxu0 0.0
    %5399 = vmatpush2.xpose.msra.mxu0 0.0
    %5400 = vmatprep.subr.mxu0 0.0
    %5401 = vmatpush2.xpose.msra.mxu0 0.0
    %5402 = vmatprep.subr.mxu0 0.0
    %5403 = vmatpush2.xpose.msra.mxu0 0.0
    %5404 = vmatprep.mubr.f32.mxu0 0.0
    %5405 = vmatmul.mubr.f32.gmra.mxu0 %v5335
    %v5406 = vpop.f32.mrf.mxu0
    %v5407 = vadd.f32 0.0, %v5406
    %v5408 = vpop.f32.mrf.mxu0
    %5409 = vdwg.mxu0
    %v5411 = vsel %vm1231, %v4577, 0
    %v5414 = vsel %vm1231, %v4881, 0
    %5416 = vmatprep.subr.mxu0 0.0
    %5417 = vmatpush1.xpose.msra.mxu0 0.0
    %5418 = vmatprep.subr.mxu0 0.0
    %5419 = vmatpush1.xpose.msra.mxu0 0.0
    %5420 = vmatprep.subr.mxu0 0.0
    %5421 = vmatpush1.xpose.msra.mxu0 0.0
    %5422 = vmatprep.subr.mxu0 0.0
    %5423 = vmatpush1.xpose.msra.mxu0 0.0
    %5424 = vmatprep.subr.mxu0 0.0
    %5425 = vmatpush1.xpose.msra.mxu0 0.0
    %5426 = vmatprep.subr.mxu0 0.0
    %5427 = vmatpush1.xpose.msra.mxu0 0.0
    %5428 = vmatprep.subr.mxu0 0.0
    %5429 = vmatpush1.xpose.msra.mxu0 0.0
    %5430 = vmatprep.subr.mxu0 0.0
    %5431 = vmatpush1.xpose.msra.mxu0 0.0
    %5432 = vmatprep.subr.mxu0 0.0
    %5433 = vmatpush1.xpose.msra.mxu0 0.0
    %5434 = vmatprep.subr.mxu0 0.0
    %5435 = vmatpush1.xpose.msra.mxu0 0.0
    %5436 = vmatprep.subr.mxu0 0.0
    %5437 = vmatpush1.xpose.msra.mxu0 0.0
    %5438 = vmatprep.subr.mxu0 0.0
    %5439 = vmatpush1.xpose.msra.mxu0 0.0
    %5440 = vmatprep.subr.mxu0 0.0
    %5441 = vmatpush1.xpose.msra.mxu0 0.0
    %5442 = vmatprep.subr.mxu0 0.0
    %5443 = vmatpush1.xpose.msra.mxu0 0.0
    %5444 = vmatprep.subr.mxu0 0.0
    %5445 = vmatpush1.xpose.msra.mxu0 0.0
    %5446 = vmatprep.subr.mxu0 0.0
    %5447 = vmatpush1.xpose.msra.mxu0 %v5414
    %5448 = vmatprep.subr.mxu0 0.0
    %5449 = vmatpush2.xpose.msra.mxu0 0.0
    %5450 = vmatprep.subr.mxu0 0.0
    %5451 = vmatpush2.xpose.msra.mxu0 0.0
    %5452 = vmatprep.subr.mxu0 0.0
    %5453 = vmatpush2.xpose.msra.mxu0 0.0
    %5454 = vmatprep.subr.mxu0 0.0
    %5455 = vmatpush2.xpose.msra.mxu0 0.0
    %5456 = vmatprep.subr.mxu0 0.0
    %5457 = vmatpush2.xpose.msra.mxu0 0.0
    %5458 = vmatprep.subr.mxu0 0.0
    %5459 = vmatpush2.xpose.msra.mxu0 0.0
    %5460 = vmatprep.subr.mxu0 0.0
    %5461 = vmatpush2.xpose.msra.mxu0 0.0
    %5462 = vmatprep.subr.mxu0 0.0
    %5463 = vmatpush2.xpose.msra.mxu0 0.0
    %5464 = vmatprep.subr.mxu0 0.0
    %5465 = vmatpush2.xpose.msra.mxu0 0.0
    %5466 = vmatprep.subr.mxu0 0.0
    %5467 = vmatpush2.xpose.msra.mxu0 0.0
    %5468 = vmatprep.subr.mxu0 0.0
    %5469 = vmatpush2.xpose.msra.mxu0 0.0
    %5470 = vmatprep.subr.mxu0 0.0
    %5471 = vmatpush2.xpose.msra.mxu0 0.0
    %5472 = vmatprep.subr.mxu0 0.0
    %5473 = vmatpush2.xpose.msra.mxu0 0.0
    %5474 = vmatprep.subr.mxu0 0.0
    %5475 = vmatpush2.xpose.msra.mxu0 0.0
    %5476 = vmatprep.subr.mxu0 0.0
    %5477 = vmatpush2.xpose.msra.mxu0 0.0
    %5478 = vmatprep.subr.mxu0 0.0
    %5479 = vmatpush2.xpose.msra.mxu0 0.0
    %5480 = vmatprep.mubr.f32.mxu0 0.0
    %5481 = vmatmul.mubr.f32.gmra.mxu0 %v5411
    %v5482 = vpop.f32.mrf.mxu0
    %v5483 = vadd.f32 0.0, %v5482
    %v5484 = vpop.f32.mrf.mxu0
    %5485 = vdwg.mxu0
    %v5487 = vsel %vm1231, %v4647, 0
    %v5490 = vsel %vm1231, %v4951, 0
    %5492 = vmatprep.subr.mxu0 0.0
    %5493 = vmatpush1.xpose.msra.mxu0 0.0
    %5494 = vmatprep.subr.mxu0 0.0
    %5495 = vmatpush1.xpose.msra.mxu0 0.0
    %5496 = vmatprep.subr.mxu0 0.0
    %5497 = vmatpush1.xpose.msra.mxu0 0.0
    %5498 = vmatprep.subr.mxu0 0.0
    %5499 = vmatpush1.xpose.msra.mxu0 0.0
    %5500 = vmatprep.subr.mxu0 0.0
    %5501 = vmatpush1.xpose.msra.mxu0 0.0
    %5502 = vmatprep.subr.mxu0 0.0
    %5503 = vmatpush1.xpose.msra.mxu0 0.0
    %5504 = vmatprep.subr.mxu0 0.0
    %5505 = vmatpush1.xpose.msra.mxu0 0.0
    %5506 = vmatprep.subr.mxu0 0.0
    %5507 = vmatpush1.xpose.msra.mxu0 0.0
    %5508 = vmatprep.subr.mxu0 0.0
    %5509 = vmatpush1.xpose.msra.mxu0 0.0
    %5510 = vmatprep.subr.mxu0 0.0
    %5511 = vmatpush1.xpose.msra.mxu0 0.0
    %5512 = vmatprep.subr.mxu0 0.0
    %5513 = vmatpush1.xpose.msra.mxu0 0.0
    %5514 = vmatprep.subr.mxu0 0.0
    %5515 = vmatpush1.xpose.msra.mxu0 0.0
    %5516 = vmatprep.subr.mxu0 0.0
    %5517 = vmatpush1.xpose.msra.mxu0 0.0
    %5518 = vmatprep.subr.mxu0 0.0
    %5519 = vmatpush1.xpose.msra.mxu0 0.0
    %5520 = vmatprep.subr.mxu0 0.0
    %5521 = vmatpush1.xpose.msra.mxu0 0.0
    %5522 = vmatprep.subr.mxu0 0.0
    %5523 = vmatpush1.xpose.msra.mxu0 %v5490
    %5524 = vmatprep.subr.mxu0 0.0
    %5525 = vmatpush2.xpose.msra.mxu0 0.0
    %5526 = vmatprep.subr.mxu0 0.0
    %5527 = vmatpush2.xpose.msra.mxu0 0.0
    %5528 = vmatprep.subr.mxu0 0.0
    %5529 = vmatpush2.xpose.msra.mxu0 0.0
    %5530 = vmatprep.subr.mxu0 0.0
    %5531 = vmatpush2.xpose.msra.mxu0 0.0
    %5532 = vmatprep.subr.mxu0 0.0
    %5533 = vmatpush2.xpose.msra.mxu0 0.0
    %5534 = vmatprep.subr.mxu0 0.0
    %5535 = vmatpush2.xpose.msra.mxu0 0.0
    %5536 = vmatprep.subr.mxu0 0.0
    %5537 = vmatpush2.xpose.msra.mxu0 0.0
    %5538 = vmatprep.subr.mxu0 0.0
    %5539 = vmatpush2.xpose.msra.mxu0 0.0
    %5540 = vmatprep.subr.mxu0 0.0
    %5541 = vmatpush2.xpose.msra.mxu0 0.0
    %5542 = vmatprep.subr.mxu0 0.0
    %5543 = vmatpush2.xpose.msra.mxu0 0.0
    %5544 = vmatprep.subr.mxu0 0.0
    %5545 = vmatpush2.xpose.msra.mxu0 0.0
    %5546 = vmatprep.subr.mxu0 0.0
    %5547 = vmatpush2.xpose.msra.mxu0 0.0
    %5548 = vmatprep.subr.mxu0 0.0
    %5549 = vmatpush2.xpose.msra.mxu0 0.0
    %5550 = vmatprep.subr.mxu0 0.0
    %5551 = vmatpush2.xpose.msra.mxu0 0.0
    %5552 = vmatprep.subr.mxu0 0.0
    %5553 = vmatpush2.xpose.msra.mxu0 0.0
    %5554 = vmatprep.subr.mxu0 0.0
    %5555 = vmatpush2.xpose.msra.mxu0 0.0
    %5556 = vmatprep.mubr.f32.mxu0 0.0
    %5557 = vmatmul.mubr.f32.gmra.mxu0 %v5487
    %v5558 = vpop.f32.mrf.mxu0
    %v5559 = vadd.f32 0.0, %v5558
    %v5560 = vpop.f32.mrf.mxu0
    %5561 = vdwg.mxu0
    %v5562 = vmul.f32 %v5331, 0.35355338
    %v5563 = vmul.f32 %v5407, 0.35355338
    %v5564 = vmul.f32 %v5483, 0.35355338
    %v5565 = vmul.f32 %v5559, 0.35355338
    %v5566 = vadd.f32 %v5562, %v187
    %v5567 = vadd.f32 %v5563, %v187
    %v5568 = vadd.f32 %v5564, %v187
    %v5569 = vadd.f32 %v5565, %v187
    %v5570 = vsel %vm1231, %v5566, -inf
    %5571 = vmax.xlane.f32.xlu0 %v5570
    %v5572 = vpop.xlane.xlu0 %5571
    %v5573 = vsel %vm1231, %v5567, -inf
    %5574 = vmax.xlane.f32.xlu0 %v5573
    %v5575 = vpop.xlane.xlu0 %5574
    %v5576 = vsel %vm1231, %v5568, -inf
    %5577 = vmax.xlane.f32.xlu0 %v5576
    %v5578 = vpop.xlane.xlu0 %5577
    %v5579 = vsel %vm1231, %v5569, -inf
    %5580 = vmax.xlane.f32.xlu0 %v5579
    %v5581 = vpop.xlane.xlu0 %5580
    %v5582 = vsub.f32 %v5566, %v5572
    %v5583 = vsub.f32 %v5567, %v5575
    %v5584 = vsub.f32 %v5568, %v5578
    %v5585 = vsub.f32 %v5569, %v5581
    %v5586 = vmul.f32 %v5582, 1.442695
    %v5587 = vpow.pop %v5586
    %v5588 = vmul.f32 %v5583, 1.442695
    %v5589 = vpow.pop %v5588
    %v5590 = vmul.f32 %v5584, 1.442695
    %v5591 = vpow.pop %v5590
    %v5592 = vmul.f32 %v5585, 1.442695
    %v5593 = vpow.pop %v5592
    %v5594 = vsel %vm1231, %v5587, 0.0
    %5595 = vadd.xlane.f32.xlu0 %v5594
    %v5596 = vpop.xlane.xlu0 %5595
    %v5597 = vsel %vm1231, %v5589, 0.0
    %5598 = vadd.xlane.f32.xlu0 %v5597
    %v5599 = vpop.xlane.xlu0 %5598
    %v5600 = vsel %vm1231, %v5591, 0.0
    %5601 = vadd.xlane.f32.xlu0 %v5600
    %v5602 = vpop.xlane.xlu0 %5601
    %v5603 = vsel %vm1231, %v5593, 0.0
    %5604 = vadd.xlane.f32.xlu0 %v5603
    %v5605 = vpop.xlane.xlu0 %5604
    %v5606 = vrcp.pop %v5596
    %v5607 = vmul.f32 %v5587, %v5606
    %v5608 = vrcp.pop %v5599
    %v5609 = vmul.f32 %v5589, %v5608
    %v5610 = vrcp.pop %v5602
    %v5611 = vmul.f32 %v5591, %v5610
    %v5612 = vrcp.pop %v5605
    %v5613 = vmul.f32 %v5593, %v5612
    %v5615 = vsel %vm1231, %v5607, 0
    %5617 = vmatprep.subr.mxu0 0.0
    %5618 = vmatpush1.msra.mxu0 0.0
    %5619 = vmatprep.subr.mxu0 0.0
    %5620 = vmatpush1.msra.mxu0 0.0
    %5621 = vmatprep.subr.mxu0 0.0
    %5622 = vmatpush1.msra.mxu0 0.0
    %5623 = vmatprep.subr.mxu0 0.0
    %5624 = vmatpush1.msra.mxu0 0.0
    %5625 = vmatprep.subr.mxu0 0.0
    %5626 = vmatpush1.msra.mxu0 0.0
    %5627 = vmatprep.subr.mxu0 0.0
    %5628 = vmatpush1.msra.mxu0 0.0
    %5629 = vmatprep.subr.mxu0 0.0
    %5630 = vmatpush1.msra.mxu0 0.0
    %5631 = vmatprep.subr.mxu0 0.0
    %5632 = vmatpush1.msra.mxu0 0.0
    %5633 = vmatprep.subr.mxu0 0.0
    %5634 = vmatpush1.msra.mxu0 0.0
    %5635 = vmatprep.subr.mxu0 0.0
    %5636 = vmatpush1.msra.mxu0 0.0
    %5637 = vmatprep.subr.mxu0 0.0
    %5638 = vmatpush1.msra.mxu0 0.0
    %5639 = vmatprep.subr.mxu0 0.0
    %5640 = vmatpush1.msra.mxu0 0.0
    %5641 = vmatprep.subr.mxu0 0.0
    %5642 = vmatpush1.msra.mxu0 0.0
    %5643 = vmatprep.subr.mxu0 0.0
    %5644 = vmatpush1.msra.mxu0 0.0
    %5645 = vmatprep.subr.mxu0 0.0
    %5646 = vmatpush1.msra.mxu0 0.0
    %5647 = vmatprep.subr.mxu0 0.0
    %5648 = vmatpush1.msra.mxu0 %v5045
    %5649 = vmatprep.subr.mxu0 0.0
    %5650 = vmatpush2.msra.mxu0 0.0
    %5651 = vmatprep.subr.mxu0 0.0
    %5652 = vmatpush2.msra.mxu0 0.0
    %5653 = vmatprep.subr.mxu0 0.0
    %5654 = vmatpush2.msra.mxu0 0.0
    %5655 = vmatprep.subr.mxu0 0.0
    %5656 = vmatpush2.msra.mxu0 0.0
    %5657 = vmatprep.subr.mxu0 0.0
    %5658 = vmatpush2.msra.mxu0 0.0
    %5659 = vmatprep.subr.mxu0 0.0
    %5660 = vmatpush2.msra.mxu0 0.0
    %5661 = vmatprep.subr.mxu0 0.0
    %5662 = vmatpush2.msra.mxu0 0.0
    %5663 = vmatprep.subr.mxu0 0.0
    %5664 = vmatpush2.msra.mxu0 0.0
    %5665 = vmatprep.subr.mxu0 0.0
    %5666 = vmatpush2.msra.mxu0 0.0
    %5667 = vmatprep.subr.mxu0 0.0
    %5668 = vmatpush2.msra.mxu0 0.0
    %5669 = vmatprep.subr.mxu0 0.0
    %5670 = vmatpush2.msra.mxu0 0.0
    %5671 = vmatprep.subr.mxu0 0.0
    %5672 = vmatpush2.msra.mxu0 0.0
    %5673 = vmatprep.subr.mxu0 0.0
    %5674 = vmatpush2.msra.mxu0 0.0
    %5675 = vmatprep.subr.mxu0 0.0
    %5676 = vmatpush2.msra.mxu0 0.0
    %5677 = vmatprep.subr.mxu0 0.0
    %5678 = vmatpush2.msra.mxu0 0.0
    %5679 = vmatprep.subr.mxu0 0.0
    %5680 = vmatpush2.msra.mxu0 0.0
    %5681 = vmatprep.mubr.f32.mxu0 0.0
    %5682 = vmatmul.mubr.f32.gmra.mxu0 %v5615
    %v5683 = vpop.f32.mrf.mxu0
    %v5684 = vadd.f32 0.0, %v5683
    %v5685 = vpop.f32.mrf.mxu0
    %5686 = vdwg.mxu0
    %v5688 = vsel %vm1231, %v5609, 0
    %5690 = vmatprep.subr.mxu0 0.0
    %5691 = vmatpush1.msra.mxu0 0.0
    %5692 = vmatprep.subr.mxu0 0.0
    %5693 = vmatpush1.msra.mxu0 0.0
    %5694 = vmatprep.subr.mxu0 0.0
    %5695 = vmatpush1.msra.mxu0 0.0
    %5696 = vmatprep.subr.mxu0 0.0
    %5697 = vmatpush1.msra.mxu0 0.0
    %5698 = vmatprep.subr.mxu0 0.0
    %5699 = vmatpush1.msra.mxu0 0.0
    %5700 = vmatprep.subr.mxu0 0.0
    %5701 = vmatpush1.msra.mxu0 0.0
    %5702 = vmatprep.subr.mxu0 0.0
    %5703 = vmatpush1.msra.mxu0 0.0
    %5704 = vmatprep.subr.mxu0 0.0
    %5705 = vmatpush1.msra.mxu0 0.0
    %5706 = vmatprep.subr.mxu0 0.0
    %5707 = vmatpush1.msra.mxu0 0.0
    %5708 = vmatprep.subr.mxu0 0.0
    %5709 = vmatpush1.msra.mxu0 0.0
    %5710 = vmatprep.subr.mxu0 0.0
    %5711 = vmatpush1.msra.mxu0 0.0
    %5712 = vmatprep.subr.mxu0 0.0
    %5713 = vmatpush1.msra.mxu0 0.0
    %5714 = vmatprep.subr.mxu0 0.0
    %5715 = vmatpush1.msra.mxu0 0.0
    %5716 = vmatprep.subr.mxu0 0.0
    %5717 = vmatpush1.msra.mxu0 0.0
    %5718 = vmatprep.subr.mxu0 0.0
    %5719 = vmatpush1.msra.mxu0 0.0
    %5720 = vmatprep.subr.mxu0 0.0
    %5721 = vmatpush1.msra.mxu0 %v5115
    %5722 = vmatprep.subr.mxu0 0.0
    %5723 = vmatpush2.msra.mxu0 0.0
    %5724 = vmatprep.subr.mxu0 0.0
    %5725 = vmatpush2.msra.mxu0 0.0
    %5726 = vmatprep.subr.mxu0 0.0
    %5727 = vmatpush2.msra.mxu0 0.0
    %5728 = vmatprep.subr.mxu0 0.0
    %5729 = vmatpush2.msra.mxu0 0.0
    %5730 = vmatprep.subr.mxu0 0.0
    %5731 = vmatpush2.msra.mxu0 0.0
    %5732 = vmatprep.subr.mxu0 0.0
    %5733 = vmatpush2.msra.mxu0 0.0
    %5734 = vmatprep.subr.mxu0 0.0
    %5735 = vmatpush2.msra.mxu0 0.0
    %5736 = vmatprep.subr.mxu0 0.0
    %5737 = vmatpush2.msra.mxu0 0.0
    %5738 = vmatprep.subr.mxu0 0.0
    %5739 = vmatpush2.msra.mxu0 0.0
    %5740 = vmatprep.subr.mxu0 0.0
    %5741 = vmatpush2.msra.mxu0 0.0
    %5742 = vmatprep.subr.mxu0 0.0
    %5743 = vmatpush2.msra.mxu0 0.0
    %5744 = vmatprep.subr.mxu0 0.0
    %5745 = vmatpush2.msra.mxu0 0.0
    %5746 = vmatprep.subr.mxu0 0.0
    %5747 = vmatpush2.msra.mxu0 0.0
    %5748 = vmatprep.subr.mxu0 0.0
    %5749 = vmatpush2.msra.mxu0 0.0
    %5750 = vmatprep.subr.mxu0 0.0
    %5751 = vmatpush2.msra.mxu0 0.0
    %5752 = vmatprep.subr.mxu0 0.0
    %5753 = vmatpush2.msra.mxu0 0.0
    %5754 = vmatprep.mubr.f32.mxu0 0.0
    %5755 = vmatmul.mubr.f32.gmra.mxu0 %v5688
    %v5756 = vpop.f32.mrf.mxu0
    %v5757 = vadd.f32 0.0, %v5756
    %v5758 = vpop.f32.mrf.mxu0
    %5759 = vdwg.mxu0
    %v5761 = vsel %vm1231, %v5611, 0
    %5763 = vmatprep.subr.mxu0 0.0
    %5764 = vmatpush1.msra.mxu0 0.0
    %5765 = vmatprep.subr.mxu0 0.0
    %5766 = vmatpush1.msra.mxu0 0.0
    %5767 = vmatprep.subr.mxu0 0.0
    %5768 = vmatpush1.msra.mxu0 0.0
    %5769 = vmatprep.subr.mxu0 0.0
    %5770 = vmatpush1.msra.mxu0 0.0
    %5771 = vmatprep.subr.mxu0 0.0
    %5772 = vmatpush1.msra.mxu0 0.0
    %5773 = vmatprep.subr.mxu0 0.0
    %5774 = vmatpush1.msra.mxu0 0.0
    %5775 = vmatprep.subr.mxu0 0.0
    %5776 = vmatpush1.msra.mxu0 0.0
    %5777 = vmatprep.subr.mxu0 0.0
    %5778 = vmatpush1.msra.mxu0 0.0
    %5779 = vmatprep.subr.mxu0 0.0
    %5780 = vmatpush1.msra.mxu0 0.0
    %5781 = vmatprep.subr.mxu0 0.0
    %5782 = vmatpush1.msra.mxu0 0.0
    %5783 = vmatprep.subr.mxu0 0.0
    %5784 = vmatpush1.msra.mxu0 0.0
    %5785 = vmatprep.subr.mxu0 0.0
    %5786 = vmatpush1.msra.mxu0 0.0
    %5787 = vmatprep.subr.mxu0 0.0
    %5788 = vmatpush1.msra.mxu0 0.0
    %5789 = vmatprep.subr.mxu0 0.0
    %5790 = vmatpush1.msra.mxu0 0.0
    %5791 = vmatprep.subr.mxu0 0.0
    %5792 = vmatpush1.msra.mxu0 0.0
    %5793 = vmatprep.subr.mxu0 0.0
    %5794 = vmatpush1.msra.mxu0 %v5185
    %5795 = vmatprep.subr.mxu0 0.0
    %5796 = vmatpush2.msra.mxu0 0.0
    %5797 = vmatprep.subr.mxu0 0.0
    %5798 = vmatpush2.msra.mxu0 0.0
    %5799 = vmatprep.subr.mxu0 0.0
    %5800 = vmatpush2.msra.mxu0 0.0
    %5801 = vmatprep.subr.mxu0 0.0
    %5802 = vmatpush2.msra.mxu0 0.0
    %5803 = vmatprep.subr.mxu0 0.0
    %5804 = vmatpush2.msra.mxu0 0.0
    %5805 = vmatprep.subr.mxu0 0.0
    %5806 = vmatpush2.msra.mxu0 0.0
    %5807 = vmatprep.subr.mxu0 0.0
    %5808 = vmatpush2.msra.mxu0 0.0
    %5809 = vmatprep.subr.mxu0 0.0
    %5810 = vmatpush2.msra.mxu0 0.0
    %5811 = vmatprep.subr.mxu0 0.0
    %5812 = vmatpush2.msra.mxu0 0.0
    %5813 = vmatprep.subr.mxu0 0.0
    %5814 = vmatpush2.msra.mxu0 0.0
    %5815 = vmatprep.subr.mxu0 0.0
    %5816 = vmatpush2.msra.mxu0 0.0
    %5817 = vmatprep.subr.mxu0 0.0
    %5818 = vmatpush2.msra.mxu0 0.0
    %5819 = vmatprep.subr.mxu0 0.0
    %5820 = vmatpush2.msra.mxu0 0.0
    %5821 = vmatprep.subr.mxu0 0.0
    %5822 = vmatpush2.msra.mxu0 0.0
    %5823 = vmatprep.subr.mxu0 0.0
    %5824 = vmatpush2.msra.mxu0 0.0
    %5825 = vmatprep.subr.mxu0 0.0
    %5826 = vmatpush2.msra.mxu0 0.0
    %5827 = vmatprep.mubr.f32.mxu0 0.0
    %5828 = vmatmul.mubr.f32.gmra.mxu0 %v5761
    %v5829 = vpop.f32.mrf.mxu0
    %v5830 = vadd.f32 0.0, %v5829
    %v5831 = vpop.f32.mrf.mxu0
    %5832 = vdwg.mxu0
    %v5834 = vsel %vm1231, %v5613, 0
    %5836 = vmatprep.subr.mxu0 0.0
    %5837 = vmatpush1.msra.mxu0 0.0
    %5838 = vmatprep.subr.mxu0 0.0
    %5839 = vmatpush1.msra.mxu0 0.0
    %5840 = vmatprep.subr.mxu0 0.0
    %5841 = vmatpush1.msra.mxu0 0.0
    %5842 = vmatprep.subr.mxu0 0.0
    %5843 = vmatpush1.msra.mxu0 0.0
    %5844 = vmatprep.subr.mxu0 0.0
    %5845 = vmatpush1.msra.mxu0 0.0
    %5846 = vmatprep.subr.mxu0 0.0
    %5847 = vmatpush1.msra.mxu0 0.0
    %5848 = vmatprep.subr.mxu0 0.0
    %5849 = vmatpush1.msra.mxu0 0.0
    %5850 = vmatprep.subr.mxu0 0.0
    %5851 = vmatpush1.msra.mxu0 0.0
    %5852 = vmatprep.subr.mxu0 0.0
    %5853 = vmatpush1.msra.mxu0 0.0
    %5854 = vmatprep.subr.mxu0 0.0
    %5855 = vmatpush1.msra.mxu0 0.0
    %5856 = vmatprep.subr.mxu0 0.0
    %5857 = vmatpush1.msra.mxu0 0.0
    %5858 = vmatprep.subr.mxu0 0.0
    %5859 = vmatpush1.msra.mxu0 0.0
    %5860 = vmatprep.subr.mxu0 0.0
    %5861 = vmatpush1.msra.mxu0 0.0
    %5862 = vmatprep.subr.mxu0 0.0
    %5863 = vmatpush1.msra.mxu0 0.0
    %5864 = vmatprep.subr.mxu0 0.0
    %5865 = vmatpush1.msra.mxu0 0.0
    %5866 = vmatprep.subr.mxu0 0.0
    %5867 = vmatpush1.msra.mxu0 %v5255
    %5868 = vmatprep.subr.mxu0 0.0
    %5869 = vmatpush2.msra.mxu0 0.0
    %5870 = vmatprep.subr.mxu0 0.0
    %5871 = vmatpush2.msra.mxu0 0.0
    %5872 = vmatprep.subr.mxu0 0.0
    %5873 = vmatpush2.msra.mxu0 0.0
    %5874 = vmatprep.subr.mxu0 0.0
    %5875 = vmatpush2.msra.mxu0 0.0
    %5876 = vmatprep.subr.mxu0 0.0
    %5877 = vmatpush2.msra.mxu0 0.0
    %5878 = vmatprep.subr.mxu0 0.0
    %5879 = vmatpush2.msra.mxu0 0.0
    %5880 = vmatprep.subr.mxu0 0.0
    %5881 = vmatpush2.msra.mxu0 0.0
    %5882 = vmatprep.subr.mxu0 0.0
    %5883 = vmatpush2.msra.mxu0 0.0
    %5884 = vmatprep.subr.mxu0 0.0
    %5885 = vmatpush2.msra.mxu0 0.0
    %5886 = vmatprep.subr.mxu0 0.0
    %5887 = vmatpush2.msra.mxu0 0.0
    %5888 = vmatprep.subr.mxu0 0.0
    %5889 = vmatpush2.msra.mxu0 0.0
    %5890 = vmatprep.subr.mxu0 0.0
    %5891 = vmatpush2.msra.mxu0 0.0
    %5892 = vmatprep.subr.mxu0 0.0
    %5893 = vmatpush2.msra.mxu0 0.0
    %5894 = vmatprep.subr.mxu0 0.0
    %5895 = vmatpush2.msra.mxu0 0.0
    %5896 = vmatprep.subr.mxu0 0.0
    %5897 = vmatpush2.msra.mxu0 0.0
    %5898 = vmatprep.subr.mxu0 0.0
    %5899 = vmatpush2.msra.mxu0 0.0
    %5900 = vmatprep.mubr.f32.mxu0 0.0
    %5901 = vmatmul.mubr.f32.gmra.mxu0 %v5834
    %v5902 = vpop.f32.mrf.mxu0
    %v5903 = vadd.f32 0.0, %v5902
    %v5904 = vpop.f32.mrf.mxu0
    %5905 = vdwg.mxu0
    %v5907 = vsel %vm1231, %v5684, 0
    %5909 = vmatprep.subr.mxu0 0.0
    %5910 = vmatpush1.msra.mxu0 0.0
    %5911 = vmatprep.subr.mxu0 0.0
    %5912 = vmatpush1.msra.mxu0 0.0
    %5913 = vmatprep.subr.mxu0 0.0
    %5914 = vmatpush1.msra.mxu0 0.0
    %5915 = vmatprep.subr.mxu0 0.0
    %5916 = vmatpush1.msra.mxu0 0.0
    %5917 = vmatprep.subr.mxu0 0.0
    %5918 = vmatpush1.msra.mxu0 0.0
    %5919 = vmatprep.subr.mxu0 0.0
    %5920 = vmatpush1.msra.mxu0 0.0
    %5921 = vmatprep.subr.mxu0 0.0
    %5922 = vmatpush1.msra.mxu0 0.0
    %5923 = vmatprep.subr.mxu0 0.0
    %5924 = vmatpush1.msra.mxu0 0.0
    %5925 = vmatprep.subr.mxu0 0.0
    %5926 = vmatpush1.msra.mxu0 0.0
    %5927 = vmatprep.subr.mxu0 0.0
    %5928 = vmatpush1.msra.mxu0 0.0
    %5929 = vmatprep.subr.mxu0 0.0
    %5930 = vmatpush1.msra.mxu0 0.0
    %5931 = vmatprep.subr.mxu0 0.0
    %5932 = vmatpush1.msra.mxu0 0.0
    %5933 = vmatprep.subr.mxu0 0.0
    %5934 = vmatpush1.msra.mxu0 0.0
    %5935 = vmatprep.subr.mxu0 0.0
    %5936 = vmatpush1.msra.mxu0 0.0
    %5937 = vmatprep.subr.mxu0 0.0
    %5938 = vmatpush1.msra.mxu0 0.0
    %5939 = vmatprep.subr.mxu0 0.0
    %5940 = vmatpush1.msra.mxu0 %v4297
    %5941 = vmatprep.subr.mxu0 0.0
    %5942 = vmatpush2.msra.mxu0 0.0
    %5943 = vmatprep.subr.mxu0 0.0
    %5944 = vmatpush2.msra.mxu0 0.0
    %5945 = vmatprep.subr.mxu0 0.0
    %5946 = vmatpush2.msra.mxu0 0.0
    %5947 = vmatprep.subr.mxu0 0.0
    %5948 = vmatpush2.msra.mxu0 0.0
    %5949 = vmatprep.subr.mxu0 0.0
    %5950 = vmatpush2.msra.mxu0 0.0
    %5951 = vmatprep.subr.mxu0 0.0
    %5952 = vmatpush2.msra.mxu0 0.0
    %5953 = vmatprep.subr.mxu0 0.0
    %5954 = vmatpush2.msra.mxu0 0.0
    %5955 = vmatprep.subr.mxu0 0.0
    %5956 = vmatpush2.msra.mxu0 0.0
    %5957 = vmatprep.subr.mxu0 0.0
    %5958 = vmatpush2.msra.mxu0 0.0
    %5959 = vmatprep.subr.mxu0 0.0
    %5960 = vmatpush2.msra.mxu0 0.0
    %5961 = vmatprep.subr.mxu0 0.0
    %5962 = vmatpush2.msra.mxu0 0.0
    %5963 = vmatprep.subr.mxu0 0.0
    %5964 = vmatpush2.msra.mxu0 0.0
    %5965 = vmatprep.subr.mxu0 0.0
    %5966 = vmatpush2.msra.mxu0 0.0
    %5967 = vmatprep.subr.mxu0 0.0
    %5968 = vmatpush2.msra.mxu0 0.0
    %5969 = vmatprep.subr.mxu0 0.0
    %5970 = vmatpush2.msra.mxu0 0.0
    %5971 = vmatprep.subr.mxu0 0.0
    %5972 = vmatpush2.msra.mxu0 0.0
    %5973 = vmatprep.mubr.f32.mxu0 0.0
    %5974 = vmatmul.mubr.f32.gmra.mxu0 %v5907
    %v5975 = vpop.f32.mrf.mxu0
    %v5976 = vadd.f32 0.0, %v5975
    %v5977 = vpop.f32.mrf.mxu0
    %5978 = vdwg.mxu0
    %v5980 = vsel %vm1231, %v5757, 0
    %5982 = vmatprep.subr.mxu0 0.0
    %5983 = vmatpush1.msra.mxu0 0.0
    %5984 = vmatprep.subr.mxu0 0.0
    %5985 = vmatpush1.msra.mxu0 0.0
    %5986 = vmatprep.subr.mxu0 0.0
    %5987 = vmatpush1.msra.mxu0 0.0
    %5988 = vmatprep.subr.mxu0 0.0
    %5989 = vmatpush1.msra.mxu0 0.0
    %5990 = vmatprep.subr.mxu0 0.0
    %5991 = vmatpush1.msra.mxu0 0.0
    %5992 = vmatprep.subr.mxu0 0.0
    %5993 = vmatpush1.msra.mxu0 0.0
    %5994 = vmatprep.subr.mxu0 0.0
    %5995 = vmatpush1.msra.mxu0 0.0
    %5996 = vmatprep.subr.mxu0 0.0
    %5997 = vmatpush1.msra.mxu0 0.0
    %5998 = vmatprep.subr.mxu0 0.0
    %5999 = vmatpush1.msra.mxu0 0.0
    %6000 = vmatprep.subr.mxu0 0.0
    %6001 = vmatpush1.msra.mxu0 0.0
    %6002 = vmatprep.subr.mxu0 0.0
    %6003 = vmatpush1.msra.mxu0 0.0
    %6004 = vmatprep.subr.mxu0 0.0
    %6005 = vmatpush1.msra.mxu0 0.0
    %6006 = vmatprep.subr.mxu0 0.0
    %6007 = vmatpush1.msra.mxu0 0.0
    %6008 = vmatprep.subr.mxu0 0.0
    %6009 = vmatpush1.msra.mxu0 0.0
    %6010 = vmatprep.subr.mxu0 0.0
    %6011 = vmatpush1.msra.mxu0 0.0
    %6012 = vmatprep.subr.mxu0 0.0
    %6013 = vmatpush1.msra.mxu0 %v4298
    %6014 = vmatprep.subr.mxu0 0.0
    %6015 = vmatpush2.msra.mxu0 0.0
    %6016 = vmatprep.subr.mxu0 0.0
    %6017 = vmatpush2.msra.mxu0 0.0
    %6018 = vmatprep.subr.mxu0 0.0
    %6019 = vmatpush2.msra.mxu0 0.0
    %6020 = vmatprep.subr.mxu0 0.0
    %6021 = vmatpush2.msra.mxu0 0.0
    %6022 = vmatprep.subr.mxu0 0.0
    %6023 = vmatpush2.msra.mxu0 0.0
    %6024 = vmatprep.subr.mxu0 0.0
    %6025 = vmatpush2.msra.mxu0 0.0
    %6026 = vmatprep.subr.mxu0 0.0
    %6027 = vmatpush2.msra.mxu0 0.0
    %6028 = vmatprep.subr.mxu0 0.0
    %6029 = vmatpush2.msra.mxu0 0.0
    %6030 = vmatprep.subr.mxu0 0.0
    %6031 = vmatpush2.msra.mxu0 0.0
    %6032 = vmatprep.subr.mxu0 0.0
    %6033 = vmatpush2.msra.mxu0 0.0
    %6034 = vmatprep.subr.mxu0 0.0
    %6035 = vmatpush2.msra.mxu0 0.0
    %6036 = vmatprep.subr.mxu0 0.0
    %6037 = vmatpush2.msra.mxu0 0.0
    %6038 = vmatprep.subr.mxu0 0.0
    %6039 = vmatpush2.msra.mxu0 0.0
    %6040 = vmatprep.subr.mxu0 0.0
    %6041 = vmatpush2.msra.mxu0 0.0
    %6042 = vmatprep.subr.mxu0 0.0
    %6043 = vmatpush2.msra.mxu0 0.0
    %6044 = vmatprep.subr.mxu0 0.0
    %6045 = vmatpush2.msra.mxu0 0.0
    %6046 = vmatprep.mubr.f32.mxu0 0.0
    %6047 = vmatmul.mubr.f32.gmra.mxu0 %v5980
    %v6048 = vpop.f32.mrf.mxu0
    %v6049 = vadd.f32 0.0, %v6048
    %v6050 = vpop.f32.mrf.mxu0
    %6051 = vdwg.mxu0
    %v6053 = vsel %vm1231, %v5830, 0
    %6055 = vmatprep.subr.mxu0 0.0
    %6056 = vmatpush1.msra.mxu0 0.0
    %6057 = vmatprep.subr.mxu0 0.0
    %6058 = vmatpush1.msra.mxu0 0.0
    %6059 = vmatprep.subr.mxu0 0.0
    %6060 = vmatpush1.msra.mxu0 0.0
    %6061 = vmatprep.subr.mxu0 0.0
    %6062 = vmatpush1.msra.mxu0 0.0
    %6063 = vmatprep.subr.mxu0 0.0
    %6064 = vmatpush1.msra.mxu0 0.0
    %6065 = vmatprep.subr.mxu0 0.0
    %6066 = vmatpush1.msra.mxu0 0.0
    %6067 = vmatprep.subr.mxu0 0.0
    %6068 = vmatpush1.msra.mxu0 0.0
    %6069 = vmatprep.subr.mxu0 0.0
    %6070 = vmatpush1.msra.mxu0 0.0
    %6071 = vmatprep.subr.mxu0 0.0
    %6072 = vmatpush1.msra.mxu0 0.0
    %6073 = vmatprep.subr.mxu0 0.0
    %6074 = vmatpush1.msra.mxu0 0.0
    %6075 = vmatprep.subr.mxu0 0.0
    %6076 = vmatpush1.msra.mxu0 0.0
    %6077 = vmatprep.subr.mxu0 0.0
    %6078 = vmatpush1.msra.mxu0 0.0
    %6079 = vmatprep.subr.mxu0 0.0
    %6080 = vmatpush1.msra.mxu0 0.0
    %6081 = vmatprep.subr.mxu0 0.0
    %6082 = vmatpush1.msra.mxu0 0.0
    %6083 = vmatprep.subr.mxu0 0.0
    %6084 = vmatpush1.msra.mxu0 0.0
    %6085 = vmatprep.subr.mxu0 0.0
    %6086 = vmatpush1.msra.mxu0 %v4299
    %6087 = vmatprep.subr.mxu0 0.0
    %6088 = vmatpush2.msra.mxu0 0.0
    %6089 = vmatprep.subr.mxu0 0.0
    %6090 = vmatpush2.msra.mxu0 0.0
    %6091 = vmatprep.subr.mxu0 0.0
    %6092 = vmatpush2.msra.mxu0 0.0
    %6093 = vmatprep.subr.mxu0 0.0
    %6094 = vmatpush2.msra.mxu0 0.0
    %6095 = vmatprep.subr.mxu0 0.0
    %6096 = vmatpush2.msra.mxu0 0.0
    %6097 = vmatprep.subr.mxu0 0.0
    %6098 = vmatpush2.msra.mxu0 0.0
    %6099 = vmatprep.subr.mxu0 0.0
    %6100 = vmatpush2.msra.mxu0 0.0
    %6101 = vmatprep.subr.mxu0 0.0
    %6102 = vmatpush2.msra.mxu0 0.0
    %6103 = vmatprep.subr.mxu0 0.0
    %6104 = vmatpush2.msra.mxu0 0.0
    %6105 = vmatprep.subr.mxu0 0.0
    %6106 = vmatpush2.msra.mxu0 0.0
    %6107 = vmatprep.subr.mxu0 0.0
    %6108 = vmatpush2.msra.mxu0 0.0
    %6109 = vmatprep.subr.mxu0 0.0
    %6110 = vmatpush2.msra.mxu0 0.0
    %6111 = vmatprep.subr.mxu0 0.0
    %6112 = vmatpush2.msra.mxu0 0.0
    %6113 = vmatprep.subr.mxu0 0.0
    %6114 = vmatpush2.msra.mxu0 0.0
    %6115 = vmatprep.subr.mxu0 0.0
    %6116 = vmatpush2.msra.mxu0 0.0
    %6117 = vmatprep.subr.mxu0 0.0
    %6118 = vmatpush2.msra.mxu0 0.0
    %6119 = vmatprep.mubr.f32.mxu0 0.0
    %6120 = vmatmul.mubr.f32.gmra.mxu0 %v6053
    %v6121 = vpop.f32.mrf.mxu0
    %v6122 = vadd.f32 0.0, %v6121
    %v6123 = vpop.f32.mrf.mxu0
    %6124 = vdwg.mxu0
    %v6126 = vsel %vm1231, %v5903, 0
    %6128 = vmatprep.subr.mxu0 0.0
    %6129 = vmatpush1.msra.mxu0 0.0
    %6130 = vmatprep.subr.mxu0 0.0
    %6131 = vmatpush1.msra.mxu0 0.0
    %6132 = vmatprep.subr.mxu0 0.0
    %6133 = vmatpush1.msra.mxu0 0.0
    %6134 = vmatprep.subr.mxu0 0.0
    %6135 = vmatpush1.msra.mxu0 0.0
    %6136 = vmatprep.subr.mxu0 0.0
    %6137 = vmatpush1.msra.mxu0 0.0
    %6138 = vmatprep.subr.mxu0 0.0
    %6139 = vmatpush1.msra.mxu0 0.0
    %6140 = vmatprep.subr.mxu0 0.0
    %6141 = vmatpush1.msra.mxu0 0.0
    %6142 = vmatprep.subr.mxu0 0.0
    %6143 = vmatpush1.msra.mxu0 0.0
    %6144 = vmatprep.subr.mxu0 0.0
    %6145 = vmatpush1.msra.mxu0 0.0
    %6146 = vmatprep.subr.mxu0 0.0
    %6147 = vmatpush1.msra.mxu0 0.0
    %6148 = vmatprep.subr.mxu0 0.0
    %6149 = vmatpush1.msra.mxu0 0.0
    %6150 = vmatprep.subr.mxu0 0.0
    %6151 = vmatpush1.msra.mxu0 0.0
    %6152 = vmatprep.subr.mxu0 0.0
    %6153 = vmatpush1.msra.mxu0 0.0
    %6154 = vmatprep.subr.mxu0 0.0
    %6155 = vmatpush1.msra.mxu0 0.0
    %6156 = vmatprep.subr.mxu0 0.0
    %6157 = vmatpush1.msra.mxu0 0.0
    %6158 = vmatprep.subr.mxu0 0.0
    %6159 = vmatpush1.msra.mxu0 %v4300
    %6160 = vmatprep.subr.mxu0 0.0
    %6161 = vmatpush2.msra.mxu0 0.0
    %6162 = vmatprep.subr.mxu0 0.0
    %6163 = vmatpush2.msra.mxu0 0.0
    %6164 = vmatprep.subr.mxu0 0.0
    %6165 = vmatpush2.msra.mxu0 0.0
    %6166 = vmatprep.subr.mxu0 0.0
    %6167 = vmatpush2.msra.mxu0 0.0
    %6168 = vmatprep.subr.mxu0 0.0
    %6169 = vmatpush2.msra.mxu0 0.0
    %6170 = vmatprep.subr.mxu0 0.0
    %6171 = vmatpush2.msra.mxu0 0.0
    %6172 = vmatprep.subr.mxu0 0.0
    %6173 = vmatpush2.msra.mxu0 0.0
    %6174 = vmatprep.subr.mxu0 0.0
    %6175 = vmatpush2.msra.mxu0 0.0
    %6176 = vmatprep.subr.mxu0 0.0
    %6177 = vmatpush2.msra.mxu0 0.0
    %6178 = vmatprep.subr.mxu0 0.0
    %6179 = vmatpush2.msra.mxu0 0.0
    %6180 = vmatprep.subr.mxu0 0.0
    %6181 = vmatpush2.msra.mxu0 0.0
    %6182 = vmatprep.subr.mxu0 0.0
    %6183 = vmatpush2.msra.mxu0 0.0
    %6184 = vmatprep.subr.mxu0 0.0
    %6185 = vmatpush2.msra.mxu0 0.0
    %6186 = vmatprep.subr.mxu0 0.0
    %6187 = vmatpush2.msra.mxu0 0.0
    %6188 = vmatprep.subr.mxu0 0.0
    %6189 = vmatpush2.msra.mxu0 0.0
    %6190 = vmatprep.subr.mxu0 0.0
    %6191 = vmatpush2.msra.mxu0 0.0
    %6192 = vmatprep.mubr.f32.mxu0 0.0
    %6193 = vmatmul.mubr.f32.gmra.mxu0 %v6126
    %v6194 = vpop.f32.mrf.mxu0
    %v6195 = vadd.f32 0.0, %v6194
    %v6196 = vpop.f32.mrf.mxu0
    %6197 = vdwg.mxu0
    %v6198 = vsel %vm272, %v5976, 0.0
    %v6199 = vsel %vm272, %v6049, 0.0
    %v6200 = vadd.f32 %v6198, %v6199
    %v6201 = vsel %vm272, %v6122, 0.0
    %v6202 = vadd.f32 %v6200, %v6201
    %v6203 = vsel %vm272, %v6195, 0.0
    %v6204 = vadd.f32 %v6202, %v6203
    %v6206 = vsel %vm272, %v4342, 0
    %6208 = vmatprep.subr.mxu0 0.0
    %6209 = vmatpush1.msra.mxu0 0.0
    %6210 = vmatprep.subr.mxu0 0.0
    %6211 = vmatpush1.msra.mxu0 0.0
    %6212 = vmatprep.subr.mxu0 0.0
    %6213 = vmatpush1.msra.mxu0 0.0
    %6214 = vmatprep.subr.mxu0 0.0
    %6215 = vmatpush1.msra.mxu0 0.0
    %6216 = vmatprep.subr.mxu0 0.0
    %6217 = vmatpush1.msra.mxu0 0.0
    %6218 = vmatprep.subr.mxu0 0.0
    %6219 = vmatpush1.msra.mxu0 0.0
    %6220 = vmatprep.subr.mxu0 0.0
    %6221 = vmatpush1.msra.mxu0 0.0
    %6222 = vmatprep.subr.mxu0 0.0
    %6223 = vmatpush1.msra.mxu0 0.0
    %6224 = vmatprep.subr.mxu0 0.0
    %6225 = vmatpush1.msra.mxu0 0.0
    %6226 = vmatprep.subr.mxu0 0.0
    %6227 = vmatpush1.msra.mxu0 0.0
    %6228 = vmatprep.subr.mxu0 0.0
    %6229 = vmatpush1.msra.mxu0 0.0
    %6230 = vmatprep.subr.mxu0 0.0
    %6231 = vmatpush1.msra.mxu0 0.0
    %6232 = vmatprep.subr.mxu0 0.0
    %6233 = vmatpush1.msra.mxu0 %v4234
    %6234 = vmatprep.subr.mxu0 0.0
    %6235 = vmatpush1.msra.mxu0 %v4233
    %6236 = vmatprep.subr.mxu0 0.0
    %6237 = vmatpush1.msra.mxu0 %v4232
    %6238 = vmatprep.subr.mxu0 0.0
    %6239 = vmatpush1.msra.mxu0 %v4231
    %6240 = vmatprep.subr.mxu0 0.0
    %6241 = vmatpush2.msra.mxu0 0.0
    %6242 = vmatprep.subr.mxu0 0.0
    %6243 = vmatpush2.msra.mxu0 0.0
    %6244 = vmatprep.subr.mxu0 0.0
    %6245 = vmatpush2.msra.mxu0 0.0
    %6246 = vmatprep.subr.mxu0 0.0
    %6247 = vmatpush2.msra.mxu0 0.0
    %6248 = vmatprep.subr.mxu0 0.0
    %6249 = vmatpush2.msra.mxu0 0.0
    %6250 = vmatprep.subr.mxu0 0.0
    %6251 = vmatpush2.msra.mxu0 0.0
    %6252 = vmatprep.subr.mxu0 0.0
    %6253 = vmatpush2.msra.mxu0 0.0
    %6254 = vmatprep.subr.mxu0 0.0
    %6255 = vmatpush2.msra.mxu0 0.0
    %6256 = vmatprep.subr.mxu0 0.0
    %6257 = vmatpush2.msra.mxu0 0.0
    %6258 = vmatprep.subr.mxu0 0.0
    %6259 = vmatpush2.msra.mxu0 0.0
    %6260 = vmatprep.subr.mxu0 0.0
    %6261 = vmatpush2.msra.mxu0 0.0
    %6262 = vmatprep.subr.mxu0 0.0
    %6263 = vmatpush2.msra.mxu0 0.0
    %6264 = vmatprep.subr.mxu0 0.0
    %6265 = vmatpush2.msra.mxu0 0.0
    %6266 = vmatprep.subr.mxu0 0.0
    %6267 = vmatpush2.msra.mxu0 0.0
    %6268 = vmatprep.subr.mxu0 0.0
    %6269 = vmatpush2.msra.mxu0 0.0
    %6270 = vmatprep.subr.mxu0 0.0
    %6271 = vmatpush2.msra.mxu0 0.0
    %6272 = vmatprep.mubr.f32.mxu0 0.0
    %6273 = vmatmul.mubr.f32.gmra.mxu0 %v6206
    %v6274 = vpop.f32.mrf.mxu0
    %v6275 = vadd.f32 %v4350, %v6274
    %v6276 = vpop.f32.mrf.mxu0
    %6277 = vdwg.mxu0
    %6278 = vmatprep.subr.mxu0 0.0
    %6279 = vmatpush1.msra.mxu0 0.0
    %6280 = vmatprep.subr.mxu0 0.0
    %6281 = vmatpush1.msra.mxu0 0.0
    %6282 = vmatprep.subr.mxu0 0.0
    %6283 = vmatpush1.msra.mxu0 0.0
    %6284 = vmatprep.subr.mxu0 0.0
    %6285 = vmatpush1.msra.mxu0 0.0
    %6286 = vmatprep.subr.mxu0 0.0
    %6287 = vmatpush1.msra.mxu0 0.0
    %6288 = vmatprep.subr.mxu0 0.0
    %6289 = vmatpush1.msra.mxu0 0.0
    %6290 = vmatprep.subr.mxu0 0.0
    %6291 = vmatpush1.msra.mxu0 0.0
    %6292 = vmatprep.subr.mxu0 0.0
    %6293 = vmatpush1.msra.mxu0 0.0
    %6294 = vmatprep.subr.mxu0 0.0
    %6295 = vmatpush1.msra.mxu0 0.0
    %6296 = vmatprep.subr.mxu0 0.0
    %6297 = vmatpush1.msra.mxu0 0.0
    %6298 = vmatprep.subr.mxu0 0.0
    %6299 = vmatpush1.msra.mxu0 0.0
    %6300 = vmatprep.subr.mxu0 0.0
    %6301 = vmatpush1.msra.mxu0 0.0
    %6302 = vmatprep.subr.mxu0 0.0
    %6303 = vmatpush1.msra.mxu0 %v4238
    %6304 = vmatprep.subr.mxu0 0.0
    %6305 = vmatpush1.msra.mxu0 %v4237
    %6306 = vmatprep.subr.mxu0 0.0
    %6307 = vmatpush1.msra.mxu0 %v4236
    %6308 = vmatprep.subr.mxu0 0.0
    %6309 = vmatpush1.msra.mxu0 %v4235
    %6310 = vmatprep.subr.mxu0 0.0
    %6311 = vmatpush2.msra.mxu0 0.0
    %6312 = vmatprep.subr.mxu0 0.0
    %6313 = vmatpush2.msra.mxu0 0.0
    %6314 = vmatprep.subr.mxu0 0.0
    %6315 = vmatpush2.msra.mxu0 0.0
    %6316 = vmatprep.subr.mxu0 0.0
    %6317 = vmatpush2.msra.mxu0 0.0
    %6318 = vmatprep.subr.mxu0 0.0
    %6319 = vmatpush2.msra.mxu0 0.0
    %6320 = vmatprep.subr.mxu0 0.0
    %6321 = vmatpush2.msra.mxu0 0.0
    %6322 = vmatprep.subr.mxu0 0.0
    %6323 = vmatpush2.msra.mxu0 0.0
    %6324 = vmatprep.subr.mxu0 0.0
    %6325 = vmatpush2.msra.mxu0 0.0
    %6326 = vmatprep.subr.mxu0 0.0
    %6327 = vmatpush2.msra.mxu0 0.0
    %6328 = vmatprep.subr.mxu0 0.0
    %6329 = vmatpush2.msra.mxu0 0.0
    %6330 = vmatprep.subr.mxu0 0.0
    %6331 = vmatpush2.msra.mxu0 0.0
    %6332 = vmatprep.subr.mxu0 0.0
    %6333 = vmatpush2.msra.mxu0 0.0
    %6334 = vmatprep.subr.mxu0 0.0
    %6335 = vmatpush2.msra.mxu0 0.0
    %6336 = vmatprep.subr.mxu0 0.0
    %6337 = vmatpush2.msra.mxu0 0.0
    %6338 = vmatprep.subr.mxu0 0.0
    %6339 = vmatpush2.msra.mxu0 0.0
    %6340 = vmatprep.subr.mxu0 0.0
    %6341 = vmatpush2.msra.mxu0 0.0
    %6342 = vmatprep.mubr.f32.mxu0 0.0
    %6343 = vmatmul.mubr.f32.gmra.mxu0 %v6206
    %v6344 = vpop.f32.mrf.mxu0
    %v6345 = vadd.f32 %v4354, %v6344
    %v6346 = vpop.f32.mrf.mxu0
    %6347 = vdwg.mxu0
    %6348 = vmatprep.subr.mxu0 0.0
    %6349 = vmatpush1.msra.mxu0 0.0
    %6350 = vmatprep.subr.mxu0 0.0
    %6351 = vmatpush1.msra.mxu0 0.0
    %6352 = vmatprep.subr.mxu0 0.0
    %6353 = vmatpush1.msra.mxu0 0.0
    %6354 = vmatprep.subr.mxu0 0.0
    %6355 = vmatpush1.msra.mxu0 0.0
    %6356 = vmatprep.subr.mxu0 0.0
    %6357 = vmatpush1.msra.mxu0 0.0
    %6358 = vmatprep.subr.mxu0 0.0
    %6359 = vmatpush1.msra.mxu0 0.0
    %6360 = vmatprep.subr.mxu0 0.0
    %6361 = vmatpush1.msra.mxu0 0.0
    %6362 = vmatprep.subr.mxu0 0.0
    %6363 = vmatpush1.msra.mxu0 0.0
    %6364 = vmatprep.subr.mxu0 0.0
    %6365 = vmatpush1.msra.mxu0 0.0
    %6366 = vmatprep.subr.mxu0 0.0
    %6367 = vmatpush1.msra.mxu0 0.0
    %6368 = vmatprep.subr.mxu0 0.0
    %6369 = vmatpush1.msra.mxu0 0.0
    %6370 = vmatprep.subr.mxu0 0.0
    %6371 = vmatpush1.msra.mxu0 0.0
    %6372 = vmatprep.subr.mxu0 0.0
    %6373 = vmatpush1.msra.mxu0 %v4242
    %6374 = vmatprep.subr.mxu0 0.0
    %6375 = vmatpush1.msra.mxu0 %v4241
    %6376 = vmatprep.subr.mxu0 0.0
    %6377 = vmatpush1.msra.mxu0 %v4240
    %6378 = vmatprep.subr.mxu0 0.0
    %6379 = vmatpush1.msra.mxu0 %v4239
    %6380 = vmatprep.subr.mxu0 0.0
    %6381 = vmatpush2.msra.mxu0 0.0
    %6382 = vmatprep.subr.mxu0 0.0
    %6383 = vmatpush2.msra.mxu0 0.0
    %6384 = vmatprep.subr.mxu0 0.0
    %6385 = vmatpush2.msra.mxu0 0.0
    %6386 = vmatprep.subr.mxu0 0.0
    %6387 = vmatpush2.msra.mxu0 0.0
    %6388 = vmatprep.subr.mxu0 0.0
    %6389 = vmatpush2.msra.mxu0 0.0
    %6390 = vmatprep.subr.mxu0 0.0
    %6391 = vmatpush2.msra.mxu0 0.0
    %6392 = vmatprep.subr.mxu0 0.0
    %6393 = vmatpush2.msra.mxu0 0.0
    %6394 = vmatprep.subr.mxu0 0.0
    %6395 = vmatpush2.msra.mxu0 0.0
    %6396 = vmatprep.subr.mxu0 0.0
    %6397 = vmatpush2.msra.mxu0 0.0
    %6398 = vmatprep.subr.mxu0 0.0
    %6399 = vmatpush2.msra.mxu0 0.0
    %6400 = vmatprep.subr.mxu0 0.0
    %6401 = vmatpush2.msra.mxu0 0.0
    %6402 = vmatprep.subr.mxu0 0.0
    %6403 = vmatpush2.msra.mxu0 0.0
    %6404 = vmatprep.subr.mxu0 0.0
    %6405 = vmatpush2.msra.mxu0 0.0
    %6406 = vmatprep.subr.mxu0 0.0
    %6407 = vmatpush2.msra.mxu0 0.0
    %6408 = vmatprep.subr.mxu0 0.0
    %6409 = vmatpush2.msra.mxu0 0.0
    %6410 = vmatprep.subr.mxu0 0.0
    %6411 = vmatpush2.msra.mxu0 0.0
    %6412 = vmatprep.mubr.f32.mxu0 0.0
    %6413 = vmatmul.mubr.f32.gmra.mxu0 %v6206
    %v6414 = vpop.f32.mrf.mxu0
    %v6415 = vadd.f32 %v4358, %v6414
    %v6416 = vpop.f32.mrf.mxu0
    %6417 = vdwg.mxu0
    %6418 = vmatprep.subr.mxu0 0.0
    %6419 = vmatpush1.msra.mxu0 0.0
    %6420 = vmatprep.subr.mxu0 0.0
    %6421 = vmatpush1.msra.mxu0 0.0
    %6422 = vmatprep.subr.mxu0 0.0
    %6423 = vmatpush1.msra.mxu0 0.0
    %6424 = vmatprep.subr.mxu0 0.0
    %6425 = vmatpush1.msra.mxu0 0.0
    %6426 = vmatprep.subr.mxu0 0.0
    %6427 = vmatpush1.msra.mxu0 0.0
    %6428 = vmatprep.subr.mxu0 0.0
    %6429 = vmatpush1.msra.mxu0 0.0
    %6430 = vmatprep.subr.mxu0 0.0
    %6431 = vmatpush1.msra.mxu0 0.0
    %6432 = vmatprep.subr.mxu0 0.0
    %6433 = vmatpush1.msra.mxu0 0.0
    %6434 = vmatprep.subr.mxu0 0.0
    %6435 = vmatpush1.msra.mxu0 0.0
    %6436 = vmatprep.subr.mxu0 0.0
    %6437 = vmatpush1.msra.mxu0 0.0
    %6438 = vmatprep.subr.mxu0 0.0
    %6439 = vmatpush1.msra.mxu0 0.0
    %6440 = vmatprep.subr.mxu0 0.0
    %6441 = vmatpush1.msra.mxu0 0.0
    %6442 = vmatprep.subr.mxu0 0.0
    %6443 = vmatpush1.msra.mxu0 %v4246
    %6444 = vmatprep.subr.mxu0 0.0
    %6445 = vmatpush1.msra.mxu0 %v4245
    %6446 = vmatprep.subr.mxu0 0.0
    %6447 = vmatpush1.msra.mxu0 %v4244
    %6448 = vmatprep.subr.mxu0 0.0
    %6449 = vmatpush1.msra.mxu0 %v4243
    %6450 = vmatprep.subr.mxu0 0.0
    %6451 = vmatpush2.msra.mxu0 0.0
    %6452 = vmatprep.subr.mxu0 0.0
    %6453 = vmatpush2.msra.mxu0 0.0
    %6454 = vmatprep.subr.mxu0 0.0
    %6455 = vmatpush2.msra.mxu0 0.0
    %6456 = vmatprep.subr.mxu0 0.0
    %6457 = vmatpush2.msra.mxu0 0.0
    %6458 = vmatprep.subr.mxu0 0.0
    %6459 = vmatpush2.msra.mxu0 0.0
    %6460 = vmatprep.subr.mxu0 0.0
    %6461 = vmatpush2.msra.mxu0 0.0
    %6462 = vmatprep.subr.mxu0 0.0
    %6463 = vmatpush2.msra.mxu0 0.0
    %6464 = vmatprep.subr.mxu0 0.0
    %6465 = vmatpush2.msra.mxu0 0.0
    %6466 = vmatprep.subr.mxu0 0.0
    %6467 = vmatpush2.msra.mxu0 0.0
    %6468 = vmatprep.subr.mxu0 0.0
    %6469 = vmatpush2.msra.mxu0 0.0
    %6470 = vmatprep.subr.mxu0 0.0
    %6471 = vmatpush2.msra.mxu0 0.0
    %6472 = vmatprep.subr.mxu0 0.0
    %6473 = vmatpush2.msra.mxu0 0.0
    %6474 = vmatprep.subr.mxu0 0.0
    %6475 = vmatpush2.msra.mxu0 0.0
    %6476 = vmatprep.subr.mxu0 0.0
    %6477 = vmatpush2.msra.mxu0 0.0
    %6478 = vmatprep.subr.mxu0 0.0
    %6479 = vmatpush2.msra.mxu0 0.0
    %6480 = vmatprep.subr.mxu0 0.0
    %6481 = vmatpush2.msra.mxu0 0.0
    %6482 = vmatprep.mubr.f32.mxu0 0.0
    %6483 = vmatmul.mubr.f32.gmra.mxu0 %v6206
    %v6484 = vpop.f32.mrf.mxu0
    %v6485 = vadd.f32 %v4362, %v6484
    %v6486 = vpop.f32.mrf.mxu0
    %6487 = vdwg.mxu0
    %6488 = vmatprep.subr.mxu0 0.0
    %6489 = vmatpush1.msra.mxu0 0.0
    %6490 = vmatprep.subr.mxu0 0.0
    %6491 = vmatpush1.msra.mxu0 0.0
    %6492 = vmatprep.subr.mxu0 0.0
    %6493 = vmatpush1.msra.mxu0 0.0
    %6494 = vmatprep.subr.mxu0 0.0
    %6495 = vmatpush1.msra.mxu0 0.0
    %6496 = vmatprep.subr.mxu0 0.0
    %6497 = vmatpush1.msra.mxu0 0.0
    %6498 = vmatprep.subr.mxu0 0.0
    %6499 = vmatpush1.msra.mxu0 0.0
    %6500 = vmatprep.subr.mxu0 0.0
    %6501 = vmatpush1.msra.mxu0 0.0
    %6502 = vmatprep.subr.mxu0 0.0
    %6503 = vmatpush1.msra.mxu0 0.0
    %6504 = vmatprep.subr.mxu0 0.0
    %6505 = vmatpush1.msra.mxu0 0.0
    %6506 = vmatprep.subr.mxu0 0.0
    %6507 = vmatpush1.msra.mxu0 0.0
    %6508 = vmatprep.subr.mxu0 0.0
    %6509 = vmatpush1.msra.mxu0 0.0
    %6510 = vmatprep.subr.mxu0 0.0
    %6511 = vmatpush1.msra.mxu0 0.0
    %6512 = vmatprep.subr.mxu0 0.0
    %6513 = vmatpush1.msra.mxu0 %v4256
    %6514 = vmatprep.subr.mxu0 0.0
    %6515 = vmatpush1.msra.mxu0 %v4255
    %6516 = vmatprep.subr.mxu0 0.0
    %6517 = vmatpush1.msra.mxu0 %v4254
    %6518 = vmatprep.subr.mxu0 0.0
    %6519 = vmatpush1.msra.mxu0 %v4253
    %6520 = vmatprep.subr.mxu0 0.0
    %6521 = vmatpush2.msra.mxu0 0.0
    %6522 = vmatprep.subr.mxu0 0.0
    %6523 = vmatpush2.msra.mxu0 0.0
    %6524 = vmatprep.subr.mxu0 0.0
    %6525 = vmatpush2.msra.mxu0 0.0
    %6526 = vmatprep.subr.mxu0 0.0
    %6527 = vmatpush2.msra.mxu0 0.0
    %6528 = vmatprep.subr.mxu0 0.0
    %6529 = vmatpush2.msra.mxu0 0.0
    %6530 = vmatprep.subr.mxu0 0.0
    %6531 = vmatpush2.msra.mxu0 0.0
    %6532 = vmatprep.subr.mxu0 0.0
    %6533 = vmatpush2.msra.mxu0 0.0
    %6534 = vmatprep.subr.mxu0 0.0
    %6535 = vmatpush2.msra.mxu0 0.0
    %6536 = vmatprep.subr.mxu0 0.0
    %6537 = vmatpush2.msra.mxu0 0.0
    %6538 = vmatprep.subr.mxu0 0.0
    %6539 = vmatpush2.msra.mxu0 0.0
    %6540 = vmatprep.subr.mxu0 0.0
    %6541 = vmatpush2.msra.mxu0 0.0
    %6542 = vmatprep.subr.mxu0 0.0
    %6543 = vmatpush2.msra.mxu0 0.0
    %6544 = vmatprep.subr.mxu0 0.0
    %6545 = vmatpush2.msra.mxu0 0.0
    %6546 = vmatprep.subr.mxu0 0.0
    %6547 = vmatpush2.msra.mxu0 0.0
    %6548 = vmatprep.subr.mxu0 0.0
    %6549 = vmatpush2.msra.mxu0 0.0
    %6550 = vmatprep.subr.mxu0 0.0
    %6551 = vmatpush2.msra.mxu0 0.0
    %6552 = vmatprep.mubr.f32.mxu0 0.0
    %6553 = vmatmul.mubr.f32.gmra.mxu0 %v6206
    %v6554 = vpop.f32.mrf.mxu0
    %v6555 = vadd.f32 %v4657, %v6554
    %v6556 = vpop.f32.mrf.mxu0
    %6557 = vdwg.mxu0
    %6558 = vmatprep.subr.mxu0 0.0
    %6559 = vmatpush1.msra.mxu0 0.0
    %6560 = vmatprep.subr.mxu0 0.0
    %6561 = vmatpush1.msra.mxu0 0.0
    %6562 = vmatprep.subr.mxu0 0.0
    %6563 = vmatpush1.msra.mxu0 0.0
    %6564 = vmatprep.subr.mxu0 0.0
    %6565 = vmatpush1.msra.mxu0 0.0
    %6566 = vmatprep.subr.mxu0 0.0
    %6567 = vmatpush1.msra.mxu0 0.0
    %6568 = vmatprep.subr.mxu0 0.0
    %6569 = vmatpush1.msra.mxu0 0.0
    %6570 = vmatprep.subr.mxu0 0.0
    %6571 = vmatpush1.msra.mxu0 0.0
    %6572 = vmatprep.subr.mxu0 0.0
    %6573 = vmatpush1.msra.mxu0 0.0
    %6574 = vmatprep.subr.mxu0 0.0
    %6575 = vmatpush1.msra.mxu0 0.0
    %6576 = vmatprep.subr.mxu0 0.0
    %6577 = vmatpush1.msra.mxu0 0.0
    %6578 = vmatprep.subr.mxu0 0.0
    %6579 = vmatpush1.msra.mxu0 0.0
    %6580 = vmatprep.subr.mxu0 0.0
    %6581 = vmatpush1.msra.mxu0 0.0
    %6582 = vmatprep.subr.mxu0 0.0
    %6583 = vmatpush1.msra.mxu0 %v4260
    %6584 = vmatprep.subr.mxu0 0.0
    %6585 = vmatpush1.msra.mxu0 %v4259
    %6586 = vmatprep.subr.mxu0 0.0
    %6587 = vmatpush1.msra.mxu0 %v4258
    %6588 = vmatprep.subr.mxu0 0.0
    %6589 = vmatpush1.msra.mxu0 %v4257
    %6590 = vmatprep.subr.mxu0 0.0
    %6591 = vmatpush2.msra.mxu0 0.0
    %6592 = vmatprep.subr.mxu0 0.0
    %6593 = vmatpush2.msra.mxu0 0.0
    %6594 = vmatprep.subr.mxu0 0.0
    %6595 = vmatpush2.msra.mxu0 0.0
    %6596 = vmatprep.subr.mxu0 0.0
    %6597 = vmatpush2.msra.mxu0 0.0
    %6598 = vmatprep.subr.mxu0 0.0
    %6599 = vmatpush2.msra.mxu0 0.0
    %6600 = vmatprep.subr.mxu0 0.0
    %6601 = vmatpush2.msra.mxu0 0.0
    %6602 = vmatprep.subr.mxu0 0.0
    %6603 = vmatpush2.msra.mxu0 0.0
    %6604 = vmatprep.subr.mxu0 0.0
    %6605 = vmatpush2.msra.mxu0 0.0
    %6606 = vmatprep.subr.mxu0 0.0
    %6607 = vmatpush2.msra.mxu0 0.0
    %6608 = vmatprep.subr.mxu0 0.0
    %6609 = vmatpush2.msra.mxu0 0.0
    %6610 = vmatprep.subr.mxu0 0.0
    %6611 = vmatpush2.msra.mxu0 0.0
    %6612 = vmatprep.subr.mxu0 0.0
    %6613 = vmatpush2.msra.mxu0 0.0
    %6614 = vmatprep.subr.mxu0 0.0
    %6615 = vmatpush2.msra.mxu0 0.0
    %6616 = vmatprep.subr.mxu0 0.0
    %6617 = vmatpush2.msra.mxu0 0.0
    %6618 = vmatprep.subr.mxu0 0.0
    %6619 = vmatpush2.msra.mxu0 0.0
    %6620 = vmatprep.subr.mxu0 0.0
    %6621 = vmatpush2.msra.mxu0 0.0
    %6622 = vmatprep.mubr.f32.mxu0 0.0
    %6623 = vmatmul.mubr.f32.gmra.mxu0 %v6206
    %v6624 = vpop.f32.mrf.mxu0
    %v6625 = vadd.f32 %v4661, %v6624
    %v6626 = vpop.f32.mrf.mxu0
    %6627 = vdwg.mxu0
    %6628 = vmatprep.subr.mxu0 0.0
    %6629 = vmatpush1.msra.mxu0 0.0
    %6630 = vmatprep.subr.mxu0 0.0
    %6631 = vmatpush1.msra.mxu0 0.0
    %6632 = vmatprep.subr.mxu0 0.0
    %6633 = vmatpush1.msra.mxu0 0.0
    %6634 = vmatprep.subr.mxu0 0.0
    %6635 = vmatpush1.msra.mxu0 0.0
    %6636 = vmatprep.subr.mxu0 0.0
    %6637 = vmatpush1.msra.mxu0 0.0
    %6638 = vmatprep.subr.mxu0 0.0
    %6639 = vmatpush1.msra.mxu0 0.0
    %6640 = vmatprep.subr.mxu0 0.0
    %6641 = vmatpush1.msra.mxu0 0.0
    %6642 = vmatprep.subr.mxu0 0.0
    %6643 = vmatpush1.msra.mxu0 0.0
    %6644 = vmatprep.subr.mxu0 0.0
    %6645 = vmatpush1.msra.mxu0 0.0
    %6646 = vmatprep.subr.mxu0 0.0
    %6647 = vmatpush1.msra.mxu0 0.0
    %6648 = vmatprep.subr.mxu0 0.0
    %6649 = vmatpush1.msra.mxu0 0.0
    %6650 = vmatprep.subr.mxu0 0.0
    %6651 = vmatpush1.msra.mxu0 0.0
    %6652 = vmatprep.subr.mxu0 0.0
    %6653 = vmatpush1.msra.mxu0 %v4264
    %6654 = vmatprep.subr.mxu0 0.0
    %6655 = vmatpush1.msra.mxu0 %v4263
    %6656 = vmatprep.subr.mxu0 0.0
    %6657 = vmatpush1.msra.mxu0 %v4262
    %6658 = vmatprep.subr.mxu0 0.0
    %6659 = vmatpush1.msra.mxu0 %v4261
    %6660 = vmatprep.subr.mxu0 0.0
    %6661 = vmatpush2.msra.mxu0 0.0
    %6662 = vmatprep.subr.mxu0 0.0
    %6663 = vmatpush2.msra.mxu0 0.0
    %6664 = vmatprep.subr.mxu0 0.0
    %6665 = vmatpush2.msra.mxu0 0.0
    %6666 = vmatprep.subr.mxu0 0.0
    %6667 = vmatpush2.msra.mxu0 0.0
    %6668 = vmatprep.subr.mxu0 0.0
    %6669 = vmatpush2.msra.mxu0 0.0
    %6670 = vmatprep.subr.mxu0 0.0
    %6671 = vmatpush2.msra.mxu0 0.0
    %6672 = vmatprep.subr.mxu0 0.0
    %6673 = vmatpush2.msra.mxu0 0.0
    %6674 = vmatprep.subr.mxu0 0.0
    %6675 = vmatpush2.msra.mxu0 0.0
    %6676 = vmatprep.subr.mxu0 0.0
    %6677 = vmatpush2.msra.mxu0 0.0
    %6678 = vmatprep.subr.mxu0 0.0
    %6679 = vmatpush2.msra.mxu0 0.0
    %6680 = vmatprep.subr.mxu0 0.0
    %6681 = vmatpush2.msra.mxu0 0.0
    %6682 = vmatprep.subr.mxu0 0.0
    %6683 = vmatpush2.msra.mxu0 0.0
    %6684 = vmatprep.subr.mxu0 0.0
    %6685 = vmatpush2.msra.mxu0 0.0
    %6686 = vmatprep.subr.mxu0 0.0
    %6687 = vmatpush2.msra.mxu0 0.0
    %6688 = vmatprep.subr.mxu0 0.0
    %6689 = vmatpush2.msra.mxu0 0.0
    %6690 = vmatprep.subr.mxu0 0.0
    %6691 = vmatpush2.msra.mxu0 0.0
    %6692 = vmatprep.mubr.f32.mxu0 0.0
    %6693 = vmatmul.mubr.f32.gmra.mxu0 %v6206
    %v6694 = vpop.f32.mrf.mxu0
    %v6695 = vadd.f32 %v4665, %v6694
    %v6696 = vpop.f32.mrf.mxu0
    %6697 = vdwg.mxu0
    %6698 = vmatprep.subr.mxu0 0.0
    %6699 = vmatpush1.msra.mxu0 0.0
    %6700 = vmatprep.subr.mxu0 0.0
    %6701 = vmatpush1.msra.mxu0 0.0
    %6702 = vmatprep.subr.mxu0 0.0
    %6703 = vmatpush1.msra.mxu0 0.0
    %6704 = vmatprep.subr.mxu0 0.0
    %6705 = vmatpush1.msra.mxu0 0.0
    %6706 = vmatprep.subr.mxu0 0.0
    %6707 = vmatpush1.msra.mxu0 0.0
    %6708 = vmatprep.subr.mxu0 0.0
    %6709 = vmatpush1.msra.mxu0 0.0
    %6710 = vmatprep.subr.mxu0 0.0
    %6711 = vmatpush1.msra.mxu0 0.0
    %6712 = vmatprep.subr.mxu0 0.0
    %6713 = vmatpush1.msra.mxu0 0.0
    %6714 = vmatprep.subr.mxu0 0.0
    %6715 = vmatpush1.msra.mxu0 0.0
    %6716 = vmatprep.subr.mxu0 0.0
    %6717 = vmatpush1.msra.mxu0 0.0
    %6718 = vmatprep.subr.mxu0 0.0
    %6719 = vmatpush1.msra.mxu0 0.0
    %6720 = vmatprep.subr.mxu0 0.0
    %6721 = vmatpush1.msra.mxu0 0.0
    %6722 = vmatprep.subr.mxu0 0.0
    %6723 = vmatpush1.msra.mxu0 %v4268
    %6724 = vmatprep.subr.mxu0 0.0
    %6725 = vmatpush1.msra.mxu0 %v4267
    %6726 = vmatprep.subr.mxu0 0.0
    %6727 = vmatpush1.msra.mxu0 %v4266
    %6728 = vmatprep.subr.mxu0 0.0
    %6729 = vmatpush1.msra.mxu0 %v4265
    %6730 = vmatprep.subr.mxu0 0.0
    %6731 = vmatpush2.msra.mxu0 0.0
    %6732 = vmatprep.subr.mxu0 0.0
    %6733 = vmatpush2.msra.mxu0 0.0
    %6734 = vmatprep.subr.mxu0 0.0
    %6735 = vmatpush2.msra.mxu0 0.0
    %6736 = vmatprep.subr.mxu0 0.0
    %6737 = vmatpush2.msra.mxu0 0.0
    %6738 = vmatprep.subr.mxu0 0.0
    %6739 = vmatpush2.msra.mxu0 0.0
    %6740 = vmatprep.subr.mxu0 0.0
    %6741 = vmatpush2.msra.mxu0 0.0
    %6742 = vmatprep.subr.mxu0 0.0
    %6743 = vmatpush2.msra.mxu0 0.0
    %6744 = vmatprep.subr.mxu0 0.0
    %6745 = vmatpush2.msra.mxu0 0.0
    %6746 = vmatprep.subr.mxu0 0.0
    %6747 = vmatpush2.msra.mxu0 0.0
    %6748 = vmatprep.subr.mxu0 0.0
    %6749 = vmatpush2.msra.mxu0 0.0
    %6750 = vmatprep.subr.mxu0 0.0
    %6751 = vmatpush2.msra.mxu0 0.0
    %6752 = vmatprep.subr.mxu0 0.0
    %6753 = vmatpush2.msra.mxu0 0.0
    %6754 = vmatprep.subr.mxu0 0.0
    %6755 = vmatpush2.msra.mxu0 0.0
    %6756 = vmatprep.subr.mxu0 0.0
    %6757 = vmatpush2.msra.mxu0 0.0
    %6758 = vmatprep.subr.mxu0 0.0
    %6759 = vmatpush2.msra.mxu0 0.0
    %6760 = vmatprep.subr.mxu0 0.0
    %6761 = vmatpush2.msra.mxu0 0.0
    %6762 = vmatprep.mubr.f32.mxu0 0.0
    %6763 = vmatmul.mubr.f32.gmra.mxu0 %v6206
    %v6764 = vpop.f32.mrf.mxu0
    %v6765 = vadd.f32 %v4669, %v6764
    %v6766 = vpop.f32.mrf.mxu0
    %6767 = vdwg.mxu0
    %6768 = vmatprep.subr.mxu0 0.0
    %6769 = vmatpush1.msra.mxu0 0.0
    %6770 = vmatprep.subr.mxu0 0.0
    %6771 = vmatpush1.msra.mxu0 0.0
    %6772 = vmatprep.subr.mxu0 0.0
    %6773 = vmatpush1.msra.mxu0 0.0
    %6774 = vmatprep.subr.mxu0 0.0
    %6775 = vmatpush1.msra.mxu0 0.0
    %6776 = vmatprep.subr.mxu0 0.0
    %6777 = vmatpush1.msra.mxu0 0.0
    %6778 = vmatprep.subr.mxu0 0.0
    %6779 = vmatpush1.msra.mxu0 0.0
    %6780 = vmatprep.subr.mxu0 0.0
    %6781 = vmatpush1.msra.mxu0 0.0
    %6782 = vmatprep.subr.mxu0 0.0
    %6783 = vmatpush1.msra.mxu0 0.0
    %6784 = vmatprep.subr.mxu0 0.0
    %6785 = vmatpush1.msra.mxu0 0.0
    %6786 = vmatprep.subr.mxu0 0.0
    %6787 = vmatpush1.msra.mxu0 0.0
    %6788 = vmatprep.subr.mxu0 0.0
    %6789 = vmatpush1.msra.mxu0 0.0
    %6790 = vmatprep.subr.mxu0 0.0
    %6791 = vmatpush1.msra.mxu0 0.0
    %6792 = vmatprep.subr.mxu0 0.0
    %6793 = vmatpush1.msra.mxu0 %v4278
    %6794 = vmatprep.subr.mxu0 0.0
    %6795 = vmatpush1.msra.mxu0 %v4277
    %6796 = vmatprep.subr.mxu0 0.0
    %6797 = vmatpush1.msra.mxu0 %v4276
    %6798 = vmatprep.subr.mxu0 0.0
    %6799 = vmatpush1.msra.mxu0 %v4275
    %6800 = vmatprep.subr.mxu0 0.0
    %6801 = vmatpush2.msra.mxu0 0.0
    %6802 = vmatprep.subr.mxu0 0.0
    %6803 = vmatpush2.msra.mxu0 0.0
    %6804 = vmatprep.subr.mxu0 0.0
    %6805 = vmatpush2.msra.mxu0 0.0
    %6806 = vmatprep.subr.mxu0 0.0
    %6807 = vmatpush2.msra.mxu0 0.0
    %6808 = vmatprep.subr.mxu0 0.0
    %6809 = vmatpush2.msra.mxu0 0.0
    %6810 = vmatprep.subr.mxu0 0.0
    %6811 = vmatpush2.msra.mxu0 0.0
    %6812 = vmatprep.subr.mxu0 0.0
    %6813 = vmatpush2.msra.mxu0 0.0
    %6814 = vmatprep.subr.mxu0 0.0
    %6815 = vmatpush2.msra.mxu0 0.0
    %6816 = vmatprep.subr.mxu0 0.0
    %6817 = vmatpush2.msra.mxu0 0.0
    %6818 = vmatprep.subr.mxu0 0.0
    %6819 = vmatpush2.msra.mxu0 0.0
    %6820 = vmatprep.subr.mxu0 0.0
    %6821 = vmatpush2.msra.mxu0 0.0
    %6822 = vmatprep.subr.mxu0 0.0
    %6823 = vmatpush2.msra.mxu0 0.0
    %6824 = vmatprep.subr.mxu0 0.0
    %6825 = vmatpush2.msra.mxu0 0.0
    %6826 = vmatprep.subr.mxu0 0.0
    %6827 = vmatpush2.msra.mxu0 0.0
    %6828 = vmatprep.subr.mxu0 0.0
    %6829 = vmatpush2.msra.mxu0 0.0
    %6830 = vmatprep.subr.mxu0 0.0
    %6831 = vmatpush2.msra.mxu0 0.0
    %6832 = vmatprep.mubr.f32.mxu0 0.0
    %6833 = vmatmul.mubr.f32.gmra.mxu0 %v6206
    %v6834 = vpop.f32.mrf.mxu0
    %v6835 = vadd.f32 %v4961, %v6834
    %v6836 = vpop.f32.mrf.mxu0
    %6837 = vdwg.mxu0
    %6838 = vmatprep.subr.mxu0 0.0
    %6839 = vmatpush1.msra.mxu0 0.0
    %6840 = vmatprep.subr.mxu0 0.0
    %6841 = vmatpush1.msra.mxu0 0.0
    %6842 = vmatprep.subr.mxu0 0.0
    %6843 = vmatpush1.msra.mxu0 0.0
    %6844 = vmatprep.subr.mxu0 0.0
    %6845 = vmatpush1.msra.mxu0 0.0
    %6846 = vmatprep.subr.mxu0 0.0
    %6847 = vmatpush1.msra.mxu0 0.0
    %6848 = vmatprep.subr.mxu0 0.0
    %6849 = vmatpush1.msra.mxu0 0.0
    %6850 = vmatprep.subr.mxu0 0.0
    %6851 = vmatpush1.msra.mxu0 0.0
    %6852 = vmatprep.subr.mxu0 0.0
    %6853 = vmatpush1.msra.mxu0 0.0
    %6854 = vmatprep.subr.mxu0 0.0
    %6855 = vmatpush1.msra.mxu0 0.0
    %6856 = vmatprep.subr.mxu0 0.0
    %6857 = vmatpush1.msra.mxu0 0.0
    %6858 = vmatprep.subr.mxu0 0.0
    %6859 = vmatpush1.msra.mxu0 0.0
    %6860 = vmatprep.subr.mxu0 0.0
    %6861 = vmatpush1.msra.mxu0 0.0
    %6862 = vmatprep.subr.mxu0 0.0
    %6863 = vmatpush1.msra.mxu0 %v4282
    %6864 = vmatprep.subr.mxu0 0.0
    %6865 = vmatpush1.msra.mxu0 %v4281
    %6866 = vmatprep.subr.mxu0 0.0
    %6867 = vmatpush1.msra.mxu0 %v4280
    %6868 = vmatprep.subr.mxu0 0.0
    %6869 = vmatpush1.msra.mxu0 %v4279
    %6870 = vmatprep.subr.mxu0 0.0
    %6871 = vmatpush2.msra.mxu0 0.0
    %6872 = vmatprep.subr.mxu0 0.0
    %6873 = vmatpush2.msra.mxu0 0.0
    %6874 = vmatprep.subr.mxu0 0.0
    %6875 = vmatpush2.msra.mxu0 0.0
    %6876 = vmatprep.subr.mxu0 0.0
    %6877 = vmatpush2.msra.mxu0 0.0
    %6878 = vmatprep.subr.mxu0 0.0
    %6879 = vmatpush2.msra.mxu0 0.0
    %6880 = vmatprep.subr.mxu0 0.0
    %6881 = vmatpush2.msra.mxu0 0.0
    %6882 = vmatprep.subr.mxu0 0.0
    %6883 = vmatpush2.msra.mxu0 0.0
    %6884 = vmatprep.subr.mxu0 0.0
    %6885 = vmatpush2.msra.mxu0 0.0
    %6886 = vmatprep.subr.mxu0 0.0
    %6887 = vmatpush2.msra.mxu0 0.0
    %6888 = vmatprep.subr.mxu0 0.0
    %6889 = vmatpush2.msra.mxu0 0.0
    %6890 = vmatprep.subr.mxu0 0.0
    %6891 = vmatpush2.msra.mxu0 0.0
    %6892 = vmatprep.subr.mxu0 0.0
    %6893 = vmatpush2.msra.mxu0 0.0
    %6894 = vmatprep.subr.mxu0 0.0
    %6895 = vmatpush2.msra.mxu0 0.0
    %6896 = vmatprep.subr.mxu0 0.0
    %6897 = vmatpush2.msra.mxu0 0.0
    %6898 = vmatprep.subr.mxu0 0.0
    %6899 = vmatpush2.msra.mxu0 0.0
    %6900 = vmatprep.subr.mxu0 0.0
    %6901 = vmatpush2.msra.mxu0 0.0
    %6902 = vmatprep.mubr.f32.mxu0 0.0
    %6903 = vmatmul.mubr.f32.gmra.mxu0 %v6206
    %v6904 = vpop.f32.mrf.mxu0
    %v6905 = vadd.f32 %v4965, %v6904
    %v6906 = vpop.f32.mrf.mxu0
    %6907 = vdwg.mxu0
    %6908 = vmatprep.subr.mxu0 0.0
    %6909 = vmatpush1.msra.mxu0 0.0
    %6910 = vmatprep.subr.mxu0 0.0
    %6911 = vmatpush1.msra.mxu0 0.0
    %6912 = vmatprep.subr.mxu0 0.0
    %6913 = vmatpush1.msra.mxu0 0.0
    %6914 = vmatprep.subr.mxu0 0.0
    %6915 = vmatpush1.msra.mxu0 0.0
    %6916 = vmatprep.subr.mxu0 0.0
    %6917 = vmatpush1.msra.mxu0 0.0
    %6918 = vmatprep.subr.mxu0 0.0
    %6919 = vmatpush1.msra.mxu0 0.0
    %6920 = vmatprep.subr.mxu0 0.0
    %6921 = vmatpush1.msra.mxu0 0.0
    %6922 = vmatprep.subr.mxu0 0.0
    %6923 = vmatpush1.msra.mxu0 0.0
    %6924 = vmatprep.subr.mxu0 0.0
    %6925 = vmatpush1.msra.mxu0 0.0
    %6926 = vmatprep.subr.mxu0 0.0
    %6927 = vmatpush1.msra.mxu0 0.0
    %6928 = vmatprep.subr.mxu0 0.0
    %6929 = vmatpush1.msra.mxu0 0.0
    %6930 = vmatprep.subr.mxu0 0.0
    %6931 = vmatpush1.msra.mxu0 0.0
    %6932 = vmatprep.subr.mxu0 0.0
    %6933 = vmatpush1.msra.mxu0 %v4286
    %6934 = vmatprep.subr.mxu0 0.0
    %6935 = vmatpush1.msra.mxu0 %v4285
    %6936 = vmatprep.subr.mxu0 0.0
    %6937 = vmatpush1.msra.mxu0 %v4284
    %6938 = vmatprep.subr.mxu0 0.0
    %6939 = vmatpush1.msra.mxu0 %v4283
    %6940 = vmatprep.subr.mxu0 0.0
    %6941 = vmatpush2.msra.mxu0 0.0
    %6942 = vmatprep.subr.mxu0 0.0
    %6943 = vmatpush2.msra.mxu0 0.0
    %6944 = vmatprep.subr.mxu0 0.0
    %6945 = vmatpush2.msra.mxu0 0.0
    %6946 = vmatprep.subr.mxu0 0.0
    %6947 = vmatpush2.msra.mxu0 0.0
    %6948 = vmatprep.subr.mxu0 0.0
    %6949 = vmatpush2.msra.mxu0 0.0
    %6950 = vmatprep.subr.mxu0 0.0
    %6951 = vmatpush2.msra.mxu0 0.0
    %6952 = vmatprep.subr.mxu0 0.0
    %6953 = vmatpush2.msra.mxu0 0.0
    %6954 = vmatprep.subr.mxu0 0.0
    %6955 = vmatpush2.msra.mxu0 0.0
    %6956 = vmatprep.subr.mxu0 0.0
    %6957 = vmatpush2.msra.mxu0 0.0
    %6958 = vmatprep.subr.mxu0 0.0
    %6959 = vmatpush2.msra.mxu0 0.0
    %6960 = vmatprep.subr.mxu0 0.0
    %6961 = vmatpush2.msra.mxu0 0.0
    %6962 = vmatprep.subr.mxu0 0.0
    %6963 = vmatpush2.msra.mxu0 0.0
    %6964 = vmatprep.subr.mxu0 0.0
    %6965 = vmatpush2.msra.mxu0 0.0
    %6966 = vmatprep.subr.mxu0 0.0
    %6967 = vmatpush2.msra.mxu0 0.0
    %6968 = vmatprep.subr.mxu0 0.0
    %6969 = vmatpush2.msra.mxu0 0.0
    %6970 = vmatprep.subr.mxu0 0.0
    %6971 = vmatpush2.msra.mxu0 0.0
    %6972 = vmatprep.mubr.f32.mxu0 0.0
    %6973 = vmatmul.mubr.f32.gmra.mxu0 %v6206
    %v6974 = vpop.f32.mrf.mxu0
    %v6975 = vadd.f32 %v4969, %v6974
    %v6976 = vpop.f32.mrf.mxu0
    %6977 = vdwg.mxu0
    %6978 = vmatprep.subr.mxu0 0.0
    %6979 = vmatpush1.msra.mxu0 0.0
    %6980 = vmatprep.subr.mxu0 0.0
    %6981 = vmatpush1.msra.mxu0 0.0
    %6982 = vmatprep.subr.mxu0 0.0
    %6983 = vmatpush1.msra.mxu0 0.0
    %6984 = vmatprep.subr.mxu0 0.0
    %6985 = vmatpush1.msra.mxu0 0.0
    %6986 = vmatprep.subr.mxu0 0.0
    %6987 = vmatpush1.msra.mxu0 0.0
    %6988 = vmatprep.subr.mxu0 0.0
    %6989 = vmatpush1.msra.mxu0 0.0
    %6990 = vmatprep.subr.mxu0 0.0
    %6991 = vmatpush1.msra.mxu0 0.0
    %6992 = vmatprep.subr.mxu0 0.0
    %6993 = vmatpush1.msra.mxu0 0.0
    %6994 = vmatprep.subr.mxu0 0.0
    %6995 = vmatpush1.msra.mxu0 0.0
    %6996 = vmatprep.subr.mxu0 0.0
    %6997 = vmatpush1.msra.mxu0 0.0
    %6998 = vmatprep.subr.mxu0 0.0
    %6999 = vmatpush1.msra.mxu0 0.0
    %7000 = vmatprep.subr.mxu0 0.0
    %7001 = vmatpush1.msra.mxu0 0.0
    %7002 = vmatprep.subr.mxu0 0.0
    %7003 = vmatpush1.msra.mxu0 %v4290
    %7004 = vmatprep.subr.mxu0 0.0
    %7005 = vmatpush1.msra.mxu0 %v4289
    %7006 = vmatprep.subr.mxu0 0.0
    %7007 = vmatpush1.msra.mxu0 %v4288
    %7008 = vmatprep.subr.mxu0 0.0
    %7009 = vmatpush1.msra.mxu0 %v4287
    %7010 = vmatprep.subr.mxu0 0.0
    %7011 = vmatpush2.msra.mxu0 0.0
    %7012 = vmatprep.subr.mxu0 0.0
    %7013 = vmatpush2.msra.mxu0 0.0
    %7014 = vmatprep.subr.mxu0 0.0
    %7015 = vmatpush2.msra.mxu0 0.0
    %7016 = vmatprep.subr.mxu0 0.0
    %7017 = vmatpush2.msra.mxu0 0.0
    %7018 = vmatprep.subr.mxu0 0.0
    %7019 = vmatpush2.msra.mxu0 0.0
    %7020 = vmatprep.subr.mxu0 0.0
    %7021 = vmatpush2.msra.mxu0 0.0
    %7022 = vmatprep.subr.mxu0 0.0
    %7023 = vmatpush2.msra.mxu0 0.0
    %7024 = vmatprep.subr.mxu0 0.0
    %7025 = vmatpush2.msra.mxu0 0.0
    %7026 = vmatprep.subr.mxu0 0.0
    %7027 = vmatpush2.msra.mxu0 0.0
    %7028 = vmatprep.subr.mxu0 0.0
    %7029 = vmatpush2.msra.mxu0 0.0
    %7030 = vmatprep.subr.mxu0 0.0
    %7031 = vmatpush2.msra.mxu0 0.0
    %7032 = vmatprep.subr.mxu0 0.0
    %7033 = vmatpush2.msra.mxu0 0.0
    %7034 = vmatprep.subr.mxu0 0.0
    %7035 = vmatpush2.msra.mxu0 0.0
    %7036 = vmatprep.subr.mxu0 0.0
    %7037 = vmatpush2.msra.mxu0 0.0
    %7038 = vmatprep.subr.mxu0 0.0
    %7039 = vmatpush2.msra.mxu0 0.0
    %7040 = vmatprep.subr.mxu0 0.0
    %7041 = vmatpush2.msra.mxu0 0.0
    %7042 = vmatprep.mubr.f32.mxu0 0.0
    %7043 = vmatmul.mubr.f32.gmra.mxu0 %v6206
    %v7044 = vpop.f32.mrf.mxu0
    %v7045 = vadd.f32 %v4973, %v7044
    %v7046 = vpop.f32.mrf.mxu0
    %7047 = vdwg.mxu0
    %v7049 = vsel %vm1231, %v6275, 0
    %v7052 = vsel %vm1231, %v6555, 0
    %7054 = vmatprep.subr.mxu0 0.0
    %7055 = vmatpush1.xpose.msra.mxu0 0.0
    %7056 = vmatprep.subr.mxu0 0.0
    %7057 = vmatpush1.xpose.msra.mxu0 0.0
    %7058 = vmatprep.subr.mxu0 0.0
    %7059 = vmatpush1.xpose.msra.mxu0 0.0
    %7060 = vmatprep.subr.mxu0 0.0
    %7061 = vmatpush1.xpose.msra.mxu0 0.0
    %7062 = vmatprep.subr.mxu0 0.0
    %7063 = vmatpush1.xpose.msra.mxu0 0.0
    %7064 = vmatprep.subr.mxu0 0.0
    %7065 = vmatpush1.xpose.msra.mxu0 0.0
    %7066 = vmatprep.subr.mxu0 0.0
    %7067 = vmatpush1.xpose.msra.mxu0 0.0
    %7068 = vmatprep.subr.mxu0 0.0
    %7069 = vmatpush1.xpose.msra.mxu0 0.0
    %7070 = vmatprep.subr.mxu0 0.0
    %7071 = vmatpush1.xpose.msra.mxu0 0.0
    %7072 = vmatprep.subr.mxu0 0.0
    %7073 = vmatpush1.xpose.msra.mxu0 0.0
    %7074 = vmatprep.subr.mxu0 0.0
    %7075 = vmatpush1.xpose.msra.mxu0 0.0
    %7076 = vmatprep.subr.mxu0 0.0
    %7077 = vmatpush1.xpose.msra.mxu0 0.0
    %7078 = vmatprep.subr.mxu0 0.0
    %7079 = vmatpush1.xpose.msra.mxu0 0.0
    %7080 = vmatprep.subr.mxu0 0.0
    %7081 = vmatpush1.xpose.msra.mxu0 0.0
    %7082 = vmatprep.subr.mxu0 0.0
    %7083 = vmatpush1.xpose.msra.mxu0 0.0
    %7084 = vmatprep.subr.mxu0 0.0
    %7085 = vmatpush1.xpose.msra.mxu0 %v7052
    %7086 = vmatprep.subr.mxu0 0.0
    %7087 = vmatpush2.xpose.msra.mxu0 0.0
    %7088 = vmatprep.subr.mxu0 0.0
    %7089 = vmatpush2.xpose.msra.mxu0 0.0
    %7090 = vmatprep.subr.mxu0 0.0
    %7091 = vmatpush2.xpose.msra.mxu0 0.0
    %7092 = vmatprep.subr.mxu0 0.0
    %7093 = vmatpush2.xpose.msra.mxu0 0.0
    %7094 = vmatprep.subr.mxu0 0.0
    %7095 = vmatpush2.xpose.msra.mxu0 0.0
    %7096 = vmatprep.subr.mxu0 0.0
    %7097 = vmatpush2.xpose.msra.mxu0 0.0
    %7098 = vmatprep.subr.mxu0 0.0
    %7099 = vmatpush2.xpose.msra.mxu0 0.0
    %7100 = vmatprep.subr.mxu0 0.0
    %7101 = vmatpush2.xpose.msra.mxu0 0.0
    %7102 = vmatprep.subr.mxu0 0.0
    %7103 = vmatpush2.xpose.msra.mxu0 0.0
    %7104 = vmatprep.subr.mxu0 0.0
    %7105 = vmatpush2.xpose.msra.mxu0 0.0
    %7106 = vmatprep.subr.mxu0 0.0
    %7107 = vmatpush2.xpose.msra.mxu0 0.0
    %7108 = vmatprep.subr.mxu0 0.0
    %7109 = vmatpush2.xpose.msra.mxu0 0.0
    %7110 = vmatprep.subr.mxu0 0.0
    %7111 = vmatpush2.xpose.msra.mxu0 0.0
    %7112 = vmatprep.subr.mxu0 0.0
    %7113 = vmatpush2.xpose.msra.mxu0 0.0
    %7114 = vmatprep.subr.mxu0 0.0
    %7115 = vmatpush2.xpose.msra.mxu0 0.0
    %7116 = vmatprep.subr.mxu0 0.0
    %7117 = vmatpush2.xpose.msra.mxu0 0.0
    %7118 = vmatprep.mubr.f32.mxu0 0.0
    %7119 = vmatmul.mubr.f32.gmra.mxu0 %v7049
    %v7120 = vpop.f32.mrf.mxu0
    %v7121 = vadd.f32 0.0, %v7120
    %v7122 = vpop.f32.mrf.mxu0
    %7123 = vdwg.mxu0
    %v7125 = vsel %vm1231, %v6345, 0
    %v7128 = vsel %vm1231, %v6625, 0
    %7130 = vmatprep.subr.mxu0 0.0
    %7131 = vmatpush1.xpose.msra.mxu0 0.0
    %7132 = vmatprep.subr.mxu0 0.0
    %7133 = vmatpush1.xpose.msra.mxu0 0.0
    %7134 = vmatprep.subr.mxu0 0.0
    %7135 = vmatpush1.xpose.msra.mxu0 0.0
    %7136 = vmatprep.subr.mxu0 0.0
    %7137 = vmatpush1.xpose.msra.mxu0 0.0
    %7138 = vmatprep.subr.mxu0 0.0
    %7139 = vmatpush1.xpose.msra.mxu0 0.0
    %7140 = vmatprep.subr.mxu0 0.0
    %7141 = vmatpush1.xpose.msra.mxu0 0.0
    %7142 = vmatprep.subr.mxu0 0.0
    %7143 = vmatpush1.xpose.msra.mxu0 0.0
    %7144 = vmatprep.subr.mxu0 0.0
    %7145 = vmatpush1.xpose.msra.mxu0 0.0
    %7146 = vmatprep.subr.mxu0 0.0
    %7147 = vmatpush1.xpose.msra.mxu0 0.0
    %7148 = vmatprep.subr.mxu0 0.0
    %7149 = vmatpush1.xpose.msra.mxu0 0.0
    %7150 = vmatprep.subr.mxu0 0.0
    %7151 = vmatpush1.xpose.msra.mxu0 0.0
    %7152 = vmatprep.subr.mxu0 0.0
    %7153 = vmatpush1.xpose.msra.mxu0 0.0
    %7154 = vmatprep.subr.mxu0 0.0
    %7155 = vmatpush1.xpose.msra.mxu0 0.0
    %7156 = vmatprep.subr.mxu0 0.0
    %7157 = vmatpush1.xpose.msra.mxu0 0.0
    %7158 = vmatprep.subr.mxu0 0.0
    %7159 = vmatpush1.xpose.msra.mxu0 0.0
    %7160 = vmatprep.subr.mxu0 0.0
    %7161 = vmatpush1.xpose.msra.mxu0 %v7128
    %7162 = vmatprep.subr.mxu0 0.0
    %7163 = vmatpush2.xpose.msra.mxu0 0.0
    %7164 = vmatprep.subr.mxu0 0.0
    %7165 = vmatpush2.xpose.msra.mxu0 0.0
    %7166 = vmatprep.subr.mxu0 0.0
    %7167 = vmatpush2.xpose.msra.mxu0 0.0
    %7168 = vmatprep.subr.mxu0 0.0
    %7169 = vmatpush2.xpose.msra.mxu0 0.0
    %7170 = vmatprep.subr.mxu0 0.0
    %7171 = vmatpush2.xpose.msra.mxu0 0.0
    %7172 = vmatprep.subr.mxu0 0.0
    %7173 = vmatpush2.xpose.msra.mxu0 0.0
    %7174 = vmatprep.subr.mxu0 0.0
    %7175 = vmatpush2.xpose.msra.mxu0 0.0
    %7176 = vmatprep.subr.mxu0 0.0
    %7177 = vmatpush2.xpose.msra.mxu0 0.0
    %7178 = vmatprep.subr.mxu0 0.0
    %7179 = vmatpush2.xpose.msra.mxu0 0.0
    %7180 = vmatprep.subr.mxu0 0.0
    %7181 = vmatpush2.xpose.msra.mxu0 0.0
    %7182 = vmatprep.subr.mxu0 0.0
    %7183 = vmatpush2.xpose.msra.mxu0 0.0
    %7184 = vmatprep.subr.mxu0 0.0
    %7185 = vmatpush2.xpose.msra.mxu0 0.0
    %7186 = vmatprep.subr.mxu0 0.0
    %7187 = vmatpush2.xpose.msra.mxu0 0.0
    %7188 = vmatprep.subr.mxu0 0.0
    %7189 = vmatpush2.xpose.msra.mxu0 0.0
    %7190 = vmatprep.subr.mxu0 0.0
    %7191 = vmatpush2.xpose.msra.mxu0 0.0
    %7192 = vmatprep.subr.mxu0 0.0
    %7193 = vmatpush2.xpose.msra.mxu0 0.0
    %7194 = vmatprep.mubr.f32.mxu0 0.0
    %7195 = vmatmul.mubr.f32.gmra.mxu0 %v7125
    %v7196 = vpop.f32.mrf.mxu0
    %v7197 = vadd.f32 0.0, %v7196
    %v7198 = vpop.f32.mrf.mxu0
    %7199 = vdwg.mxu0
    %v7201 = vsel %vm1231, %v6415, 0
    %v7204 = vsel %vm1231, %v6695, 0
    %7206 = vmatprep.subr.mxu0 0.0
    %7207 = vmatpush1.xpose.msra.mxu0 0.0
    %7208 = vmatprep.subr.mxu0 0.0
    %7209 = vmatpush1.xpose.msra.mxu0 0.0
    %7210 = vmatprep.subr.mxu0 0.0
    %7211 = vmatpush1.xpose.msra.mxu0 0.0
    %7212 = vmatprep.subr.mxu0 0.0
    %7213 = vmatpush1.xpose.msra.mxu0 0.0
    %7214 = vmatprep.subr.mxu0 0.0
    %7215 = vmatpush1.xpose.msra.mxu0 0.0
    %7216 = vmatprep.subr.mxu0 0.0
    %7217 = vmatpush1.xpose.msra.mxu0 0.0
    %7218 = vmatprep.subr.mxu0 0.0
    %7219 = vmatpush1.xpose.msra.mxu0 0.0
    %7220 = vmatprep.subr.mxu0 0.0
    %7221 = vmatpush1.xpose.msra.mxu0 0.0
    %7222 = vmatprep.subr.mxu0 0.0
    %7223 = vmatpush1.xpose.msra.mxu0 0.0
    %7224 = vmatprep.subr.mxu0 0.0
    %7225 = vmatpush1.xpose.msra.mxu0 0.0
    %7226 = vmatprep.subr.mxu0 0.0
    %7227 = vmatpush1.xpose.msra.mxu0 0.0
    %7228 = vmatprep.subr.mxu0 0.0
    %7229 = vmatpush1.xpose.msra.mxu0 0.0
    %7230 = vmatprep.subr.mxu0 0.0
    %7231 = vmatpush1.xpose.msra.mxu0 0.0
    %7232 = vmatprep.subr.mxu0 0.0
    %7233 = vmatpush1.xpose.msra.mxu0 0.0
    %7234 = vmatprep.subr.mxu0 0.0
    %7235 = vmatpush1.xpose.msra.mxu0 0.0
    %7236 = vmatprep.subr.mxu0 0.0
    %7237 = vmatpush1.xpose.msra.mxu0 %v7204
    %7238 = vmatprep.subr.mxu0 0.0
    %7239 = vmatpush2.xpose.msra.mxu0 0.0
    %7240 = vmatprep.subr.mxu0 0.0
    %7241 = vmatpush2.xpose.msra.mxu0 0.0
    %7242 = vmatprep.subr.mxu0 0.0
    %7243 = vmatpush2.xpose.msra.mxu0 0.0
    %7244 = vmatprep.subr.mxu0 0.0
    %7245 = vmatpush2.xpose.msra.mxu0 0.0
    %7246 = vmatprep.subr.mxu0 0.0
    %7247 = vmatpush2.xpose.msra.mxu0 0.0
    %7248 = vmatprep.subr.mxu0 0.0
    %7249 = vmatpush2.xpose.msra.mxu0 0.0
    %7250 = vmatprep.subr.mxu0 0.0
    %7251 = vmatpush2.xpose.msra.mxu0 0.0
    %7252 = vmatprep.subr.mxu0 0.0
    %7253 = vmatpush2.xpose.msra.mxu0 0.0
    %7254 = vmatprep.subr.mxu0 0.0
    %7255 = vmatpush2.xpose.msra.mxu0 0.0
    %7256 = vmatprep.subr.mxu0 0.0
    %7257 = vmatpush2.xpose.msra.mxu0 0.0
    %7258 = vmatprep.subr.mxu0 0.0
    %7259 = vmatpush2.xpose.msra.mxu0 0.0
    %7260 = vmatprep.subr.mxu0 0.0
    %7261 = vmatpush2.xpose.msra.mxu0 0.0
    %7262 = vmatprep.subr.mxu0 0.0
    %7263 = vmatpush2.xpose.msra.mxu0 0.0
    %7264 = vmatprep.subr.mxu0 0.0
    %7265 = vmatpush2.xpose.msra.mxu0 0.0
    %7266 = vmatprep.subr.mxu0 0.0
    %7267 = vmatpush2.xpose.msra.mxu0 0.0
    %7268 = vmatprep.subr.mxu0 0.0
    %7269 = vmatpush2.xpose.msra.mxu0 0.0
    %7270 = vmatprep.mubr.f32.mxu0 0.0
    %7271 = vmatmul.mubr.f32.gmra.mxu0 %v7201
    %v7272 = vpop.f32.mrf.mxu0
    %v7273 = vadd.f32 0.0, %v7272
    %v7274 = vpop.f32.mrf.mxu0
    %7275 = vdwg.mxu0
    %v7277 = vsel %vm1231, %v6485, 0
    %v7280 = vsel %vm1231, %v6765, 0
    %7282 = vmatprep.subr.mxu0 0.0
    %7283 = vmatpush1.xpose.msra.mxu0 0.0
    %7284 = vmatprep.subr.mxu0 0.0
    %7285 = vmatpush1.xpose.msra.mxu0 0.0
    %7286 = vmatprep.subr.mxu0 0.0
    %7287 = vmatpush1.xpose.msra.mxu0 0.0
    %7288 = vmatprep.subr.mxu0 0.0
    %7289 = vmatpush1.xpose.msra.mxu0 0.0
    %7290 = vmatprep.subr.mxu0 0.0
    %7291 = vmatpush1.xpose.msra.mxu0 0.0
    %7292 = vmatprep.subr.mxu0 0.0
    %7293 = vmatpush1.xpose.msra.mxu0 0.0
    %7294 = vmatprep.subr.mxu0 0.0
    %7295 = vmatpush1.xpose.msra.mxu0 0.0
    %7296 = vmatprep.subr.mxu0 0.0
    %7297 = vmatpush1.xpose.msra.mxu0 0.0
    %7298 = vmatprep.subr.mxu0 0.0
    %7299 = vmatpush1.xpose.msra.mxu0 0.0
    %7300 = vmatprep.subr.mxu0 0.0
    %7301 = vmatpush1.xpose.msra.mxu0 0.0
    %7302 = vmatprep.subr.mxu0 0.0
    %7303 = vmatpush1.xpose.msra.mxu0 0.0
    %7304 = vmatprep.subr.mxu0 0.0
    %7305 = vmatpush1.xpose.msra.mxu0 0.0
    %7306 = vmatprep.subr.mxu0 0.0
    %7307 = vmatpush1.xpose.msra.mxu0 0.0
    %7308 = vmatprep.subr.mxu0 0.0
    %7309 = vmatpush1.xpose.msra.mxu0 0.0
    %7310 = vmatprep.subr.mxu0 0.0
    %7311 = vmatpush1.xpose.msra.mxu0 0.0
    %7312 = vmatprep.subr.mxu0 0.0
    %7313 = vmatpush1.xpose.msra.mxu0 %v7280
    %7314 = vmatprep.subr.mxu0 0.0
    %7315 = vmatpush2.xpose.msra.mxu0 0.0
    %7316 = vmatprep.subr.mxu0 0.0
    %7317 = vmatpush2.xpose.msra.mxu0 0.0
    %7318 = vmatprep.subr.mxu0 0.0
    %7319 = vmatpush2.xpose.msra.mxu0 0.0
    %7320 = vmatprep.subr.mxu0 0.0
    %7321 = vmatpush2.xpose.msra.mxu0 0.0
    %7322 = vmatprep.subr.mxu0 0.0
    %7323 = vmatpush2.xpose.msra.mxu0 0.0
    %7324 = vmatprep.subr.mxu0 0.0
    %7325 = vmatpush2.xpose.msra.mxu0 0.0
    %7326 = vmatprep.subr.mxu0 0.0
    %7327 = vmatpush2.xpose.msra.mxu0 0.0
    %7328 = vmatprep.subr.mxu0 0.0
    %7329 = vmatpush2.xpose.msra.mxu0 0.0
    %7330 = vmatprep.subr.mxu0 0.0
    %7331 = vmatpush2.xpose.msra.mxu0 0.0
    %7332 = vmatprep.subr.mxu0 0.0
    %7333 = vmatpush2.xpose.msra.mxu0 0.0
    %7334 = vmatprep.subr.mxu0 0.0
    %7335 = vmatpush2.xpose.msra.mxu0 0.0
    %7336 = vmatprep.subr.mxu0 0.0
    %7337 = vmatpush2.xpose.msra.mxu0 0.0
    %7338 = vmatprep.subr.mxu0 0.0
    %7339 = vmatpush2.xpose.msra.mxu0 0.0
    %7340 = vmatprep.subr.mxu0 0.0
    %7341 = vmatpush2.xpose.msra.mxu0 0.0
    %7342 = vmatprep.subr.mxu0 0.0
    %7343 = vmatpush2.xpose.msra.mxu0 0.0
    %7344 = vmatprep.subr.mxu0 0.0
    %7345 = vmatpush2.xpose.msra.mxu0 0.0
    %7346 = vmatprep.mubr.f32.mxu0 0.0
    %7347 = vmatmul.mubr.f32.gmra.mxu0 %v7277
    %v7348 = vpop.f32.mrf.mxu0
    %v7349 = vadd.f32 0.0, %v7348
    %v7350 = vpop.f32.mrf.mxu0
    %7351 = vdwg.mxu0
    %v7352 = vmul.f32 %v7121, 0.35355338
    %v7353 = vmul.f32 %v7197, 0.35355338
    %v7354 = vmul.f32 %v7273, 0.35355338
    %v7355 = vmul.f32 %v7349, 0.35355338
    %v7356 = vadd.f32 %v7352, %v188
    %v7357 = vadd.f32 %v7353, %v188
    %v7358 = vadd.f32 %v7354, %v188
    %v7359 = vadd.f32 %v7355, %v188
    %v7360 = vsel %vm1231, %v7356, -inf
    %7361 = vmax.xlane.f32.xlu0 %v7360
    %v7362 = vpop.xlane.xlu0 %7361
    %v7363 = vsel %vm1231, %v7357, -inf
    %7364 = vmax.xlane.f32.xlu0 %v7363
    %v7365 = vpop.xlane.xlu0 %7364
    %v7366 = vsel %vm1231, %v7358, -inf
    %7367 = vmax.xlane.f32.xlu0 %v7366
    %v7368 = vpop.xlane.xlu0 %7367
    %v7369 = vsel %vm1231, %v7359, -inf
    %7370 = vmax.xlane.f32.xlu0 %v7369
    %v7371 = vpop.xlane.xlu0 %7370
    %v7372 = vsub.f32 %v7356, %v7362
    %v7373 = vsub.f32 %v7357, %v7365
    %v7374 = vsub.f32 %v7358, %v7368
    %v7375 = vsub.f32 %v7359, %v7371
    %v7376 = vmul.f32 %v7372, 1.442695
    %v7377 = vpow.pop %v7376
    %v7378 = vmul.f32 %v7373, 1.442695
    %v7379 = vpow.pop %v7378
    %v7380 = vmul.f32 %v7374, 1.442695
    %v7381 = vpow.pop %v7380
    %v7382 = vmul.f32 %v7375, 1.442695
    %v7383 = vpow.pop %v7382
    %v7384 = vsel %vm1231, %v7377, 0.0
    %7385 = vadd.xlane.f32.xlu0 %v7384
    %v7386 = vpop.xlane.xlu0 %7385
    %v7387 = vsel %vm1231, %v7379, 0.0
    %7388 = vadd.xlane.f32.xlu0 %v7387
    %v7389 = vpop.xlane.xlu0 %7388
    %v7390 = vsel %vm1231, %v7381, 0.0
    %7391 = vadd.xlane.f32.xlu0 %v7390
    %v7392 = vpop.xlane.xlu0 %7391
    %v7393 = vsel %vm1231, %v7383, 0.0
    %7394 = vadd.xlane.f32.xlu0 %v7393
    %v7395 = vpop.xlane.xlu0 %7394
    %v7396 = vrcp.pop %v7386
    %v7397 = vmul.f32 %v7377, %v7396
    %v7398 = vrcp.pop %v7389
    %v7399 = vmul.f32 %v7379, %v7398
    %v7400 = vrcp.pop %v7392
    %v7401 = vmul.f32 %v7381, %v7400
    %v7402 = vrcp.pop %v7395
    %v7403 = vmul.f32 %v7383, %v7402
    %v7405 = vsel %vm1231, %v7397, 0
    %7407 = vmatprep.subr.mxu0 0.0
    %7408 = vmatpush1.msra.mxu0 0.0
    %7409 = vmatprep.subr.mxu0 0.0
    %7410 = vmatpush1.msra.mxu0 0.0
    %7411 = vmatprep.subr.mxu0 0.0
    %7412 = vmatpush1.msra.mxu0 0.0
    %7413 = vmatprep.subr.mxu0 0.0
    %7414 = vmatpush1.msra.mxu0 0.0
    %7415 = vmatprep.subr.mxu0 0.0
    %7416 = vmatpush1.msra.mxu0 0.0
    %7417 = vmatprep.subr.mxu0 0.0
    %7418 = vmatpush1.msra.mxu0 0.0
    %7419 = vmatprep.subr.mxu0 0.0
    %7420 = vmatpush1.msra.mxu0 0.0
    %7421 = vmatprep.subr.mxu0 0.0
    %7422 = vmatpush1.msra.mxu0 0.0
    %7423 = vmatprep.subr.mxu0 0.0
    %7424 = vmatpush1.msra.mxu0 0.0
    %7425 = vmatprep.subr.mxu0 0.0
    %7426 = vmatpush1.msra.mxu0 0.0
    %7427 = vmatprep.subr.mxu0 0.0
    %7428 = vmatpush1.msra.mxu0 0.0
    %7429 = vmatprep.subr.mxu0 0.0
    %7430 = vmatpush1.msra.mxu0 0.0
    %7431 = vmatprep.subr.mxu0 0.0
    %7432 = vmatpush1.msra.mxu0 0.0
    %7433 = vmatprep.subr.mxu0 0.0
    %7434 = vmatpush1.msra.mxu0 0.0
    %7435 = vmatprep.subr.mxu0 0.0
    %7436 = vmatpush1.msra.mxu0 0.0
    %7437 = vmatprep.subr.mxu0 0.0
    %7438 = vmatpush1.msra.mxu0 %v6835
    %7439 = vmatprep.subr.mxu0 0.0
    %7440 = vmatpush2.msra.mxu0 0.0
    %7441 = vmatprep.subr.mxu0 0.0
    %7442 = vmatpush2.msra.mxu0 0.0
    %7443 = vmatprep.subr.mxu0 0.0
    %7444 = vmatpush2.msra.mxu0 0.0
    %7445 = vmatprep.subr.mxu0 0.0
    %7446 = vmatpush2.msra.mxu0 0.0
    %7447 = vmatprep.subr.mxu0 0.0
    %7448 = vmatpush2.msra.mxu0 0.0
    %7449 = vmatprep.subr.mxu0 0.0
    %7450 = vmatpush2.msra.mxu0 0.0
    %7451 = vmatprep.subr.mxu0 0.0
    %7452 = vmatpush2.msra.mxu0 0.0
    %7453 = vmatprep.subr.mxu0 0.0
    %7454 = vmatpush2.msra.mxu0 0.0
    %7455 = vmatprep.subr.mxu0 0.0
    %7456 = vmatpush2.msra.mxu0 0.0
    %7457 = vmatprep.subr.mxu0 0.0
    %7458 = vmatpush2.msra.mxu0 0.0
    %7459 = vmatprep.subr.mxu0 0.0
    %7460 = vmatpush2.msra.mxu0 0.0
    %7461 = vmatprep.subr.mxu0 0.0
    %7462 = vmatpush2.msra.mxu0 0.0
    %7463 = vmatprep.subr.mxu0 0.0
    %7464 = vmatpush2.msra.mxu0 0.0
    %7465 = vmatprep.subr.mxu0 0.0
    %7466 = vmatpush2.msra.mxu0 0.0
    %7467 = vmatprep.subr.mxu0 0.0
    %7468 = vmatpush2.msra.mxu0 0.0
    %7469 = vmatprep.subr.mxu0 0.0
    %7470 = vmatpush2.msra.mxu0 0.0
    %7471 = vmatprep.mubr.f32.mxu0 0.0
    %7472 = vmatmul.mubr.f32.gmra.mxu0 %v7405
    %v7473 = vpop.f32.mrf.mxu0
    %v7474 = vadd.f32 0.0, %v7473
    %v7475 = vpop.f32.mrf.mxu0
    %7476 = vdwg.mxu0
    %v7478 = vsel %vm1231, %v7399, 0
    %7480 = vmatprep.subr.mxu0 0.0
    %7481 = vmatpush1.msra.mxu0 0.0
    %7482 = vmatprep.subr.mxu0 0.0
    %7483 = vmatpush1.msra.mxu0 0.0
    %7484 = vmatprep.subr.mxu0 0.0
    %7485 = vmatpush1.msra.mxu0 0.0
    %7486 = vmatprep.subr.mxu0 0.0
    %7487 = vmatpush1.msra.mxu0 0.0
    %7488 = vmatprep.subr.mxu0 0.0
    %7489 = vmatpush1.msra.mxu0 0.0
    %7490 = vmatprep.subr.mxu0 0.0
    %7491 = vmatpush1.msra.mxu0 0.0
    %7492 = vmatprep.subr.mxu0 0.0
    %7493 = vmatpush1.msra.mxu0 0.0
    %7494 = vmatprep.subr.mxu0 0.0
    %7495 = vmatpush1.msra.mxu0 0.0
    %7496 = vmatprep.subr.mxu0 0.0
    %7497 = vmatpush1.msra.mxu0 0.0
    %7498 = vmatprep.subr.mxu0 0.0
    %7499 = vmatpush1.msra.mxu0 0.0
    %7500 = vmatprep.subr.mxu0 0.0
    %7501 = vmatpush1.msra.mxu0 0.0
    %7502 = vmatprep.subr.mxu0 0.0
    %7503 = vmatpush1.msra.mxu0 0.0
    %7504 = vmatprep.subr.mxu0 0.0
    %7505 = vmatpush1.msra.mxu0 0.0
    %7506 = vmatprep.subr.mxu0 0.0
    %7507 = vmatpush1.msra.mxu0 0.0
    %7508 = vmatprep.subr.mxu0 0.0
    %7509 = vmatpush1.msra.mxu0 0.0
    %7510 = vmatprep.subr.mxu0 0.0
    %7511 = vmatpush1.msra.mxu0 %v6905
    %7512 = vmatprep.subr.mxu0 0.0
    %7513 = vmatpush2.msra.mxu0 0.0
    %7514 = vmatprep.subr.mxu0 0.0
    %7515 = vmatpush2.msra.mxu0 0.0
    %7516 = vmatprep.subr.mxu0 0.0
    %7517 = vmatpush2.msra.mxu0 0.0
    %7518 = vmatprep.subr.mxu0 0.0
    %7519 = vmatpush2.msra.mxu0 0.0
    %7520 = vmatprep.subr.mxu0 0.0
    %7521 = vmatpush2.msra.mxu0 0.0
    %7522 = vmatprep.subr.mxu0 0.0
    %7523 = vmatpush2.msra.mxu0 0.0
    %7524 = vmatprep.subr.mxu0 0.0
    %7525 = vmatpush2.msra.mxu0 0.0
    %7526 = vmatprep.subr.mxu0 0.0
    %7527 = vmatpush2.msra.mxu0 0.0
    %7528 = vmatprep.subr.mxu0 0.0
    %7529 = vmatpush2.msra.mxu0 0.0
    %7530 = vmatprep.subr.mxu0 0.0
    %7531 = vmatpush2.msra.mxu0 0.0
    %7532 = vmatprep.subr.mxu0 0.0
    %7533 = vmatpush2.msra.mxu0 0.0
    %7534 = vmatprep.subr.mxu0 0.0
    %7535 = vmatpush2.msra.mxu0 0.0
    %7536 = vmatprep.subr.mxu0 0.0
    %7537 = vmatpush2.msra.mxu0 0.0
    %7538 = vmatprep.subr.mxu0 0.0
    %7539 = vmatpush2.msra.mxu0 0.0
    %7540 = vmatprep.subr.mxu0 0.0
    %7541 = vmatpush2.msra.mxu0 0.0
    %7542 = vmatprep.subr.mxu0 0.0
    %7543 = vmatpush2.msra.mxu0 0.0
    %7544 = vmatprep.mubr.f32.mxu0 0.0
    %7545 = vmatmul.mubr.f32.gmra.mxu0 %v7478
    %v7546 = vpop.f32.mrf.mxu0
    %v7547 = vadd.f32 0.0, %v7546
    %v7548 = vpop.f32.mrf.mxu0
    %7549 = vdwg.mxu0
    %v7551 = vsel %vm1231, %v7401, 0
    %7553 = vmatprep.subr.mxu0 0.0
    %7554 = vmatpush1.msra.mxu0 0.0
    %7555 = vmatprep.subr.mxu0 0.0
    %7556 = vmatpush1.msra.mxu0 0.0
    %7557 = vmatprep.subr.mxu0 0.0
    %7558 = vmatpush1.msra.mxu0 0.0
    %7559 = vmatprep.subr.mxu0 0.0
    %7560 = vmatpush1.msra.mxu0 0.0
    %7561 = vmatprep.subr.mxu0 0.0
    %7562 = vmatpush1.msra.mxu0 0.0
    %7563 = vmatprep.subr.mxu0 0.0
    %7564 = vmatpush1.msra.mxu0 0.0
    %7565 = vmatprep.subr.mxu0 0.0
    %7566 = vmatpush1.msra.mxu0 0.0
    %7567 = vmatprep.subr.mxu0 0.0
    %7568 = vmatpush1.msra.mxu0 0.0
    %7569 = vmatprep.subr.mxu0 0.0
    %7570 = vmatpush1.msra.mxu0 0.0
    %7571 = vmatprep.subr.mxu0 0.0
    %7572 = vmatpush1.msra.mxu0 0.0
    %7573 = vmatprep.subr.mxu0 0.0
    %7574 = vmatpush1.msra.mxu0 0.0
    %7575 = vmatprep.subr.mxu0 0.0
    %7576 = vmatpush1.msra.mxu0 0.0
    %7577 = vmatprep.subr.mxu0 0.0
    %7578 = vmatpush1.msra.mxu0 0.0
    %7579 = vmatprep.subr.mxu0 0.0
    %7580 = vmatpush1.msra.mxu0 0.0
    %7581 = vmatprep.subr.mxu0 0.0
    %7582 = vmatpush1.msra.mxu0 0.0
    %7583 = vmatprep.subr.mxu0 0.0
    %7584 = vmatpush1.msra.mxu0 %v6975
    %7585 = vmatprep.subr.mxu0 0.0
    %7586 = vmatpush2.msra.mxu0 0.0
    %7587 = vmatprep.subr.mxu0 0.0
    %7588 = vmatpush2.msra.mxu0 0.0
    %7589 = vmatprep.subr.mxu0 0.0
    %7590 = vmatpush2.msra.mxu0 0.0
    %7591 = vmatprep.subr.mxu0 0.0
    %7592 = vmatpush2.msra.mxu0 0.0
    %7593 = vmatprep.subr.mxu0 0.0
    %7594 = vmatpush2.msra.mxu0 0.0
    %7595 = vmatprep.subr.mxu0 0.0
    %7596 = vmatpush2.msra.mxu0 0.0
    %7597 = vmatprep.subr.mxu0 0.0
    %7598 = vmatpush2.msra.mxu0 0.0
    %7599 = vmatprep.subr.mxu0 0.0
    %7600 = vmatpush2.msra.mxu0 0.0
    %7601 = vmatprep.subr.mxu0 0.0
    %7602 = vmatpush2.msra.mxu0 0.0
    %7603 = vmatprep.subr.mxu0 0.0
    %7604 = vmatpush2.msra.mxu0 0.0
    %7605 = vmatprep.subr.mxu0 0.0
    %7606 = vmatpush2.msra.mxu0 0.0
    %7607 = vmatprep.subr.mxu0 0.0
    %7608 = vmatpush2.msra.mxu0 0.0
    %7609 = vmatprep.subr.mxu0 0.0
    %7610 = vmatpush2.msra.mxu0 0.0
    %7611 = vmatprep.subr.mxu0 0.0
    %7612 = vmatpush2.msra.mxu0 0.0
    %7613 = vmatprep.subr.mxu0 0.0
    %7614 = vmatpush2.msra.mxu0 0.0
    %7615 = vmatprep.subr.mxu0 0.0
    %7616 = vmatpush2.msra.mxu0 0.0
    %7617 = vmatprep.mubr.f32.mxu0 0.0
    %7618 = vmatmul.mubr.f32.gmra.mxu0 %v7551
    %v7619 = vpop.f32.mrf.mxu0
    %v7620 = vadd.f32 0.0, %v7619
    %v7621 = vpop.f32.mrf.mxu0
    %7622 = vdwg.mxu0
    %v7624 = vsel %vm1231, %v7403, 0
    %7626 = vmatprep.subr.mxu0 0.0
    %7627 = vmatpush1.msra.mxu0 0.0
    %7628 = vmatprep.subr.mxu0 0.0
    %7629 = vmatpush1.msra.mxu0 0.0
    %7630 = vmatprep.subr.mxu0 0.0
    %7631 = vmatpush1.msra.mxu0 0.0
    %7632 = vmatprep.subr.mxu0 0.0
    %7633 = vmatpush1.msra.mxu0 0.0
    %7634 = vmatprep.subr.mxu0 0.0
    %7635 = vmatpush1.msra.mxu0 0.0
    %7636 = vmatprep.subr.mxu0 0.0
    %7637 = vmatpush1.msra.mxu0 0.0
    %7638 = vmatprep.subr.mxu0 0.0
    %7639 = vmatpush1.msra.mxu0 0.0
    %7640 = vmatprep.subr.mxu0 0.0
    %7641 = vmatpush1.msra.mxu0 0.0
    %7642 = vmatprep.subr.mxu0 0.0
    %7643 = vmatpush1.msra.mxu0 0.0
    %7644 = vmatprep.subr.mxu0 0.0
    %7645 = vmatpush1.msra.mxu0 0.0
    %7646 = vmatprep.subr.mxu0 0.0
    %7647 = vmatpush1.msra.mxu0 0.0
    %7648 = vmatprep.subr.mxu0 0.0
    %7649 = vmatpush1.msra.mxu0 0.0
    %7650 = vmatprep.subr.mxu0 0.0
    %7651 = vmatpush1.msra.mxu0 0.0
    %7652 = vmatprep.subr.mxu0 0.0
    %7653 = vmatpush1.msra.mxu0 0.0
    %7654 = vmatprep.subr.mxu0 0.0
    %7655 = vmatpush1.msra.mxu0 0.0
    %7656 = vmatprep.subr.mxu0 0.0
    %7657 = vmatpush1.msra.mxu0 %v7045
    %7658 = vmatprep.subr.mxu0 0.0
    %7659 = vmatpush2.msra.mxu0 0.0
    %7660 = vmatprep.subr.mxu0 0.0
    %7661 = vmatpush2.msra.mxu0 0.0
    %7662 = vmatprep.subr.mxu0 0.0
    %7663 = vmatpush2.msra.mxu0 0.0
    %7664 = vmatprep.subr.mxu0 0.0
    %7665 = vmatpush2.msra.mxu0 0.0
    %7666 = vmatprep.subr.mxu0 0.0
    %7667 = vmatpush2.msra.mxu0 0.0
    %7668 = vmatprep.subr.mxu0 0.0
    %7669 = vmatpush2.msra.mxu0 0.0
    %7670 = vmatprep.subr.mxu0 0.0
    %7671 = vmatpush2.msra.mxu0 0.0
    %7672 = vmatprep.subr.mxu0 0.0
    %7673 = vmatpush2.msra.mxu0 0.0
    %7674 = vmatprep.subr.mxu0 0.0
    %7675 = vmatpush2.msra.mxu0 0.0
    %7676 = vmatprep.subr.mxu0 0.0
    %7677 = vmatpush2.msra.mxu0 0.0
    %7678 = vmatprep.subr.mxu0 0.0
    %7679 = vmatpush2.msra.mxu0 0.0
    %7680 = vmatprep.subr.mxu0 0.0
    %7681 = vmatpush2.msra.mxu0 0.0
    %7682 = vmatprep.subr.mxu0 0.0
    %7683 = vmatpush2.msra.mxu0 0.0
    %7684 = vmatprep.subr.mxu0 0.0
    %7685 = vmatpush2.msra.mxu0 0.0
    %7686 = vmatprep.subr.mxu0 0.0
    %7687 = vmatpush2.msra.mxu0 0.0
    %7688 = vmatprep.subr.mxu0 0.0
    %7689 = vmatpush2.msra.mxu0 0.0
    %7690 = vmatprep.mubr.f32.mxu0 0.0
    %7691 = vmatmul.mubr.f32.gmra.mxu0 %v7624
    %v7692 = vpop.f32.mrf.mxu0
    %v7693 = vadd.f32 0.0, %v7692
    %v7694 = vpop.f32.mrf.mxu0
    %7695 = vdwg.mxu0
    %v7697 = vsel %vm1231, %v7474, 0
    %7699 = vmatprep.subr.mxu0 0.0
    %7700 = vmatpush1.msra.mxu0 0.0
    %7701 = vmatprep.subr.mxu0 0.0
    %7702 = vmatpush1.msra.mxu0 0.0
    %7703 = vmatprep.subr.mxu0 0.0
    %7704 = vmatpush1.msra.mxu0 0.0
    %7705 = vmatprep.subr.mxu0 0.0
    %7706 = vmatpush1.msra.mxu0 0.0
    %7707 = vmatprep.subr.mxu0 0.0
    %7708 = vmatpush1.msra.mxu0 0.0
    %7709 = vmatprep.subr.mxu0 0.0
    %7710 = vmatpush1.msra.mxu0 0.0
    %7711 = vmatprep.subr.mxu0 0.0
    %7712 = vmatpush1.msra.mxu0 0.0
    %7713 = vmatprep.subr.mxu0 0.0
    %7714 = vmatpush1.msra.mxu0 0.0
    %7715 = vmatprep.subr.mxu0 0.0
    %7716 = vmatpush1.msra.mxu0 0.0
    %7717 = vmatprep.subr.mxu0 0.0
    %7718 = vmatpush1.msra.mxu0 0.0
    %7719 = vmatprep.subr.mxu0 0.0
    %7720 = vmatpush1.msra.mxu0 0.0
    %7721 = vmatprep.subr.mxu0 0.0
    %7722 = vmatpush1.msra.mxu0 0.0
    %7723 = vmatprep.subr.mxu0 0.0
    %7724 = vmatpush1.msra.mxu0 0.0
    %7725 = vmatprep.subr.mxu0 0.0
    %7726 = vmatpush1.msra.mxu0 0.0
    %7727 = vmatprep.subr.mxu0 0.0
    %7728 = vmatpush1.msra.mxu0 0.0
    %7729 = vmatprep.subr.mxu0 0.0
    %7730 = vmatpush1.msra.mxu0 %v4297
    %7731 = vmatprep.subr.mxu0 0.0
    %7732 = vmatpush2.msra.mxu0 0.0
    %7733 = vmatprep.subr.mxu0 0.0
    %7734 = vmatpush2.msra.mxu0 0.0
    %7735 = vmatprep.subr.mxu0 0.0
    %7736 = vmatpush2.msra.mxu0 0.0
    %7737 = vmatprep.subr.mxu0 0.0
    %7738 = vmatpush2.msra.mxu0 0.0
    %7739 = vmatprep.subr.mxu0 0.0
    %7740 = vmatpush2.msra.mxu0 0.0
    %7741 = vmatprep.subr.mxu0 0.0
    %7742 = vmatpush2.msra.mxu0 0.0
    %7743 = vmatprep.subr.mxu0 0.0
    %7744 = vmatpush2.msra.mxu0 0.0
    %7745 = vmatprep.subr.mxu0 0.0
    %7746 = vmatpush2.msra.mxu0 0.0
    %7747 = vmatprep.subr.mxu0 0.0
    %7748 = vmatpush2.msra.mxu0 0.0
    %7749 = vmatprep.subr.mxu0 0.0
    %7750 = vmatpush2.msra.mxu0 0.0
    %7751 = vmatprep.subr.mxu0 0.0
    %7752 = vmatpush2.msra.mxu0 0.0
    %7753 = vmatprep.subr.mxu0 0.0
    %7754 = vmatpush2.msra.mxu0 0.0
    %7755 = vmatprep.subr.mxu0 0.0
    %7756 = vmatpush2.msra.mxu0 0.0
    %7757 = vmatprep.subr.mxu0 0.0
    %7758 = vmatpush2.msra.mxu0 0.0
    %7759 = vmatprep.subr.mxu0 0.0
    %7760 = vmatpush2.msra.mxu0 0.0
    %7761 = vmatprep.subr.mxu0 0.0
    %7762 = vmatpush2.msra.mxu0 0.0
    %7763 = vmatprep.mubr.f32.mxu0 0.0
    %7764 = vmatmul.mubr.f32.gmra.mxu0 %v7697
    %v7765 = vpop.f32.mrf.mxu0
    %v7766 = vadd.f32 0.0, %v7765
    %v7767 = vpop.f32.mrf.mxu0
    %7768 = vdwg.mxu0
    %v7770 = vsel %vm1231, %v7547, 0
    %7772 = vmatprep.subr.mxu0 0.0
    %7773 = vmatpush1.msra.mxu0 0.0
    %7774 = vmatprep.subr.mxu0 0.0
    %7775 = vmatpush1.msra.mxu0 0.0
    %7776 = vmatprep.subr.mxu0 0.0
    %7777 = vmatpush1.msra.mxu0 0.0
    %7778 = vmatprep.subr.mxu0 0.0
    %7779 = vmatpush1.msra.mxu0 0.0
    %7780 = vmatprep.subr.mxu0 0.0
    %7781 = vmatpush1.msra.mxu0 0.0
    %7782 = vmatprep.subr.mxu0 0.0
    %7783 = vmatpush1.msra.mxu0 0.0
    %7784 = vmatprep.subr.mxu0 0.0
    %7785 = vmatpush1.msra.mxu0 0.0
    %7786 = vmatprep.subr.mxu0 0.0
    %7787 = vmatpush1.msra.mxu0 0.0
    %7788 = vmatprep.subr.mxu0 0.0
    %7789 = vmatpush1.msra.mxu0 0.0
    %7790 = vmatprep.subr.mxu0 0.0
    %7791 = vmatpush1.msra.mxu0 0.0
    %7792 = vmatprep.subr.mxu0 0.0
    %7793 = vmatpush1.msra.mxu0 0.0
    %7794 = vmatprep.subr.mxu0 0.0
    %7795 = vmatpush1.msra.mxu0 0.0
    %7796 = vmatprep.subr.mxu0 0.0
    %7797 = vmatpush1.msra.mxu0 0.0
    %7798 = vmatprep.subr.mxu0 0.0
    %7799 = vmatpush1.msra.mxu0 0.0
    %7800 = vmatprep.subr.mxu0 0.0
    %7801 = vmatpush1.msra.mxu0 0.0
    %7802 = vmatprep.subr.mxu0 0.0
    %7803 = vmatpush1.msra.mxu0 %v4298
    %7804 = vmatprep.subr.mxu0 0.0
    %7805 = vmatpush2.msra.mxu0 0.0
    %7806 = vmatprep.subr.mxu0 0.0
    %7807 = vmatpush2.msra.mxu0 0.0
    %7808 = vmatprep.subr.mxu0 0.0
    %7809 = vmatpush2.msra.mxu0 0.0
    %7810 = vmatprep.subr.mxu0 0.0
    %7811 = vmatpush2.msra.mxu0 0.0
    %7812 = vmatprep.subr.mxu0 0.0
    %7813 = vmatpush2.msra.mxu0 0.0
    %7814 = vmatprep.subr.mxu0 0.0
    %7815 = vmatpush2.msra.mxu0 0.0
    %7816 = vmatprep.subr.mxu0 0.0
    %7817 = vmatpush2.msra.mxu0 0.0
    %7818 = vmatprep.subr.mxu0 0.0
    %7819 = vmatpush2.msra.mxu0 0.0
    %7820 = vmatprep.subr.mxu0 0.0
    %7821 = vmatpush2.msra.mxu0 0.0
    %7822 = vmatprep.subr.mxu0 0.0
    %7823 = vmatpush2.msra.mxu0 0.0
    %7824 = vmatprep.subr.mxu0 0.0
    %7825 = vmatpush2.msra.mxu0 0.0
    %7826 = vmatprep.subr.mxu0 0.0
    %7827 = vmatpush2.msra.mxu0 0.0
    %7828 = vmatprep.subr.mxu0 0.0
    %7829 = vmatpush2.msra.mxu0 0.0
    %7830 = vmatprep.subr.mxu0 0.0
    %7831 = vmatpush2.msra.mxu0 0.0
    %7832 = vmatprep.subr.mxu0 0.0
    %7833 = vmatpush2.msra.mxu0 0.0
    %7834 = vmatprep.subr.mxu0 0.0
    %7835 = vmatpush2.msra.mxu0 0.0
    %7836 = vmatprep.mubr.f32.mxu0 0.0
    %7837 = vmatmul.mubr.f32.gmra.mxu0 %v7770
    %v7838 = vpop.f32.mrf.mxu0
    %v7839 = vadd.f32 0.0, %v7838
    %v7840 = vpop.f32.mrf.mxu0
    %7841 = vdwg.mxu0
    %v7843 = vsel %vm1231, %v7620, 0
    %7845 = vmatprep.subr.mxu0 0.0
    %7846 = vmatpush1.msra.mxu0 0.0
    %7847 = vmatprep.subr.mxu0 0.0
    %7848 = vmatpush1.msra.mxu0 0.0
    %7849 = vmatprep.subr.mxu0 0.0
    %7850 = vmatpush1.msra.mxu0 0.0
    %7851 = vmatprep.subr.mxu0 0.0
    %7852 = vmatpush1.msra.mxu0 0.0
    %7853 = vmatprep.subr.mxu0 0.0
    %7854 = vmatpush1.msra.mxu0 0.0
    %7855 = vmatprep.subr.mxu0 0.0
    %7856 = vmatpush1.msra.mxu0 0.0
    %7857 = vmatprep.subr.mxu0 0.0
    %7858 = vmatpush1.msra.mxu0 0.0
    %7859 = vmatprep.subr.mxu0 0.0
    %7860 = vmatpush1.msra.mxu0 0.0
    %7861 = vmatprep.subr.mxu0 0.0
    %7862 = vmatpush1.msra.mxu0 0.0
    %7863 = vmatprep.subr.mxu0 0.0
    %7864 = vmatpush1.msra.mxu0 0.0
    %7865 = vmatprep.subr.mxu0 0.0
    %7866 = vmatpush1.msra.mxu0 0.0
    %7867 = vmatprep.subr.mxu0 0.0
    %7868 = vmatpush1.msra.mxu0 0.0
    %7869 = vmatprep.subr.mxu0 0.0
    %7870 = vmatpush1.msra.mxu0 0.0
    %7871 = vmatprep.subr.mxu0 0.0
    %7872 = vmatpush1.msra.mxu0 0.0
    %7873 = vmatprep.subr.mxu0 0.0
    %7874 = vmatpush1.msra.mxu0 0.0
    %7875 = vmatprep.subr.mxu0 0.0
    %7876 = vmatpush1.msra.mxu0 %v4299
    %7877 = vmatprep.subr.mxu0 0.0
    %7878 = vmatpush2.msra.mxu0 0.0
    %7879 = vmatprep.subr.mxu0 0.0
    %7880 = vmatpush2.msra.mxu0 0.0
    %7881 = vmatprep.subr.mxu0 0.0
    %7882 = vmatpush2.msra.mxu0 0.0
    %7883 = vmatprep.subr.mxu0 0.0
    %7884 = vmatpush2.msra.mxu0 0.0
    %7885 = vmatprep.subr.mxu0 0.0
    %7886 = vmatpush2.msra.mxu0 0.0
    %7887 = vmatprep.subr.mxu0 0.0
    %7888 = vmatpush2.msra.mxu0 0.0
    %7889 = vmatprep.subr.mxu0 0.0
    %7890 = vmatpush2.msra.mxu0 0.0
    %7891 = vmatprep.subr.mxu0 0.0
    %7892 = vmatpush2.msra.mxu0 0.0
    %7893 = vmatprep.subr.mxu0 0.0
    %7894 = vmatpush2.msra.mxu0 0.0
    %7895 = vmatprep.subr.mxu0 0.0
    %7896 = vmatpush2.msra.mxu0 0.0
    %7897 = vmatprep.subr.mxu0 0.0
    %7898 = vmatpush2.msra.mxu0 0.0
    %7899 = vmatprep.subr.mxu0 0.0
    %7900 = vmatpush2.msra.mxu0 0.0
    %7901 = vmatprep.subr.mxu0 0.0
    %7902 = vmatpush2.msra.mxu0 0.0
    %7903 = vmatprep.subr.mxu0 0.0
    %7904 = vmatpush2.msra.mxu0 0.0
    %7905 = vmatprep.subr.mxu0 0.0
    %7906 = vmatpush2.msra.mxu0 0.0
    %7907 = vmatprep.subr.mxu0 0.0
    %7908 = vmatpush2.msra.mxu0 0.0
    %7909 = vmatprep.mubr.f32.mxu0 0.0
    %7910 = vmatmul.mubr.f32.gmra.mxu0 %v7843
    %v7911 = vpop.f32.mrf.mxu0
    %v7912 = vadd.f32 0.0, %v7911
    %v7913 = vpop.f32.mrf.mxu0
    %7914 = vdwg.mxu0
    %v7916 = vsel %vm1231, %v7693, 0
    %7918 = vmatprep.subr.mxu0 0.0
    %7919 = vmatpush1.msra.mxu0 0.0
    %7920 = vmatprep.subr.mxu0 0.0
    %7921 = vmatpush1.msra.mxu0 0.0
    %7922 = vmatprep.subr.mxu0 0.0
    %7923 = vmatpush1.msra.mxu0 0.0
    %7924 = vmatprep.subr.mxu0 0.0
    %7925 = vmatpush1.msra.mxu0 0.0
    %7926 = vmatprep.subr.mxu0 0.0
    %7927 = vmatpush1.msra.mxu0 0.0
    %7928 = vmatprep.subr.mxu0 0.0
    %7929 = vmatpush1.msra.mxu0 0.0
    %7930 = vmatprep.subr.mxu0 0.0
    %7931 = vmatpush1.msra.mxu0 0.0
    %7932 = vmatprep.subr.mxu0 0.0
    %7933 = vmatpush1.msra.mxu0 0.0
    %7934 = vmatprep.subr.mxu0 0.0
    %7935 = vmatpush1.msra.mxu0 0.0
    %7936 = vmatprep.subr.mxu0 0.0
    %7937 = vmatpush1.msra.mxu0 0.0
    %7938 = vmatprep.subr.mxu0 0.0
    %7939 = vmatpush1.msra.mxu0 0.0
    %7940 = vmatprep.subr.mxu0 0.0
    %7941 = vmatpush1.msra.mxu0 0.0
    %7942 = vmatprep.subr.mxu0 0.0
    %7943 = vmatpush1.msra.mxu0 0.0
    %7944 = vmatprep.subr.mxu0 0.0
    %7945 = vmatpush1.msra.mxu0 0.0
    %7946 = vmatprep.subr.mxu0 0.0
    %7947 = vmatpush1.msra.mxu0 0.0
    %7948 = vmatprep.subr.mxu0 0.0
    %7949 = vmatpush1.msra.mxu0 %v4300
    %7950 = vmatprep.subr.mxu0 0.0
    %7951 = vmatpush2.msra.mxu0 0.0
    %7952 = vmatprep.subr.mxu0 0.0
    %7953 = vmatpush2.msra.mxu0 0.0
    %7954 = vmatprep.subr.mxu0 0.0
    %7955 = vmatpush2.msra.mxu0 0.0
    %7956 = vmatprep.subr.mxu0 0.0
    %7957 = vmatpush2.msra.mxu0 0.0
    %7958 = vmatprep.subr.mxu0 0.0
    %7959 = vmatpush2.msra.mxu0 0.0
    %7960 = vmatprep.subr.mxu0 0.0
    %7961 = vmatpush2.msra.mxu0 0.0
    %7962 = vmatprep.subr.mxu0 0.0
    %7963 = vmatpush2.msra.mxu0 0.0
    %7964 = vmatprep.subr.mxu0 0.0
    %7965 = vmatpush2.msra.mxu0 0.0
    %7966 = vmatprep.subr.mxu0 0.0
    %7967 = vmatpush2.msra.mxu0 0.0
    %7968 = vmatprep.subr.mxu0 0.0
    %7969 = vmatpush2.msra.mxu0 0.0
    %7970 = vmatprep.subr.mxu0 0.0
    %7971 = vmatpush2.msra.mxu0 0.0
    %7972 = vmatprep.subr.mxu0 0.0
    %7973 = vmatpush2.msra.mxu0 0.0
    %7974 = vmatprep.subr.mxu0 0.0
    %7975 = vmatpush2.msra.mxu0 0.0
    %7976 = vmatprep.subr.mxu0 0.0
    %7977 = vmatpush2.msra.mxu0 0.0
    %7978 = vmatprep.subr.mxu0 0.0
    %7979 = vmatpush2.msra.mxu0 0.0
    %7980 = vmatprep.subr.mxu0 0.0
    %7981 = vmatpush2.msra.mxu0 0.0
    %7982 = vmatprep.mubr.f32.mxu0 0.0
    %7983 = vmatmul.mubr.f32.gmra.mxu0 %v7916
    %v7984 = vpop.f32.mrf.mxu0
    %v7985 = vadd.f32 0.0, %v7984
    %v7986 = vpop.f32.mrf.mxu0
    %7987 = vdwg.mxu0
    %v7988 = vsel %vm272, %v7766, 0.0
    %v7989 = vsel %vm272, %v7839, 0.0
    %v7990 = vadd.f32 %v7988, %v7989
    %v7991 = vsel %vm272, %v7912, 0.0
    %v7992 = vadd.f32 %v7990, %v7991
    %v7993 = vsel %vm272, %v7985, 0.0
    %v7994 = vadd.f32 %v7992, %v7993
    %v7995 = vadd.f32 %v4200, %v6204
    %v7996 = vadd.f32 %v4201, %v7994
    %v7998 = vlaneseq
    %v7999 = vshrl.u32 %v7998, 7
    %v8000 = vsub.s32 0, %v7999
    %v8001 = vrot.slane %v4211, %v8000
    %v8003 = vadd.f32 %v7995, %v8001
    %v8004 = vadd.f32 %v7996, %v8001
    %v8005 = vsel %vm272, %v8003, 0.0
    %8006 = vadd.xlane.f32.xlu0 %v8005
    %v8007 = vpop.xlane.xlu0 %8006
    %v8008 = vsel %vm272, %v8004, 0.0
    %8009 = vadd.xlane.f32.xlu0 %v8008
    %v8010 = vpop.xlane.xlu0 %8009
    %v8011 = vmul.f32 %v8007, %v279
    %v8012 = vmul.f32 %v8010, %v279
    %v8013 = vsub.f32 %v8003, %v8011
    %v8014 = vsub.f32 %v8004, %v8012
    %v8015 = vmul.f32 %v8013, %v8013
    %v8016 = vmul.f32 %v8014, %v8014
    %v8017 = vsel %vm272, %v8015, 0.0
    %8018 = vadd.xlane.f32.xlu0 %v8017
    %v8019 = vpop.xlane.xlu0 %8018
    %v8020 = vsel %vm272, %v8016, 0.0
    %8021 = vadd.xlane.f32.xlu0 %v8020
    %v8022 = vpop.xlane.xlu0 %8021
    %v8023 = vmul.f32 %v8019, %v279
    %v8024 = vmul.f32 %v8022, %v279
    %v8025 = vadd.f32 %v8023, 1e-06
    %v8026 = vadd.f32 %v8024, 1e-06
    %v8027 = vrsqrt.pop %v8025
    %v8028 = vrsqrt.pop %v8026
    %v8029 = vmul.f32 %v8013, %v8027
    %v8030 = vmul.f32 %v8014, %v8028
    %v8032 = vlaneseq
    %v8033 = vshrl.u32 %v8032, 7
    %v8034 = vsub.s32 0, %v8033
    %v8035 = vrot.slane %v4207, %v8034
    %v8037 = vmul.f32 %v8029, %v8035
    %v8038 = vmul.f32 %v8030, %v8035
    %v8040 = vlaneseq
    %v8041 = vshrl.u32 %v8040, 7
    %v8042 = vsub.s32 0, %v8041
    %v8043 = vrot.slane %v4209, %v8042
    %v8045 = vadd.f32 %v8037, %v8043
    %v8046 = vadd.f32 %v8038, %v8043
    %v8048 = vlaneseq
    %v8049 = vshrl.u32 %v8048, 7
    %v8050 = vsub.s32 0, %v8049
    %v8051 = vrot.slane %v4218, %v8050
    %v8054 = vsel %vm272, %v8045, 0
    %v8057 = vsel %vm272, %v8046, 0
    %8059 = vmatprep.subr.mxu0 0.0
    %8060 = vmatpush1.msra.mxu0 0.0
    %8061 = vmatprep.subr.mxu0 0.0
    %8062 = vmatpush1.msra.mxu0 0.0
    %8063 = vmatprep.subr.mxu0 0.0
    %8064 = vmatpush1.msra.mxu0 0.0
    %8065 = vmatprep.subr.mxu0 0.0
    %8066 = vmatpush1.msra.mxu0 0.0
    %8067 = vmatprep.subr.mxu0 0.0
    %8068 = vmatpush1.msra.mxu0 0.0
    %8069 = vmatprep.subr.mxu0 0.0
    %8070 = vmatpush1.msra.mxu0 0.0
    %8071 = vmatprep.subr.mxu0 0.0
    %8072 = vmatpush1.msra.mxu0 0.0
    %8073 = vmatprep.subr.mxu0 0.0
    %8074 = vmatpush1.msra.mxu0 0.0
    %8075 = vmatprep.subr.mxu0 0.0
    %8076 = vmatpush1.msra.mxu0 0.0
    %8077 = vmatprep.subr.mxu0 0.0
    %8078 = vmatpush1.msra.mxu0 0.0
    %8079 = vmatprep.subr.mxu0 0.0
    %8080 = vmatpush1.msra.mxu0 0.0
    %8081 = vmatprep.subr.mxu0 0.0
    %8082 = vmatpush1.msra.mxu0 0.0
    %8083 = vmatprep.subr.mxu0 0.0
    %8084 = vmatpush1.msra.mxu0 %v4216
    %8085 = vmatprep.subr.mxu0 0.0
    %8086 = vmatpush1.msra.mxu0 %v4215
    %8087 = vmatprep.subr.mxu0 0.0
    %8088 = vmatpush1.msra.mxu0 %v4214
    %8089 = vmatprep.subr.mxu0 0.0
    %8090 = vmatpush1.msra.mxu0 %v4213
    %8091 = vmatprep.subr.mxu0 0.0
    %8092 = vmatpush2.msra.mxu0 0.0
    %8093 = vmatprep.subr.mxu0 0.0
    %8094 = vmatpush2.msra.mxu0 0.0
    %8095 = vmatprep.subr.mxu0 0.0
    %8096 = vmatpush2.msra.mxu0 0.0
    %8097 = vmatprep.subr.mxu0 0.0
    %8098 = vmatpush2.msra.mxu0 0.0
    %8099 = vmatprep.subr.mxu0 0.0
    %8100 = vmatpush2.msra.mxu0 0.0
    %8101 = vmatprep.subr.mxu0 0.0
    %8102 = vmatpush2.msra.mxu0 0.0
    %8103 = vmatprep.subr.mxu0 0.0
    %8104 = vmatpush2.msra.mxu0 0.0
    %8105 = vmatprep.subr.mxu0 0.0
    %8106 = vmatpush2.msra.mxu0 0.0
    %8107 = vmatprep.subr.mxu0 0.0
    %8108 = vmatpush2.msra.mxu0 0.0
    %8109 = vmatprep.subr.mxu0 0.0
    %8110 = vmatpush2.msra.mxu0 0.0
    %8111 = vmatprep.subr.mxu0 0.0
    %8112 = vmatpush2.msra.mxu0 0.0
    %8113 = vmatprep.subr.mxu0 0.0
    %8114 = vmatpush2.msra.mxu0 0.0
    %8115 = vmatprep.subr.mxu0 0.0
    %8116 = vmatpush2.msra.mxu0 0.0
    %8117 = vmatprep.subr.mxu0 0.0
    %8118 = vmatpush2.msra.mxu0 0.0
    %8119 = vmatprep.subr.mxu0 0.0
    %8120 = vmatpush2.msra.mxu0 0.0
    %8121 = vmatprep.subr.mxu0 0.0
    %8122 = vmatpush2.msra.mxu0 0.0
    %8123 = vmatprep.mubr.f32.mxu0 0.0
    %8124 = vmatmul.mubr.f32.gmra.mxu0 %v8054
    %v8125 = vpop.f32.mrf.mxu0
    %v8126 = vadd.f32 %v8051, %v8125
    %v8127 = vpop.f32.mrf.mxu0
    %8128 = vmatprep.mubr.f32.mxu0 0.0
    %8129 = vmatmul.mubr.f32.gmra.mxu0 %v8057
    %v8130 = vpop.f32.mrf.mxu0
    %v8131 = vadd.f32 %v8051, %v8130
    %v8132 = vpop.f32.mrf.mxu0
    %8133 = vdwg.mxu0
    %v8134 = vmax.f32 %v8126, 0.0
    %v8135 = vmax.f32 %v8131, 0.0
    %v8137 = vsel %vm4110, %v8134, 0
    %v8140 = vsel %vm4110, %v8135, 0
    %8142 = vmatprep.subr.mxu0 0.0
    %8143 = vmatpush1.msra.mxu0 0.0
    %8144 = vmatprep.subr.mxu0 0.0
    %8145 = vmatpush1.msra.mxu0 0.0
    %8146 = vmatprep.subr.mxu0 0.0
    %8147 = vmatpush1.msra.mxu0 0.0
    %8148 = vmatprep.subr.mxu0 0.0
    %8149 = vmatpush1.msra.mxu0 0.0
    %8150 = vmatprep.subr.mxu0 0.0
    %8151 = vmatpush1.msra.mxu0 0.0
    %8152 = vmatprep.subr.mxu0 0.0
    %8153 = vmatpush1.msra.mxu0 0.0
    %8154 = vmatprep.subr.mxu0 0.0
    %8155 = vmatpush1.msra.mxu0 0.0
    %8156 = vmatprep.subr.mxu0 0.0
    %8157 = vmatpush1.msra.mxu0 0.0
    %8158 = vmatprep.subr.mxu0 0.0
    %8159 = vmatpush1.msra.mxu0 %v4227
    %8160 = vmatprep.subr.mxu0 0.0
    %8161 = vmatpush1.msra.mxu0 %v4226
    %8162 = vmatprep.subr.mxu0 0.0
    %8163 = vmatpush1.msra.mxu0 %v4225
    %8164 = vmatprep.subr.mxu0 0.0
    %8165 = vmatpush1.msra.mxu0 %v4224
    %8166 = vmatprep.subr.mxu0 0.0
    %8167 = vmatpush1.msra.mxu0 %v4223
    %8168 = vmatprep.subr.mxu0 0.0
    %8169 = vmatpush1.msra.mxu0 %v4222
    %8170 = vmatprep.subr.mxu0 0.0
    %8171 = vmatpush1.msra.mxu0 %v4221
    %8172 = vmatprep.subr.mxu0 0.0
    %8173 = vmatpush1.msra.mxu0 %v4220
    %8174 = vmatprep.subr.mxu0 0.0
    %8175 = vmatpush2.msra.mxu0 0.0
    %8176 = vmatprep.subr.mxu0 0.0
    %8177 = vmatpush2.msra.mxu0 0.0
    %8178 = vmatprep.subr.mxu0 0.0
    %8179 = vmatpush2.msra.mxu0 0.0
    %8180 = vmatprep.subr.mxu0 0.0
    %8181 = vmatpush2.msra.mxu0 0.0
    %8182 = vmatprep.subr.mxu0 0.0
    %8183 = vmatpush2.msra.mxu0 0.0
    %8184 = vmatprep.subr.mxu0 0.0
    %8185 = vmatpush2.msra.mxu0 0.0
    %8186 = vmatprep.subr.mxu0 0.0
    %8187 = vmatpush2.msra.mxu0 0.0
    %8188 = vmatprep.subr.mxu0 0.0
    %8189 = vmatpush2.msra.mxu0 0.0
    %8190 = vmatprep.subr.mxu0 0.0
    %8191 = vmatpush2.msra.mxu0 0.0
    %8192 = vmatprep.subr.mxu0 0.0
    %8193 = vmatpush2.msra.mxu0 0.0
    %8194 = vmatprep.subr.mxu0 0.0
    %8195 = vmatpush2.msra.mxu0 0.0
    %8196 = vmatprep.subr.mxu0 0.0
    %8197 = vmatpush2.msra.mxu0 0.0
    %8198 = vmatprep.subr.mxu0 0.0
    %8199 = vmatpush2.msra.mxu0 0.0
    %8200 = vmatprep.subr.mxu0 0.0
    %8201 = vmatpush2.msra.mxu0 0.0
    %8202 = vmatprep.subr.mxu0 0.0
    %8203 = vmatpush2.msra.mxu0 0.0
    %8204 = vmatprep.subr.mxu0 0.0
    %8205 = vmatpush2.msra.mxu0 0.0
    %8206 = vmatprep.mubr.f32.mxu0 0.0
    %8207 = vmatmul.mubr.f32.gmra.mxu0 %v8137
    %v8208 = vpop.f32.mrf.mxu0
    %v8209 = vadd.f32 0.0, %v8208
    %v8210 = vpop.f32.mrf.mxu0
    %8211 = vmatprep.mubr.f32.mxu0 0.0
    %8212 = vmatmul.mubr.f32.gmra.mxu0 %v8140
    %v8213 = vpop.f32.mrf.mxu0
    %v8214 = vadd.f32 0.0, %v8213
    %v8215 = vpop.f32.mrf.mxu0
    %8216 = vdwg.mxu0
    %v8217 = vadd.f32 %v8003, %v8209
    %v8218 = vadd.f32 %v8004, %v8214
    %v8220 = vlaneseq
    %v8221 = vshrl.u32 %v8220, 7
    %v8222 = vsub.s32 0, %v8221
    %v8223 = vrot.slane %v4229, %v8222
    %v8225 = vadd.f32 %v8217, %v8223
    %v8226 = vadd.f32 %v8218, %v8223
    %v8227 = vld [vmem:[%s20] sm:$0x1]
    %v8228 = vld [vmem:[%s21] sm:$0x1]
    %v8229 = vsel %vm272, %v8225, 0.0
    %8230 = vadd.xlane.f32.xlu0 %v8229
    %v8231 = vpop.xlane.xlu0 %8230
    %v8232 = vsel %vm272, %v8226, 0.0
    %8233 = vadd.xlane.f32.xlu0 %v8232
    %v8234 = vpop.xlane.xlu0 %8233
    %v8235 = vmul.f32 %v8231, %v279
    %v8236 = vmul.f32 %v8234, %v279
    %v8237 = vsub.f32 %v8225, %v8235
    %v8238 = vsub.f32 %v8226, %v8236
    %v8239 = vmul.f32 %v8237, %v8237
    %v8240 = vmul.f32 %v8238, %v8238
    %v8241 = vsel %vm272, %v8239, 0.0
    %8242 = vadd.xlane.f32.xlu0 %v8241
    %v8243 = vpop.xlane.xlu0 %8242
    %v8244 = vsel %vm272, %v8240, 0.0
    %8245 = vadd.xlane.f32.xlu0 %v8244
    %v8246 = vpop.xlane.xlu0 %8245
    %v8247 = vmul.f32 %v8243, %v279
    %v8248 = vmul.f32 %v8246, %v279
    %v8249 = vadd.f32 %v8247, 1e-06
    %v8250 = vadd.f32 %v8248, 1e-06
    %v8251 = vrsqrt.pop %v8249
    %v8252 = vrsqrt.pop %v8250
    %v8253 = vmul.f32 %v8237, %v8251
    %v8254 = vmul.f32 %v8238, %v8252
    %v8256 = vlaneseq
    %v8257 = vshrl.u32 %v8256, 7
    %v8258 = vsub.s32 0, %v8257
    %v8259 = vrot.slane %v8227, %v8258
    %v8261 = vmul.f32 %v8253, %v8259
    %v8262 = vmul.f32 %v8254, %v8259
    %v8264 = vlaneseq
    %v8265 = vshrl.u32 %v8264, 7
    %v8266 = vsub.s32 0, %v8265
    %v8267 = vrot.slane %v8228, %v8266
    %v8269 = vadd.f32 %v8261, %v8267
    %v8270 = vadd.f32 %v8262, %v8267
    %8271 = vst.msk [vmem:[#allocation2] sm:$0xff] %vm272, %v8269
    %8272 = vst.msk [vmem:[#allocation2 + $0x8] sm:$0xff] %vm272, %v8270
    // Predicated region
    $region90: #{tpu_custom_call.1} parent=1 // pred_check
      _
    $region91: #{tpu_custom_call.1} parent=1 // pred_check_branch
      %8274 = sbr.rel (0) target = $region93
    $region92: #{tpu_custom_call.1} parent=1 // pred_region
      %s8276 = ssub.s32 256, 256
      %8277 = vsyncadd [#allocation3], %s8276
      %s8278 = sshll.u32 [#allocation2], 4
      %s8279 = int_to_ptr.vmem [resolvable:$true] %s8278
      %8284 = dma.vmem_to_hbm [thread:$0]  %s8279, 256, %s22, [#allocation3], 128, 128, 8
    $region93: #{tpu_custom_call.1} parent=1 // pred_fallthru
      _
    // Predicated region
    $region94: #{tpu_custom_call.1} parent=1 // pred_check
      _
    $region95: #{tpu_custom_call.1} parent=1 // pred_check_branch
      %8286 = sbr.rel (0) target = $region97
    $region96: #{tpu_custom_call.1} parent=1 // pred_region
      %8287 = dma.done [#allocation3], 256
    $region97: #{tpu_custom_call.1} parent=1 // pred_fallthru
      _
    %8288 = vsyncpa [#allocation3], 1

</llo_original>
